<compile_context>
chip_gen: v5e
topology: v5e:2x2
jax: 0.10.0
libtpu: 0.0.40
codegen_flags: <defaults>
</compile_context>

<pallas_src>
import jax
import jax.numpy as jnp
from jax.experimental import pallas as pl
from jax.experimental.pallas import tpu as pltpu


def _round_up(x, m):
    return ((x + m - 1) // m) * m


def _pad_axis(x, target, axis):
    pad = target - x.shape[axis]
    if pad <= 0:
        return x
    widths = [(0, 0)] * x.ndim
    widths[axis] = (0, pad)
    return jnp.pad(x, widths)


# Source params use PyTorch/DGL gate order (i, f, g, o); we pack columns as [i | f | o | g]
# so the three sigmoid gates are one contiguous slab in the kernel.
_GATE_COL_ORDER = (0, 1, 3, 2)


def _pack_gate_weights(w, rows_pad, h_pad):
    """(4, R, H) per-gate params -> (rows_pad, 4*h_pad), column slabs ordered [i|f|o|g]."""
    _, r, h = w.shape
    out = jnp.zeros((rows_pad, 4 * h_pad), w.dtype)
    for slab, g in enumerate(_GATE_COL_ORDER):
        out = out.at[:r, slab * h_pad:slab * h_pad + h].set(w[g])
    return out


def _make_fused_graphsage_kernel(n_layers, k_steps, n_nodes, cp):
    """One grid step == one SAGEConv('lstm') layer over ALL nodes."""

    def kernel(feat_ref, w_ih_ref, w_hh_ref, b_ref, w_cat_ref, bias_ref, mask_ref,
               out_ref, h_buf, xproj_ref):
        layer = pl.program_id(0)

        # Layer 0: load the (wrap-padded) input features into the persistent activation
        # scratch.  Rows [n_nodes : n_nodes+K] replicate rows [0:K] so every circulant
        # neighbor "gather" below is a single shifted window read.
        @pl.when(layer == 0)
        def _():
            h_buf[...] = feat_ref[...]

        w_ih = w_ih_ref[0]        # (cp, 4*cp)   bf16, gate-fused
        w_hh = w_hh_ref[0]        # (cp, 4*cp)   bf16, gate-fused
        b_lstm = b_ref[0]         # (1, 4*cp)    f32

        # --- in-kernel neighbor gather (K shifted windows of h) + ONE batched,
        #     gate-fused input projection for all K timesteps (bias added once). -------
        m_all = jnp.concatenate(
            [h_buf[pl.ds(t + 1, n_nodes), :] for t in range(k_steps)], axis=0)
        xproj_ref[...] = (
            jnp.dot(m_all.astype(jnp.bfloat16), w_ih,
                    preferred_element_type=jnp.float32)
            + b_lstm)

        # --- serial LSTM recurrence over the K ordered neighbor messages
        #     (DGL '_lstm_reducer'); only h_{t-1} @ W_hh is on the dependency chain. ----
        h_t = jnp.zeros((n_nodes, cp), jnp.float32)
        c_t = jnp.zeros((n_nodes, cp), jnp.float32)
        for t in range(k_steps):                               # static unroll, K small
            gates = (xproj_ref[pl.ds(t * n_nodes, n_nodes), :]
                     + jnp.dot(h_t.astype(jnp.bfloat16), w_hh,
                               preferred_element_type=jnp.float32))
            # Gates packed [i|f|o|g]: 3 sigmoids as ONE tanh slab (sigmoid via tanh
            # identity -> single EUP pass), one tanh for g.  All f32 (v5e-safe).
            sig = 0.5 * jnp.tanh(0.5 * gates[:, :3 * cp]) + 0.5
            i_g = sig[:, 0 * cp:1 * cp]
            f_g = sig[:, 1 * cp:2 * cp]
            o_g = sig[:, 2 * cp:3 * cp]
            g_g = jnp.tanh(gates[:, 3 * cp:4 * cp])
            c_t = f_g * c_t + i_g * g_g
            h_t = o_g * jnp.tanh(c_t)

        # --- fused output projection: [h_self | h_neigh] @ [W_self; W_neigh] + bias ----
        h_cat = jnp.concatenate(
            [h_buf[pl.ds(0, n_nodes), :].astype(jnp.bfloat16),
             h_t.astype(jnp.bfloat16)], axis=1)                # (n, 2*cp)
        out = (jnp.dot(h_cat, w_cat_ref[0], preferred_element_type=jnp.float32)
               + bias_ref[0])

        # --- per-layer epilogue ---------------------------------------------------------
        @pl.when(layer < n_layers - 1)
        def _():
            act = jnp.maximum(out, 0.0) * mask_ref[0]          # relu + inverted dropout
            h_buf[pl.ds(0, n_nodes), :] = act
            h_buf[pl.ds(n_nodes, k_steps), :] = act[:k_steps, :]   # refresh wrap rows

        @pl.when(layer == n_layers - 1)
        def _():
            out_ref[...] = (0.5 * jnp.tanh(0.5 * out) + 0.5).astype(out_ref.dtype)

    return kernel


def graphsage_lstm_forward(feat, layer_params, hidden_dropout_masks, *, k_neighbors):
    """Fused 4-layer GraphSAGE ('lstm' aggregator) forward on the circulant digraph."""
    n, d0 = feat.shape
    k = k_neighbors
    n_layers = len(layer_params)
    assert n % 8 == 0, "node count must be sublane-aligned for the fused kernel"

    dims_in = [p["w_self"].shape[0] for p in layer_params]
    dims_out = [p["w_self"].shape[1] for p in layer_params]
    assert dims_in[0] == d0
    cp = _round_up(max(dims_in + dims_out), 128)   # common padded channel width (lane-dense)

    w_ih_all, w_hh_all, b_all, w_cat_all, bias_all, mask_all = [], [], [], [], [], []
    for li, p in enumerate(layer_params):
        din, dout = dims_in[li], dims_out[li]
        w_ih_all.append(_pack_gate_weights(p["w_ih"], cp, cp).astype(jnp.bfloat16))
        w_hh_all.append(_pack_gate_weights(p["w_hh"], cp, cp).astype(jnp.bfloat16))
        b_all.append(_pack_gate_weights(p["b_lstm"], 1, cp).astype(jnp.float32))
        wc = jnp.zeros((2 * cp, cp), jnp.float32)              # stacked [W_self; W_neigh]
        wc = wc.at[:din, :dout].set(p["w_self"])
        wc = wc.at[cp:cp + din, :dout].set(p["w_neigh"])
        w_cat_all.append(wc.astype(jnp.bfloat16))
        bias_all.append(_pad_axis(p["bias"], cp, 1).astype(jnp.float32))
        if li < n_layers - 1:
            mask_all.append(_pad_axis(hidden_dropout_masks[li], cp, 1).astype(jnp.float32))
        else:
            mask_all.append(jnp.ones((n, cp), jnp.float32))    # no dropout after last layer

    w_ih_all = jnp.stack(w_ih_all)     # (L, cp, 4*cp) bf16
    w_hh_all = jnp.stack(w_hh_all)     # (L, cp, 4*cp) bf16
    b_all = jnp.stack(b_all)           # (L, 1, 4*cp)  f32
    w_cat_all = jnp.stack(w_cat_all)   # (L, 2*cp, cp) bf16
    bias_all = jnp.stack(bias_all)     # (L, 1, cp)    f32
    mask_all = jnp.stack(mask_all)     # (L, n, cp)    f32

    feat_p = _pad_axis(feat, cp, 1).astype(jnp.float32)
    feat_wrap = jnp.concatenate([feat_p, feat_p[:k]], axis=0)  # (n + k, cp) wrap-padded

    kernel = _make_fused_graphsage_kernel(n_layers, k, n, cp)
    out = pl.pallas_call(
        kernel,
        out_shape=jax.ShapeDtypeStruct((n, cp), jnp.float32),
        grid=(n_layers,),
        in_specs=[
            pl.BlockSpec((n + k, cp), lambda l: (0, 0)),           # input features (fetched once)
            pl.BlockSpec((1, cp, 4 * cp), lambda l: (l, 0, 0)),    # W_ih per layer
            pl.BlockSpec((1, cp, 4 * cp), lambda l: (l, 0, 0)),    # W_hh per layer
            pl.BlockSpec((1, 1, 4 * cp), lambda l: (l, 0, 0)),     # LSTM bias per layer
            pl.BlockSpec((1, 2 * cp, cp), lambda l: (l, 0, 0)),    # [W_self; W_neigh] per layer
            pl.BlockSpec((1, 1, cp), lambda l: (l, 0, 0)),         # output bias per layer
            pl.BlockSpec((1, n, cp), lambda l: (l, 0, 0)),         # dropout mask per layer
        ],
        out_specs=pl.BlockSpec((n, cp), lambda l: (0, 0)),
        scratch_shapes=[
            pltpu.VMEM((n + k, cp), jnp.float32),                  # persistent node activations
            pltpu.VMEM((k * n, 4 * cp), jnp.float32),              # batched input projection
        ],
        compiler_params=pltpu.CompilerParams(
            dimension_semantics=("arbitrary",),                    # layers are sequential
            vmem_limit_bytes=32 * 1024 * 1024),
    )(feat_wrap, w_ih_all, w_hh_all, b_all, w_cat_all, bias_all, mask_all)
    return out[:, :dims_out[-1]]


def init_sage_params(key, d_in, d_out):
    """Deterministic synthetic parameters for SAGEConv(d_in, d_out, 'lstm')."""
    ks = jax.random.split(key, 8)
    s = 1.0 / float(jnp.sqrt(d_in))
    w_ih = jax.random.uniform(ks[0], (4, d_in, d_in), jnp.float32, -s, s)   # gates i,f,g,o
    w_hh = jax.random.uniform(ks[1], (4, d_in, d_in), jnp.float32, -s, s)
    b_ih = jax.random.uniform(ks[2], (4, 1, d_in), jnp.float32, -s, s)
    b_hh = jax.random.uniform(ks[3], (4, 1, d_in), jnp.float32, -s, s)
    w_self = jax.random.uniform(ks[4], (d_in, d_out), jnp.float32, -s, s)
    w_neigh = jax.random.uniform(ks[5], (d_in, d_out), jnp.float32, -s, s)
    bias = jnp.zeros((1, d_out), jnp.float32)
    return {"w_ih": w_ih, "w_hh": w_hh, "b_lstm": b_ih + b_hh,
            "w_self": w_self, "w_neigh": w_neigh, "bias": bias}


if __name__ == "__main__":
    N, K = 256, 4                # nodes, fixed in-degree
    in_feats, h_feats = 16, 32   # GraphSAGE(in_feats, h_feats); conv2 output dim is 100

    root = jax.random.PRNGKey(0)
    k_feat, k_p1, k_p2, k_p3, k_p4, k_d1, k_d2, k_d3 = jax.random.split(root, 8)

    feat = jax.random.normal(k_feat, (N, in_feats), jnp.float32)

    # Synthetic regular digraph: node i receives ordered messages from (i+1..i+K) mod N.
    # TODO(synk): original builds the graph via networkx + dgl.from_networkx; the circulant
    # structure lets the in-kernel gather be K shifted window reads of h.  An arbitrary graph
    # (and degree < K) would need a scalar-prefetched neighbor table + per-row DMA gather and
    # per-timestep masking instead.
    p1 = init_sage_params(k_p1, in_feats, h_feats)   # conv1: in_feats -> h_feats
    p2 = init_sage_params(k_p2, h_feats, 100)        # conv2: h_feats  -> 100
    p3 = init_sage_params(k_p3, 100, h_feats)        # conv3: 100      -> h_feats
    p4 = init_sage_params(k_p4, h_feats, 1)          # conv4: h_feats  -> 1

    def dropout_mask(key, shape, p=0.5):
        keep = jax.random.bernoulli(key, 1.0 - p, shape)
        return keep.astype(jnp.float32) / (1.0 - p)

    m1 = dropout_mask(k_d1, (N, h_feats))
    m2 = dropout_mask(k_d2, (N, 100))
    m3 = dropout_mask(k_d3, (N, h_feats))

    @jax.jit
    def forward(feat, m1, m2, m3):
        # conv1+relu+drop -> conv2+relu+drop -> conv3+relu+drop -> conv4+sigmoid,
        # all inside one fused pallas_call (grid iterates over the 4 layers).
        return graphsage_lstm_forward(feat, [p1, p2, p3, p4], [m1, m2, m3], k_neighbors=K)

    out = jax.block_until_ready(forward(feat, m1, m2, m3))
    assert out.shape == (N, 1) and out.dtype == jnp.float32
    assert bool(jnp.all(jnp.isfinite(out)))
    print("KERNEL_OK")
</pallas_src>

<mosaic_0001>
module attributes {stable_mosaic.version = 11 : i64} {
  func.func @kernel(%arg0: i32, %arg1: memref<260x128xf32, #tpu.memory_space<vmem>>, %arg2: memref<1x128x512xbf16, #tpu.memory_space<vmem>>, %arg3: memref<1x128x512xbf16, #tpu.memory_space<vmem>>, %arg4: memref<1x1x512xf32, #tpu.memory_space<vmem>>, %arg5: memref<1x256x128xbf16, #tpu.memory_space<vmem>>, %arg6: memref<1x1x128xf32, #tpu.memory_space<vmem>>, %arg7: memref<1x256x128xf32, #tpu.memory_space<vmem>>, %arg8: memref<256x128xf32, #tpu.memory_space<vmem>>, %arg9: memref<260x128xf32, #tpu.memory_space<vmem>>, %arg10: memref<1024x512xf32, #tpu.memory_space<vmem>>) attributes {dimension_semantics = [#tpu.dimension_semantics<arbitrary>], iteration_bounds = array<i64: 4>, scalar_prefetch = 0 : i64, scratch_operands = 2 : i64, tpu.core_type = #tpu.core_type<tc>, window_params = [{pipeline_mode = #tpu.pipeline_mode<synchronous>, transform_indices = @transform_0, window_bounds = array<i64: 260, 128>}, {transform_indices = @transform_1, window_bounds = array<i64: 1, 128, 512>}, {transform_indices = @transform_2, window_bounds = array<i64: 1, 128, 512>}, {transform_indices = @transform_3, window_bounds = array<i64: 1, 1, 512>}, {transform_indices = @transform_4, window_bounds = array<i64: 1, 256, 128>}, {transform_indices = @transform_5, window_bounds = array<i64: 1, 1, 128>}, {transform_indices = @transform_6, window_bounds = array<i64: 1, 256, 128>}, {pipeline_mode = #tpu.pipeline_mode<synchronous>, transform_indices = @transform_7, window_bounds = array<i64: 256, 128>}]} {
    %c0_i32 = arith.constant 0 : i32
    %0 = arith.cmpi eq, %arg0, %c0_i32 : i32
    %1 = arith.extui %0 : i1 to i32
    %c0_i32_0 = arith.constant 0 : i32
    %2 = arith.cmpi ne, %1, %c0_i32_0 : i32
    scf.if %2 {
      %c0_50 = arith.constant 0 : index
      %c0_51 = arith.constant 0 : index
      %126 = vector.load %arg1[%c0_50, %c0_51] : memref<260x128xf32, #tpu.memory_space<vmem>>, vector<260x128xf32>
      %c0_52 = arith.constant 0 : index
      %c0_53 = arith.constant 0 : index
      %127 = vector.load %arg9[%c0_52, %c0_53] : memref<260x128xf32, #tpu.memory_space<vmem>>, vector<260x128xf32>
      tpu.vector_store %arg9[%c0_52, %c0_53], %126 {strides = array<i32>} : memref<260x128xf32, #tpu.memory_space<vmem>>, vector<260x128xf32>,
    } else {
    }
    %c0 = arith.constant 0 : index
    %c0_1 = arith.constant 0 : index
    %c0_2 = arith.constant 0 : index
    %3 = vector.load %arg2[%c0, %c0_1, %c0_2] : memref<1x128x512xbf16, #tpu.memory_space<vmem>>, vector<1x128x512xbf16>
    %4 = vector.shape_cast %3 : vector<1x128x512xbf16> to vector<128x512xbf16>
    %c0_3 = arith.constant 0 : index
    %c0_4 = arith.constant 0 : index
    %c0_5 = arith.constant 0 : index
    %5 = vector.load %arg3[%c0_3, %c0_4, %c0_5] : memref<1x128x512xbf16, #tpu.memory_space<vmem>>, vector<1x128x512xbf16>
    %6 = vector.shape_cast %5 : vector<1x128x512xbf16> to vector<128x512xbf16>
    %c0_6 = arith.constant 0 : index
    %c0_7 = arith.constant 0 : index
    %c0_8 = arith.constant 0 : index
    %7 = vector.load %arg4[%c0_6, %c0_7, %c0_8] : memref<1x1x512xf32, #tpu.memory_space<vmem>>, vector<1x1x512xf32>
    %8 = vector.shape_cast %7 : vector<1x1x512xf32> to vector<1x512xf32>
    %c1 = arith.constant 1 : index
    %c0_9 = arith.constant 0 : index
    %9 = vector.load %arg9[%c1, %c0_9] : memref<260x128xf32, #tpu.memory_space<vmem>>, vector<256x128xf32>
    %c2 = arith.constant 2 : index
    %c0_10 = arith.constant 0 : index
    %10 = vector.load %arg9[%c2, %c0_10] : memref<260x128xf32, #tpu.memory_space<vmem>>, vector<256x128xf32>
    %c3 = arith.constant 3 : index
    %c0_11 = arith.constant 0 : index
    %11 = vector.load %arg9[%c3, %c0_11] : memref<260x128xf32, #tpu.memory_space<vmem>>, vector<256x128xf32>
    %c4 = arith.constant 4 : index
    %c0_12 = arith.constant 0 : index
    %12 = vector.load %arg9[%c4, %c0_12] : memref<260x128xf32, #tpu.memory_space<vmem>>, vector<256x128xf32>
    %13 = tpu.concatenate %9, %10, %11, %12 in 0 : vector<256x128xf32>, vector<256x128xf32>, vector<256x128xf32>, vector<256x128xf32> -> vector<1024x128xf32>
    %14 = arith.truncf %13 : vector<1024x128xf32> to vector<1024x128xbf16>
    %cst = arith.constant dense<0.000000e+00> : vector<1024x512xf32>
    %15 = tpu.matmul %14, %4, %cst {dimension_numbers = #tpu.dot_dimension_numbers<[1], [0], [0], [1], [0, 0, 1, 1], [], []>} : vector<1024x128xbf16>, vector<128x512xbf16>, vector<1024x512xf32> -> vector<1024x512xf32>
    %16 = vector.broadcast %8 : vector<1x512xf32> to vector<1024x512xf32>
    %17 = arith.addf %15, %16 : vector<1024x512xf32>
    %c0_13 = arith.constant 0 : index
    %c0_14 = arith.constant 0 : index
    %18 = vector.load %arg10[%c0_13, %c0_14] : memref<1024x512xf32, #tpu.memory_space<vmem>>, vector<1024x512xf32>
    tpu.vector_store %arg10[%c0_13, %c0_14], %17 {strides = array<i32>} : memref<1024x512xf32, #tpu.memory_space<vmem>>, vector<1024x512xf32>,
    %cst_15 = arith.constant 0.000000e+00 : f32
    %19 = vector.broadcast %cst_15 : f32 to vector<256x128xf32>
    %cst_16 = arith.constant 0.000000e+00 : f32
    %20 = vector.broadcast %cst_16 : f32 to vector<256x128xf32>
    %c0_17 = arith.constant 0 : index
    %c0_18 = arith.constant 0 : index
    %21 = vector.load %arg10[%c0_17, %c0_18] : memref<1024x512xf32, #tpu.memory_space<vmem>>, vector<256x512xf32>
    %22 = arith.truncf %19 : vector<256x128xf32> to vector<256x128xbf16>
    %cst_19 = arith.constant dense<0.000000e+00> : vector<256x512xf32>
    %23 = tpu.matmul %22, %6, %cst_19 {dimension_numbers = #tpu.dot_dimension_numbers<[1], [0], [0], [1], [0, 0, 1, 1], [], []>} : vector<256x128xbf16>, vector<128x512xbf16>, vector<256x512xf32> -> vector<256x512xf32>
    %24 = arith.addf %21, %23 : vector<256x512xf32>
    %25 = vector.extract_strided_slice %24 {offsets = [0, 0], sizes = [256, 384], strides = [1, 1]} : vector<256x512xf32> to vector<256x384xf32>
    %cst_20 = arith.constant 5.000000e-01 : f32
    %26 = vector.broadcast %cst_20 : f32 to vector<256x384xf32>
    %27 = arith.mulf %26, %25 : vector<256x384xf32>
    %28 = math.tanh %27 : vector<256x384xf32>
    %cst_21 = arith.constant 5.000000e-01 : f32
    %29 = vector.broadcast %cst_21 : f32 to vector<256x384xf32>
    %30 = arith.mulf %29, %28 : vector<256x384xf32>
    %cst_22 = arith.constant 5.000000e-01 : f32
    %31 = vector.broadcast %cst_22 : f32 to vector<256x384xf32>
    %32 = arith.addf %30, %31 : vector<256x384xf32>
    %33 = vector.extract_strided_slice %32 {offsets = [0, 0], sizes = [256, 128], strides = [1, 1]} : vector<256x384xf32> to vector<256x128xf32>
    %34 = vector.extract_strided_slice %32 {offsets = [0, 128], sizes = [256, 128], strides = [1, 1]} : vector<256x384xf32> to vector<256x128xf32>
    %35 = vector.extract_strided_slice %32 {offsets = [0, 256], sizes = [256, 128], strides = [1, 1]} : vector<256x384xf32> to vector<256x128xf32>
    %36 = vector.extract_strided_slice %24 {offsets = [0, 384], sizes = [256, 128], strides = [1, 1]} : vector<256x512xf32> to vector<256x128xf32>
    %37 = math.tanh %36 : vector<256x128xf32>
    %38 = arith.mulf %34, %20 : vector<256x128xf32>
    %39 = arith.mulf %33, %37 : vector<256x128xf32>
    %40 = arith.addf %38, %39 : vector<256x128xf32>
    %41 = math.tanh %40 : vector<256x128xf32>
    %42 = arith.mulf %35, %41 : vector<256x128xf32>
    %c256 = arith.constant 256 : index
    %c0_23 = arith.constant 0 : index
    %43 = vector.load %arg10[%c256, %c0_23] : memref<1024x512xf32, #tpu.memory_space<vmem>>, vector<256x512xf32>
    %44 = arith.truncf %42 : vector<256x128xf32> to vector<256x128xbf16>
    %cst_24 = arith.constant dense<0.000000e+00> : vector<256x512xf32>
    %45 = tpu.matmul %44, %6, %cst_24 {dimension_numbers = #tpu.dot_dimension_numbers<[1], [0], [0], [1], [0, 0, 1, 1], [], []>} : vector<256x128xbf16>, vector<128x512xbf16>, vector<256x512xf32> -> vector<256x512xf32>
    %46 = arith.addf %43, %45 : vector<256x512xf32>
    %47 = vector.extract_strided_slice %46 {offsets = [0, 0], sizes = [256, 384], strides = [1, 1]} : vector<256x512xf32> to vector<256x384xf32>
    %cst_25 = arith.constant 5.000000e-01 : f32
    %48 = vector.broadcast %cst_25 : f32 to vector<256x384xf32>
    %49 = arith.mulf %48, %47 : vector<256x384xf32>
    %50 = math.tanh %49 : vector<256x384xf32>
    %cst_26 = arith.constant 5.000000e-01 : f32
    %51 = vector.broadcast %cst_26 : f32 to vector<256x384xf32>
    %52 = arith.mulf %51, %50 : vector<256x384xf32>
    %cst_27 = arith.constant 5.000000e-01 : f32
    %53 = vector.broadcast %cst_27 : f32 to vector<256x384xf32>
    %54 = arith.addf %52, %53 : vector<256x384xf32>
    %55 = vector.extract_strided_slice %54 {offsets = [0, 0], sizes = [256, 128], strides = [1, 1]} : vector<256x384xf32> to vector<256x128xf32>
    %56 = vector.extract_strided_slice %54 {offsets = [0, 128], sizes = [256, 128], strides = [1, 1]} : vector<256x384xf32> to vector<256x128xf32>
    %57 = vector.extract_strided_slice %54 {offsets = [0, 256], sizes = [256, 128], strides = [1, 1]} : vector<256x384xf32> to vector<256x128xf32>
    %58 = vector.extract_strided_slice %46 {offsets = [0, 384], sizes = [256, 128], strides = [1, 1]} : vector<256x512xf32> to vector<256x128xf32>
    %59 = math.tanh %58 : vector<256x128xf32>
    %60 = arith.mulf %56, %40 : vector<256x128xf32>
    %61 = arith.mulf %55, %59 : vector<256x128xf32>
    %62 = arith.addf %60, %61 : vector<256x128xf32>
    %63 = math.tanh %62 : vector<256x128xf32>
    %64 = arith.mulf %57, %63 : vector<256x128xf32>
    %c512 = arith.constant 512 : index
    %c0_28 = arith.constant 0 : index
    %65 = vector.load %arg10[%c512, %c0_28] : memref<1024x512xf32, #tpu.memory_space<vmem>>, vector<256x512xf32>
    %66 = arith.truncf %64 : vector<256x128xf32> to vector<256x128xbf16>
    %cst_29 = arith.constant dense<0.000000e+00> : vector<256x512xf32>
    %67 = tpu.matmul %66, %6, %cst_29 {dimension_numbers = #tpu.dot_dimension_numbers<[1], [0], [0], [1], [0, 0, 1, 1], [], []>} : vector<256x128xbf16>, vector<128x512xbf16>, vector<256x512xf32> -> vector<256x512xf32>
    %68 = arith.addf %65, %67 : vector<256x512xf32>
    %69 = vector.extract_strided_slice %68 {offsets = [0, 0], sizes = [256, 384], strides = [1, 1]} : vector<256x512xf32> to vector<256x384xf32>
    %cst_30 = arith.constant 5.000000e-01 : f32
    %70 = vector.broadcast %cst_30 : f32 to vector<256x384xf32>
    %71 = arith.mulf %70, %69 : vector<256x384xf32>
    %72 = math.tanh %71 : vector<256x384xf32>
    %cst_31 = arith.constant 5.000000e-01 : f32
    %73 = vector.broadcast %cst_31 : f32 to vector<256x384xf32>
    %74 = arith.mulf %73, %72 : vector<256x384xf32>
    %cst_32 = arith.constant 5.000000e-01 : f32
    %75 = vector.broadcast %cst_32 : f32 to vector<256x384xf32>
    %76 = arith.addf %74, %75 : vector<256x384xf32>
    %77 = vector.extract_strided_slice %76 {offsets = [0, 0], sizes = [256, 128], strides = [1, 1]} : vector<256x384xf32> to vector<256x128xf32>
    %78 = vector.extract_strided_slice %76 {offsets = [0, 128], sizes = [256, 128], strides = [1, 1]} : vector<256x384xf32> to vector<256x128xf32>
    %79 = vector.extract_strided_slice %76 {offsets = [0, 256], sizes = [256, 128], strides = [1, 1]} : vector<256x384xf32> to vector<256x128xf32>
    %80 = vector.extract_strided_slice %68 {offsets = [0, 384], sizes = [256, 128], strides = [1, 1]} : vector<256x512xf32> to vector<256x128xf32>
    %81 = math.tanh %80 : vector<256x128xf32>
    %82 = arith.mulf %78, %62 : vector<256x128xf32>
    %83 = arith.mulf %77, %81 : vector<256x128xf32>
    %84 = arith.addf %82, %83 : vector<256x128xf32>
    %85 = math.tanh %84 : vector<256x128xf32>
    %86 = arith.mulf %79, %85 : vector<256x128xf32>
    %c768 = arith.constant 768 : index
    %c0_33 = arith.constant 0 : index
    %87 = vector.load %arg10[%c768, %c0_33] : memref<1024x512xf32, #tpu.memory_space<vmem>>, vector<256x512xf32>
    %88 = arith.truncf %86 : vector<256x128xf32> to vector<256x128xbf16>
    %cst_34 = arith.constant dense<0.000000e+00> : vector<256x512xf32>
    %89 = tpu.matmul %88, %6, %cst_34 {dimension_numbers = #tpu.dot_dimension_numbers<[1], [0], [0], [1], [0, 0, 1, 1], [], []>} : vector<256x128xbf16>, vector<128x512xbf16>, vector<256x512xf32> -> vector<256x512xf32>
    %90 = arith.addf %87, %89 : vector<256x512xf32>
    %91 = vector.extract_strided_slice %90 {offsets = [0, 0], sizes = [256, 384], strides = [1, 1]} : vector<256x512xf32> to vector<256x384xf32>
    %cst_35 = arith.constant 5.000000e-01 : f32
    %92 = vector.broadcast %cst_35 : f32 to vector<256x384xf32>
    %93 = arith.mulf %92, %91 : vector<256x384xf32>
    %94 = math.tanh %93 : vector<256x384xf32>
    %cst_36 = arith.constant 5.000000e-01 : f32
    %95 = vector.broadcast %cst_36 : f32 to vector<256x384xf32>
    %96 = arith.mulf %95, %94 : vector<256x384xf32>
    %cst_37 = arith.constant 5.000000e-01 : f32
    %97 = vector.broadcast %cst_37 : f32 to vector<256x384xf32>
    %98 = arith.addf %96, %97 : vector<256x384xf32>
    %99 = vector.extract_strided_slice %98 {offsets = [0, 0], sizes = [256, 128], strides = [1, 1]} : vector<256x384xf32> to vector<256x128xf32>
    %100 = vector.extract_strided_slice %98 {offsets = [0, 128], sizes = [256, 128], strides = [1, 1]} : vector<256x384xf32> to vector<256x128xf32>
    %101 = vector.extract_strided_slice %98 {offsets = [0, 256], sizes = [256, 128], strides = [1, 1]} : vector<256x384xf32> to vector<256x128xf32>
    %102 = vector.extract_strided_slice %90 {offsets = [0, 384], sizes = [256, 128], strides = [1, 1]} : vector<256x512xf32> to vector<256x128xf32>
    %103 = math.tanh %102 : vector<256x128xf32>
    %104 = arith.mulf %100, %84 : vector<256x128xf32>
    %105 = arith.mulf %99, %103 : vector<256x128xf32>
    %106 = arith.addf %104, %105 : vector<256x128xf32>
    %107 = math.tanh %106 : vector<256x128xf32>
    %108 = arith.mulf %101, %107 : vector<256x128xf32>
    %c0_38 = arith.constant 0 : index
    %c0_39 = arith.constant 0 : index
    %109 = vector.load %arg9[%c0_38, %c0_39] : memref<260x128xf32, #tpu.memory_space<vmem>>, vector<256x128xf32>
    %110 = arith.truncf %109 : vector<256x128xf32> to vector<256x128xbf16>
    %111 = arith.truncf %108 : vector<256x128xf32> to vector<256x128xbf16>
    %112 = tpu.concatenate %110, %111 in 1 : vector<256x128xbf16>, vector<256x128xbf16> -> vector<256x256xbf16>
    %c0_40 = arith.constant 0 : index
    %c0_41 = arith.constant 0 : index
    %c0_42 = arith.constant 0 : index
    %113 = vector.load %arg5[%c0_40, %c0_41, %c0_42] : memref<1x256x128xbf16, #tpu.memory_space<vmem>>, vector<1x256x128xbf16>
    %114 = vector.shape_cast %113 : vector<1x256x128xbf16> to vector<256x128xbf16>
    %cst_43 = arith.constant dense<0.000000e+00> : vector<256x128xf32>
    %115 = tpu.matmul %112, %114, %cst_43 {dimension_numbers = #tpu.dot_dimension_numbers<[1], [0], [0], [1], [0, 0, 1, 1], [], []>} : vector<256x256xbf16>, vector<256x128xbf16>, vector<256x128xf32> -> vector<256x128xf32>
    %c0_44 = arith.constant 0 : index
    %c0_45 = arith.constant 0 : index
    %c0_46 = arith.constant 0 : index
    %116 = vector.load %arg6[%c0_44, %c0_45, %c0_46] : memref<1x1x128xf32, #tpu.memory_space<vmem>>, vector<1x1x128xf32>
    %117 = vector.shape_cast %116 : vector<1x1x128xf32> to vector<1x128xf32>
    %118 = vector.broadcast %117 : vector<1x128xf32> to vector<256x128xf32>
    %119 = arith.addf %115, %118 : vector<256x128xf32>
    %c3_i32 = arith.constant 3 : i32
    %120 = arith.cmpi slt, %arg0, %c3_i32 : i32
    %121 = arith.extui %120 : i1 to i32
    %c0_i32_47 = arith.constant 0 : i32
    %122 = arith.cmpi ne, %121, %c0_i32_47 : i32
    scf.if %122 {
      %cst_50 = arith.constant 0.000000e+00 : f32
      %126 = vector.broadcast %cst_50 : f32 to vector<256x128xf32>
      %127 = arith.maximumf %119, %126 : vector<256x128xf32>
      %c0_51 = arith.constant 0 : index
      %c0_52 = arith.constant 0 : index
      %c0_53 = arith.constant 0 : index
      %128 = vector.load %arg7[%c0_51, %c0_52, %c0_53] : memref<1x256x128xf32, #tpu.memory_space<vmem>>, vector<1x256x128xf32>
      %129 = vector.shape_cast %128 : vector<1x256x128xf32> to vector<256x128xf32>
      %130 = arith.mulf %127, %129 : vector<256x128xf32>
      %c0_54 = arith.constant 0 : index
      %c0_55 = arith.constant 0 : index
      %131 = vector.load %arg9[%c0_54, %c0_55] : memref<260x128xf32, #tpu.memory_space<vmem>>, vector<256x128xf32>
      tpu.vector_store %arg9[%c0_54, %c0_55], %130 {strides = array<i32>} : memref<260x128xf32, #tpu.memory_space<vmem>>, vector<256x128xf32>,
      %132 = vector.extract_strided_slice %130 {offsets = [0, 0], sizes = [4, 128], strides = [1, 1]} : vector<256x128xf32> to vector<4x128xf32>
      %c256_56 = arith.constant 256 : index
      %c0_57 = arith.constant 0 : index
      %133 = vector.load %arg9[%c256_56, %c0_57] : memref<260x128xf32, #tpu.memory_space<vmem>>, vector<4x128xf32>
      tpu.vector_store %arg9[%c256_56, %c0_57], %132 {strides = array<i32>} : memref<260x128xf32, #tpu.memory_space<vmem>>, vector<4x128xf32>,
    } else {
    }
    %c3_i32_48 = arith.constant 3 : i32
    %123 = arith.cmpi eq, %arg0, %c3_i32_48 : i32
    %124 = arith.extui %123 : i1 to i32
    %c0_i32_49 = arith.constant 0 : i32
    %125 = arith.cmpi ne, %124, %c0_i32_49 : i32
    scf.if %125 {
      %cst_50 = arith.constant 5.000000e-01 : f32
      %126 = vector.broadcast %cst_50 : f32 to vector<256x128xf32>
      %127 = arith.mulf %126, %119 : vector<256x128xf32>
      %128 = math.tanh %127 : vector<256x128xf32>
      %cst_51 = arith.constant 5.000000e-01 : f32
      %129 = vector.broadcast %cst_51 : f32 to vector<256x128xf32>
      %130 = arith.mulf %129, %128 : vector<256x128xf32>
      %cst_52 = arith.constant 5.000000e-01 : f32
      %131 = vector.broadcast %cst_52 : f32 to vector<256x128xf32>
      %132 = arith.addf %130, %131 : vector<256x128xf32>
      %c0_53 = arith.constant 0 : index
      %c0_54 = arith.constant 0 : index
      %133 = vector.load %arg8[%c0_53, %c0_54] : memref<256x128xf32, #tpu.memory_space<vmem>>, vector<256x128xf32>
      tpu.vector_store %arg8[%c0_53, %c0_54], %132 {strides = array<i32>} : memref<256x128xf32, #tpu.memory_space<vmem>>, vector<256x128xf32>,
    } else {
    }
    return
  }
  func.func @transform_0(%arg0: i32) -> (i32, i32) {
    %c0_i32 = arith.constant 0 : i32
    %c0_i32_0 = arith.constant 0 : i32
    %c0_i32_1 = arith.constant 0 : i32
    return %c0_i32, %c0_i32_0 : i32, i32
  }
  func.func @transform_1(%arg0: i32) -> (i32, i32, i32) {
    %c0_i32 = arith.constant 0 : i32
    %c0_i32_0 = arith.constant 0 : i32
    %c0_i32_1 = arith.constant 0 : i32
    return %arg0, %c0_i32, %c0_i32_0 : i32, i32, i32
  }
  func.func @transform_2(%arg0: i32) -> (i32, i32, i32) {
    %c0_i32 = arith.constant 0 : i32
    %c0_i32_0 = arith.constant 0 : i32
    %c0_i32_1 = arith.constant 0 : i32
    return %arg0, %c0_i32, %c0_i32_0 : i32, i32, i32
  }
  func.func @transform_3(%arg0: i32) -> (i32, i32, i32) {
    %c0_i32 = arith.constant 0 : i32
    %c0_i32_0 = arith.constant 0 : i32
    %c0_i32_1 = arith.constant 0 : i32
    return %arg0, %c0_i32, %c0_i32_0 : i32, i32, i32
  }
  func.func @transform_4(%arg0: i32) -> (i32, i32, i32) {
    %c0_i32 = arith.constant 0 : i32
    %c0_i32_0 = arith.constant 0 : i32
    %c0_i32_1 = arith.constant 0 : i32
    return %arg0, %c0_i32, %c0_i32_0 : i32, i32, i32
  }
  func.func @transform_5(%arg0: i32) -> (i32, i32, i32) {
    %c0_i32 = arith.constant 0 : i32
    %c0_i32_0 = arith.constant 0 : i32
    %c0_i32_1 = arith.constant 0 : i32
    return %arg0, %c0_i32, %c0_i32_0 : i32, i32, i32
  }
  func.func @transform_6(%arg0: i32) -> (i32, i32, i32) {
    %c0_i32 = arith.constant 0 : i32
    %c0_i32_0 = arith.constant 0 : i32
    %c0_i32_1 = arith.constant 0 : i32
    return %arg0, %c0_i32, %c0_i32_0 : i32, i32, i32
  }
  func.func @transform_7(%arg0: i32) -> (i32, i32) {
    %c0_i32 = arith.constant 0 : i32
    %c0_i32_0 = arith.constant 0 : i32
    %c0_i32_1 = arith.constant 0 : i32
    return %c0_i32, %c0_i32_0 : i32, i32
  }
}

</mosaic_0001>

<llo_original>
// kernel: forward.1
$region0: #{forward.1}
  #allocation0 [shape = 'u32[]', space=smem, size = 0x4, offset = 0x4, fixed_abs, tag = 'smem constant byte address 0x4 - core index']
  #allocation1 [shape = 'u32[72,128]{1,0:T(1,128)}', space=vmem, size = 0x9000, scoped, tag = 'internal scratch']
  #allocation2 [shape = 'f32[260,128]{1,0:T(8,128)}', space=vmem, size = 0x21000, scoped, tag = 'scratch operand']
  #allocation3 [shape = 'f32[1024,512]{1,0:T(8,128)}', space=vmem, size = 0x200000, scoped, tag = 'scratch operand']
  %s0 = inlined_call_operand.vmem [shape: f32[260,128], index: 0, kind: input, shape index: {}]
  %s1 = inlined_call_operand.vmem [shape: bf16[4,128,512], index: 1, kind: input, shape index: {}]
  %s2 = inlined_call_operand.vmem [shape: bf16[4,128,512], index: 2, kind: input, shape index: {}]
  %s3 = inlined_call_operand.vmem [shape: f32[4,1,512], index: 3, kind: input, shape index: {}]
  %s4 = inlined_call_operand.vmem [shape: bf16[4,256,128], index: 4, kind: input, shape index: {}]
  %s5 = inlined_call_operand.vmem [shape: f32[4,1,128], index: 5, kind: input, shape index: {}]
  %s6 = inlined_call_operand.vmem [shape: f32[4,256,128], index: 6, kind: input, shape index: {}]
  %s7 = inlined_call_operand.vmem [shape: f32[256,128], index: 7, kind: output, shape index: {}]
  %s8 = sld [smem:[#allocation0]]
  $region73: #{forward.1} parent=0
    _
  %s10 = ssub.s32 1, %s8
  %s11 = scalar_select 0, %s10, %s8
  loop: start=0, step=1, limit=6
  $region2: #{forward.1} parent=0 // loop_pre_header
    _
  $region3: #{forward.1} parent=0 // loop_header
    %s13 = sphi 0, %s17
    %p14 = scmp.ge.s32.totalorder %s13, 6
    %s21 = sphi 0, %s21
    %s23 = sphi 0, %s21
    %s24 = sphi 0, %s23
    %s38 = sphi 0, %s24
    %s44 = sphi 0, %s46
    %s47 = sphi 0, %s44
    %s48 = sphi 0, %s47
    %s64 = sphi 0, %s48
    %s70 = sphi 0, %s72
    %s73 = sphi 0, %s70
    %s74 = sphi 0, %s73
    %s90 = sphi 0, %s74
    %s96 = sphi 0, %s98
    %s99 = sphi 0, %s96
    %s100 = sphi 0, %s99
    %s116 = sphi 0, %s100
    %s122 = sphi 0, %s124
    %s125 = sphi 0, %s122
    %s126 = sphi 0, %s125
    %s142 = sphi 0, %s126
    %s148 = sphi 0, %s150
    %s151 = sphi 0, %s148
    %s152 = sphi 0, %s151
    %s168 = sphi 0, %s152
    %s174 = sphi 0, %s176
    %s177 = sphi 0, %s174
    %s178 = sphi 0, %s177
    %s194 = sphi 0, %s178
    %s198 = sphi 0, %s198
    %s200 = sphi 0, %s198
    %s201 = sphi 0, %s200
    %s215 = sphi 0, %s201
  $region4: #{forward.1} parent=0 // loop_header_branch
    %16 = sbr.rel (%p14) target = $region8
  $region5: #{forward.1} parent=0 // loop_body
    %s18 = ssub.s32 %s13, 1
    %s19 = ssub.s32 %s13, 2
    %s20 = sadd.s32 %s13, 1
    %s22 = sadd.s32 %s21, 1
    %p25 = scmp.eq.s32.totalorder %s13, 3
    %p26 = scmp.ne.s32.totalorder %s21, %s23
    %p27 = scmp.eq.s32.totalorder %s13, 0
    %p28 = por %p26, %p27
    %p29 = scmp.ne.s32.totalorder %s21, %s23
    %p30 = scmp.eq.s32.totalorder %s18, 3
    %p31 = por %p29, %p30
    %p32 = scmp.ne.s32.totalorder %s23, %s24
    %p33 = scmp.eq.s32.totalorder %s18, 0
    %p34 = por %p32, %p33
    %p35 = scmp.ne.s32.totalorder %s23, %s24
    %p36 = scmp.eq.s32.totalorder %s19, 3
    %p37 = por %p35, %p36
    %p39 = scmp.ne.s32.totalorder %s24, %s38
    %p40 = scmp.eq.s32.totalorder %s19, 0
    %p41 = por %p39, %p40
    %s42 = ssub.s32 %s13, %s20
    %p43 = scmp.eq.s32.totalorder %s42, 0
    %s45 = sadd.s32 %s44, 1
    %s46 = scalar_select %p43, %s44, %s45
    %p49 = pneg %p43
    %p50 = scmp.eq.s32.totalorder %s13, 3
    %p51 = por %p49, %p50
    %p52 = scmp.ne.s32.totalorder %s44, %s47
    %p53 = scmp.eq.s32.totalorder %s13, 0
    %p54 = por %p52, %p53
    %p55 = scmp.ne.s32.totalorder %s44, %s47
    %p56 = scmp.eq.s32.totalorder %s18, 3
    %p57 = por %p55, %p56
    %p58 = scmp.ne.s32.totalorder %s47, %s48
    %p59 = scmp.eq.s32.totalorder %s18, 0
    %p60 = por %p58, %p59
    %p61 = scmp.ne.s32.totalorder %s47, %s48
    %p62 = scmp.eq.s32.totalorder %s19, 3
    %p63 = por %p61, %p62
    %p65 = scmp.ne.s32.totalorder %s48, %s64
    %p66 = scmp.eq.s32.totalorder %s19, 0
    %p67 = por %p65, %p66
    %s68 = ssub.s32 %s13, %s20
    %p69 = scmp.eq.s32.totalorder %s68, 0
    %s71 = sadd.s32 %s70, 1
    %s72 = scalar_select %p69, %s70, %s71
    %p75 = pneg %p69
    %p76 = scmp.eq.s32.totalorder %s13, 3
    %p77 = por %p75, %p76
    %p78 = scmp.ne.s32.totalorder %s70, %s73
    %p79 = scmp.eq.s32.totalorder %s13, 0
    %p80 = por %p78, %p79
    %p81 = scmp.ne.s32.totalorder %s70, %s73
    %p82 = scmp.eq.s32.totalorder %s18, 3
    %p83 = por %p81, %p82
    %p84 = scmp.ne.s32.totalorder %s73, %s74
    %p85 = scmp.eq.s32.totalorder %s18, 0
    %p86 = por %p84, %p85
    %p87 = scmp.ne.s32.totalorder %s73, %s74
    %p88 = scmp.eq.s32.totalorder %s19, 3
    %p89 = por %p87, %p88
    %p91 = scmp.ne.s32.totalorder %s74, %s90
    %p92 = scmp.eq.s32.totalorder %s19, 0
    %p93 = por %p91, %p92
    %s94 = ssub.s32 %s13, %s20
    %p95 = scmp.eq.s32.totalorder %s94, 0
    %s97 = sadd.s32 %s96, 1
    %s98 = scalar_select %p95, %s96, %s97
    %p101 = pneg %p95
    %p102 = scmp.eq.s32.totalorder %s13, 3
    %p103 = por %p101, %p102
    %p104 = scmp.ne.s32.totalorder %s96, %s99
    %p105 = scmp.eq.s32.totalorder %s13, 0
    %p106 = por %p104, %p105
    %p107 = scmp.ne.s32.totalorder %s96, %s99
    %p108 = scmp.eq.s32.totalorder %s18, 3
    %p109 = por %p107, %p108
    %p110 = scmp.ne.s32.totalorder %s99, %s100
    %p111 = scmp.eq.s32.totalorder %s18, 0
    %p112 = por %p110, %p111
    %p113 = scmp.ne.s32.totalorder %s99, %s100
    %p114 = scmp.eq.s32.totalorder %s19, 3
    %p115 = por %p113, %p114
    %p117 = scmp.ne.s32.totalorder %s100, %s116
    %p118 = scmp.eq.s32.totalorder %s19, 0
    %p119 = por %p117, %p118
    %s120 = ssub.s32 %s13, %s20
    %p121 = scmp.eq.s32.totalorder %s120, 0
    %s123 = sadd.s32 %s122, 1
    %s124 = scalar_select %p121, %s122, %s123
    %p127 = pneg %p121
    %p128 = scmp.eq.s32.totalorder %s13, 3
    %p129 = por %p127, %p128
    %p130 = scmp.ne.s32.totalorder %s122, %s125
    %p131 = scmp.eq.s32.totalorder %s13, 0
    %p132 = por %p130, %p131
    %p133 = scmp.ne.s32.totalorder %s122, %s125
    %p134 = scmp.eq.s32.totalorder %s18, 3
    %p135 = por %p133, %p134
    %p136 = scmp.ne.s32.totalorder %s125, %s126
    %p137 = scmp.eq.s32.totalorder %s18, 0
    %p138 = por %p136, %p137
    %p139 = scmp.ne.s32.totalorder %s125, %s126
    %p140 = scmp.eq.s32.totalorder %s19, 3
    %p141 = por %p139, %p140
    %p143 = scmp.ne.s32.totalorder %s126, %s142
    %p144 = scmp.eq.s32.totalorder %s19, 0
    %p145 = por %p143, %p144
    %s146 = ssub.s32 %s13, %s20
    %p147 = scmp.eq.s32.totalorder %s146, 0
    %s149 = sadd.s32 %s148, 1
    %s150 = scalar_select %p147, %s148, %s149
    %p153 = pneg %p147
    %p154 = scmp.eq.s32.totalorder %s13, 3
    %p155 = por %p153, %p154
    %p156 = scmp.ne.s32.totalorder %s148, %s151
    %p157 = scmp.eq.s32.totalorder %s13, 0
    %p158 = por %p156, %p157
    %p159 = scmp.ne.s32.totalorder %s148, %s151
    %p160 = scmp.eq.s32.totalorder %s18, 3
    %p161 = por %p159, %p160
    %p162 = scmp.ne.s32.totalorder %s151, %s152
    %p163 = scmp.eq.s32.totalorder %s18, 0
    %p164 = por %p162, %p163
    %p165 = scmp.ne.s32.totalorder %s151, %s152
    %p166 = scmp.eq.s32.totalorder %s19, 3
    %p167 = por %p165, %p166
    %p169 = scmp.ne.s32.totalorder %s152, %s168
    %p170 = scmp.eq.s32.totalorder %s19, 0
    %p171 = por %p169, %p170
    %s172 = ssub.s32 %s13, %s20
    %p173 = scmp.eq.s32.totalorder %s172, 0
    %s175 = sadd.s32 %s174, 1
    %s176 = scalar_select %p173, %s174, %s175
    %p179 = pneg %p173
    %p180 = scmp.eq.s32.totalorder %s13, 3
    %p181 = por %p179, %p180
    %p182 = scmp.ne.s32.totalorder %s174, %s177
    %p183 = scmp.eq.s32.totalorder %s13, 0
    %p184 = por %p182, %p183
    %p185 = scmp.ne.s32.totalorder %s174, %s177
    %p186 = scmp.eq.s32.totalorder %s18, 3
    %p187 = por %p185, %p186
    %p188 = scmp.ne.s32.totalorder %s177, %s178
    %p189 = scmp.eq.s32.totalorder %s18, 0
    %p190 = por %p188, %p189
    %p191 = scmp.ne.s32.totalorder %s177, %s178
    %p192 = scmp.eq.s32.totalorder %s19, 3
    %p193 = por %p191, %p192
    %p195 = scmp.ne.s32.totalorder %s178, %s194
    %p196 = scmp.eq.s32.totalorder %s19, 0
    %p197 = por %p195, %p196
    %s199 = sadd.s32 %s198, 1
    %p202 = scmp.eq.s32.totalorder %s13, 3
    %p203 = scmp.ne.s32.totalorder %s198, %s200
    %p204 = scmp.eq.s32.totalorder %s13, 0
    %p205 = por %p203, %p204
    %p206 = scmp.ne.s32.totalorder %s198, %s200
    %p207 = scmp.eq.s32.totalorder %s18, 3
    %p208 = por %p206, %p207
    %p209 = scmp.ne.s32.totalorder %s200, %s201
    %p210 = scmp.eq.s32.totalorder %s18, 0
    %p211 = por %p209, %p210
    %p212 = scmp.ne.s32.totalorder %s200, %s201
    %p213 = scmp.eq.s32.totalorder %s19, 3
    %p214 = por %p212, %p213
    %p216 = scmp.ne.s32.totalorder %s201, %s215
    %p217 = scmp.eq.s32.totalorder %s19, 0
    %p218 = por %p216, %p217
    %p219 = scmp.le.s32.totalorder 1, %s13
    %p220 = scmp.lt.s32.totalorder %s13, 5
    %p221 = pnand %p219, %p220
    %p222 = pneg %p221
    // Predicated region
    $region9: #{forward.1} parent=5 // pred_check
      _
    $region10: #{forward.1} parent=5 // pred_check_branch
      %224 = sbr.rel (%p221) target = $region12
    $region11: #{forward.1} parent=5 // pred_region
      %s225 = ssub.s32 %s13, 1
      // Predicated region
      $region13: #{forward.1} parent=11 // pred_check
        %p226 = pneg %p34
      $region14: #{forward.1} parent=11 // pred_check_branch
        %228 = sbr.rel (%p226) target = $region16
      $region15: #{forward.1} parent=11 // pred_region
        _
      $region16: #{forward.1} parent=11 // pred_fallthru
        _
    $region12: #{forward.1} parent=5 // pred_fallthru
      _
    %p229 = scmp.lt.s32.totalorder %s13, 4
    // Predicated region
    $region17: #{forward.1} parent=5 // pred_check
      %p230 = pneg %p229
    $region18: #{forward.1} parent=5 // pred_check_branch
      %232 = sbr.rel (%p230) target = $region20
    $region19: #{forward.1} parent=5 // pred_region
      // Predicated region
      $region21: #{forward.1} parent=19 // pred_check
        %p233 = pneg %p54
      $region22: #{forward.1} parent=19 // pred_check_branch
        %235 = sbr.rel (%p233) target = $region24
      $region23: #{forward.1} parent=19 // pred_region
        %p236 = scmp.lt.s32.totalorder %s13, 3
        %s237 = scalar_select %p236, %s13, 3
        %s238 = smul.addr %s237, 64
        %s239 = smul.addr %s238, 4
        %s240 = scalar_lea.vmem %s1, %s239
      $region24: #{forward.1} parent=19 // pred_fallthru
        _
      // Predicated region
      $region25: #{forward.1} parent=19 // pred_check
        %p241 = pneg %p80
      $region26: #{forward.1} parent=19 // pred_check_branch
        %243 = sbr.rel (%p241) target = $region28
      $region27: #{forward.1} parent=19 // pred_region
        %p244 = scmp.lt.s32.totalorder %s13, 3
        %s245 = scalar_select %p244, %s13, 3
        %s246 = smul.addr %s245, 64
        %s247 = smul.addr %s246, 4
        %s248 = scalar_lea.vmem %s2, %s247
      $region28: #{forward.1} parent=19 // pred_fallthru
        _
      // Predicated region
      $region29: #{forward.1} parent=19 // pred_check
        %p249 = pneg %p106
      $region30: #{forward.1} parent=19 // pred_check_branch
        %251 = sbr.rel (%p249) target = $region32
      $region31: #{forward.1} parent=19 // pred_region
        %p252 = scmp.lt.s32.totalorder %s13, 3
        %s253 = scalar_select %p252, %s13, 3
        %s254 = smul.addr %s253, 4
        %s255 = scalar_lea.vmem %s3, %s254
      $region32: #{forward.1} parent=19 // pred_fallthru
        _
      // Predicated region
      $region33: #{forward.1} parent=19 // pred_check
        %p256 = pneg %p132
      $region34: #{forward.1} parent=19 // pred_check_branch
        %258 = sbr.rel (%p256) target = $region36
      $region35: #{forward.1} parent=19 // pred_region
        %p259 = scmp.lt.s32.totalorder %s13, 3
        %s260 = scalar_select %p259, %s13, 3
        %s261 = smul.addr %s260, 32
        %s262 = smul.addr %s261, 4
        %s263 = scalar_lea.vmem %s4, %s262
      $region36: #{forward.1} parent=19 // pred_fallthru
        _
      // Predicated region
      $region37: #{forward.1} parent=19 // pred_check
        %p264 = pneg %p158
      $region38: #{forward.1} parent=19 // pred_check_branch
        %266 = sbr.rel (%p264) target = $region40
      $region39: #{forward.1} parent=19 // pred_region
        %p267 = scmp.lt.s32.totalorder %s13, 3
        %s268 = scalar_select %p267, %s13, 3
        %s269 = scalar_lea.vmem %s5, %s268
      $region40: #{forward.1} parent=19 // pred_fallthru
        _
      // Predicated region
      $region41: #{forward.1} parent=19 // pred_check
        %p270 = pneg %p184
      $region42: #{forward.1} parent=19 // pred_check_branch
        %272 = sbr.rel (%p270) target = $region44
      $region43: #{forward.1} parent=19 // pred_region
        %p273 = scmp.lt.s32.totalorder %s13, 3
        %s274 = scalar_select %p273, %s13, 3
        %s275 = smul.addr %s274, 32
        %s276 = smul.addr %s275, 8
        %s277 = scalar_lea.vmem %s6, %s276
      $region44: #{forward.1} parent=19 // pred_fallthru
        _
    $region20: #{forward.1} parent=5 // pred_fallthru
      _
    %p278 = scmp.le.s32.totalorder 1, %s13
    %p279 = scmp.lt.s32.totalorder %s13, 5
    %p280 = pnand %p278, %p279
    %p281 = pneg %p280
    // Predicated region
    $region45: #{forward.1} parent=5 // pred_check
      _
    $region46: #{forward.1} parent=5 // pred_check_branch
      %283 = sbr.rel (%p280) target = $region48
    $region47: #{forward.1} parent=5 // pred_region
      %s284 = ssub.s32 %s13, 1
      %p285 = pneg %p34
      %p286 = pneg %p31
      %p287 = scmp.lt.s32.totalorder %s18, 3
      %s288 = scalar_select %p287, %s18, 3
      %s289 = smul.addr %s288, 64
      %s290 = smul.addr %s289, 4
      %s291 = scalar_lea.vmem %s1, %s290
      %p292 = pneg %p60
      %p293 = pneg %p57
      %p294 = scmp.lt.s32.totalorder %s18, 3
      %s295 = scalar_select %p294, %s18, 3
      %s296 = smul.addr %s295, 64
      %s297 = smul.addr %s296, 4
      %s298 = scalar_lea.vmem %s2, %s297
      %p299 = pneg %p86
      %p300 = pneg %p83
      %p301 = scmp.lt.s32.totalorder %s18, 3
      %s302 = scalar_select %p301, %s18, 3
      %s303 = smul.addr %s302, 4
      %s304 = scalar_lea.vmem %s3, %s303
      %p305 = pneg %p112
      %p306 = pneg %p109
      %p307 = scmp.lt.s32.totalorder %s18, 3
      %s308 = scalar_select %p307, %s18, 3
      %s309 = smul.addr %s308, 32
      %s310 = smul.addr %s309, 4
      %s311 = scalar_lea.vmem %s4, %s310
      %p312 = pneg %p138
      %p313 = pneg %p135
      %p314 = scmp.lt.s32.totalorder %s18, 3
      %s315 = scalar_select %p314, %s18, 3
      %s316 = scalar_lea.vmem %s5, %s315
      %p317 = pneg %p164
      %p318 = pneg %p161
      %p319 = scmp.lt.s32.totalorder %s18, 3
      %s320 = scalar_select %p319, %s18, 3
      %s321 = smul.addr %s320, 32
      %s322 = smul.addr %s321, 8
      %s323 = scalar_lea.vmem %s6, %s322
      %p324 = pneg %p190
      %p325 = pneg %p187
      %p326 = pneg %p211
      %p327 = pneg %p208
      %p328 = scmp.lt.s32.totalorder %s18, 3
      %s329 = scalar_select %p328, %s18, 3
      %s330 = smul.addr %s329, 64
      %s331 = smul.addr %s330, 4
      %s332 = scalar_lea.vmem %s1, %s331
      %p333 = scmp.lt.s32.totalorder %s18, 3
      %s334 = scalar_select %p333, %s18, 3
      %s335 = smul.addr %s334, 64
      %s336 = smul.addr %s335, 4
      %s337 = scalar_lea.vmem %s2, %s336
      %p338 = scmp.lt.s32.totalorder %s18, 3
      %s339 = scalar_select %p338, %s18, 3
      %s340 = smul.addr %s339, 4
      %s341 = scalar_lea.vmem %s3, %s340
      %p342 = scmp.lt.s32.totalorder %s18, 3
      %s343 = scalar_select %p342, %s18, 3
      %s344 = smul.addr %s343, 32
      %s345 = smul.addr %s344, 4
      %s346 = scalar_lea.vmem %s4, %s345
      %p347 = scmp.lt.s32.totalorder %s18, 3
      %s348 = scalar_select %p347, %s18, 3
      %s349 = scalar_lea.vmem %s5, %s348
      %p350 = scmp.lt.s32.totalorder %s18, 3
      %s351 = scalar_select %p350, %s18, 3
      %s352 = smul.addr %s351, 32
      %s353 = smul.addr %s352, 8
      %s354 = scalar_lea.vmem %s6, %s353
      %p356 = scmp.eq.s32.totalorder %s18, 0
      // Predicated region
      $region49: #{forward.1} parent=47 // pred_check
        %p357 = pneg %p356
      $region50: #{forward.1} parent=47 // pred_check_branch
        %359 = sbr.rel (%p357) target = $region52
      $region51: #{forward.1} parent=47 // pred_region
        %v360 = vld [vmem:[%s0] sm:$0xff]
        %v361 = vld [vmem:[%s0 + $0x8] sm:$0xff]
        %v362 = vld [vmem:[%s0 + $0x10] sm:$0xff]
        %v363 = vld [vmem:[%s0 + $0x18] sm:$0xff]
        %v364 = vld [vmem:[%s0 + $0x20] sm:$0xff]
        %v365 = vld [vmem:[%s0 + $0x28] sm:$0xff]
        %v366 = vld [vmem:[%s0 + $0x30] sm:$0xff]
        %v367 = vld [vmem:[%s0 + $0x38] sm:$0xff]
        %v368 = vld [vmem:[%s0 + $0x40] sm:$0xff]
        %v369 = vld [vmem:[%s0 + $0x48] sm:$0xff]
        %v370 = vld [vmem:[%s0 + $0x50] sm:$0xff]
        %v371 = vld [vmem:[%s0 + $0x58] sm:$0xff]
        %v372 = vld [vmem:[%s0 + $0x60] sm:$0xff]
        %v373 = vld [vmem:[%s0 + $0x68] sm:$0xff]
        %v374 = vld [vmem:[%s0 + $0x70] sm:$0xff]
        %v375 = vld [vmem:[%s0 + $0x78] sm:$0xff]
        %v376 = vld [vmem:[%s0 + $0x80] sm:$0xff]
        %v377 = vld [vmem:[%s0 + $0x88] sm:$0xff]
        %v378 = vld [vmem:[%s0 + $0x90] sm:$0xff]
        %v379 = vld [vmem:[%s0 + $0x98] sm:$0xff]
        %v380 = vld [vmem:[%s0 + $0xa0] sm:$0xff]
        %v381 = vld [vmem:[%s0 + $0xa8] sm:$0xff]
        %v382 = vld [vmem:[%s0 + $0xb0] sm:$0xff]
        %v383 = vld [vmem:[%s0 + $0xb8] sm:$0xff]
        %v384 = vld [vmem:[%s0 + $0xc0] sm:$0xff]
        %v385 = vld [vmem:[%s0 + $0xc8] sm:$0xff]
        %v386 = vld [vmem:[%s0 + $0xd0] sm:$0xff]
        %v387 = vld [vmem:[%s0 + $0xd8] sm:$0xff]
        %v388 = vld [vmem:[%s0 + $0xe0] sm:$0xff]
        %v389 = vld [vmem:[%s0 + $0xe8] sm:$0xff]
        %v390 = vld [vmem:[%s0 + $0xf0] sm:$0xff]
        %v391 = vld [vmem:[%s0 + $0xf8] sm:$0xff]
        %v392 = vld [vmem:[%s0 + $0x100] sm:$0xf]
        %393 = vst [vmem:[#allocation2] sm:$0xff] %v360
        %394 = vst [vmem:[#allocation2 + $0x8] sm:$0xff] %v361
        %395 = vst [vmem:[#allocation2 + $0x10] sm:$0xff] %v362
        %396 = vst [vmem:[#allocation2 + $0x18] sm:$0xff] %v363
        %397 = vst [vmem:[#allocation2 + $0x20] sm:$0xff] %v364
        %398 = vst [vmem:[#allocation2 + $0x28] sm:$0xff] %v365
        %399 = vst [vmem:[#allocation2 + $0x30] sm:$0xff] %v366
        %400 = vst [vmem:[#allocation2 + $0x38] sm:$0xff] %v367
        %401 = vst [vmem:[#allocation2 + $0x40] sm:$0xff] %v368
        %402 = vst [vmem:[#allocation2 + $0x48] sm:$0xff] %v369
        %403 = vst [vmem:[#allocation2 + $0x50] sm:$0xff] %v370
        %404 = vst [vmem:[#allocation2 + $0x58] sm:$0xff] %v371
        %405 = vst [vmem:[#allocation2 + $0x60] sm:$0xff] %v372
        %406 = vst [vmem:[#allocation2 + $0x68] sm:$0xff] %v373
        %407 = vst [vmem:[#allocation2 + $0x70] sm:$0xff] %v374
        %408 = vst [vmem:[#allocation2 + $0x78] sm:$0xff] %v375
        %409 = vst [vmem:[#allocation2 + $0x80] sm:$0xff] %v376
        %410 = vst [vmem:[#allocation2 + $0x88] sm:$0xff] %v377
        %411 = vst [vmem:[#allocation2 + $0x90] sm:$0xff] %v378
        %412 = vst [vmem:[#allocation2 + $0x98] sm:$0xff] %v379
        %413 = vst [vmem:[#allocation2 + $0xa0] sm:$0xff] %v380
        %414 = vst [vmem:[#allocation2 + $0xa8] sm:$0xff] %v381
        %415 = vst [vmem:[#allocation2 + $0xb0] sm:$0xff] %v382
        %416 = vst [vmem:[#allocation2 + $0xb8] sm:$0xff] %v383
        %417 = vst [vmem:[#allocation2 + $0xc0] sm:$0xff] %v384
        %418 = vst [vmem:[#allocation2 + $0xc8] sm:$0xff] %v385
        %419 = vst [vmem:[#allocation2 + $0xd0] sm:$0xff] %v386
        %420 = vst [vmem:[#allocation2 + $0xd8] sm:$0xff] %v387
        %421 = vst [vmem:[#allocation2 + $0xe0] sm:$0xff] %v388
        %422 = vst [vmem:[#allocation2 + $0xe8] sm:$0xff] %v389
        %423 = vst [vmem:[#allocation2 + $0xf0] sm:$0xff] %v390
        %424 = vst [vmem:[#allocation2 + $0xf8] sm:$0xff] %v391
        %425 = vst [vmem:[#allocation2 + $0x100] sm:$0xf] %v392
      $region52: #{forward.1} parent=47 // pred_fallthru
        _
      %v426 = vld [vmem:[%s332] sm:$0xff]
      %v427 = vld [vmem:[%s332 + $0x8] sm:$0xff]
      %v428 = vld [vmem:[%s332 + $0x10] sm:$0xff]
      %v429 = vld [vmem:[%s332 + $0x18] sm:$0xff]
      %v430 = vld [vmem:[%s332 + $0x20] sm:$0xff]
      %v431 = vld [vmem:[%s332 + $0x28] sm:$0xff]
      %v432 = vld [vmem:[%s332 + $0x30] sm:$0xff]
      %v433 = vld [vmem:[%s332 + $0x38] sm:$0xff]
      %v434 = vld [vmem:[%s332 + $0x40] sm:$0xff]
      %v435 = vld [vmem:[%s332 + $0x48] sm:$0xff]
      %v436 = vld [vmem:[%s332 + $0x50] sm:$0xff]
      %v437 = vld [vmem:[%s332 + $0x58] sm:$0xff]
      %v438 = vld [vmem:[%s332 + $0x60] sm:$0xff]
      %v439 = vld [vmem:[%s332 + $0x68] sm:$0xff]
      %v440 = vld [vmem:[%s332 + $0x70] sm:$0xff]
      %v441 = vld [vmem:[%s332 + $0x78] sm:$0xff]
      %v442 = vld [vmem:[%s332 + $0x80] sm:$0xff]
      %v443 = vld [vmem:[%s332 + $0x88] sm:$0xff]
      %v444 = vld [vmem:[%s332 + $0x90] sm:$0xff]
      %v445 = vld [vmem:[%s332 + $0x98] sm:$0xff]
      %v446 = vld [vmem:[%s332 + $0xa0] sm:$0xff]
      %v447 = vld [vmem:[%s332 + $0xa8] sm:$0xff]
      %v448 = vld [vmem:[%s332 + $0xb0] sm:$0xff]
      %v449 = vld [vmem:[%s332 + $0xb8] sm:$0xff]
      %v450 = vld [vmem:[%s332 + $0xc0] sm:$0xff]
      %v451 = vld [vmem:[%s332 + $0xc8] sm:$0xff]
      %v452 = vld [vmem:[%s332 + $0xd0] sm:$0xff]
      %v453 = vld [vmem:[%s332 + $0xd8] sm:$0xff]
      %v454 = vld [vmem:[%s332 + $0xe0] sm:$0xff]
      %v455 = vld [vmem:[%s332 + $0xe8] sm:$0xff]
      %v456 = vld [vmem:[%s332 + $0xf0] sm:$0xff]
      %v457 = vld [vmem:[%s332 + $0xf8] sm:$0xff]
      %v458 = vld [vmem:[%s337] sm:$0xff]
      %v459 = vld [vmem:[%s337 + $0x8] sm:$0xff]
      %v460 = vld [vmem:[%s337 + $0x10] sm:$0xff]
      %v461 = vld [vmem:[%s337 + $0x18] sm:$0xff]
      %v462 = vld [vmem:[%s337 + $0x20] sm:$0xff]
      %v463 = vld [vmem:[%s337 + $0x28] sm:$0xff]
      %v464 = vld [vmem:[%s337 + $0x30] sm:$0xff]
      %v465 = vld [vmem:[%s337 + $0x38] sm:$0xff]
      %v466 = vld [vmem:[%s337 + $0x40] sm:$0xff]
      %v467 = vld [vmem:[%s337 + $0x48] sm:$0xff]
      %v468 = vld [vmem:[%s337 + $0x50] sm:$0xff]
      %v469 = vld [vmem:[%s337 + $0x58] sm:$0xff]
      %v470 = vld [vmem:[%s337 + $0x60] sm:$0xff]
      %v471 = vld [vmem:[%s337 + $0x68] sm:$0xff]
      %v472 = vld [vmem:[%s337 + $0x70] sm:$0xff]
      %v473 = vld [vmem:[%s337 + $0x78] sm:$0xff]
      %v474 = vld [vmem:[%s337 + $0x80] sm:$0xff]
      %v475 = vld [vmem:[%s337 + $0x88] sm:$0xff]
      %v476 = vld [vmem:[%s337 + $0x90] sm:$0xff]
      %v477 = vld [vmem:[%s337 + $0x98] sm:$0xff]
      %v478 = vld [vmem:[%s337 + $0xa0] sm:$0xff]
      %v479 = vld [vmem:[%s337 + $0xa8] sm:$0xff]
      %v480 = vld [vmem:[%s337 + $0xb0] sm:$0xff]
      %v481 = vld [vmem:[%s337 + $0xb8] sm:$0xff]
      %v482 = vld [vmem:[%s337 + $0xc0] sm:$0xff]
      %v483 = vld [vmem:[%s337 + $0xc8] sm:$0xff]
      %v484 = vld [vmem:[%s337 + $0xd0] sm:$0xff]
      %v485 = vld [vmem:[%s337 + $0xd8] sm:$0xff]
      %v486 = vld [vmem:[%s337 + $0xe0] sm:$0xff]
      %v487 = vld [vmem:[%s337 + $0xe8] sm:$0xff]
      %v488 = vld [vmem:[%s337 + $0xf0] sm:$0xff]
      %v489 = vld [vmem:[%s337 + $0xf8] sm:$0xff]
      %v490 = vld [vmem:[%s341] sm:$0xf]
      %v491 = vld [vmem:[#allocation2 + $0x1] sm:$0xff]
      %v492 = vld [vmem:[#allocation2 + $0x9] sm:$0xff]
      %v493 = vld [vmem:[#allocation2 + $0x11] sm:$0xff]
      %v494 = vld [vmem:[#allocation2 + $0x19] sm:$0xff]
      %v495 = vld [vmem:[#allocation2 + $0x21] sm:$0xff]
      %v496 = vld [vmem:[#allocation2 + $0x29] sm:$0xff]
      %v497 = vld [vmem:[#allocation2 + $0x31] sm:$0xff]
      %v498 = vld [vmem:[#allocation2 + $0x39] sm:$0xff]
      %v499 = vld [vmem:[#allocation2 + $0x41] sm:$0xff]
      %v500 = vld [vmem:[#allocation2 + $0x49] sm:$0xff]
      %v501 = vld [vmem:[#allocation2 + $0x51] sm:$0xff]
      %v502 = vld [vmem:[#allocation2 + $0x59] sm:$0xff]
      %v503 = vld [vmem:[#allocation2 + $0x61] sm:$0xff]
      %v504 = vld [vmem:[#allocation2 + $0x69] sm:$0xff]
      %v505 = vld [vmem:[#allocation2 + $0x71] sm:$0xff]
      %v506 = vld [vmem:[#allocation2 + $0x79] sm:$0xff]
      %v507 = vld [vmem:[#allocation2 + $0x81] sm:$0xff]
      %v508 = vld [vmem:[#allocation2 + $0x89] sm:$0xff]
      %v509 = vld [vmem:[#allocation2 + $0x91] sm:$0xff]
      %v510 = vld [vmem:[#allocation2 + $0x99] sm:$0xff]
      %v511 = vld [vmem:[#allocation2 + $0xa1] sm:$0xff]
      %v512 = vld [vmem:[#allocation2 + $0xa9] sm:$0xff]
      %v513 = vld [vmem:[#allocation2 + $0xb1] sm:$0xff]
      %v514 = vld [vmem:[#allocation2 + $0xb9] sm:$0xff]
      %v515 = vld [vmem:[#allocation2 + $0xc1] sm:$0xff]
      %v516 = vld [vmem:[#allocation2 + $0xc9] sm:$0xff]
      %v517 = vld [vmem:[#allocation2 + $0xd1] sm:$0xff]
      %v518 = vld [vmem:[#allocation2 + $0xd9] sm:$0xff]
      %v519 = vld [vmem:[#allocation2 + $0xe1] sm:$0xff]
      %v520 = vld [vmem:[#allocation2 + $0xe9] sm:$0xff]
      %v521 = vld [vmem:[#allocation2 + $0xf1] sm:$0xff]
      %v522 = vld [vmem:[#allocation2 + $0xf9] sm:$0xff]
      %v523 = vld [vmem:[#allocation2 + $0x2] sm:$0xff]
      %v524 = vld [vmem:[#allocation2 + $0xa] sm:$0xff]
      %v525 = vld [vmem:[#allocation2 + $0x12] sm:$0xff]
      %v526 = vld [vmem:[#allocation2 + $0x1a] sm:$0xff]
      %v527 = vld [vmem:[#allocation2 + $0x22] sm:$0xff]
      %v528 = vld [vmem:[#allocation2 + $0x2a] sm:$0xff]
      %v529 = vld [vmem:[#allocation2 + $0x32] sm:$0xff]
      %v530 = vld [vmem:[#allocation2 + $0x3a] sm:$0xff]
      %v531 = vld [vmem:[#allocation2 + $0x42] sm:$0xff]
      %v532 = vld [vmem:[#allocation2 + $0x4a] sm:$0xff]
      %v533 = vld [vmem:[#allocation2 + $0x52] sm:$0xff]
      %v534 = vld [vmem:[#allocation2 + $0x5a] sm:$0xff]
      %v535 = vld [vmem:[#allocation2 + $0x62] sm:$0xff]
      %v536 = vld [vmem:[#allocation2 + $0x6a] sm:$0xff]
      %v537 = vld [vmem:[#allocation2 + $0x72] sm:$0xff]
      %v538 = vld [vmem:[#allocation2 + $0x7a] sm:$0xff]
      %v539 = vld [vmem:[#allocation2 + $0x82] sm:$0xff]
      %v540 = vld [vmem:[#allocation2 + $0x8a] sm:$0xff]
      %v541 = vld [vmem:[#allocation2 + $0x92] sm:$0xff]
      %v542 = vld [vmem:[#allocation2 + $0x9a] sm:$0xff]
      %v543 = vld [vmem:[#allocation2 + $0xa2] sm:$0xff]
      %v544 = vld [vmem:[#allocation2 + $0xaa] sm:$0xff]
      %v545 = vld [vmem:[#allocation2 + $0xb2] sm:$0xff]
      %v546 = vld [vmem:[#allocation2 + $0xba] sm:$0xff]
      %v547 = vld [vmem:[#allocation2 + $0xc2] sm:$0xff]
      %v548 = vld [vmem:[#allocation2 + $0xca] sm:$0xff]
      %v549 = vld [vmem:[#allocation2 + $0xd2] sm:$0xff]
      %v550 = vld [vmem:[#allocation2 + $0xda] sm:$0xff]
      %v551 = vld [vmem:[#allocation2 + $0xe2] sm:$0xff]
      %v552 = vld [vmem:[#allocation2 + $0xea] sm:$0xff]
      %v553 = vld [vmem:[#allocation2 + $0xf2] sm:$0xff]
      %v554 = vld [vmem:[#allocation2 + $0xfa] sm:$0xff]
      %v555 = vld [vmem:[#allocation2 + $0x3] sm:$0xff]
      %v556 = vld [vmem:[#allocation2 + $0xb] sm:$0xff]
      %v557 = vld [vmem:[#allocation2 + $0x13] sm:$0xff]
      %v558 = vld [vmem:[#allocation2 + $0x1b] sm:$0xff]
      %v559 = vld [vmem:[#allocation2 + $0x23] sm:$0xff]
      %v560 = vld [vmem:[#allocation2 + $0x2b] sm:$0xff]
      %v561 = vld [vmem:[#allocation2 + $0x33] sm:$0xff]
      %v562 = vld [vmem:[#allocation2 + $0x3b] sm:$0xff]
      %v563 = vld [vmem:[#allocation2 + $0x43] sm:$0xff]
      %v564 = vld [vmem:[#allocation2 + $0x4b] sm:$0xff]
      %v565 = vld [vmem:[#allocation2 + $0x53] sm:$0xff]
      %v566 = vld [vmem:[#allocation2 + $0x5b] sm:$0xff]
      %v567 = vld [vmem:[#allocation2 + $0x63] sm:$0xff]
      %v568 = vld [vmem:[#allocation2 + $0x6b] sm:$0xff]
      %v569 = vld [vmem:[#allocation2 + $0x73] sm:$0xff]
      %v570 = vld [vmem:[#allocation2 + $0x7b] sm:$0xff]
      %v571 = vld [vmem:[#allocation2 + $0x83] sm:$0xff]
      %v572 = vld [vmem:[#allocation2 + $0x8b] sm:$0xff]
      %v573 = vld [vmem:[#allocation2 + $0x93] sm:$0xff]
      %v574 = vld [vmem:[#allocation2 + $0x9b] sm:$0xff]
      %v575 = vld [vmem:[#allocation2 + $0xa3] sm:$0xff]
      %v576 = vld [vmem:[#allocation2 + $0xab] sm:$0xff]
      %v577 = vld [vmem:[#allocation2 + $0xb3] sm:$0xff]
      %v578 = vld [vmem:[#allocation2 + $0xbb] sm:$0xff]
      %v579 = vld [vmem:[#allocation2 + $0xc3] sm:$0xff]
      %v580 = vld [vmem:[#allocation2 + $0xcb] sm:$0xff]
      %v581 = vld [vmem:[#allocation2 + $0xd3] sm:$0xff]
      %v582 = vld [vmem:[#allocation2 + $0xdb] sm:$0xff]
      %v583 = vld [vmem:[#allocation2 + $0xe3] sm:$0xff]
      %v584 = vld [vmem:[#allocation2 + $0xeb] sm:$0xff]
      %v585 = vld [vmem:[#allocation2 + $0xf3] sm:$0xff]
      %v586 = vld [vmem:[#allocation2 + $0xfb] sm:$0xff]
      %v587 = vld [vmem:[#allocation2 + $0x4] sm:$0xff]
      %v588 = vld [vmem:[#allocation2 + $0xc] sm:$0xff]
      %v589 = vld [vmem:[#allocation2 + $0x14] sm:$0xff]
      %v590 = vld [vmem:[#allocation2 + $0x1c] sm:$0xff]
      %v591 = vld [vmem:[#allocation2 + $0x24] sm:$0xff]
      %v592 = vld [vmem:[#allocation2 + $0x2c] sm:$0xff]
      %v593 = vld [vmem:[#allocation2 + $0x34] sm:$0xff]
      %v594 = vld [vmem:[#allocation2 + $0x3c] sm:$0xff]
      %v595 = vld [vmem:[#allocation2 + $0x44] sm:$0xff]
      %v596 = vld [vmem:[#allocation2 + $0x4c] sm:$0xff]
      %v597 = vld [vmem:[#allocation2 + $0x54] sm:$0xff]
      %v598 = vld [vmem:[#allocation2 + $0x5c] sm:$0xff]
      %v599 = vld [vmem:[#allocation2 + $0x64] sm:$0xff]
      %v600 = vld [vmem:[#allocation2 + $0x6c] sm:$0xff]
      %v601 = vld [vmem:[#allocation2 + $0x74] sm:$0xff]
      %v602 = vld [vmem:[#allocation2 + $0x7c] sm:$0xff]
      %v603 = vld [vmem:[#allocation2 + $0x84] sm:$0xff]
      %v604 = vld [vmem:[#allocation2 + $0x8c] sm:$0xff]
      %v605 = vld [vmem:[#allocation2 + $0x94] sm:$0xff]
      %v606 = vld [vmem:[#allocation2 + $0x9c] sm:$0xff]
      %v607 = vld [vmem:[#allocation2 + $0xa4] sm:$0xff]
      %v608 = vld [vmem:[#allocation2 + $0xac] sm:$0xff]
      %v609 = vld [vmem:[#allocation2 + $0xb4] sm:$0xff]
      %v610 = vld [vmem:[#allocation2 + $0xbc] sm:$0xff]
      %v611 = vld [vmem:[#allocation2 + $0xc4] sm:$0xff]
      %v612 = vld [vmem:[#allocation2 + $0xcc] sm:$0xff]
      %v613 = vld [vmem:[#allocation2 + $0xd4] sm:$0xff]
      %v614 = vld [vmem:[#allocation2 + $0xdc] sm:$0xff]
      %v615 = vld [vmem:[#allocation2 + $0xe4] sm:$0xff]
      %v616 = vld [vmem:[#allocation2 + $0xec] sm:$0xff]
      %v617 = vld [vmem:[#allocation2 + $0xf4] sm:$0xff]
      %v618 = vld [vmem:[#allocation2 + $0xfc] sm:$0xff]
      %v619 = vpack.c.bf16 %v492, %v491
      %v620 = vpack.c.bf16 %v494, %v493
      %v621 = vpack.c.bf16 %v496, %v495
      %v622 = vpack.c.bf16 %v498, %v497
      %v623 = vpack.c.bf16 %v500, %v499
      %v624 = vpack.c.bf16 %v502, %v501
      %v625 = vpack.c.bf16 %v504, %v503
      %v626 = vpack.c.bf16 %v506, %v505
      %v627 = vpack.c.bf16 %v508, %v507
      %v628 = vpack.c.bf16 %v510, %v509
      %v629 = vpack.c.bf16 %v512, %v511
      %v630 = vpack.c.bf16 %v514, %v513
      %v631 = vpack.c.bf16 %v516, %v515
      %v632 = vpack.c.bf16 %v518, %v517
      %v633 = vpack.c.bf16 %v520, %v519
      %v634 = vpack.c.bf16 %v522, %v521
      %v635 = vpack.c.bf16 %v524, %v523
      %v636 = vpack.c.bf16 %v526, %v525
      %v637 = vpack.c.bf16 %v528, %v527
      %v638 = vpack.c.bf16 %v530, %v529
      %v639 = vpack.c.bf16 %v532, %v531
      %v640 = vpack.c.bf16 %v534, %v533
      %v641 = vpack.c.bf16 %v536, %v535
      %v642 = vpack.c.bf16 %v538, %v537
      %v643 = vpack.c.bf16 %v540, %v539
      %v644 = vpack.c.bf16 %v542, %v541
      %v645 = vpack.c.bf16 %v544, %v543
      %v646 = vpack.c.bf16 %v546, %v545
      %v647 = vpack.c.bf16 %v548, %v547
      %v648 = vpack.c.bf16 %v550, %v549
      %v649 = vpack.c.bf16 %v552, %v551
      %v650 = vpack.c.bf16 %v554, %v553
      %v651 = vpack.c.bf16 %v556, %v555
      %v652 = vpack.c.bf16 %v558, %v557
      %v653 = vpack.c.bf16 %v560, %v559
      %v654 = vpack.c.bf16 %v562, %v561
      %v655 = vpack.c.bf16 %v564, %v563
      %v656 = vpack.c.bf16 %v566, %v565
      %v657 = vpack.c.bf16 %v568, %v567
      %v658 = vpack.c.bf16 %v570, %v569
      %v659 = vpack.c.bf16 %v572, %v571
      %v660 = vpack.c.bf16 %v574, %v573
      %v661 = vpack.c.bf16 %v576, %v575
      %v662 = vpack.c.bf16 %v578, %v577
      %v663 = vpack.c.bf16 %v580, %v579
      %v664 = vpack.c.bf16 %v582, %v581
      %v665 = vpack.c.bf16 %v584, %v583
      %v666 = vpack.c.bf16 %v586, %v585
      %v667 = vpack.c.bf16 %v588, %v587
      %v668 = vpack.c.bf16 %v590, %v589
      %v669 = vpack.c.bf16 %v592, %v591
      %v670 = vpack.c.bf16 %v594, %v593
      %v671 = vpack.c.bf16 %v596, %v595
      %v672 = vpack.c.bf16 %v598, %v597
      %v673 = vpack.c.bf16 %v600, %v599
      %v674 = vpack.c.bf16 %v602, %v601
      %v675 = vpack.c.bf16 %v604, %v603
      %v676 = vpack.c.bf16 %v606, %v605
      %v677 = vpack.c.bf16 %v608, %v607
      %v678 = vpack.c.bf16 %v610, %v609
      %v679 = vpack.c.bf16 %v612, %v611
      %v680 = vpack.c.bf16 %v614, %v613
      %v681 = vpack.c.bf16 %v616, %v615
      %v682 = vpack.c.bf16 %v618, %v617
      %v684 = vperm.slane %v490, 0
      %v685 = vperm.slane %v490, 1
      %v686 = vperm.slane %v490, 2
      %v687 = vperm.slane %v490, 3
      %v724 = vunpack.c.l.b16 %v426
      %v725 = vunpack.c.h.b16 %v426
      %v726 = vunpack.c.l.b16 %v427
      %v727 = vunpack.c.h.b16 %v427
      %v728 = vunpack.c.l.b16 %v428
      %v729 = vunpack.c.h.b16 %v428
      %v730 = vunpack.c.l.b16 %v429
      %v731 = vunpack.c.h.b16 %v429
      %v732 = vunpack.c.l.b16 %v430
      %v733 = vunpack.c.h.b16 %v430
      %v734 = vunpack.c.l.b16 %v431
      %v735 = vunpack.c.h.b16 %v431
      %v736 = vunpack.c.l.b16 %v432
      %v737 = vunpack.c.h.b16 %v432
      %v738 = vunpack.c.l.b16 %v433
      %v739 = vunpack.c.h.b16 %v433
      %v740 = vunpack.c.l.b16 %v434
      %v741 = vunpack.c.h.b16 %v434
      %v742 = vunpack.c.l.b16 %v435
      %v743 = vunpack.c.h.b16 %v435
      %v744 = vunpack.c.l.b16 %v436
      %v745 = vunpack.c.h.b16 %v436
      %v746 = vunpack.c.l.b16 %v437
      %v747 = vunpack.c.h.b16 %v437
      %v748 = vunpack.c.l.b16 %v438
      %v749 = vunpack.c.h.b16 %v438
      %v750 = vunpack.c.l.b16 %v439
      %v751 = vunpack.c.h.b16 %v439
      %v752 = vunpack.c.l.b16 %v440
      %v753 = vunpack.c.h.b16 %v440
      %v754 = vunpack.c.l.b16 %v441
      %v755 = vunpack.c.h.b16 %v441
      %v756 = vunpack.c.l.b16 %v442
      %v757 = vunpack.c.h.b16 %v442
      %v758 = vunpack.c.l.b16 %v443
      %v759 = vunpack.c.h.b16 %v443
      %v760 = vunpack.c.l.b16 %v444
      %v761 = vunpack.c.h.b16 %v444
      %v762 = vunpack.c.l.b16 %v445
      %v763 = vunpack.c.h.b16 %v445
      %v764 = vunpack.c.l.b16 %v446
      %v765 = vunpack.c.h.b16 %v446
      %v766 = vunpack.c.l.b16 %v447
      %v767 = vunpack.c.h.b16 %v447
      %v768 = vunpack.c.l.b16 %v448
      %v769 = vunpack.c.h.b16 %v448
      %v770 = vunpack.c.l.b16 %v449
      %v771 = vunpack.c.h.b16 %v449
      %v772 = vunpack.c.l.b16 %v450
      %v773 = vunpack.c.h.b16 %v450
      %v774 = vunpack.c.l.b16 %v451
      %v775 = vunpack.c.h.b16 %v451
      %v776 = vunpack.c.l.b16 %v452
      %v777 = vunpack.c.h.b16 %v452
      %v778 = vunpack.c.l.b16 %v453
      %v779 = vunpack.c.h.b16 %v453
      %v780 = vunpack.c.l.b16 %v454
      %v781 = vunpack.c.h.b16 %v454
      %v782 = vunpack.c.l.b16 %v455
      %v783 = vunpack.c.h.b16 %v455
      %v784 = vunpack.c.l.b16 %v456
      %v785 = vunpack.c.h.b16 %v456
      %v786 = vunpack.c.l.b16 %v457
      %v787 = vunpack.c.h.b16 %v457
      %v788 = vpack.c.b16 %v728, %v724
      %v789 = vpack.c.b16 %v729, %v725
      %v790 = vpack.c.b16 %v730, %v726
      %v791 = vpack.c.b16 %v731, %v727
      %v792 = vpack.c.b16 %v736, %v732
      %v793 = vpack.c.b16 %v737, %v733
      %v794 = vpack.c.b16 %v738, %v734
      %v795 = vpack.c.b16 %v739, %v735
      %v796 = vpack.c.b16 %v744, %v740
      %v797 = vpack.c.b16 %v745, %v741
      %v798 = vpack.c.b16 %v746, %v742
      %v799 = vpack.c.b16 %v747, %v743
      %v800 = vpack.c.b16 %v752, %v748
      %v801 = vpack.c.b16 %v753, %v749
      %v802 = vpack.c.b16 %v754, %v750
      %v803 = vpack.c.b16 %v755, %v751
      %v804 = vpack.c.b16 %v760, %v756
      %v805 = vpack.c.b16 %v761, %v757
      %v806 = vpack.c.b16 %v762, %v758
      %v807 = vpack.c.b16 %v763, %v759
      %v808 = vpack.c.b16 %v768, %v764
      %v809 = vpack.c.b16 %v769, %v765
      %v810 = vpack.c.b16 %v770, %v766
      %v811 = vpack.c.b16 %v771, %v767
      %v812 = vpack.c.b16 %v776, %v772
      %v813 = vpack.c.b16 %v777, %v773
      %v814 = vpack.c.b16 %v778, %v774
      %v815 = vpack.c.b16 %v779, %v775
      %v816 = vpack.c.b16 %v784, %v780
      %v817 = vpack.c.b16 %v785, %v781
      %v818 = vpack.c.b16 %v786, %v782
      %v819 = vpack.c.b16 %v787, %v783
      %852 = vmatpush.bf16.msra.mxu0 %v816
      %853 = vmatpush.bf16.msra.mxu0 %v812
      %854 = vmatpush.bf16.msra.mxu0 %v808
      %855 = vmatpush.bf16.msra.mxu0 %v804
      %856 = vmatpush.bf16.msra.mxu0 %v800
      %857 = vmatpush.bf16.msra.mxu0 %v796
      %858 = vmatpush.bf16.msra.mxu0 %v792
      %859 = vmatpush.bf16.msra.mxu0 %v788
      %860 = vmatmul.bf16.gmra.mxu0 %v619
      %v861 = vpop.f32.mrf.mxu0
      %v862 = vadd.f32 %v684, %v861
      %v863 = vpop.f32.mrf.mxu0
      %v864 = vadd.f32 %v684, %v863
      %865 = vmatmul.bf16.gmra.mxu0 %v620
      %v866 = vpop.f32.mrf.mxu0
      %v867 = vadd.f32 %v684, %v866
      %v868 = vpop.f32.mrf.mxu0
      %v869 = vadd.f32 %v684, %v868
      %870 = vmatmul.bf16.gmra.mxu0 %v621
      %v871 = vpop.f32.mrf.mxu0
      %v872 = vadd.f32 %v684, %v871
      %v873 = vpop.f32.mrf.mxu0
      %v874 = vadd.f32 %v684, %v873
      %875 = vmatmul.bf16.gmra.mxu0 %v622
      %v876 = vpop.f32.mrf.mxu0
      %v877 = vadd.f32 %v684, %v876
      %v878 = vpop.f32.mrf.mxu0
      %v879 = vadd.f32 %v684, %v878
      %880 = vmatmul.bf16.gmra.mxu0 %v623
      %v881 = vpop.f32.mrf.mxu0
      %v882 = vadd.f32 %v684, %v881
      %v883 = vpop.f32.mrf.mxu0
      %v884 = vadd.f32 %v684, %v883
      %885 = vmatmul.bf16.gmra.mxu0 %v624
      %v886 = vpop.f32.mrf.mxu0
      %v887 = vadd.f32 %v684, %v886
      %v888 = vpop.f32.mrf.mxu0
      %v889 = vadd.f32 %v684, %v888
      %890 = vmatmul.bf16.gmra.mxu0 %v625
      %v891 = vpop.f32.mrf.mxu0
      %v892 = vadd.f32 %v684, %v891
      %v893 = vpop.f32.mrf.mxu0
      %v894 = vadd.f32 %v684, %v893
      %895 = vmatmul.bf16.gmra.mxu0 %v626
      %v896 = vpop.f32.mrf.mxu0
      %v897 = vadd.f32 %v684, %v896
      %v898 = vpop.f32.mrf.mxu0
      %v899 = vadd.f32 %v684, %v898
      %900 = vmatmul.bf16.gmra.mxu0 %v627
      %v901 = vpop.f32.mrf.mxu0
      %v902 = vadd.f32 %v684, %v901
      %v903 = vpop.f32.mrf.mxu0
      %v904 = vadd.f32 %v684, %v903
      %905 = vmatmul.bf16.gmra.mxu0 %v628
      %v906 = vpop.f32.mrf.mxu0
      %v907 = vadd.f32 %v684, %v906
      %v908 = vpop.f32.mrf.mxu0
      %v909 = vadd.f32 %v684, %v908
      %910 = vmatmul.bf16.gmra.mxu0 %v629
      %v911 = vpop.f32.mrf.mxu0
      %v912 = vadd.f32 %v684, %v911
      %v913 = vpop.f32.mrf.mxu0
      %v914 = vadd.f32 %v684, %v913
      %915 = vmatmul.bf16.gmra.mxu0 %v630
      %v916 = vpop.f32.mrf.mxu0
      %v917 = vadd.f32 %v684, %v916
      %v918 = vpop.f32.mrf.mxu0
      %v919 = vadd.f32 %v684, %v918
      %920 = vmatmul.bf16.gmra.mxu0 %v631
      %v921 = vpop.f32.mrf.mxu0
      %v922 = vadd.f32 %v684, %v921
      %v923 = vpop.f32.mrf.mxu0
      %v924 = vadd.f32 %v684, %v923
      %925 = vmatmul.bf16.gmra.mxu0 %v632
      %v926 = vpop.f32.mrf.mxu0
      %v927 = vadd.f32 %v684, %v926
      %v928 = vpop.f32.mrf.mxu0
      %v929 = vadd.f32 %v684, %v928
      %930 = vmatmul.bf16.gmra.mxu0 %v633
      %v931 = vpop.f32.mrf.mxu0
      %v932 = vadd.f32 %v684, %v931
      %v933 = vpop.f32.mrf.mxu0
      %v934 = vadd.f32 %v684, %v933
      %935 = vmatmul.bf16.gmra.mxu0 %v634
      %v936 = vpop.f32.mrf.mxu0
      %v937 = vadd.f32 %v684, %v936
      %v938 = vpop.f32.mrf.mxu0
      %v939 = vadd.f32 %v684, %v938
      %940 = vmatmul.bf16.gmra.mxu0 %v635
      %v941 = vpop.f32.mrf.mxu0
      %v942 = vadd.f32 %v684, %v941
      %v943 = vpop.f32.mrf.mxu0
      %v944 = vadd.f32 %v684, %v943
      %945 = vmatmul.bf16.gmra.mxu0 %v636
      %v946 = vpop.f32.mrf.mxu0
      %v947 = vadd.f32 %v684, %v946
      %v948 = vpop.f32.mrf.mxu0
      %v949 = vadd.f32 %v684, %v948
      %950 = vmatmul.bf16.gmra.mxu0 %v637
      %v951 = vpop.f32.mrf.mxu0
      %v952 = vadd.f32 %v684, %v951
      %v953 = vpop.f32.mrf.mxu0
      %v954 = vadd.f32 %v684, %v953
      %955 = vmatmul.bf16.gmra.mxu0 %v638
      %v956 = vpop.f32.mrf.mxu0
      %v957 = vadd.f32 %v684, %v956
      %v958 = vpop.f32.mrf.mxu0
      %v959 = vadd.f32 %v684, %v958
      %960 = vmatmul.bf16.gmra.mxu0 %v639
      %v961 = vpop.f32.mrf.mxu0
      %v962 = vadd.f32 %v684, %v961
      %v963 = vpop.f32.mrf.mxu0
      %v964 = vadd.f32 %v684, %v963
      %965 = vmatmul.bf16.gmra.mxu0 %v640
      %v966 = vpop.f32.mrf.mxu0
      %v967 = vadd.f32 %v684, %v966
      %v968 = vpop.f32.mrf.mxu0
      %v969 = vadd.f32 %v684, %v968
      %970 = vmatmul.bf16.gmra.mxu0 %v641
      %v971 = vpop.f32.mrf.mxu0
      %v972 = vadd.f32 %v684, %v971
      %v973 = vpop.f32.mrf.mxu0
      %v974 = vadd.f32 %v684, %v973
      %975 = vmatmul.bf16.gmra.mxu0 %v642
      %v976 = vpop.f32.mrf.mxu0
      %v977 = vadd.f32 %v684, %v976
      %v978 = vpop.f32.mrf.mxu0
      %v979 = vadd.f32 %v684, %v978
      %980 = vmatmul.bf16.gmra.mxu0 %v643
      %v981 = vpop.f32.mrf.mxu0
      %v982 = vadd.f32 %v684, %v981
      %v983 = vpop.f32.mrf.mxu0
      %v984 = vadd.f32 %v684, %v983
      %985 = vmatmul.bf16.gmra.mxu0 %v644
      %v986 = vpop.f32.mrf.mxu0
      %v987 = vadd.f32 %v684, %v986
      %v988 = vpop.f32.mrf.mxu0
      %v989 = vadd.f32 %v684, %v988
      %990 = vmatmul.bf16.gmra.mxu0 %v645
      %v991 = vpop.f32.mrf.mxu0
      %v992 = vadd.f32 %v684, %v991
      %v993 = vpop.f32.mrf.mxu0
      %v994 = vadd.f32 %v684, %v993
      %995 = vmatmul.bf16.gmra.mxu0 %v646
      %v996 = vpop.f32.mrf.mxu0
      %v997 = vadd.f32 %v684, %v996
      %v998 = vpop.f32.mrf.mxu0
      %v999 = vadd.f32 %v684, %v998
      %1000 = vmatmul.bf16.gmra.mxu0 %v647
      %v1001 = vpop.f32.mrf.mxu0
      %v1002 = vadd.f32 %v684, %v1001
      %v1003 = vpop.f32.mrf.mxu0
      %v1004 = vadd.f32 %v684, %v1003
      %1005 = vmatmul.bf16.gmra.mxu0 %v648
      %v1006 = vpop.f32.mrf.mxu0
      %v1007 = vadd.f32 %v684, %v1006
      %v1008 = vpop.f32.mrf.mxu0
      %v1009 = vadd.f32 %v684, %v1008
      %1010 = vmatmul.bf16.gmra.mxu0 %v649
      %v1011 = vpop.f32.mrf.mxu0
      %v1012 = vadd.f32 %v684, %v1011
      %v1013 = vpop.f32.mrf.mxu0
      %v1014 = vadd.f32 %v684, %v1013
      %1015 = vmatmul.bf16.gmra.mxu0 %v650
      %v1016 = vpop.f32.mrf.mxu0
      %v1017 = vadd.f32 %v684, %v1016
      %v1018 = vpop.f32.mrf.mxu0
      %v1019 = vadd.f32 %v684, %v1018
      %1020 = vmatmul.bf16.gmra.mxu0 %v651
      %v1021 = vpop.f32.mrf.mxu0
      %v1022 = vadd.f32 %v684, %v1021
      %v1023 = vpop.f32.mrf.mxu0
      %v1024 = vadd.f32 %v684, %v1023
      %1025 = vmatmul.bf16.gmra.mxu0 %v652
      %v1026 = vpop.f32.mrf.mxu0
      %v1027 = vadd.f32 %v684, %v1026
      %v1028 = vpop.f32.mrf.mxu0
      %v1029 = vadd.f32 %v684, %v1028
      %1030 = vmatmul.bf16.gmra.mxu0 %v653
      %v1031 = vpop.f32.mrf.mxu0
      %v1032 = vadd.f32 %v684, %v1031
      %v1033 = vpop.f32.mrf.mxu0
      %v1034 = vadd.f32 %v684, %v1033
      %1035 = vmatmul.bf16.gmra.mxu0 %v654
      %v1036 = vpop.f32.mrf.mxu0
      %v1037 = vadd.f32 %v684, %v1036
      %v1038 = vpop.f32.mrf.mxu0
      %v1039 = vadd.f32 %v684, %v1038
      %1040 = vmatmul.bf16.gmra.mxu0 %v655
      %v1041 = vpop.f32.mrf.mxu0
      %v1042 = vadd.f32 %v684, %v1041
      %v1043 = vpop.f32.mrf.mxu0
      %v1044 = vadd.f32 %v684, %v1043
      %1045 = vmatmul.bf16.gmra.mxu0 %v656
      %v1046 = vpop.f32.mrf.mxu0
      %v1047 = vadd.f32 %v684, %v1046
      %v1048 = vpop.f32.mrf.mxu0
      %v1049 = vadd.f32 %v684, %v1048
      %1050 = vmatmul.bf16.gmra.mxu0 %v657
      %v1051 = vpop.f32.mrf.mxu0
      %v1052 = vadd.f32 %v684, %v1051
      %v1053 = vpop.f32.mrf.mxu0
      %v1054 = vadd.f32 %v684, %v1053
      %1055 = vmatmul.bf16.gmra.mxu0 %v658
      %v1056 = vpop.f32.mrf.mxu0
      %v1057 = vadd.f32 %v684, %v1056
      %v1058 = vpop.f32.mrf.mxu0
      %v1059 = vadd.f32 %v684, %v1058
      %1060 = vmatmul.bf16.gmra.mxu0 %v659
      %v1061 = vpop.f32.mrf.mxu0
      %v1062 = vadd.f32 %v684, %v1061
      %v1063 = vpop.f32.mrf.mxu0
      %v1064 = vadd.f32 %v684, %v1063
      %1065 = vmatmul.bf16.gmra.mxu0 %v660
      %v1066 = vpop.f32.mrf.mxu0
      %v1067 = vadd.f32 %v684, %v1066
      %v1068 = vpop.f32.mrf.mxu0
      %v1069 = vadd.f32 %v684, %v1068
      %1070 = vmatmul.bf16.gmra.mxu0 %v661
      %v1071 = vpop.f32.mrf.mxu0
      %v1072 = vadd.f32 %v684, %v1071
      %v1073 = vpop.f32.mrf.mxu0
      %v1074 = vadd.f32 %v684, %v1073
      %1075 = vmatmul.bf16.gmra.mxu0 %v662
      %v1076 = vpop.f32.mrf.mxu0
      %v1077 = vadd.f32 %v684, %v1076
      %v1078 = vpop.f32.mrf.mxu0
      %v1079 = vadd.f32 %v684, %v1078
      %1080 = vmatmul.bf16.gmra.mxu0 %v663
      %v1081 = vpop.f32.mrf.mxu0
      %v1082 = vadd.f32 %v684, %v1081
      %v1083 = vpop.f32.mrf.mxu0
      %v1084 = vadd.f32 %v684, %v1083
      %1085 = vmatmul.bf16.gmra.mxu0 %v664
      %v1086 = vpop.f32.mrf.mxu0
      %v1087 = vadd.f32 %v684, %v1086
      %v1088 = vpop.f32.mrf.mxu0
      %v1089 = vadd.f32 %v684, %v1088
      %1090 = vmatmul.bf16.gmra.mxu0 %v665
      %v1091 = vpop.f32.mrf.mxu0
      %v1092 = vadd.f32 %v684, %v1091
      %v1093 = vpop.f32.mrf.mxu0
      %v1094 = vadd.f32 %v684, %v1093
      %1095 = vmatmul.bf16.gmra.mxu0 %v666
      %v1096 = vpop.f32.mrf.mxu0
      %v1097 = vadd.f32 %v684, %v1096
      %v1098 = vpop.f32.mrf.mxu0
      %v1099 = vadd.f32 %v684, %v1098
      %1100 = vmatmul.bf16.gmra.mxu0 %v667
      %v1101 = vpop.f32.mrf.mxu0
      %v1102 = vadd.f32 %v684, %v1101
      %v1103 = vpop.f32.mrf.mxu0
      %v1104 = vadd.f32 %v684, %v1103
      %1105 = vmatmul.bf16.gmra.mxu0 %v668
      %v1106 = vpop.f32.mrf.mxu0
      %v1107 = vadd.f32 %v684, %v1106
      %v1108 = vpop.f32.mrf.mxu0
      %v1109 = vadd.f32 %v684, %v1108
      %1110 = vmatmul.bf16.gmra.mxu0 %v669
      %v1111 = vpop.f32.mrf.mxu0
      %v1112 = vadd.f32 %v684, %v1111
      %v1113 = vpop.f32.mrf.mxu0
      %v1114 = vadd.f32 %v684, %v1113
      %1115 = vmatmul.bf16.gmra.mxu0 %v670
      %v1116 = vpop.f32.mrf.mxu0
      %v1117 = vadd.f32 %v684, %v1116
      %v1118 = vpop.f32.mrf.mxu0
      %v1119 = vadd.f32 %v684, %v1118
      %1120 = vmatmul.bf16.gmra.mxu0 %v671
      %v1121 = vpop.f32.mrf.mxu0
      %v1122 = vadd.f32 %v684, %v1121
      %v1123 = vpop.f32.mrf.mxu0
      %v1124 = vadd.f32 %v684, %v1123
      %1125 = vmatmul.bf16.gmra.mxu0 %v672
      %v1126 = vpop.f32.mrf.mxu0
      %v1127 = vadd.f32 %v684, %v1126
      %v1128 = vpop.f32.mrf.mxu0
      %v1129 = vadd.f32 %v684, %v1128
      %1130 = vmatmul.bf16.gmra.mxu0 %v673
      %v1131 = vpop.f32.mrf.mxu0
      %v1132 = vadd.f32 %v684, %v1131
      %v1133 = vpop.f32.mrf.mxu0
      %v1134 = vadd.f32 %v684, %v1133
      %1135 = vmatmul.bf16.gmra.mxu0 %v674
      %v1136 = vpop.f32.mrf.mxu0
      %v1137 = vadd.f32 %v684, %v1136
      %v1138 = vpop.f32.mrf.mxu0
      %v1139 = vadd.f32 %v684, %v1138
      %1140 = vmatmul.bf16.gmra.mxu0 %v675
      %v1141 = vpop.f32.mrf.mxu0
      %v1142 = vadd.f32 %v684, %v1141
      %v1143 = vpop.f32.mrf.mxu0
      %v1144 = vadd.f32 %v684, %v1143
      %1145 = vmatmul.bf16.gmra.mxu0 %v676
      %v1146 = vpop.f32.mrf.mxu0
      %v1147 = vadd.f32 %v684, %v1146
      %v1148 = vpop.f32.mrf.mxu0
      %v1149 = vadd.f32 %v684, %v1148
      %1150 = vmatmul.bf16.gmra.mxu0 %v677
      %v1151 = vpop.f32.mrf.mxu0
      %v1152 = vadd.f32 %v684, %v1151
      %v1153 = vpop.f32.mrf.mxu0
      %v1154 = vadd.f32 %v684, %v1153
      %1155 = vmatmul.bf16.gmra.mxu0 %v678
      %v1156 = vpop.f32.mrf.mxu0
      %v1157 = vadd.f32 %v684, %v1156
      %v1158 = vpop.f32.mrf.mxu0
      %v1159 = vadd.f32 %v684, %v1158
      %1160 = vmatmul.bf16.gmra.mxu0 %v679
      %v1161 = vpop.f32.mrf.mxu0
      %v1162 = vadd.f32 %v684, %v1161
      %v1163 = vpop.f32.mrf.mxu0
      %v1164 = vadd.f32 %v684, %v1163
      %1165 = vmatmul.bf16.gmra.mxu0 %v680
      %v1166 = vpop.f32.mrf.mxu0
      %v1167 = vadd.f32 %v684, %v1166
      %v1168 = vpop.f32.mrf.mxu0
      %v1169 = vadd.f32 %v684, %v1168
      %1170 = vmatmul.bf16.gmra.mxu0 %v681
      %v1171 = vpop.f32.mrf.mxu0
      %v1172 = vadd.f32 %v684, %v1171
      %v1173 = vpop.f32.mrf.mxu0
      %v1174 = vadd.f32 %v684, %v1173
      %1175 = vmatmul.bf16.gmra.mxu0 %v682
      %v1176 = vpop.f32.mrf.mxu0
      %v1177 = vadd.f32 %v684, %v1176
      %v1178 = vpop.f32.mrf.mxu0
      %v1179 = vadd.f32 %v684, %v1178
      %1180 = vdwg.mxu0
      %1181 = vmatpush.bf16.msra.mxu0 %v817
      %1182 = vmatpush.bf16.msra.mxu0 %v813
      %1183 = vmatpush.bf16.msra.mxu0 %v809
      %1184 = vmatpush.bf16.msra.mxu0 %v805
      %1185 = vmatpush.bf16.msra.mxu0 %v801
      %1186 = vmatpush.bf16.msra.mxu0 %v797
      %1187 = vmatpush.bf16.msra.mxu0 %v793
      %1188 = vmatpush.bf16.msra.mxu0 %v789
      %1189 = vmatmul.bf16.gmra.mxu0 %v619
      %v1190 = vpop.f32.mrf.mxu0
      %v1191 = vadd.f32 %v685, %v1190
      %v1192 = vpop.f32.mrf.mxu0
      %v1193 = vadd.f32 %v685, %v1192
      %1194 = vmatmul.bf16.gmra.mxu0 %v620
      %v1195 = vpop.f32.mrf.mxu0
      %v1196 = vadd.f32 %v685, %v1195
      %v1197 = vpop.f32.mrf.mxu0
      %v1198 = vadd.f32 %v685, %v1197
      %1199 = vmatmul.bf16.gmra.mxu0 %v621
      %v1200 = vpop.f32.mrf.mxu0
      %v1201 = vadd.f32 %v685, %v1200
      %v1202 = vpop.f32.mrf.mxu0
      %v1203 = vadd.f32 %v685, %v1202
      %1204 = vmatmul.bf16.gmra.mxu0 %v622
      %v1205 = vpop.f32.mrf.mxu0
      %v1206 = vadd.f32 %v685, %v1205
      %v1207 = vpop.f32.mrf.mxu0
      %v1208 = vadd.f32 %v685, %v1207
      %1209 = vmatmul.bf16.gmra.mxu0 %v623
      %v1210 = vpop.f32.mrf.mxu0
      %v1211 = vadd.f32 %v685, %v1210
      %v1212 = vpop.f32.mrf.mxu0
      %v1213 = vadd.f32 %v685, %v1212
      %1214 = vmatmul.bf16.gmra.mxu0 %v624
      %v1215 = vpop.f32.mrf.mxu0
      %v1216 = vadd.f32 %v685, %v1215
      %v1217 = vpop.f32.mrf.mxu0
      %v1218 = vadd.f32 %v685, %v1217
      %1219 = vmatmul.bf16.gmra.mxu0 %v625
      %v1220 = vpop.f32.mrf.mxu0
      %v1221 = vadd.f32 %v685, %v1220
      %v1222 = vpop.f32.mrf.mxu0
      %v1223 = vadd.f32 %v685, %v1222
      %1224 = vmatmul.bf16.gmra.mxu0 %v626
      %v1225 = vpop.f32.mrf.mxu0
      %v1226 = vadd.f32 %v685, %v1225
      %v1227 = vpop.f32.mrf.mxu0
      %v1228 = vadd.f32 %v685, %v1227
      %1229 = vmatmul.bf16.gmra.mxu0 %v627
      %v1230 = vpop.f32.mrf.mxu0
      %v1231 = vadd.f32 %v685, %v1230
      %v1232 = vpop.f32.mrf.mxu0
      %v1233 = vadd.f32 %v685, %v1232
      %1234 = vmatmul.bf16.gmra.mxu0 %v628
      %v1235 = vpop.f32.mrf.mxu0
      %v1236 = vadd.f32 %v685, %v1235
      %v1237 = vpop.f32.mrf.mxu0
      %v1238 = vadd.f32 %v685, %v1237
      %1239 = vmatmul.bf16.gmra.mxu0 %v629
      %v1240 = vpop.f32.mrf.mxu0
      %v1241 = vadd.f32 %v685, %v1240
      %v1242 = vpop.f32.mrf.mxu0
      %v1243 = vadd.f32 %v685, %v1242
      %1244 = vmatmul.bf16.gmra.mxu0 %v630
      %v1245 = vpop.f32.mrf.mxu0
      %v1246 = vadd.f32 %v685, %v1245
      %v1247 = vpop.f32.mrf.mxu0
      %v1248 = vadd.f32 %v685, %v1247
      %1249 = vmatmul.bf16.gmra.mxu0 %v631
      %v1250 = vpop.f32.mrf.mxu0
      %v1251 = vadd.f32 %v685, %v1250
      %v1252 = vpop.f32.mrf.mxu0
      %v1253 = vadd.f32 %v685, %v1252
      %1254 = vmatmul.bf16.gmra.mxu0 %v632
      %v1255 = vpop.f32.mrf.mxu0
      %v1256 = vadd.f32 %v685, %v1255
      %v1257 = vpop.f32.mrf.mxu0
      %v1258 = vadd.f32 %v685, %v1257
      %1259 = vmatmul.bf16.gmra.mxu0 %v633
      %v1260 = vpop.f32.mrf.mxu0
      %v1261 = vadd.f32 %v685, %v1260
      %v1262 = vpop.f32.mrf.mxu0
      %v1263 = vadd.f32 %v685, %v1262
      %1264 = vmatmul.bf16.gmra.mxu0 %v634
      %v1265 = vpop.f32.mrf.mxu0
      %v1266 = vadd.f32 %v685, %v1265
      %v1267 = vpop.f32.mrf.mxu0
      %v1268 = vadd.f32 %v685, %v1267
      %1269 = vmatmul.bf16.gmra.mxu0 %v635
      %v1270 = vpop.f32.mrf.mxu0
      %v1271 = vadd.f32 %v685, %v1270
      %v1272 = vpop.f32.mrf.mxu0
      %v1273 = vadd.f32 %v685, %v1272
      %1274 = vmatmul.bf16.gmra.mxu0 %v636
      %v1275 = vpop.f32.mrf.mxu0
      %v1276 = vadd.f32 %v685, %v1275
      %v1277 = vpop.f32.mrf.mxu0
      %v1278 = vadd.f32 %v685, %v1277
      %1279 = vmatmul.bf16.gmra.mxu0 %v637
      %v1280 = vpop.f32.mrf.mxu0
      %v1281 = vadd.f32 %v685, %v1280
      %v1282 = vpop.f32.mrf.mxu0
      %v1283 = vadd.f32 %v685, %v1282
      %1284 = vmatmul.bf16.gmra.mxu0 %v638
      %v1285 = vpop.f32.mrf.mxu0
      %v1286 = vadd.f32 %v685, %v1285
      %v1287 = vpop.f32.mrf.mxu0
      %v1288 = vadd.f32 %v685, %v1287
      %1289 = vmatmul.bf16.gmra.mxu0 %v639
      %v1290 = vpop.f32.mrf.mxu0
      %v1291 = vadd.f32 %v685, %v1290
      %v1292 = vpop.f32.mrf.mxu0
      %v1293 = vadd.f32 %v685, %v1292
      %1294 = vmatmul.bf16.gmra.mxu0 %v640
      %v1295 = vpop.f32.mrf.mxu0
      %v1296 = vadd.f32 %v685, %v1295
      %v1297 = vpop.f32.mrf.mxu0
      %v1298 = vadd.f32 %v685, %v1297
      %1299 = vmatmul.bf16.gmra.mxu0 %v641
      %v1300 = vpop.f32.mrf.mxu0
      %v1301 = vadd.f32 %v685, %v1300
      %v1302 = vpop.f32.mrf.mxu0
      %v1303 = vadd.f32 %v685, %v1302
      %1304 = vmatmul.bf16.gmra.mxu0 %v642
      %v1305 = vpop.f32.mrf.mxu0
      %v1306 = vadd.f32 %v685, %v1305
      %v1307 = vpop.f32.mrf.mxu0
      %v1308 = vadd.f32 %v685, %v1307
      %1309 = vmatmul.bf16.gmra.mxu0 %v643
      %v1310 = vpop.f32.mrf.mxu0
      %v1311 = vadd.f32 %v685, %v1310
      %v1312 = vpop.f32.mrf.mxu0
      %v1313 = vadd.f32 %v685, %v1312
      %1314 = vmatmul.bf16.gmra.mxu0 %v644
      %v1315 = vpop.f32.mrf.mxu0
      %v1316 = vadd.f32 %v685, %v1315
      %v1317 = vpop.f32.mrf.mxu0
      %v1318 = vadd.f32 %v685, %v1317
      %1319 = vmatmul.bf16.gmra.mxu0 %v645
      %v1320 = vpop.f32.mrf.mxu0
      %v1321 = vadd.f32 %v685, %v1320
      %v1322 = vpop.f32.mrf.mxu0
      %v1323 = vadd.f32 %v685, %v1322
      %1324 = vmatmul.bf16.gmra.mxu0 %v646
      %v1325 = vpop.f32.mrf.mxu0
      %v1326 = vadd.f32 %v685, %v1325
      %v1327 = vpop.f32.mrf.mxu0
      %v1328 = vadd.f32 %v685, %v1327
      %1329 = vmatmul.bf16.gmra.mxu0 %v647
      %v1330 = vpop.f32.mrf.mxu0
      %v1331 = vadd.f32 %v685, %v1330
      %v1332 = vpop.f32.mrf.mxu0
      %v1333 = vadd.f32 %v685, %v1332
      %1334 = vmatmul.bf16.gmra.mxu0 %v648
      %v1335 = vpop.f32.mrf.mxu0
      %v1336 = vadd.f32 %v685, %v1335
      %v1337 = vpop.f32.mrf.mxu0
      %v1338 = vadd.f32 %v685, %v1337
      %1339 = vmatmul.bf16.gmra.mxu0 %v649
      %v1340 = vpop.f32.mrf.mxu0
      %v1341 = vadd.f32 %v685, %v1340
      %v1342 = vpop.f32.mrf.mxu0
      %v1343 = vadd.f32 %v685, %v1342
      %1344 = vmatmul.bf16.gmra.mxu0 %v650
      %v1345 = vpop.f32.mrf.mxu0
      %v1346 = vadd.f32 %v685, %v1345
      %v1347 = vpop.f32.mrf.mxu0
      %v1348 = vadd.f32 %v685, %v1347
      %1349 = vmatmul.bf16.gmra.mxu0 %v651
      %v1350 = vpop.f32.mrf.mxu0
      %v1351 = vadd.f32 %v685, %v1350
      %v1352 = vpop.f32.mrf.mxu0
      %v1353 = vadd.f32 %v685, %v1352
      %1354 = vmatmul.bf16.gmra.mxu0 %v652
      %v1355 = vpop.f32.mrf.mxu0
      %v1356 = vadd.f32 %v685, %v1355
      %v1357 = vpop.f32.mrf.mxu0
      %v1358 = vadd.f32 %v685, %v1357
      %1359 = vmatmul.bf16.gmra.mxu0 %v653
      %v1360 = vpop.f32.mrf.mxu0
      %v1361 = vadd.f32 %v685, %v1360
      %v1362 = vpop.f32.mrf.mxu0
      %v1363 = vadd.f32 %v685, %v1362
      %1364 = vmatmul.bf16.gmra.mxu0 %v654
      %v1365 = vpop.f32.mrf.mxu0
      %v1366 = vadd.f32 %v685, %v1365
      %v1367 = vpop.f32.mrf.mxu0
      %v1368 = vadd.f32 %v685, %v1367
      %1369 = vmatmul.bf16.gmra.mxu0 %v655
      %v1370 = vpop.f32.mrf.mxu0
      %v1371 = vadd.f32 %v685, %v1370
      %v1372 = vpop.f32.mrf.mxu0
      %v1373 = vadd.f32 %v685, %v1372
      %1374 = vmatmul.bf16.gmra.mxu0 %v656
      %v1375 = vpop.f32.mrf.mxu0
      %v1376 = vadd.f32 %v685, %v1375
      %v1377 = vpop.f32.mrf.mxu0
      %v1378 = vadd.f32 %v685, %v1377
      %1379 = vmatmul.bf16.gmra.mxu0 %v657
      %v1380 = vpop.f32.mrf.mxu0
      %v1381 = vadd.f32 %v685, %v1380
      %v1382 = vpop.f32.mrf.mxu0
      %v1383 = vadd.f32 %v685, %v1382
      %1384 = vmatmul.bf16.gmra.mxu0 %v658
      %v1385 = vpop.f32.mrf.mxu0
      %v1386 = vadd.f32 %v685, %v1385
      %v1387 = vpop.f32.mrf.mxu0
      %v1388 = vadd.f32 %v685, %v1387
      %1389 = vmatmul.bf16.gmra.mxu0 %v659
      %v1390 = vpop.f32.mrf.mxu0
      %v1391 = vadd.f32 %v685, %v1390
      %v1392 = vpop.f32.mrf.mxu0
      %v1393 = vadd.f32 %v685, %v1392
      %1394 = vmatmul.bf16.gmra.mxu0 %v660
      %v1395 = vpop.f32.mrf.mxu0
      %v1396 = vadd.f32 %v685, %v1395
      %v1397 = vpop.f32.mrf.mxu0
      %v1398 = vadd.f32 %v685, %v1397
      %1399 = vmatmul.bf16.gmra.mxu0 %v661
      %v1400 = vpop.f32.mrf.mxu0
      %v1401 = vadd.f32 %v685, %v1400
      %v1402 = vpop.f32.mrf.mxu0
      %v1403 = vadd.f32 %v685, %v1402
      %1404 = vmatmul.bf16.gmra.mxu0 %v662
      %v1405 = vpop.f32.mrf.mxu0
      %v1406 = vadd.f32 %v685, %v1405
      %v1407 = vpop.f32.mrf.mxu0
      %v1408 = vadd.f32 %v685, %v1407
      %1409 = vmatmul.bf16.gmra.mxu0 %v663
      %v1410 = vpop.f32.mrf.mxu0
      %v1411 = vadd.f32 %v685, %v1410
      %v1412 = vpop.f32.mrf.mxu0
      %v1413 = vadd.f32 %v685, %v1412
      %1414 = vmatmul.bf16.gmra.mxu0 %v664
      %v1415 = vpop.f32.mrf.mxu0
      %v1416 = vadd.f32 %v685, %v1415
      %v1417 = vpop.f32.mrf.mxu0
      %v1418 = vadd.f32 %v685, %v1417
      %1419 = vmatmul.bf16.gmra.mxu0 %v665
      %v1420 = vpop.f32.mrf.mxu0
      %v1421 = vadd.f32 %v685, %v1420
      %v1422 = vpop.f32.mrf.mxu0
      %v1423 = vadd.f32 %v685, %v1422
      %1424 = vmatmul.bf16.gmra.mxu0 %v666
      %v1425 = vpop.f32.mrf.mxu0
      %v1426 = vadd.f32 %v685, %v1425
      %v1427 = vpop.f32.mrf.mxu0
      %v1428 = vadd.f32 %v685, %v1427
      %1429 = vmatmul.bf16.gmra.mxu0 %v667
      %v1430 = vpop.f32.mrf.mxu0
      %v1431 = vadd.f32 %v685, %v1430
      %v1432 = vpop.f32.mrf.mxu0
      %v1433 = vadd.f32 %v685, %v1432
      %1434 = vmatmul.bf16.gmra.mxu0 %v668
      %v1435 = vpop.f32.mrf.mxu0
      %v1436 = vadd.f32 %v685, %v1435
      %v1437 = vpop.f32.mrf.mxu0
      %v1438 = vadd.f32 %v685, %v1437
      %1439 = vmatmul.bf16.gmra.mxu0 %v669
      %v1440 = vpop.f32.mrf.mxu0
      %v1441 = vadd.f32 %v685, %v1440
      %v1442 = vpop.f32.mrf.mxu0
      %v1443 = vadd.f32 %v685, %v1442
      %1444 = vmatmul.bf16.gmra.mxu0 %v670
      %v1445 = vpop.f32.mrf.mxu0
      %v1446 = vadd.f32 %v685, %v1445
      %v1447 = vpop.f32.mrf.mxu0
      %v1448 = vadd.f32 %v685, %v1447
      %1449 = vmatmul.bf16.gmra.mxu0 %v671
      %v1450 = vpop.f32.mrf.mxu0
      %v1451 = vadd.f32 %v685, %v1450
      %v1452 = vpop.f32.mrf.mxu0
      %v1453 = vadd.f32 %v685, %v1452
      %1454 = vmatmul.bf16.gmra.mxu0 %v672
      %v1455 = vpop.f32.mrf.mxu0
      %v1456 = vadd.f32 %v685, %v1455
      %v1457 = vpop.f32.mrf.mxu0
      %v1458 = vadd.f32 %v685, %v1457
      %1459 = vmatmul.bf16.gmra.mxu0 %v673
      %v1460 = vpop.f32.mrf.mxu0
      %v1461 = vadd.f32 %v685, %v1460
      %v1462 = vpop.f32.mrf.mxu0
      %v1463 = vadd.f32 %v685, %v1462
      %1464 = vmatmul.bf16.gmra.mxu0 %v674
      %v1465 = vpop.f32.mrf.mxu0
      %v1466 = vadd.f32 %v685, %v1465
      %v1467 = vpop.f32.mrf.mxu0
      %v1468 = vadd.f32 %v685, %v1467
      %1469 = vmatmul.bf16.gmra.mxu0 %v675
      %v1470 = vpop.f32.mrf.mxu0
      %v1471 = vadd.f32 %v685, %v1470
      %v1472 = vpop.f32.mrf.mxu0
      %v1473 = vadd.f32 %v685, %v1472
      %1474 = vmatmul.bf16.gmra.mxu0 %v676
      %v1475 = vpop.f32.mrf.mxu0
      %v1476 = vadd.f32 %v685, %v1475
      %v1477 = vpop.f32.mrf.mxu0
      %v1478 = vadd.f32 %v685, %v1477
      %1479 = vmatmul.bf16.gmra.mxu0 %v677
      %v1480 = vpop.f32.mrf.mxu0
      %v1481 = vadd.f32 %v685, %v1480
      %v1482 = vpop.f32.mrf.mxu0
      %v1483 = vadd.f32 %v685, %v1482
      %1484 = vmatmul.bf16.gmra.mxu0 %v678
      %v1485 = vpop.f32.mrf.mxu0
      %v1486 = vadd.f32 %v685, %v1485
      %v1487 = vpop.f32.mrf.mxu0
      %v1488 = vadd.f32 %v685, %v1487
      %1489 = vmatmul.bf16.gmra.mxu0 %v679
      %v1490 = vpop.f32.mrf.mxu0
      %v1491 = vadd.f32 %v685, %v1490
      %v1492 = vpop.f32.mrf.mxu0
      %v1493 = vadd.f32 %v685, %v1492
      %1494 = vmatmul.bf16.gmra.mxu0 %v680
      %v1495 = vpop.f32.mrf.mxu0
      %v1496 = vadd.f32 %v685, %v1495
      %v1497 = vpop.f32.mrf.mxu0
      %v1498 = vadd.f32 %v685, %v1497
      %1499 = vmatmul.bf16.gmra.mxu0 %v681
      %v1500 = vpop.f32.mrf.mxu0
      %v1501 = vadd.f32 %v685, %v1500
      %v1502 = vpop.f32.mrf.mxu0
      %v1503 = vadd.f32 %v685, %v1502
      %1504 = vmatmul.bf16.gmra.mxu0 %v682
      %v1505 = vpop.f32.mrf.mxu0
      %v1506 = vadd.f32 %v685, %v1505
      %v1507 = vpop.f32.mrf.mxu0
      %v1508 = vadd.f32 %v685, %v1507
      %1509 = vdwg.mxu0
      %1510 = vmatpush.bf16.msra.mxu0 %v818
      %1511 = vmatpush.bf16.msra.mxu0 %v814
      %1512 = vmatpush.bf16.msra.mxu0 %v810
      %1513 = vmatpush.bf16.msra.mxu0 %v806
      %1514 = vmatpush.bf16.msra.mxu0 %v802
      %1515 = vmatpush.bf16.msra.mxu0 %v798
      %1516 = vmatpush.bf16.msra.mxu0 %v794
      %1517 = vmatpush.bf16.msra.mxu0 %v790
      %1518 = vmatmul.bf16.gmra.mxu0 %v619
      %v1519 = vpop.f32.mrf.mxu0
      %v1520 = vadd.f32 %v686, %v1519
      %v1521 = vpop.f32.mrf.mxu0
      %v1522 = vadd.f32 %v686, %v1521
      %1523 = vmatmul.bf16.gmra.mxu0 %v620
      %v1524 = vpop.f32.mrf.mxu0
      %v1525 = vadd.f32 %v686, %v1524
      %v1526 = vpop.f32.mrf.mxu0
      %v1527 = vadd.f32 %v686, %v1526
      %1528 = vmatmul.bf16.gmra.mxu0 %v621
      %v1529 = vpop.f32.mrf.mxu0
      %v1530 = vadd.f32 %v686, %v1529
      %v1531 = vpop.f32.mrf.mxu0
      %v1532 = vadd.f32 %v686, %v1531
      %1533 = vmatmul.bf16.gmra.mxu0 %v622
      %v1534 = vpop.f32.mrf.mxu0
      %v1535 = vadd.f32 %v686, %v1534
      %v1536 = vpop.f32.mrf.mxu0
      %v1537 = vadd.f32 %v686, %v1536
      %1538 = vmatmul.bf16.gmra.mxu0 %v623
      %v1539 = vpop.f32.mrf.mxu0
      %v1540 = vadd.f32 %v686, %v1539
      %v1541 = vpop.f32.mrf.mxu0
      %v1542 = vadd.f32 %v686, %v1541
      %1543 = vmatmul.bf16.gmra.mxu0 %v624
      %v1544 = vpop.f32.mrf.mxu0
      %v1545 = vadd.f32 %v686, %v1544
      %v1546 = vpop.f32.mrf.mxu0
      %v1547 = vadd.f32 %v686, %v1546
      %1548 = vmatmul.bf16.gmra.mxu0 %v625
      %v1549 = vpop.f32.mrf.mxu0
      %v1550 = vadd.f32 %v686, %v1549
      %v1551 = vpop.f32.mrf.mxu0
      %v1552 = vadd.f32 %v686, %v1551
      %1553 = vmatmul.bf16.gmra.mxu0 %v626
      %v1554 = vpop.f32.mrf.mxu0
      %v1555 = vadd.f32 %v686, %v1554
      %v1556 = vpop.f32.mrf.mxu0
      %v1557 = vadd.f32 %v686, %v1556
      %1558 = vmatmul.bf16.gmra.mxu0 %v627
      %v1559 = vpop.f32.mrf.mxu0
      %v1560 = vadd.f32 %v686, %v1559
      %v1561 = vpop.f32.mrf.mxu0
      %v1562 = vadd.f32 %v686, %v1561
      %1563 = vmatmul.bf16.gmra.mxu0 %v628
      %v1564 = vpop.f32.mrf.mxu0
      %v1565 = vadd.f32 %v686, %v1564
      %v1566 = vpop.f32.mrf.mxu0
      %v1567 = vadd.f32 %v686, %v1566
      %1568 = vmatmul.bf16.gmra.mxu0 %v629
      %v1569 = vpop.f32.mrf.mxu0
      %v1570 = vadd.f32 %v686, %v1569
      %v1571 = vpop.f32.mrf.mxu0
      %v1572 = vadd.f32 %v686, %v1571
      %1573 = vmatmul.bf16.gmra.mxu0 %v630
      %v1574 = vpop.f32.mrf.mxu0
      %v1575 = vadd.f32 %v686, %v1574
      %v1576 = vpop.f32.mrf.mxu0
      %v1577 = vadd.f32 %v686, %v1576
      %1578 = vmatmul.bf16.gmra.mxu0 %v631
      %v1579 = vpop.f32.mrf.mxu0
      %v1580 = vadd.f32 %v686, %v1579
      %v1581 = vpop.f32.mrf.mxu0
      %v1582 = vadd.f32 %v686, %v1581
      %1583 = vmatmul.bf16.gmra.mxu0 %v632
      %v1584 = vpop.f32.mrf.mxu0
      %v1585 = vadd.f32 %v686, %v1584
      %v1586 = vpop.f32.mrf.mxu0
      %v1587 = vadd.f32 %v686, %v1586
      %1588 = vmatmul.bf16.gmra.mxu0 %v633
      %v1589 = vpop.f32.mrf.mxu0
      %v1590 = vadd.f32 %v686, %v1589
      %v1591 = vpop.f32.mrf.mxu0
      %v1592 = vadd.f32 %v686, %v1591
      %1593 = vmatmul.bf16.gmra.mxu0 %v634
      %v1594 = vpop.f32.mrf.mxu0
      %v1595 = vadd.f32 %v686, %v1594
      %v1596 = vpop.f32.mrf.mxu0
      %v1597 = vadd.f32 %v686, %v1596
      %1598 = vmatmul.bf16.gmra.mxu0 %v635
      %v1599 = vpop.f32.mrf.mxu0
      %v1600 = vadd.f32 %v686, %v1599
      %v1601 = vpop.f32.mrf.mxu0
      %v1602 = vadd.f32 %v686, %v1601
      %1603 = vmatmul.bf16.gmra.mxu0 %v636
      %v1604 = vpop.f32.mrf.mxu0
      %v1605 = vadd.f32 %v686, %v1604
      %v1606 = vpop.f32.mrf.mxu0
      %v1607 = vadd.f32 %v686, %v1606
      %1608 = vmatmul.bf16.gmra.mxu0 %v637
      %v1609 = vpop.f32.mrf.mxu0
      %v1610 = vadd.f32 %v686, %v1609
      %v1611 = vpop.f32.mrf.mxu0
      %v1612 = vadd.f32 %v686, %v1611
      %1613 = vmatmul.bf16.gmra.mxu0 %v638
      %v1614 = vpop.f32.mrf.mxu0
      %v1615 = vadd.f32 %v686, %v1614
      %v1616 = vpop.f32.mrf.mxu0
      %v1617 = vadd.f32 %v686, %v1616
      %1618 = vmatmul.bf16.gmra.mxu0 %v639
      %v1619 = vpop.f32.mrf.mxu0
      %v1620 = vadd.f32 %v686, %v1619
      %v1621 = vpop.f32.mrf.mxu0
      %v1622 = vadd.f32 %v686, %v1621
      %1623 = vmatmul.bf16.gmra.mxu0 %v640
      %v1624 = vpop.f32.mrf.mxu0
      %v1625 = vadd.f32 %v686, %v1624
      %v1626 = vpop.f32.mrf.mxu0
      %v1627 = vadd.f32 %v686, %v1626
      %1628 = vmatmul.bf16.gmra.mxu0 %v641
      %v1629 = vpop.f32.mrf.mxu0
      %v1630 = vadd.f32 %v686, %v1629
      %v1631 = vpop.f32.mrf.mxu0
      %v1632 = vadd.f32 %v686, %v1631
      %1633 = vmatmul.bf16.gmra.mxu0 %v642
      %v1634 = vpop.f32.mrf.mxu0
      %v1635 = vadd.f32 %v686, %v1634
      %v1636 = vpop.f32.mrf.mxu0
      %v1637 = vadd.f32 %v686, %v1636
      %1638 = vmatmul.bf16.gmra.mxu0 %v643
      %v1639 = vpop.f32.mrf.mxu0
      %v1640 = vadd.f32 %v686, %v1639
      %v1641 = vpop.f32.mrf.mxu0
      %v1642 = vadd.f32 %v686, %v1641
      %1643 = vmatmul.bf16.gmra.mxu0 %v644
      %v1644 = vpop.f32.mrf.mxu0
      %v1645 = vadd.f32 %v686, %v1644
      %v1646 = vpop.f32.mrf.mxu0
      %v1647 = vadd.f32 %v686, %v1646
      %1648 = vmatmul.bf16.gmra.mxu0 %v645
      %v1649 = vpop.f32.mrf.mxu0
      %v1650 = vadd.f32 %v686, %v1649
      %v1651 = vpop.f32.mrf.mxu0
      %v1652 = vadd.f32 %v686, %v1651
      %1653 = vmatmul.bf16.gmra.mxu0 %v646
      %v1654 = vpop.f32.mrf.mxu0
      %v1655 = vadd.f32 %v686, %v1654
      %v1656 = vpop.f32.mrf.mxu0
      %v1657 = vadd.f32 %v686, %v1656
      %1658 = vmatmul.bf16.gmra.mxu0 %v647
      %v1659 = vpop.f32.mrf.mxu0
      %v1660 = vadd.f32 %v686, %v1659
      %v1661 = vpop.f32.mrf.mxu0
      %v1662 = vadd.f32 %v686, %v1661
      %1663 = vmatmul.bf16.gmra.mxu0 %v648
      %v1664 = vpop.f32.mrf.mxu0
      %v1665 = vadd.f32 %v686, %v1664
      %v1666 = vpop.f32.mrf.mxu0
      %v1667 = vadd.f32 %v686, %v1666
      %1668 = vmatmul.bf16.gmra.mxu0 %v649
      %v1669 = vpop.f32.mrf.mxu0
      %v1670 = vadd.f32 %v686, %v1669
      %v1671 = vpop.f32.mrf.mxu0
      %v1672 = vadd.f32 %v686, %v1671
      %1673 = vmatmul.bf16.gmra.mxu0 %v650
      %v1674 = vpop.f32.mrf.mxu0
      %v1675 = vadd.f32 %v686, %v1674
      %v1676 = vpop.f32.mrf.mxu0
      %v1677 = vadd.f32 %v686, %v1676
      %1678 = vmatmul.bf16.gmra.mxu0 %v651
      %v1679 = vpop.f32.mrf.mxu0
      %v1680 = vadd.f32 %v686, %v1679
      %v1681 = vpop.f32.mrf.mxu0
      %v1682 = vadd.f32 %v686, %v1681
      %1683 = vmatmul.bf16.gmra.mxu0 %v652
      %v1684 = vpop.f32.mrf.mxu0
      %v1685 = vadd.f32 %v686, %v1684
      %v1686 = vpop.f32.mrf.mxu0
      %v1687 = vadd.f32 %v686, %v1686
      %1688 = vmatmul.bf16.gmra.mxu0 %v653
      %v1689 = vpop.f32.mrf.mxu0
      %v1690 = vadd.f32 %v686, %v1689
      %v1691 = vpop.f32.mrf.mxu0
      %v1692 = vadd.f32 %v686, %v1691
      %1693 = vmatmul.bf16.gmra.mxu0 %v654
      %v1694 = vpop.f32.mrf.mxu0
      %v1695 = vadd.f32 %v686, %v1694
      %v1696 = vpop.f32.mrf.mxu0
      %v1697 = vadd.f32 %v686, %v1696
      %1698 = vmatmul.bf16.gmra.mxu0 %v655
      %v1699 = vpop.f32.mrf.mxu0
      %v1700 = vadd.f32 %v686, %v1699
      %v1701 = vpop.f32.mrf.mxu0
      %v1702 = vadd.f32 %v686, %v1701
      %1703 = vmatmul.bf16.gmra.mxu0 %v656
      %v1704 = vpop.f32.mrf.mxu0
      %v1705 = vadd.f32 %v686, %v1704
      %v1706 = vpop.f32.mrf.mxu0
      %v1707 = vadd.f32 %v686, %v1706
      %1708 = vmatmul.bf16.gmra.mxu0 %v657
      %v1709 = vpop.f32.mrf.mxu0
      %v1710 = vadd.f32 %v686, %v1709
      %v1711 = vpop.f32.mrf.mxu0
      %v1712 = vadd.f32 %v686, %v1711
      %1713 = vmatmul.bf16.gmra.mxu0 %v658
      %v1714 = vpop.f32.mrf.mxu0
      %v1715 = vadd.f32 %v686, %v1714
      %v1716 = vpop.f32.mrf.mxu0
      %v1717 = vadd.f32 %v686, %v1716
      %1718 = vmatmul.bf16.gmra.mxu0 %v659
      %v1719 = vpop.f32.mrf.mxu0
      %v1720 = vadd.f32 %v686, %v1719
      %v1721 = vpop.f32.mrf.mxu0
      %v1722 = vadd.f32 %v686, %v1721
      %1723 = vmatmul.bf16.gmra.mxu0 %v660
      %v1724 = vpop.f32.mrf.mxu0
      %v1725 = vadd.f32 %v686, %v1724
      %v1726 = vpop.f32.mrf.mxu0
      %v1727 = vadd.f32 %v686, %v1726
      %1728 = vmatmul.bf16.gmra.mxu0 %v661
      %v1729 = vpop.f32.mrf.mxu0
      %v1730 = vadd.f32 %v686, %v1729
      %v1731 = vpop.f32.mrf.mxu0
      %v1732 = vadd.f32 %v686, %v1731
      %1733 = vmatmul.bf16.gmra.mxu0 %v662
      %v1734 = vpop.f32.mrf.mxu0
      %v1735 = vadd.f32 %v686, %v1734
      %v1736 = vpop.f32.mrf.mxu0
      %v1737 = vadd.f32 %v686, %v1736
      %1738 = vmatmul.bf16.gmra.mxu0 %v663
      %v1739 = vpop.f32.mrf.mxu0
      %v1740 = vadd.f32 %v686, %v1739
      %v1741 = vpop.f32.mrf.mxu0
      %v1742 = vadd.f32 %v686, %v1741
      %1743 = vmatmul.bf16.gmra.mxu0 %v664
      %v1744 = vpop.f32.mrf.mxu0
      %v1745 = vadd.f32 %v686, %v1744
      %v1746 = vpop.f32.mrf.mxu0
      %v1747 = vadd.f32 %v686, %v1746
      %1748 = vmatmul.bf16.gmra.mxu0 %v665
      %v1749 = vpop.f32.mrf.mxu0
      %v1750 = vadd.f32 %v686, %v1749
      %v1751 = vpop.f32.mrf.mxu0
      %v1752 = vadd.f32 %v686, %v1751
      %1753 = vmatmul.bf16.gmra.mxu0 %v666
      %v1754 = vpop.f32.mrf.mxu0
      %v1755 = vadd.f32 %v686, %v1754
      %v1756 = vpop.f32.mrf.mxu0
      %v1757 = vadd.f32 %v686, %v1756
      %1758 = vmatmul.bf16.gmra.mxu0 %v667
      %v1759 = vpop.f32.mrf.mxu0
      %v1760 = vadd.f32 %v686, %v1759
      %v1761 = vpop.f32.mrf.mxu0
      %v1762 = vadd.f32 %v686, %v1761
      %1763 = vmatmul.bf16.gmra.mxu0 %v668
      %v1764 = vpop.f32.mrf.mxu0
      %v1765 = vadd.f32 %v686, %v1764
      %v1766 = vpop.f32.mrf.mxu0
      %v1767 = vadd.f32 %v686, %v1766
      %1768 = vmatmul.bf16.gmra.mxu0 %v669
      %v1769 = vpop.f32.mrf.mxu0
      %v1770 = vadd.f32 %v686, %v1769
      %v1771 = vpop.f32.mrf.mxu0
      %v1772 = vadd.f32 %v686, %v1771
      %1773 = vmatmul.bf16.gmra.mxu0 %v670
      %v1774 = vpop.f32.mrf.mxu0
      %v1775 = vadd.f32 %v686, %v1774
      %v1776 = vpop.f32.mrf.mxu0
      %v1777 = vadd.f32 %v686, %v1776
      %1778 = vmatmul.bf16.gmra.mxu0 %v671
      %v1779 = vpop.f32.mrf.mxu0
      %v1780 = vadd.f32 %v686, %v1779
      %v1781 = vpop.f32.mrf.mxu0
      %v1782 = vadd.f32 %v686, %v1781
      %1783 = vmatmul.bf16.gmra.mxu0 %v672
      %v1784 = vpop.f32.mrf.mxu0
      %v1785 = vadd.f32 %v686, %v1784
      %v1786 = vpop.f32.mrf.mxu0
      %v1787 = vadd.f32 %v686, %v1786
      %1788 = vmatmul.bf16.gmra.mxu0 %v673
      %v1789 = vpop.f32.mrf.mxu0
      %v1790 = vadd.f32 %v686, %v1789
      %v1791 = vpop.f32.mrf.mxu0
      %v1792 = vadd.f32 %v686, %v1791
      %1793 = vmatmul.bf16.gmra.mxu0 %v674
      %v1794 = vpop.f32.mrf.mxu0
      %v1795 = vadd.f32 %v686, %v1794
      %v1796 = vpop.f32.mrf.mxu0
      %v1797 = vadd.f32 %v686, %v1796
      %1798 = vmatmul.bf16.gmra.mxu0 %v675
      %v1799 = vpop.f32.mrf.mxu0
      %v1800 = vadd.f32 %v686, %v1799
      %v1801 = vpop.f32.mrf.mxu0
      %v1802 = vadd.f32 %v686, %v1801
      %1803 = vmatmul.bf16.gmra.mxu0 %v676
      %v1804 = vpop.f32.mrf.mxu0
      %v1805 = vadd.f32 %v686, %v1804
      %v1806 = vpop.f32.mrf.mxu0
      %v1807 = vadd.f32 %v686, %v1806
      %1808 = vmatmul.bf16.gmra.mxu0 %v677
      %v1809 = vpop.f32.mrf.mxu0
      %v1810 = vadd.f32 %v686, %v1809
      %v1811 = vpop.f32.mrf.mxu0
      %v1812 = vadd.f32 %v686, %v1811
      %1813 = vmatmul.bf16.gmra.mxu0 %v678
      %v1814 = vpop.f32.mrf.mxu0
      %v1815 = vadd.f32 %v686, %v1814
      %v1816 = vpop.f32.mrf.mxu0
      %v1817 = vadd.f32 %v686, %v1816
      %1818 = vmatmul.bf16.gmra.mxu0 %v679
      %v1819 = vpop.f32.mrf.mxu0
      %v1820 = vadd.f32 %v686, %v1819
      %v1821 = vpop.f32.mrf.mxu0
      %v1822 = vadd.f32 %v686, %v1821
      %1823 = vmatmul.bf16.gmra.mxu0 %v680
      %v1824 = vpop.f32.mrf.mxu0
      %v1825 = vadd.f32 %v686, %v1824
      %v1826 = vpop.f32.mrf.mxu0
      %v1827 = vadd.f32 %v686, %v1826
      %1828 = vmatmul.bf16.gmra.mxu0 %v681
      %v1829 = vpop.f32.mrf.mxu0
      %v1830 = vadd.f32 %v686, %v1829
      %v1831 = vpop.f32.mrf.mxu0
      %v1832 = vadd.f32 %v686, %v1831
      %1833 = vmatmul.bf16.gmra.mxu0 %v682
      %v1834 = vpop.f32.mrf.mxu0
      %v1835 = vadd.f32 %v686, %v1834
      %v1836 = vpop.f32.mrf.mxu0
      %v1837 = vadd.f32 %v686, %v1836
      %1838 = vdwg.mxu0
      %1839 = vmatpush.bf16.msra.mxu0 %v819
      %1840 = vmatpush.bf16.msra.mxu0 %v815
      %1841 = vmatpush.bf16.msra.mxu0 %v811
      %1842 = vmatpush.bf16.msra.mxu0 %v807
      %1843 = vmatpush.bf16.msra.mxu0 %v803
      %1844 = vmatpush.bf16.msra.mxu0 %v799
      %1845 = vmatpush.bf16.msra.mxu0 %v795
      %1846 = vmatpush.bf16.msra.mxu0 %v791
      %1847 = vmatmul.bf16.gmra.mxu0 %v619
      %v1848 = vpop.f32.mrf.mxu0
      %v1849 = vadd.f32 %v687, %v1848
      %v1850 = vpop.f32.mrf.mxu0
      %v1851 = vadd.f32 %v687, %v1850
      %1852 = vmatmul.bf16.gmra.mxu0 %v620
      %v1853 = vpop.f32.mrf.mxu0
      %v1854 = vadd.f32 %v687, %v1853
      %v1855 = vpop.f32.mrf.mxu0
      %v1856 = vadd.f32 %v687, %v1855
      %1857 = vmatmul.bf16.gmra.mxu0 %v621
      %v1858 = vpop.f32.mrf.mxu0
      %v1859 = vadd.f32 %v687, %v1858
      %v1860 = vpop.f32.mrf.mxu0
      %v1861 = vadd.f32 %v687, %v1860
      %1862 = vmatmul.bf16.gmra.mxu0 %v622
      %v1863 = vpop.f32.mrf.mxu0
      %v1864 = vadd.f32 %v687, %v1863
      %v1865 = vpop.f32.mrf.mxu0
      %v1866 = vadd.f32 %v687, %v1865
      %1867 = vmatmul.bf16.gmra.mxu0 %v623
      %v1868 = vpop.f32.mrf.mxu0
      %v1869 = vadd.f32 %v687, %v1868
      %v1870 = vpop.f32.mrf.mxu0
      %v1871 = vadd.f32 %v687, %v1870
      %1872 = vmatmul.bf16.gmra.mxu0 %v624
      %v1873 = vpop.f32.mrf.mxu0
      %v1874 = vadd.f32 %v687, %v1873
      %v1875 = vpop.f32.mrf.mxu0
      %v1876 = vadd.f32 %v687, %v1875
      %1877 = vmatmul.bf16.gmra.mxu0 %v625
      %v1878 = vpop.f32.mrf.mxu0
      %v1879 = vadd.f32 %v687, %v1878
      %v1880 = vpop.f32.mrf.mxu0
      %v1881 = vadd.f32 %v687, %v1880
      %1882 = vmatmul.bf16.gmra.mxu0 %v626
      %v1883 = vpop.f32.mrf.mxu0
      %v1884 = vadd.f32 %v687, %v1883
      %v1885 = vpop.f32.mrf.mxu0
      %v1886 = vadd.f32 %v687, %v1885
      %1887 = vmatmul.bf16.gmra.mxu0 %v627
      %v1888 = vpop.f32.mrf.mxu0
      %v1889 = vadd.f32 %v687, %v1888
      %v1890 = vpop.f32.mrf.mxu0
      %v1891 = vadd.f32 %v687, %v1890
      %1892 = vmatmul.bf16.gmra.mxu0 %v628
      %v1893 = vpop.f32.mrf.mxu0
      %v1894 = vadd.f32 %v687, %v1893
      %v1895 = vpop.f32.mrf.mxu0
      %v1896 = vadd.f32 %v687, %v1895
      %1897 = vmatmul.bf16.gmra.mxu0 %v629
      %v1898 = vpop.f32.mrf.mxu0
      %v1899 = vadd.f32 %v687, %v1898
      %v1900 = vpop.f32.mrf.mxu0
      %v1901 = vadd.f32 %v687, %v1900
      %1902 = vmatmul.bf16.gmra.mxu0 %v630
      %v1903 = vpop.f32.mrf.mxu0
      %v1904 = vadd.f32 %v687, %v1903
      %v1905 = vpop.f32.mrf.mxu0
      %v1906 = vadd.f32 %v687, %v1905
      %1907 = vmatmul.bf16.gmra.mxu0 %v631
      %v1908 = vpop.f32.mrf.mxu0
      %v1909 = vadd.f32 %v687, %v1908
      %v1910 = vpop.f32.mrf.mxu0
      %v1911 = vadd.f32 %v687, %v1910
      %1912 = vmatmul.bf16.gmra.mxu0 %v632
      %v1913 = vpop.f32.mrf.mxu0
      %v1914 = vadd.f32 %v687, %v1913
      %v1915 = vpop.f32.mrf.mxu0
      %v1916 = vadd.f32 %v687, %v1915
      %1917 = vmatmul.bf16.gmra.mxu0 %v633
      %v1918 = vpop.f32.mrf.mxu0
      %v1919 = vadd.f32 %v687, %v1918
      %v1920 = vpop.f32.mrf.mxu0
      %v1921 = vadd.f32 %v687, %v1920
      %1922 = vmatmul.bf16.gmra.mxu0 %v634
      %v1923 = vpop.f32.mrf.mxu0
      %v1924 = vadd.f32 %v687, %v1923
      %v1925 = vpop.f32.mrf.mxu0
      %v1926 = vadd.f32 %v687, %v1925
      %1927 = vmatmul.bf16.gmra.mxu0 %v635
      %v1928 = vpop.f32.mrf.mxu0
      %v1929 = vadd.f32 %v687, %v1928
      %v1930 = vpop.f32.mrf.mxu0
      %v1931 = vadd.f32 %v687, %v1930
      %1932 = vmatmul.bf16.gmra.mxu0 %v636
      %v1933 = vpop.f32.mrf.mxu0
      %v1934 = vadd.f32 %v687, %v1933
      %v1935 = vpop.f32.mrf.mxu0
      %v1936 = vadd.f32 %v687, %v1935
      %1937 = vmatmul.bf16.gmra.mxu0 %v637
      %v1938 = vpop.f32.mrf.mxu0
      %v1939 = vadd.f32 %v687, %v1938
      %v1940 = vpop.f32.mrf.mxu0
      %v1941 = vadd.f32 %v687, %v1940
      %1942 = vmatmul.bf16.gmra.mxu0 %v638
      %v1943 = vpop.f32.mrf.mxu0
      %v1944 = vadd.f32 %v687, %v1943
      %v1945 = vpop.f32.mrf.mxu0
      %v1946 = vadd.f32 %v687, %v1945
      %1947 = vmatmul.bf16.gmra.mxu0 %v639
      %v1948 = vpop.f32.mrf.mxu0
      %v1949 = vadd.f32 %v687, %v1948
      %v1950 = vpop.f32.mrf.mxu0
      %v1951 = vadd.f32 %v687, %v1950
      %1952 = vmatmul.bf16.gmra.mxu0 %v640
      %v1953 = vpop.f32.mrf.mxu0
      %v1954 = vadd.f32 %v687, %v1953
      %v1955 = vpop.f32.mrf.mxu0
      %v1956 = vadd.f32 %v687, %v1955
      %1957 = vmatmul.bf16.gmra.mxu0 %v641
      %v1958 = vpop.f32.mrf.mxu0
      %v1959 = vadd.f32 %v687, %v1958
      %v1960 = vpop.f32.mrf.mxu0
      %v1961 = vadd.f32 %v687, %v1960
      %1962 = vmatmul.bf16.gmra.mxu0 %v642
      %v1963 = vpop.f32.mrf.mxu0
      %v1964 = vadd.f32 %v687, %v1963
      %v1965 = vpop.f32.mrf.mxu0
      %v1966 = vadd.f32 %v687, %v1965
      %1967 = vmatmul.bf16.gmra.mxu0 %v643
      %v1968 = vpop.f32.mrf.mxu0
      %v1969 = vadd.f32 %v687, %v1968
      %v1970 = vpop.f32.mrf.mxu0
      %v1971 = vadd.f32 %v687, %v1970
      %1972 = vmatmul.bf16.gmra.mxu0 %v644
      %v1973 = vpop.f32.mrf.mxu0
      %v1974 = vadd.f32 %v687, %v1973
      %v1975 = vpop.f32.mrf.mxu0
      %v1976 = vadd.f32 %v687, %v1975
      %1977 = vmatmul.bf16.gmra.mxu0 %v645
      %v1978 = vpop.f32.mrf.mxu0
      %v1979 = vadd.f32 %v687, %v1978
      %v1980 = vpop.f32.mrf.mxu0
      %v1981 = vadd.f32 %v687, %v1980
      %1982 = vmatmul.bf16.gmra.mxu0 %v646
      %v1983 = vpop.f32.mrf.mxu0
      %v1984 = vadd.f32 %v687, %v1983
      %v1985 = vpop.f32.mrf.mxu0
      %v1986 = vadd.f32 %v687, %v1985
      %1987 = vmatmul.bf16.gmra.mxu0 %v647
      %v1988 = vpop.f32.mrf.mxu0
      %v1989 = vadd.f32 %v687, %v1988
      %v1990 = vpop.f32.mrf.mxu0
      %v1991 = vadd.f32 %v687, %v1990
      %1992 = vmatmul.bf16.gmra.mxu0 %v648
      %v1993 = vpop.f32.mrf.mxu0
      %v1994 = vadd.f32 %v687, %v1993
      %v1995 = vpop.f32.mrf.mxu0
      %v1996 = vadd.f32 %v687, %v1995
      %1997 = vmatmul.bf16.gmra.mxu0 %v649
      %v1998 = vpop.f32.mrf.mxu0
      %v1999 = vadd.f32 %v687, %v1998
      %v2000 = vpop.f32.mrf.mxu0
      %v2001 = vadd.f32 %v687, %v2000
      %2002 = vmatmul.bf16.gmra.mxu0 %v650
      %v2003 = vpop.f32.mrf.mxu0
      %v2004 = vadd.f32 %v687, %v2003
      %v2005 = vpop.f32.mrf.mxu0
      %v2006 = vadd.f32 %v687, %v2005
      %2007 = vmatmul.bf16.gmra.mxu0 %v651
      %v2008 = vpop.f32.mrf.mxu0
      %v2009 = vadd.f32 %v687, %v2008
      %v2010 = vpop.f32.mrf.mxu0
      %v2011 = vadd.f32 %v687, %v2010
      %2012 = vmatmul.bf16.gmra.mxu0 %v652
      %v2013 = vpop.f32.mrf.mxu0
      %v2014 = vadd.f32 %v687, %v2013
      %v2015 = vpop.f32.mrf.mxu0
      %v2016 = vadd.f32 %v687, %v2015
      %2017 = vmatmul.bf16.gmra.mxu0 %v653
      %v2018 = vpop.f32.mrf.mxu0
      %v2019 = vadd.f32 %v687, %v2018
      %v2020 = vpop.f32.mrf.mxu0
      %v2021 = vadd.f32 %v687, %v2020
      %2022 = vmatmul.bf16.gmra.mxu0 %v654
      %v2023 = vpop.f32.mrf.mxu0
      %v2024 = vadd.f32 %v687, %v2023
      %v2025 = vpop.f32.mrf.mxu0
      %v2026 = vadd.f32 %v687, %v2025
      %2027 = vmatmul.bf16.gmra.mxu0 %v655
      %v2028 = vpop.f32.mrf.mxu0
      %v2029 = vadd.f32 %v687, %v2028
      %v2030 = vpop.f32.mrf.mxu0
      %v2031 = vadd.f32 %v687, %v2030
      %2032 = vmatmul.bf16.gmra.mxu0 %v656
      %v2033 = vpop.f32.mrf.mxu0
      %v2034 = vadd.f32 %v687, %v2033
      %v2035 = vpop.f32.mrf.mxu0
      %v2036 = vadd.f32 %v687, %v2035
      %2037 = vmatmul.bf16.gmra.mxu0 %v657
      %v2038 = vpop.f32.mrf.mxu0
      %v2039 = vadd.f32 %v687, %v2038
      %v2040 = vpop.f32.mrf.mxu0
      %v2041 = vadd.f32 %v687, %v2040
      %2042 = vmatmul.bf16.gmra.mxu0 %v658
      %v2043 = vpop.f32.mrf.mxu0
      %v2044 = vadd.f32 %v687, %v2043
      %v2045 = vpop.f32.mrf.mxu0
      %v2046 = vadd.f32 %v687, %v2045
      %2047 = vmatmul.bf16.gmra.mxu0 %v659
      %v2048 = vpop.f32.mrf.mxu0
      %v2049 = vadd.f32 %v687, %v2048
      %v2050 = vpop.f32.mrf.mxu0
      %v2051 = vadd.f32 %v687, %v2050
      %2052 = vmatmul.bf16.gmra.mxu0 %v660
      %v2053 = vpop.f32.mrf.mxu0
      %v2054 = vadd.f32 %v687, %v2053
      %v2055 = vpop.f32.mrf.mxu0
      %v2056 = vadd.f32 %v687, %v2055
      %2057 = vmatmul.bf16.gmra.mxu0 %v661
      %v2058 = vpop.f32.mrf.mxu0
      %v2059 = vadd.f32 %v687, %v2058
      %v2060 = vpop.f32.mrf.mxu0
      %v2061 = vadd.f32 %v687, %v2060
      %2062 = vmatmul.bf16.gmra.mxu0 %v662
      %v2063 = vpop.f32.mrf.mxu0
      %v2064 = vadd.f32 %v687, %v2063
      %v2065 = vpop.f32.mrf.mxu0
      %v2066 = vadd.f32 %v687, %v2065
      %2067 = vmatmul.bf16.gmra.mxu0 %v663
      %v2068 = vpop.f32.mrf.mxu0
      %v2069 = vadd.f32 %v687, %v2068
      %v2070 = vpop.f32.mrf.mxu0
      %v2071 = vadd.f32 %v687, %v2070
      %2072 = vmatmul.bf16.gmra.mxu0 %v664
      %v2073 = vpop.f32.mrf.mxu0
      %v2074 = vadd.f32 %v687, %v2073
      %v2075 = vpop.f32.mrf.mxu0
      %v2076 = vadd.f32 %v687, %v2075
      %2077 = vmatmul.bf16.gmra.mxu0 %v665
      %v2078 = vpop.f32.mrf.mxu0
      %v2079 = vadd.f32 %v687, %v2078
      %v2080 = vpop.f32.mrf.mxu0
      %v2081 = vadd.f32 %v687, %v2080
      %2082 = vmatmul.bf16.gmra.mxu0 %v666
      %v2083 = vpop.f32.mrf.mxu0
      %v2084 = vadd.f32 %v687, %v2083
      %v2085 = vpop.f32.mrf.mxu0
      %v2086 = vadd.f32 %v687, %v2085
      %2087 = vmatmul.bf16.gmra.mxu0 %v667
      %v2088 = vpop.f32.mrf.mxu0
      %v2089 = vadd.f32 %v687, %v2088
      %v2090 = vpop.f32.mrf.mxu0
      %v2091 = vadd.f32 %v687, %v2090
      %2092 = vmatmul.bf16.gmra.mxu0 %v668
      %v2093 = vpop.f32.mrf.mxu0
      %v2094 = vadd.f32 %v687, %v2093
      %v2095 = vpop.f32.mrf.mxu0
      %v2096 = vadd.f32 %v687, %v2095
      %2097 = vmatmul.bf16.gmra.mxu0 %v669
      %v2098 = vpop.f32.mrf.mxu0
      %v2099 = vadd.f32 %v687, %v2098
      %v2100 = vpop.f32.mrf.mxu0
      %v2101 = vadd.f32 %v687, %v2100
      %2102 = vmatmul.bf16.gmra.mxu0 %v670
      %v2103 = vpop.f32.mrf.mxu0
      %v2104 = vadd.f32 %v687, %v2103
      %v2105 = vpop.f32.mrf.mxu0
      %v2106 = vadd.f32 %v687, %v2105
      %2107 = vmatmul.bf16.gmra.mxu0 %v671
      %v2108 = vpop.f32.mrf.mxu0
      %v2109 = vadd.f32 %v687, %v2108
      %v2110 = vpop.f32.mrf.mxu0
      %v2111 = vadd.f32 %v687, %v2110
      %2112 = vmatmul.bf16.gmra.mxu0 %v672
      %v2113 = vpop.f32.mrf.mxu0
      %v2114 = vadd.f32 %v687, %v2113
      %v2115 = vpop.f32.mrf.mxu0
      %v2116 = vadd.f32 %v687, %v2115
      %2117 = vmatmul.bf16.gmra.mxu0 %v673
      %v2118 = vpop.f32.mrf.mxu0
      %v2119 = vadd.f32 %v687, %v2118
      %v2120 = vpop.f32.mrf.mxu0
      %v2121 = vadd.f32 %v687, %v2120
      %2122 = vmatmul.bf16.gmra.mxu0 %v674
      %v2123 = vpop.f32.mrf.mxu0
      %v2124 = vadd.f32 %v687, %v2123
      %v2125 = vpop.f32.mrf.mxu0
      %v2126 = vadd.f32 %v687, %v2125
      %2127 = vmatmul.bf16.gmra.mxu0 %v675
      %v2128 = vpop.f32.mrf.mxu0
      %v2129 = vadd.f32 %v687, %v2128
      %v2130 = vpop.f32.mrf.mxu0
      %v2131 = vadd.f32 %v687, %v2130
      %2132 = vmatmul.bf16.gmra.mxu0 %v676
      %v2133 = vpop.f32.mrf.mxu0
      %v2134 = vadd.f32 %v687, %v2133
      %v2135 = vpop.f32.mrf.mxu0
      %v2136 = vadd.f32 %v687, %v2135
      %2137 = vmatmul.bf16.gmra.mxu0 %v677
      %v2138 = vpop.f32.mrf.mxu0
      %v2139 = vadd.f32 %v687, %v2138
      %v2140 = vpop.f32.mrf.mxu0
      %v2141 = vadd.f32 %v687, %v2140
      %2142 = vmatmul.bf16.gmra.mxu0 %v678
      %v2143 = vpop.f32.mrf.mxu0
      %v2144 = vadd.f32 %v687, %v2143
      %v2145 = vpop.f32.mrf.mxu0
      %v2146 = vadd.f32 %v687, %v2145
      %2147 = vmatmul.bf16.gmra.mxu0 %v679
      %v2148 = vpop.f32.mrf.mxu0
      %v2149 = vadd.f32 %v687, %v2148
      %v2150 = vpop.f32.mrf.mxu0
      %v2151 = vadd.f32 %v687, %v2150
      %2152 = vmatmul.bf16.gmra.mxu0 %v680
      %v2153 = vpop.f32.mrf.mxu0
      %v2154 = vadd.f32 %v687, %v2153
      %v2155 = vpop.f32.mrf.mxu0
      %v2156 = vadd.f32 %v687, %v2155
      %2157 = vmatmul.bf16.gmra.mxu0 %v681
      %v2158 = vpop.f32.mrf.mxu0
      %v2159 = vadd.f32 %v687, %v2158
      %v2160 = vpop.f32.mrf.mxu0
      %v2161 = vadd.f32 %v687, %v2160
      %2162 = vmatmul.bf16.gmra.mxu0 %v682
      %v2163 = vpop.f32.mrf.mxu0
      %v2164 = vadd.f32 %v687, %v2163
      %v2165 = vpop.f32.mrf.mxu0
      %v2166 = vadd.f32 %v687, %v2165
      %2167 = vdwg.mxu0
      %2168 = vst [vmem:[#allocation3] sm:$0xff] %v862
      %2169 = vst [vmem:[#allocation3 + $0x8] sm:$0xff] %v1191
      %2170 = vst [vmem:[#allocation3 + $0x10] sm:$0xff] %v1520
      %2171 = vst [vmem:[#allocation3 + $0x18] sm:$0xff] %v1849
      %2172 = vst [vmem:[#allocation3 + $0x20] sm:$0xff] %v864
      %2173 = vst [vmem:[#allocation3 + $0x28] sm:$0xff] %v1193
      %2174 = vst [vmem:[#allocation3 + $0x30] sm:$0xff] %v1522
      %2175 = vst [vmem:[#allocation3 + $0x38] sm:$0xff] %v1851
      %2176 = vst [vmem:[#allocation3 + $0x40] sm:$0xff] %v867
      %2177 = vst [vmem:[#allocation3 + $0x48] sm:$0xff] %v1196
      %2178 = vst [vmem:[#allocation3 + $0x50] sm:$0xff] %v1525
      %2179 = vst [vmem:[#allocation3 + $0x58] sm:$0xff] %v1854
      %2180 = vst [vmem:[#allocation3 + $0x60] sm:$0xff] %v869
      %2181 = vst [vmem:[#allocation3 + $0x68] sm:$0xff] %v1198
      %2182 = vst [vmem:[#allocation3 + $0x70] sm:$0xff] %v1527
      %2183 = vst [vmem:[#allocation3 + $0x78] sm:$0xff] %v1856
      %2184 = vst [vmem:[#allocation3 + $0x80] sm:$0xff] %v872
      %2185 = vst [vmem:[#allocation3 + $0x88] sm:$0xff] %v1201
      %2186 = vst [vmem:[#allocation3 + $0x90] sm:$0xff] %v1530
      %2187 = vst [vmem:[#allocation3 + $0x98] sm:$0xff] %v1859
      %2188 = vst [vmem:[#allocation3 + $0xa0] sm:$0xff] %v874
      %2189 = vst [vmem:[#allocation3 + $0xa8] sm:$0xff] %v1203
      %2190 = vst [vmem:[#allocation3 + $0xb0] sm:$0xff] %v1532
      %2191 = vst [vmem:[#allocation3 + $0xb8] sm:$0xff] %v1861
      %2192 = vst [vmem:[#allocation3 + $0xc0] sm:$0xff] %v877
      %2193 = vst [vmem:[#allocation3 + $0xc8] sm:$0xff] %v1206
      %2194 = vst [vmem:[#allocation3 + $0xd0] sm:$0xff] %v1535
      %2195 = vst [vmem:[#allocation3 + $0xd8] sm:$0xff] %v1864
      %2196 = vst [vmem:[#allocation3 + $0xe0] sm:$0xff] %v879
      %2197 = vst [vmem:[#allocation3 + $0xe8] sm:$0xff] %v1208
      %2198 = vst [vmem:[#allocation3 + $0xf0] sm:$0xff] %v1537
      %2199 = vst [vmem:[#allocation3 + $0xf8] sm:$0xff] %v1866
      %2200 = vst [vmem:[#allocation3 + $0x100] sm:$0xff] %v882
      %2201 = vst [vmem:[#allocation3 + $0x108] sm:$0xff] %v1211
      %2202 = vst [vmem:[#allocation3 + $0x110] sm:$0xff] %v1540
      %2203 = vst [vmem:[#allocation3 + $0x118] sm:$0xff] %v1869
      %2204 = vst [vmem:[#allocation3 + $0x120] sm:$0xff] %v884
      %2205 = vst [vmem:[#allocation3 + $0x128] sm:$0xff] %v1213
      %2206 = vst [vmem:[#allocation3 + $0x130] sm:$0xff] %v1542
      %2207 = vst [vmem:[#allocation3 + $0x138] sm:$0xff] %v1871
      %2208 = vst [vmem:[#allocation3 + $0x140] sm:$0xff] %v887
      %2209 = vst [vmem:[#allocation3 + $0x148] sm:$0xff] %v1216
      %2210 = vst [vmem:[#allocation3 + $0x150] sm:$0xff] %v1545
      %2211 = vst [vmem:[#allocation3 + $0x158] sm:$0xff] %v1874
      %2212 = vst [vmem:[#allocation3 + $0x160] sm:$0xff] %v889
      %2213 = vst [vmem:[#allocation3 + $0x168] sm:$0xff] %v1218
      %2214 = vst [vmem:[#allocation3 + $0x170] sm:$0xff] %v1547
      %2215 = vst [vmem:[#allocation3 + $0x178] sm:$0xff] %v1876
      %2216 = vst [vmem:[#allocation3 + $0x180] sm:$0xff] %v892
      %2217 = vst [vmem:[#allocation3 + $0x188] sm:$0xff] %v1221
      %2218 = vst [vmem:[#allocation3 + $0x190] sm:$0xff] %v1550
      %2219 = vst [vmem:[#allocation3 + $0x198] sm:$0xff] %v1879
      %2220 = vst [vmem:[#allocation3 + $0x1a0] sm:$0xff] %v894
      %2221 = vst [vmem:[#allocation3 + $0x1a8] sm:$0xff] %v1223
      %2222 = vst [vmem:[#allocation3 + $0x1b0] sm:$0xff] %v1552
      %2223 = vst [vmem:[#allocation3 + $0x1b8] sm:$0xff] %v1881
      %2224 = vst [vmem:[#allocation3 + $0x1c0] sm:$0xff] %v897
      %2225 = vst [vmem:[#allocation3 + $0x1c8] sm:$0xff] %v1226
      %2226 = vst [vmem:[#allocation3 + $0x1d0] sm:$0xff] %v1555
      %2227 = vst [vmem:[#allocation3 + $0x1d8] sm:$0xff] %v1884
      %2228 = vst [vmem:[#allocation3 + $0x1e0] sm:$0xff] %v899
      %2229 = vst [vmem:[#allocation3 + $0x1e8] sm:$0xff] %v1228
      %2230 = vst [vmem:[#allocation3 + $0x1f0] sm:$0xff] %v1557
      %2231 = vst [vmem:[#allocation3 + $0x1f8] sm:$0xff] %v1886
      %2232 = vst [vmem:[#allocation3 + $0x200] sm:$0xff] %v902
      %2233 = vst [vmem:[#allocation3 + $0x208] sm:$0xff] %v1231
      %2234 = vst [vmem:[#allocation3 + $0x210] sm:$0xff] %v1560
      %2235 = vst [vmem:[#allocation3 + $0x218] sm:$0xff] %v1889
      %2236 = vst [vmem:[#allocation3 + $0x220] sm:$0xff] %v904
      %2237 = vst [vmem:[#allocation3 + $0x228] sm:$0xff] %v1233
      %2238 = vst [vmem:[#allocation3 + $0x230] sm:$0xff] %v1562
      %2239 = vst [vmem:[#allocation3 + $0x238] sm:$0xff] %v1891
      %2240 = vst [vmem:[#allocation3 + $0x240] sm:$0xff] %v907
      %2241 = vst [vmem:[#allocation3 + $0x248] sm:$0xff] %v1236
      %2242 = vst [vmem:[#allocation3 + $0x250] sm:$0xff] %v1565
      %2243 = vst [vmem:[#allocation3 + $0x258] sm:$0xff] %v1894
      %2244 = vst [vmem:[#allocation3 + $0x260] sm:$0xff] %v909
      %2245 = vst [vmem:[#allocation3 + $0x268] sm:$0xff] %v1238
      %2246 = vst [vmem:[#allocation3 + $0x270] sm:$0xff] %v1567
      %2247 = vst [vmem:[#allocation3 + $0x278] sm:$0xff] %v1896
      %2248 = vst [vmem:[#allocation3 + $0x280] sm:$0xff] %v912
      %2249 = vst [vmem:[#allocation3 + $0x288] sm:$0xff] %v1241
      %2250 = vst [vmem:[#allocation3 + $0x290] sm:$0xff] %v1570
      %2251 = vst [vmem:[#allocation3 + $0x298] sm:$0xff] %v1899
      %2252 = vst [vmem:[#allocation3 + $0x2a0] sm:$0xff] %v914
      %2253 = vst [vmem:[#allocation3 + $0x2a8] sm:$0xff] %v1243
      %2254 = vst [vmem:[#allocation3 + $0x2b0] sm:$0xff] %v1572
      %2255 = vst [vmem:[#allocation3 + $0x2b8] sm:$0xff] %v1901
      %2256 = vst [vmem:[#allocation3 + $0x2c0] sm:$0xff] %v917
      %2257 = vst [vmem:[#allocation3 + $0x2c8] sm:$0xff] %v1246
      %2258 = vst [vmem:[#allocation3 + $0x2d0] sm:$0xff] %v1575
      %2259 = vst [vmem:[#allocation3 + $0x2d8] sm:$0xff] %v1904
      %2260 = vst [vmem:[#allocation3 + $0x2e0] sm:$0xff] %v919
      %2261 = vst [vmem:[#allocation3 + $0x2e8] sm:$0xff] %v1248
      %2262 = vst [vmem:[#allocation3 + $0x2f0] sm:$0xff] %v1577
      %2263 = vst [vmem:[#allocation3 + $0x2f8] sm:$0xff] %v1906
      %2264 = vst [vmem:[#allocation3 + $0x300] sm:$0xff] %v922
      %2265 = vst [vmem:[#allocation3 + $0x308] sm:$0xff] %v1251
      %2266 = vst [vmem:[#allocation3 + $0x310] sm:$0xff] %v1580
      %2267 = vst [vmem:[#allocation3 + $0x318] sm:$0xff] %v1909
      %2268 = vst [vmem:[#allocation3 + $0x320] sm:$0xff] %v924
      %2269 = vst [vmem:[#allocation3 + $0x328] sm:$0xff] %v1253
      %2270 = vst [vmem:[#allocation3 + $0x330] sm:$0xff] %v1582
      %2271 = vst [vmem:[#allocation3 + $0x338] sm:$0xff] %v1911
      %2272 = vst [vmem:[#allocation3 + $0x340] sm:$0xff] %v927
      %2273 = vst [vmem:[#allocation3 + $0x348] sm:$0xff] %v1256
      %2274 = vst [vmem:[#allocation3 + $0x350] sm:$0xff] %v1585
      %2275 = vst [vmem:[#allocation3 + $0x358] sm:$0xff] %v1914
      %2276 = vst [vmem:[#allocation3 + $0x360] sm:$0xff] %v929
      %2277 = vst [vmem:[#allocation3 + $0x368] sm:$0xff] %v1258
      %2278 = vst [vmem:[#allocation3 + $0x370] sm:$0xff] %v1587
      %2279 = vst [vmem:[#allocation3 + $0x378] sm:$0xff] %v1916
      %2280 = vst [vmem:[#allocation3 + $0x380] sm:$0xff] %v932
      %2281 = vst [vmem:[#allocation3 + $0x388] sm:$0xff] %v1261
      %2282 = vst [vmem:[#allocation3 + $0x390] sm:$0xff] %v1590
      %2283 = vst [vmem:[#allocation3 + $0x398] sm:$0xff] %v1919
      %2284 = vst [vmem:[#allocation3 + $0x3a0] sm:$0xff] %v934
      %2285 = vst [vmem:[#allocation3 + $0x3a8] sm:$0xff] %v1263
      %2286 = vst [vmem:[#allocation3 + $0x3b0] sm:$0xff] %v1592
      %2287 = vst [vmem:[#allocation3 + $0x3b8] sm:$0xff] %v1921
      %2288 = vst [vmem:[#allocation3 + $0x3c0] sm:$0xff] %v937
      %2289 = vst [vmem:[#allocation3 + $0x3c8] sm:$0xff] %v1266
      %2290 = vst [vmem:[#allocation3 + $0x3d0] sm:$0xff] %v1595
      %2291 = vst [vmem:[#allocation3 + $0x3d8] sm:$0xff] %v1924
      %2292 = vst [vmem:[#allocation3 + $0x3e0] sm:$0xff] %v939
      %2293 = vst [vmem:[#allocation3 + $0x3e8] sm:$0xff] %v1268
      %2294 = vst [vmem:[#allocation3 + $0x3f0] sm:$0xff] %v1597
      %2295 = vst [vmem:[#allocation3 + $0x3f8] sm:$0xff] %v1926
      %2296 = vst [vmem:[#allocation3 + $0x400] sm:$0xff] %v942
      %2297 = vst [vmem:[#allocation3 + $0x408] sm:$0xff] %v1271
      %2298 = vst [vmem:[#allocation3 + $0x410] sm:$0xff] %v1600
      %2299 = vst [vmem:[#allocation3 + $0x418] sm:$0xff] %v1929
      %2300 = vst [vmem:[#allocation3 + $0x420] sm:$0xff] %v944
      %2301 = vst [vmem:[#allocation3 + $0x428] sm:$0xff] %v1273
      %2302 = vst [vmem:[#allocation3 + $0x430] sm:$0xff] %v1602
      %2303 = vst [vmem:[#allocation3 + $0x438] sm:$0xff] %v1931
      %2304 = vst [vmem:[#allocation3 + $0x440] sm:$0xff] %v947
      %2305 = vst [vmem:[#allocation3 + $0x448] sm:$0xff] %v1276
      %2306 = vst [vmem:[#allocation3 + $0x450] sm:$0xff] %v1605
      %2307 = vst [vmem:[#allocation3 + $0x458] sm:$0xff] %v1934
      %2308 = vst [vmem:[#allocation3 + $0x460] sm:$0xff] %v949
      %2309 = vst [vmem:[#allocation3 + $0x468] sm:$0xff] %v1278
      %2310 = vst [vmem:[#allocation3 + $0x470] sm:$0xff] %v1607
      %2311 = vst [vmem:[#allocation3 + $0x478] sm:$0xff] %v1936
      %2312 = vst [vmem:[#allocation3 + $0x480] sm:$0xff] %v952
      %2313 = vst [vmem:[#allocation3 + $0x488] sm:$0xff] %v1281
      %2314 = vst [vmem:[#allocation3 + $0x490] sm:$0xff] %v1610
      %2315 = vst [vmem:[#allocation3 + $0x498] sm:$0xff] %v1939
      %2316 = vst [vmem:[#allocation3 + $0x4a0] sm:$0xff] %v954
      %2317 = vst [vmem:[#allocation3 + $0x4a8] sm:$0xff] %v1283
      %2318 = vst [vmem:[#allocation3 + $0x4b0] sm:$0xff] %v1612
      %2319 = vst [vmem:[#allocation3 + $0x4b8] sm:$0xff] %v1941
      %2320 = vst [vmem:[#allocation3 + $0x4c0] sm:$0xff] %v957
      %2321 = vst [vmem:[#allocation3 + $0x4c8] sm:$0xff] %v1286
      %2322 = vst [vmem:[#allocation3 + $0x4d0] sm:$0xff] %v1615
      %2323 = vst [vmem:[#allocation3 + $0x4d8] sm:$0xff] %v1944
      %2324 = vst [vmem:[#allocation3 + $0x4e0] sm:$0xff] %v959
      %2325 = vst [vmem:[#allocation3 + $0x4e8] sm:$0xff] %v1288
      %2326 = vst [vmem:[#allocation3 + $0x4f0] sm:$0xff] %v1617
      %2327 = vst [vmem:[#allocation3 + $0x4f8] sm:$0xff] %v1946
      %2328 = vst [vmem:[#allocation3 + $0x500] sm:$0xff] %v962
      %2329 = vst [vmem:[#allocation3 + $0x508] sm:$0xff] %v1291
      %2330 = vst [vmem:[#allocation3 + $0x510] sm:$0xff] %v1620
      %2331 = vst [vmem:[#allocation3 + $0x518] sm:$0xff] %v1949
      %2332 = vst [vmem:[#allocation3 + $0x520] sm:$0xff] %v964
      %2333 = vst [vmem:[#allocation3 + $0x528] sm:$0xff] %v1293
      %2334 = vst [vmem:[#allocation3 + $0x530] sm:$0xff] %v1622
      %2335 = vst [vmem:[#allocation3 + $0x538] sm:$0xff] %v1951
      %2336 = vst [vmem:[#allocation3 + $0x540] sm:$0xff] %v967
      %2337 = vst [vmem:[#allocation3 + $0x548] sm:$0xff] %v1296
      %2338 = vst [vmem:[#allocation3 + $0x550] sm:$0xff] %v1625
      %2339 = vst [vmem:[#allocation3 + $0x558] sm:$0xff] %v1954
      %2340 = vst [vmem:[#allocation3 + $0x560] sm:$0xff] %v969
      %2341 = vst [vmem:[#allocation3 + $0x568] sm:$0xff] %v1298
      %2342 = vst [vmem:[#allocation3 + $0x570] sm:$0xff] %v1627
      %2343 = vst [vmem:[#allocation3 + $0x578] sm:$0xff] %v1956
      %2344 = vst [vmem:[#allocation3 + $0x580] sm:$0xff] %v972
      %2345 = vst [vmem:[#allocation3 + $0x588] sm:$0xff] %v1301
      %2346 = vst [vmem:[#allocation3 + $0x590] sm:$0xff] %v1630
      %2347 = vst [vmem:[#allocation3 + $0x598] sm:$0xff] %v1959
      %2348 = vst [vmem:[#allocation3 + $0x5a0] sm:$0xff] %v974
      %2349 = vst [vmem:[#allocation3 + $0x5a8] sm:$0xff] %v1303
      %2350 = vst [vmem:[#allocation3 + $0x5b0] sm:$0xff] %v1632
      %2351 = vst [vmem:[#allocation3 + $0x5b8] sm:$0xff] %v1961
      %2352 = vst [vmem:[#allocation3 + $0x5c0] sm:$0xff] %v977
      %2353 = vst [vmem:[#allocation3 + $0x5c8] sm:$0xff] %v1306
      %2354 = vst [vmem:[#allocation3 + $0x5d0] sm:$0xff] %v1635
      %2355 = vst [vmem:[#allocation3 + $0x5d8] sm:$0xff] %v1964
      %2356 = vst [vmem:[#allocation3 + $0x5e0] sm:$0xff] %v979
      %2357 = vst [vmem:[#allocation3 + $0x5e8] sm:$0xff] %v1308
      %2358 = vst [vmem:[#allocation3 + $0x5f0] sm:$0xff] %v1637
      %2359 = vst [vmem:[#allocation3 + $0x5f8] sm:$0xff] %v1966
      %2360 = vst [vmem:[#allocation3 + $0x600] sm:$0xff] %v982
      %2361 = vst [vmem:[#allocation3 + $0x608] sm:$0xff] %v1311
      %2362 = vst [vmem:[#allocation3 + $0x610] sm:$0xff] %v1640
      %2363 = vst [vmem:[#allocation3 + $0x618] sm:$0xff] %v1969
      %2364 = vst [vmem:[#allocation3 + $0x620] sm:$0xff] %v984
      %2365 = vst [vmem:[#allocation3 + $0x628] sm:$0xff] %v1313
      %2366 = vst [vmem:[#allocation3 + $0x630] sm:$0xff] %v1642
      %2367 = vst [vmem:[#allocation3 + $0x638] sm:$0xff] %v1971
      %2368 = vst [vmem:[#allocation3 + $0x640] sm:$0xff] %v987
      %2369 = vst [vmem:[#allocation3 + $0x648] sm:$0xff] %v1316
      %2370 = vst [vmem:[#allocation3 + $0x650] sm:$0xff] %v1645
      %2371 = vst [vmem:[#allocation3 + $0x658] sm:$0xff] %v1974
      %2372 = vst [vmem:[#allocation3 + $0x660] sm:$0xff] %v989
      %2373 = vst [vmem:[#allocation3 + $0x668] sm:$0xff] %v1318
      %2374 = vst [vmem:[#allocation3 + $0x670] sm:$0xff] %v1647
      %2375 = vst [vmem:[#allocation3 + $0x678] sm:$0xff] %v1976
      %2376 = vst [vmem:[#allocation3 + $0x680] sm:$0xff] %v992
      %2377 = vst [vmem:[#allocation3 + $0x688] sm:$0xff] %v1321
      %2378 = vst [vmem:[#allocation3 + $0x690] sm:$0xff] %v1650
      %2379 = vst [vmem:[#allocation3 + $0x698] sm:$0xff] %v1979
      %2380 = vst [vmem:[#allocation3 + $0x6a0] sm:$0xff] %v994
      %2381 = vst [vmem:[#allocation3 + $0x6a8] sm:$0xff] %v1323
      %2382 = vst [vmem:[#allocation3 + $0x6b0] sm:$0xff] %v1652
      %2383 = vst [vmem:[#allocation3 + $0x6b8] sm:$0xff] %v1981
      %2384 = vst [vmem:[#allocation3 + $0x6c0] sm:$0xff] %v997
      %2385 = vst [vmem:[#allocation3 + $0x6c8] sm:$0xff] %v1326
      %2386 = vst [vmem:[#allocation3 + $0x6d0] sm:$0xff] %v1655
      %2387 = vst [vmem:[#allocation3 + $0x6d8] sm:$0xff] %v1984
      %2388 = vst [vmem:[#allocation3 + $0x6e0] sm:$0xff] %v999
      %2389 = vst [vmem:[#allocation3 + $0x6e8] sm:$0xff] %v1328
      %2390 = vst [vmem:[#allocation3 + $0x6f0] sm:$0xff] %v1657
      %2391 = vst [vmem:[#allocation3 + $0x6f8] sm:$0xff] %v1986
      %2392 = vst [vmem:[#allocation3 + $0x700] sm:$0xff] %v1002
      %2393 = vst [vmem:[#allocation3 + $0x708] sm:$0xff] %v1331
      %2394 = vst [vmem:[#allocation3 + $0x710] sm:$0xff] %v1660
      %2395 = vst [vmem:[#allocation3 + $0x718] sm:$0xff] %v1989
      %2396 = vst [vmem:[#allocation3 + $0x720] sm:$0xff] %v1004
      %2397 = vst [vmem:[#allocation3 + $0x728] sm:$0xff] %v1333
      %2398 = vst [vmem:[#allocation3 + $0x730] sm:$0xff] %v1662
      %2399 = vst [vmem:[#allocation3 + $0x738] sm:$0xff] %v1991
      %2400 = vst [vmem:[#allocation3 + $0x740] sm:$0xff] %v1007
      %2401 = vst [vmem:[#allocation3 + $0x748] sm:$0xff] %v1336
      %2402 = vst [vmem:[#allocation3 + $0x750] sm:$0xff] %v1665
      %2403 = vst [vmem:[#allocation3 + $0x758] sm:$0xff] %v1994
      %2404 = vst [vmem:[#allocation3 + $0x760] sm:$0xff] %v1009
      %2405 = vst [vmem:[#allocation3 + $0x768] sm:$0xff] %v1338
      %2406 = vst [vmem:[#allocation3 + $0x770] sm:$0xff] %v1667
      %2407 = vst [vmem:[#allocation3 + $0x778] sm:$0xff] %v1996
      %2408 = vst [vmem:[#allocation3 + $0x780] sm:$0xff] %v1012
      %2409 = vst [vmem:[#allocation3 + $0x788] sm:$0xff] %v1341
      %2410 = vst [vmem:[#allocation3 + $0x790] sm:$0xff] %v1670
      %2411 = vst [vmem:[#allocation3 + $0x798] sm:$0xff] %v1999
      %2412 = vst [vmem:[#allocation3 + $0x7a0] sm:$0xff] %v1014
      %2413 = vst [vmem:[#allocation3 + $0x7a8] sm:$0xff] %v1343
      %2414 = vst [vmem:[#allocation3 + $0x7b0] sm:$0xff] %v1672
      %2415 = vst [vmem:[#allocation3 + $0x7b8] sm:$0xff] %v2001
      %2416 = vst [vmem:[#allocation3 + $0x7c0] sm:$0xff] %v1017
      %2417 = vst [vmem:[#allocation3 + $0x7c8] sm:$0xff] %v1346
      %2418 = vst [vmem:[#allocation3 + $0x7d0] sm:$0xff] %v1675
      %2419 = vst [vmem:[#allocation3 + $0x7d8] sm:$0xff] %v2004
      %2420 = vst [vmem:[#allocation3 + $0x7e0] sm:$0xff] %v1019
      %2421 = vst [vmem:[#allocation3 + $0x7e8] sm:$0xff] %v1348
      %2422 = vst [vmem:[#allocation3 + $0x7f0] sm:$0xff] %v1677
      %2423 = vst [vmem:[#allocation3 + $0x7f8] sm:$0xff] %v2006
      %2424 = vst [vmem:[#allocation3 + $0x800] sm:$0xff] %v1022
      %2425 = vst [vmem:[#allocation3 + $0x808] sm:$0xff] %v1351
      %2426 = vst [vmem:[#allocation3 + $0x810] sm:$0xff] %v1680
      %2427 = vst [vmem:[#allocation3 + $0x818] sm:$0xff] %v2009
      %2428 = vst [vmem:[#allocation3 + $0x820] sm:$0xff] %v1024
      %2429 = vst [vmem:[#allocation3 + $0x828] sm:$0xff] %v1353
      %2430 = vst [vmem:[#allocation3 + $0x830] sm:$0xff] %v1682
      %2431 = vst [vmem:[#allocation3 + $0x838] sm:$0xff] %v2011
      %2432 = vst [vmem:[#allocation3 + $0x840] sm:$0xff] %v1027
      %2433 = vst [vmem:[#allocation3 + $0x848] sm:$0xff] %v1356
      %2434 = vst [vmem:[#allocation3 + $0x850] sm:$0xff] %v1685
      %2435 = vst [vmem:[#allocation3 + $0x858] sm:$0xff] %v2014
      %2436 = vst [vmem:[#allocation3 + $0x860] sm:$0xff] %v1029
      %2437 = vst [vmem:[#allocation3 + $0x868] sm:$0xff] %v1358
      %2438 = vst [vmem:[#allocation3 + $0x870] sm:$0xff] %v1687
      %2439 = vst [vmem:[#allocation3 + $0x878] sm:$0xff] %v2016
      %2440 = vst [vmem:[#allocation3 + $0x880] sm:$0xff] %v1032
      %2441 = vst [vmem:[#allocation3 + $0x888] sm:$0xff] %v1361
      %2442 = vst [vmem:[#allocation3 + $0x890] sm:$0xff] %v1690
      %2443 = vst [vmem:[#allocation3 + $0x898] sm:$0xff] %v2019
      %2444 = vst [vmem:[#allocation3 + $0x8a0] sm:$0xff] %v1034
      %2445 = vst [vmem:[#allocation3 + $0x8a8] sm:$0xff] %v1363
      %2446 = vst [vmem:[#allocation3 + $0x8b0] sm:$0xff] %v1692
      %2447 = vst [vmem:[#allocation3 + $0x8b8] sm:$0xff] %v2021
      %2448 = vst [vmem:[#allocation3 + $0x8c0] sm:$0xff] %v1037
      %2449 = vst [vmem:[#allocation3 + $0x8c8] sm:$0xff] %v1366
      %2450 = vst [vmem:[#allocation3 + $0x8d0] sm:$0xff] %v1695
      %2451 = vst [vmem:[#allocation3 + $0x8d8] sm:$0xff] %v2024
      %2452 = vst [vmem:[#allocation3 + $0x8e0] sm:$0xff] %v1039
      %2453 = vst [vmem:[#allocation3 + $0x8e8] sm:$0xff] %v1368
      %2454 = vst [vmem:[#allocation3 + $0x8f0] sm:$0xff] %v1697
      %2455 = vst [vmem:[#allocation3 + $0x8f8] sm:$0xff] %v2026
      %2456 = vst [vmem:[#allocation3 + $0x900] sm:$0xff] %v1042
      %2457 = vst [vmem:[#allocation3 + $0x908] sm:$0xff] %v1371
      %2458 = vst [vmem:[#allocation3 + $0x910] sm:$0xff] %v1700
      %2459 = vst [vmem:[#allocation3 + $0x918] sm:$0xff] %v2029
      %2460 = vst [vmem:[#allocation3 + $0x920] sm:$0xff] %v1044
      %2461 = vst [vmem:[#allocation3 + $0x928] sm:$0xff] %v1373
      %2462 = vst [vmem:[#allocation3 + $0x930] sm:$0xff] %v1702
      %2463 = vst [vmem:[#allocation3 + $0x938] sm:$0xff] %v2031
      %2464 = vst [vmem:[#allocation3 + $0x940] sm:$0xff] %v1047
      %2465 = vst [vmem:[#allocation3 + $0x948] sm:$0xff] %v1376
      %2466 = vst [vmem:[#allocation3 + $0x950] sm:$0xff] %v1705
      %2467 = vst [vmem:[#allocation3 + $0x958] sm:$0xff] %v2034
      %2468 = vst [vmem:[#allocation3 + $0x960] sm:$0xff] %v1049
      %2469 = vst [vmem:[#allocation3 + $0x968] sm:$0xff] %v1378
      %2470 = vst [vmem:[#allocation3 + $0x970] sm:$0xff] %v1707
      %2471 = vst [vmem:[#allocation3 + $0x978] sm:$0xff] %v2036
      %2472 = vst [vmem:[#allocation3 + $0x980] sm:$0xff] %v1052
      %2473 = vst [vmem:[#allocation3 + $0x988] sm:$0xff] %v1381
      %2474 = vst [vmem:[#allocation3 + $0x990] sm:$0xff] %v1710
      %2475 = vst [vmem:[#allocation3 + $0x998] sm:$0xff] %v2039
      %2476 = vst [vmem:[#allocation3 + $0x9a0] sm:$0xff] %v1054
      %2477 = vst [vmem:[#allocation3 + $0x9a8] sm:$0xff] %v1383
      %2478 = vst [vmem:[#allocation3 + $0x9b0] sm:$0xff] %v1712
      %2479 = vst [vmem:[#allocation3 + $0x9b8] sm:$0xff] %v2041
      %2480 = vst [vmem:[#allocation3 + $0x9c0] sm:$0xff] %v1057
      %2481 = vst [vmem:[#allocation3 + $0x9c8] sm:$0xff] %v1386
      %2482 = vst [vmem:[#allocation3 + $0x9d0] sm:$0xff] %v1715
      %2483 = vst [vmem:[#allocation3 + $0x9d8] sm:$0xff] %v2044
      %2484 = vst [vmem:[#allocation3 + $0x9e0] sm:$0xff] %v1059
      %2485 = vst [vmem:[#allocation3 + $0x9e8] sm:$0xff] %v1388
      %2486 = vst [vmem:[#allocation3 + $0x9f0] sm:$0xff] %v1717
      %2487 = vst [vmem:[#allocation3 + $0x9f8] sm:$0xff] %v2046
      %2488 = vst [vmem:[#allocation3 + $0xa00] sm:$0xff] %v1062
      %2489 = vst [vmem:[#allocation3 + $0xa08] sm:$0xff] %v1391
      %2490 = vst [vmem:[#allocation3 + $0xa10] sm:$0xff] %v1720
      %2491 = vst [vmem:[#allocation3 + $0xa18] sm:$0xff] %v2049
      %2492 = vst [vmem:[#allocation3 + $0xa20] sm:$0xff] %v1064
      %2493 = vst [vmem:[#allocation3 + $0xa28] sm:$0xff] %v1393
      %2494 = vst [vmem:[#allocation3 + $0xa30] sm:$0xff] %v1722
      %2495 = vst [vmem:[#allocation3 + $0xa38] sm:$0xff] %v2051
      %2496 = vst [vmem:[#allocation3 + $0xa40] sm:$0xff] %v1067
      %2497 = vst [vmem:[#allocation3 + $0xa48] sm:$0xff] %v1396
      %2498 = vst [vmem:[#allocation3 + $0xa50] sm:$0xff] %v1725
      %2499 = vst [vmem:[#allocation3 + $0xa58] sm:$0xff] %v2054
      %2500 = vst [vmem:[#allocation3 + $0xa60] sm:$0xff] %v1069
      %2501 = vst [vmem:[#allocation3 + $0xa68] sm:$0xff] %v1398
      %2502 = vst [vmem:[#allocation3 + $0xa70] sm:$0xff] %v1727
      %2503 = vst [vmem:[#allocation3 + $0xa78] sm:$0xff] %v2056
      %2504 = vst [vmem:[#allocation3 + $0xa80] sm:$0xff] %v1072
      %2505 = vst [vmem:[#allocation3 + $0xa88] sm:$0xff] %v1401
      %2506 = vst [vmem:[#allocation3 + $0xa90] sm:$0xff] %v1730
      %2507 = vst [vmem:[#allocation3 + $0xa98] sm:$0xff] %v2059
      %2508 = vst [vmem:[#allocation3 + $0xaa0] sm:$0xff] %v1074
      %2509 = vst [vmem:[#allocation3 + $0xaa8] sm:$0xff] %v1403
      %2510 = vst [vmem:[#allocation3 + $0xab0] sm:$0xff] %v1732
      %2511 = vst [vmem:[#allocation3 + $0xab8] sm:$0xff] %v2061
      %2512 = vst [vmem:[#allocation3 + $0xac0] sm:$0xff] %v1077
      %2513 = vst [vmem:[#allocation3 + $0xac8] sm:$0xff] %v1406
      %2514 = vst [vmem:[#allocation3 + $0xad0] sm:$0xff] %v1735
      %2515 = vst [vmem:[#allocation3 + $0xad8] sm:$0xff] %v2064
      %2516 = vst [vmem:[#allocation3 + $0xae0] sm:$0xff] %v1079
      %2517 = vst [vmem:[#allocation3 + $0xae8] sm:$0xff] %v1408
      %2518 = vst [vmem:[#allocation3 + $0xaf0] sm:$0xff] %v1737
      %2519 = vst [vmem:[#allocation3 + $0xaf8] sm:$0xff] %v2066
      %2520 = vst [vmem:[#allocation3 + $0xb00] sm:$0xff] %v1082
      %2521 = vst [vmem:[#allocation3 + $0xb08] sm:$0xff] %v1411
      %2522 = vst [vmem:[#allocation3 + $0xb10] sm:$0xff] %v1740
      %2523 = vst [vmem:[#allocation3 + $0xb18] sm:$0xff] %v2069
      %2524 = vst [vmem:[#allocation3 + $0xb20] sm:$0xff] %v1084
      %2525 = vst [vmem:[#allocation3 + $0xb28] sm:$0xff] %v1413
      %2526 = vst [vmem:[#allocation3 + $0xb30] sm:$0xff] %v1742
      %2527 = vst [vmem:[#allocation3 + $0xb38] sm:$0xff] %v2071
      %2528 = vst [vmem:[#allocation3 + $0xb40] sm:$0xff] %v1087
      %2529 = vst [vmem:[#allocation3 + $0xb48] sm:$0xff] %v1416
      %2530 = vst [vmem:[#allocation3 + $0xb50] sm:$0xff] %v1745
      %2531 = vst [vmem:[#allocation3 + $0xb58] sm:$0xff] %v2074
      %2532 = vst [vmem:[#allocation3 + $0xb60] sm:$0xff] %v1089
      %2533 = vst [vmem:[#allocation3 + $0xb68] sm:$0xff] %v1418
      %2534 = vst [vmem:[#allocation3 + $0xb70] sm:$0xff] %v1747
      %2535 = vst [vmem:[#allocation3 + $0xb78] sm:$0xff] %v2076
      %2536 = vst [vmem:[#allocation3 + $0xb80] sm:$0xff] %v1092
      %2537 = vst [vmem:[#allocation3 + $0xb88] sm:$0xff] %v1421
      %2538 = vst [vmem:[#allocation3 + $0xb90] sm:$0xff] %v1750
      %2539 = vst [vmem:[#allocation3 + $0xb98] sm:$0xff] %v2079
      %2540 = vst [vmem:[#allocation3 + $0xba0] sm:$0xff] %v1094
      %2541 = vst [vmem:[#allocation3 + $0xba8] sm:$0xff] %v1423
      %2542 = vst [vmem:[#allocation3 + $0xbb0] sm:$0xff] %v1752
      %2543 = vst [vmem:[#allocation3 + $0xbb8] sm:$0xff] %v2081
      %2544 = vst [vmem:[#allocation3 + $0xbc0] sm:$0xff] %v1097
      %2545 = vst [vmem:[#allocation3 + $0xbc8] sm:$0xff] %v1426
      %2546 = vst [vmem:[#allocation3 + $0xbd0] sm:$0xff] %v1755
      %2547 = vst [vmem:[#allocation3 + $0xbd8] sm:$0xff] %v2084
      %2548 = vst [vmem:[#allocation3 + $0xbe0] sm:$0xff] %v1099
      %2549 = vst [vmem:[#allocation3 + $0xbe8] sm:$0xff] %v1428
      %2550 = vst [vmem:[#allocation3 + $0xbf0] sm:$0xff] %v1757
      %2551 = vst [vmem:[#allocation3 + $0xbf8] sm:$0xff] %v2086
      %2552 = vst [vmem:[#allocation3 + $0xc00] sm:$0xff] %v1102
      %2553 = vst [vmem:[#allocation3 + $0xc08] sm:$0xff] %v1431
      %2554 = vst [vmem:[#allocation3 + $0xc10] sm:$0xff] %v1760
      %2555 = vst [vmem:[#allocation3 + $0xc18] sm:$0xff] %v2089
      %2556 = vst [vmem:[#allocation3 + $0xc20] sm:$0xff] %v1104
      %2557 = vst [vmem:[#allocation3 + $0xc28] sm:$0xff] %v1433
      %2558 = vst [vmem:[#allocation3 + $0xc30] sm:$0xff] %v1762
      %2559 = vst [vmem:[#allocation3 + $0xc38] sm:$0xff] %v2091
      %2560 = vst [vmem:[#allocation3 + $0xc40] sm:$0xff] %v1107
      %2561 = vst [vmem:[#allocation3 + $0xc48] sm:$0xff] %v1436
      %2562 = vst [vmem:[#allocation3 + $0xc50] sm:$0xff] %v1765
      %2563 = vst [vmem:[#allocation3 + $0xc58] sm:$0xff] %v2094
      %2564 = vst [vmem:[#allocation3 + $0xc60] sm:$0xff] %v1109
      %2565 = vst [vmem:[#allocation3 + $0xc68] sm:$0xff] %v1438
      %2566 = vst [vmem:[#allocation3 + $0xc70] sm:$0xff] %v1767
      %2567 = vst [vmem:[#allocation3 + $0xc78] sm:$0xff] %v2096
      %2568 = vst [vmem:[#allocation3 + $0xc80] sm:$0xff] %v1112
      %2569 = vst [vmem:[#allocation3 + $0xc88] sm:$0xff] %v1441
      %2570 = vst [vmem:[#allocation3 + $0xc90] sm:$0xff] %v1770
      %2571 = vst [vmem:[#allocation3 + $0xc98] sm:$0xff] %v2099
      %2572 = vst [vmem:[#allocation3 + $0xca0] sm:$0xff] %v1114
      %2573 = vst [vmem:[#allocation3 + $0xca8] sm:$0xff] %v1443
      %2574 = vst [vmem:[#allocation3 + $0xcb0] sm:$0xff] %v1772
      %2575 = vst [vmem:[#allocation3 + $0xcb8] sm:$0xff] %v2101
      %2576 = vst [vmem:[#allocation3 + $0xcc0] sm:$0xff] %v1117
      %2577 = vst [vmem:[#allocation3 + $0xcc8] sm:$0xff] %v1446
      %2578 = vst [vmem:[#allocation3 + $0xcd0] sm:$0xff] %v1775
      %2579 = vst [vmem:[#allocation3 + $0xcd8] sm:$0xff] %v2104
      %2580 = vst [vmem:[#allocation3 + $0xce0] sm:$0xff] %v1119
      %2581 = vst [vmem:[#allocation3 + $0xce8] sm:$0xff] %v1448
      %2582 = vst [vmem:[#allocation3 + $0xcf0] sm:$0xff] %v1777
      %2583 = vst [vmem:[#allocation3 + $0xcf8] sm:$0xff] %v2106
      %2584 = vst [vmem:[#allocation3 + $0xd00] sm:$0xff] %v1122
      %2585 = vst [vmem:[#allocation3 + $0xd08] sm:$0xff] %v1451
      %2586 = vst [vmem:[#allocation3 + $0xd10] sm:$0xff] %v1780
      %2587 = vst [vmem:[#allocation3 + $0xd18] sm:$0xff] %v2109
      %2588 = vst [vmem:[#allocation3 + $0xd20] sm:$0xff] %v1124
      %2589 = vst [vmem:[#allocation3 + $0xd28] sm:$0xff] %v1453
      %2590 = vst [vmem:[#allocation3 + $0xd30] sm:$0xff] %v1782
      %2591 = vst [vmem:[#allocation3 + $0xd38] sm:$0xff] %v2111
      %2592 = vst [vmem:[#allocation3 + $0xd40] sm:$0xff] %v1127
      %2593 = vst [vmem:[#allocation3 + $0xd48] sm:$0xff] %v1456
      %2594 = vst [vmem:[#allocation3 + $0xd50] sm:$0xff] %v1785
      %2595 = vst [vmem:[#allocation3 + $0xd58] sm:$0xff] %v2114
      %2596 = vst [vmem:[#allocation3 + $0xd60] sm:$0xff] %v1129
      %2597 = vst [vmem:[#allocation3 + $0xd68] sm:$0xff] %v1458
      %2598 = vst [vmem:[#allocation3 + $0xd70] sm:$0xff] %v1787
      %2599 = vst [vmem:[#allocation3 + $0xd78] sm:$0xff] %v2116
      %2600 = vst [vmem:[#allocation3 + $0xd80] sm:$0xff] %v1132
      %2601 = vst [vmem:[#allocation3 + $0xd88] sm:$0xff] %v1461
      %2602 = vst [vmem:[#allocation3 + $0xd90] sm:$0xff] %v1790
      %2603 = vst [vmem:[#allocation3 + $0xd98] sm:$0xff] %v2119
      %2604 = vst [vmem:[#allocation3 + $0xda0] sm:$0xff] %v1134
      %2605 = vst [vmem:[#allocation3 + $0xda8] sm:$0xff] %v1463
      %2606 = vst [vmem:[#allocation3 + $0xdb0] sm:$0xff] %v1792
      %2607 = vst [vmem:[#allocation3 + $0xdb8] sm:$0xff] %v2121
      %2608 = vst [vmem:[#allocation3 + $0xdc0] sm:$0xff] %v1137
      %2609 = vst [vmem:[#allocation3 + $0xdc8] sm:$0xff] %v1466
      %2610 = vst [vmem:[#allocation3 + $0xdd0] sm:$0xff] %v1795
      %2611 = vst [vmem:[#allocation3 + $0xdd8] sm:$0xff] %v2124
      %2612 = vst [vmem:[#allocation3 + $0xde0] sm:$0xff] %v1139
      %2613 = vst [vmem:[#allocation3 + $0xde8] sm:$0xff] %v1468
      %2614 = vst [vmem:[#allocation3 + $0xdf0] sm:$0xff] %v1797
      %2615 = vst [vmem:[#allocation3 + $0xdf8] sm:$0xff] %v2126
      %2616 = vst [vmem:[#allocation3 + $0xe00] sm:$0xff] %v1142
      %2617 = vst [vmem:[#allocation3 + $0xe08] sm:$0xff] %v1471
      %2618 = vst [vmem:[#allocation3 + $0xe10] sm:$0xff] %v1800
      %2619 = vst [vmem:[#allocation3 + $0xe18] sm:$0xff] %v2129
      %2620 = vst [vmem:[#allocation3 + $0xe20] sm:$0xff] %v1144
      %2621 = vst [vmem:[#allocation3 + $0xe28] sm:$0xff] %v1473
      %2622 = vst [vmem:[#allocation3 + $0xe30] sm:$0xff] %v1802
      %2623 = vst [vmem:[#allocation3 + $0xe38] sm:$0xff] %v2131
      %2624 = vst [vmem:[#allocation3 + $0xe40] sm:$0xff] %v1147
      %2625 = vst [vmem:[#allocation3 + $0xe48] sm:$0xff] %v1476
      %2626 = vst [vmem:[#allocation3 + $0xe50] sm:$0xff] %v1805
      %2627 = vst [vmem:[#allocation3 + $0xe58] sm:$0xff] %v2134
      %2628 = vst [vmem:[#allocation3 + $0xe60] sm:$0xff] %v1149
      %2629 = vst [vmem:[#allocation3 + $0xe68] sm:$0xff] %v1478
      %2630 = vst [vmem:[#allocation3 + $0xe70] sm:$0xff] %v1807
      %2631 = vst [vmem:[#allocation3 + $0xe78] sm:$0xff] %v2136
      %2632 = vst [vmem:[#allocation3 + $0xe80] sm:$0xff] %v1152
      %2633 = vst [vmem:[#allocation3 + $0xe88] sm:$0xff] %v1481
      %2634 = vst [vmem:[#allocation3 + $0xe90] sm:$0xff] %v1810
      %2635 = vst [vmem:[#allocation3 + $0xe98] sm:$0xff] %v2139
      %2636 = vst [vmem:[#allocation3 + $0xea0] sm:$0xff] %v1154
      %2637 = vst [vmem:[#allocation3 + $0xea8] sm:$0xff] %v1483
      %2638 = vst [vmem:[#allocation3 + $0xeb0] sm:$0xff] %v1812
      %2639 = vst [vmem:[#allocation3 + $0xeb8] sm:$0xff] %v2141
      %2640 = vst [vmem:[#allocation3 + $0xec0] sm:$0xff] %v1157
      %2641 = vst [vmem:[#allocation3 + $0xec8] sm:$0xff] %v1486
      %2642 = vst [vmem:[#allocation3 + $0xed0] sm:$0xff] %v1815
      %2643 = vst [vmem:[#allocation3 + $0xed8] sm:$0xff] %v2144
      %2644 = vst [vmem:[#allocation3 + $0xee0] sm:$0xff] %v1159
      %2645 = vst [vmem:[#allocation3 + $0xee8] sm:$0xff] %v1488
      %2646 = vst [vmem:[#allocation3 + $0xef0] sm:$0xff] %v1817
      %2647 = vst [vmem:[#allocation3 + $0xef8] sm:$0xff] %v2146
      %2648 = vst [vmem:[#allocation3 + $0xf00] sm:$0xff] %v1162
      %2649 = vst [vmem:[#allocation3 + $0xf08] sm:$0xff] %v1491
      %2650 = vst [vmem:[#allocation3 + $0xf10] sm:$0xff] %v1820
      %2651 = vst [vmem:[#allocation3 + $0xf18] sm:$0xff] %v2149
      %2652 = vst [vmem:[#allocation3 + $0xf20] sm:$0xff] %v1164
      %2653 = vst [vmem:[#allocation3 + $0xf28] sm:$0xff] %v1493
      %2654 = vst [vmem:[#allocation3 + $0xf30] sm:$0xff] %v1822
      %2655 = vst [vmem:[#allocation3 + $0xf38] sm:$0xff] %v2151
      %2656 = vst [vmem:[#allocation3 + $0xf40] sm:$0xff] %v1167
      %2657 = vst [vmem:[#allocation3 + $0xf48] sm:$0xff] %v1496
      %2658 = vst [vmem:[#allocation3 + $0xf50] sm:$0xff] %v1825
      %2659 = vst [vmem:[#allocation3 + $0xf58] sm:$0xff] %v2154
      %2660 = vst [vmem:[#allocation3 + $0xf60] sm:$0xff] %v1169
      %2661 = vst [vmem:[#allocation3 + $0xf68] sm:$0xff] %v1498
      %2662 = vst [vmem:[#allocation3 + $0xf70] sm:$0xff] %v1827
      %2663 = vst [vmem:[#allocation3 + $0xf78] sm:$0xff] %v2156
      %2664 = vst [vmem:[#allocation3 + $0xf80] sm:$0xff] %v1172
      %2665 = vst [vmem:[#allocation3 + $0xf88] sm:$0xff] %v1501
      %2666 = vst [vmem:[#allocation3 + $0xf90] sm:$0xff] %v1830
      %2667 = vst [vmem:[#allocation3 + $0xf98] sm:$0xff] %v2159
      %2668 = vst [vmem:[#allocation3 + $0xfa0] sm:$0xff] %v1174
      %2669 = vst [vmem:[#allocation3 + $0xfa8] sm:$0xff] %v1503
      %2670 = vst [vmem:[#allocation3 + $0xfb0] sm:$0xff] %v1832
      %2671 = vst [vmem:[#allocation3 + $0xfb8] sm:$0xff] %v2161
      %2672 = vst [vmem:[#allocation3 + $0xfc0] sm:$0xff] %v1177
      %2673 = vst [vmem:[#allocation3 + $0xfc8] sm:$0xff] %v1506
      %2674 = vst [vmem:[#allocation3 + $0xfd0] sm:$0xff] %v1835
      %2675 = vst [vmem:[#allocation3 + $0xfd8] sm:$0xff] %v2164
      %2676 = vst [vmem:[#allocation3 + $0xfe0] sm:$0xff] %v1179
      %2677 = vst [vmem:[#allocation3 + $0xfe8] sm:$0xff] %v1508
      %2678 = vst [vmem:[#allocation3 + $0xff0] sm:$0xff] %v1837
      %2679 = vst [vmem:[#allocation3 + $0xff8] sm:$0xff] %v2166
      %v2680 = vld [vmem:[#allocation3] sm:$0xff]
      %v2681 = vld [vmem:[#allocation3 + $0x8] sm:$0xff]
      %v2682 = vld [vmem:[#allocation3 + $0x10] sm:$0xff]
      %v2683 = vld [vmem:[#allocation3 + $0x18] sm:$0xff]
      %v2684 = vld [vmem:[#allocation3 + $0x20] sm:$0xff]
      %v2685 = vld [vmem:[#allocation3 + $0x28] sm:$0xff]
      %v2686 = vld [vmem:[#allocation3 + $0x30] sm:$0xff]
      %v2687 = vld [vmem:[#allocation3 + $0x38] sm:$0xff]
      %v2688 = vld [vmem:[#allocation3 + $0x40] sm:$0xff]
      %v2689 = vld [vmem:[#allocation3 + $0x48] sm:$0xff]
      %v2690 = vld [vmem:[#allocation3 + $0x50] sm:$0xff]
      %v2691 = vld [vmem:[#allocation3 + $0x58] sm:$0xff]
      %v2692 = vld [vmem:[#allocation3 + $0x60] sm:$0xff]
      %v2693 = vld [vmem:[#allocation3 + $0x68] sm:$0xff]
      %v2694 = vld [vmem:[#allocation3 + $0x70] sm:$0xff]
      %v2695 = vld [vmem:[#allocation3 + $0x78] sm:$0xff]
      %v2696 = vld [vmem:[#allocation3 + $0x80] sm:$0xff]
      %v2697 = vld [vmem:[#allocation3 + $0x88] sm:$0xff]
      %v2698 = vld [vmem:[#allocation3 + $0x90] sm:$0xff]
      %v2699 = vld [vmem:[#allocation3 + $0x98] sm:$0xff]
      %v2700 = vld [vmem:[#allocation3 + $0xa0] sm:$0xff]
      %v2701 = vld [vmem:[#allocation3 + $0xa8] sm:$0xff]
      %v2702 = vld [vmem:[#allocation3 + $0xb0] sm:$0xff]
      %v2703 = vld [vmem:[#allocation3 + $0xb8] sm:$0xff]
      %v2704 = vld [vmem:[#allocation3 + $0xc0] sm:$0xff]
      %v2705 = vld [vmem:[#allocation3 + $0xc8] sm:$0xff]
      %v2706 = vld [vmem:[#allocation3 + $0xd0] sm:$0xff]
      %v2707 = vld [vmem:[#allocation3 + $0xd8] sm:$0xff]
      %v2708 = vld [vmem:[#allocation3 + $0xe0] sm:$0xff]
      %v2709 = vld [vmem:[#allocation3 + $0xe8] sm:$0xff]
      %v2710 = vld [vmem:[#allocation3 + $0xf0] sm:$0xff]
      %v2711 = vld [vmem:[#allocation3 + $0xf8] sm:$0xff]
      %v2712 = vld [vmem:[#allocation3 + $0x100] sm:$0xff]
      %v2713 = vld [vmem:[#allocation3 + $0x108] sm:$0xff]
      %v2714 = vld [vmem:[#allocation3 + $0x110] sm:$0xff]
      %v2715 = vld [vmem:[#allocation3 + $0x118] sm:$0xff]
      %v2716 = vld [vmem:[#allocation3 + $0x120] sm:$0xff]
      %v2717 = vld [vmem:[#allocation3 + $0x128] sm:$0xff]
      %v2718 = vld [vmem:[#allocation3 + $0x130] sm:$0xff]
      %v2719 = vld [vmem:[#allocation3 + $0x138] sm:$0xff]
      %v2720 = vld [vmem:[#allocation3 + $0x140] sm:$0xff]
      %v2721 = vld [vmem:[#allocation3 + $0x148] sm:$0xff]
      %v2722 = vld [vmem:[#allocation3 + $0x150] sm:$0xff]
      %v2723 = vld [vmem:[#allocation3 + $0x158] sm:$0xff]
      %v2724 = vld [vmem:[#allocation3 + $0x160] sm:$0xff]
      %v2725 = vld [vmem:[#allocation3 + $0x168] sm:$0xff]
      %v2726 = vld [vmem:[#allocation3 + $0x170] sm:$0xff]
      %v2727 = vld [vmem:[#allocation3 + $0x178] sm:$0xff]
      %v2728 = vld [vmem:[#allocation3 + $0x180] sm:$0xff]
      %v2729 = vld [vmem:[#allocation3 + $0x188] sm:$0xff]
      %v2730 = vld [vmem:[#allocation3 + $0x190] sm:$0xff]
      %v2731 = vld [vmem:[#allocation3 + $0x198] sm:$0xff]
      %v2732 = vld [vmem:[#allocation3 + $0x1a0] sm:$0xff]
      %v2733 = vld [vmem:[#allocation3 + $0x1a8] sm:$0xff]
      %v2734 = vld [vmem:[#allocation3 + $0x1b0] sm:$0xff]
      %v2735 = vld [vmem:[#allocation3 + $0x1b8] sm:$0xff]
      %v2736 = vld [vmem:[#allocation3 + $0x1c0] sm:$0xff]
      %v2737 = vld [vmem:[#allocation3 + $0x1c8] sm:$0xff]
      %v2738 = vld [vmem:[#allocation3 + $0x1d0] sm:$0xff]
      %v2739 = vld [vmem:[#allocation3 + $0x1d8] sm:$0xff]
      %v2740 = vld [vmem:[#allocation3 + $0x1e0] sm:$0xff]
      %v2741 = vld [vmem:[#allocation3 + $0x1e8] sm:$0xff]
      %v2742 = vld [vmem:[#allocation3 + $0x1f0] sm:$0xff]
      %v2743 = vld [vmem:[#allocation3 + $0x1f8] sm:$0xff]
      %v2744 = vld [vmem:[#allocation3 + $0x200] sm:$0xff]
      %v2745 = vld [vmem:[#allocation3 + $0x208] sm:$0xff]
      %v2746 = vld [vmem:[#allocation3 + $0x210] sm:$0xff]
      %v2747 = vld [vmem:[#allocation3 + $0x218] sm:$0xff]
      %v2748 = vld [vmem:[#allocation3 + $0x220] sm:$0xff]
      %v2749 = vld [vmem:[#allocation3 + $0x228] sm:$0xff]
      %v2750 = vld [vmem:[#allocation3 + $0x230] sm:$0xff]
      %v2751 = vld [vmem:[#allocation3 + $0x238] sm:$0xff]
      %v2752 = vld [vmem:[#allocation3 + $0x240] sm:$0xff]
      %v2753 = vld [vmem:[#allocation3 + $0x248] sm:$0xff]
      %v2754 = vld [vmem:[#allocation3 + $0x250] sm:$0xff]
      %v2755 = vld [vmem:[#allocation3 + $0x258] sm:$0xff]
      %v2756 = vld [vmem:[#allocation3 + $0x260] sm:$0xff]
      %v2757 = vld [vmem:[#allocation3 + $0x268] sm:$0xff]
      %v2758 = vld [vmem:[#allocation3 + $0x270] sm:$0xff]
      %v2759 = vld [vmem:[#allocation3 + $0x278] sm:$0xff]
      %v2760 = vld [vmem:[#allocation3 + $0x280] sm:$0xff]
      %v2761 = vld [vmem:[#allocation3 + $0x288] sm:$0xff]
      %v2762 = vld [vmem:[#allocation3 + $0x290] sm:$0xff]
      %v2763 = vld [vmem:[#allocation3 + $0x298] sm:$0xff]
      %v2764 = vld [vmem:[#allocation3 + $0x2a0] sm:$0xff]
      %v2765 = vld [vmem:[#allocation3 + $0x2a8] sm:$0xff]
      %v2766 = vld [vmem:[#allocation3 + $0x2b0] sm:$0xff]
      %v2767 = vld [vmem:[#allocation3 + $0x2b8] sm:$0xff]
      %v2768 = vld [vmem:[#allocation3 + $0x2c0] sm:$0xff]
      %v2769 = vld [vmem:[#allocation3 + $0x2c8] sm:$0xff]
      %v2770 = vld [vmem:[#allocation3 + $0x2d0] sm:$0xff]
      %v2771 = vld [vmem:[#allocation3 + $0x2d8] sm:$0xff]
      %v2772 = vld [vmem:[#allocation3 + $0x2e0] sm:$0xff]
      %v2773 = vld [vmem:[#allocation3 + $0x2e8] sm:$0xff]
      %v2774 = vld [vmem:[#allocation3 + $0x2f0] sm:$0xff]
      %v2775 = vld [vmem:[#allocation3 + $0x2f8] sm:$0xff]
      %v2776 = vld [vmem:[#allocation3 + $0x300] sm:$0xff]
      %v2777 = vld [vmem:[#allocation3 + $0x308] sm:$0xff]
      %v2778 = vld [vmem:[#allocation3 + $0x310] sm:$0xff]
      %v2779 = vld [vmem:[#allocation3 + $0x318] sm:$0xff]
      %v2780 = vld [vmem:[#allocation3 + $0x320] sm:$0xff]
      %v2781 = vld [vmem:[#allocation3 + $0x328] sm:$0xff]
      %v2782 = vld [vmem:[#allocation3 + $0x330] sm:$0xff]
      %v2783 = vld [vmem:[#allocation3 + $0x338] sm:$0xff]
      %v2784 = vld [vmem:[#allocation3 + $0x340] sm:$0xff]
      %v2785 = vld [vmem:[#allocation3 + $0x348] sm:$0xff]
      %v2786 = vld [vmem:[#allocation3 + $0x350] sm:$0xff]
      %v2787 = vld [vmem:[#allocation3 + $0x358] sm:$0xff]
      %v2788 = vld [vmem:[#allocation3 + $0x360] sm:$0xff]
      %v2789 = vld [vmem:[#allocation3 + $0x368] sm:$0xff]
      %v2790 = vld [vmem:[#allocation3 + $0x370] sm:$0xff]
      %v2791 = vld [vmem:[#allocation3 + $0x378] sm:$0xff]
      %v2792 = vld [vmem:[#allocation3 + $0x380] sm:$0xff]
      %v2793 = vld [vmem:[#allocation3 + $0x388] sm:$0xff]
      %v2794 = vld [vmem:[#allocation3 + $0x390] sm:$0xff]
      %v2795 = vld [vmem:[#allocation3 + $0x398] sm:$0xff]
      %v2796 = vld [vmem:[#allocation3 + $0x3a0] sm:$0xff]
      %v2797 = vld [vmem:[#allocation3 + $0x3a8] sm:$0xff]
      %v2798 = vld [vmem:[#allocation3 + $0x3b0] sm:$0xff]
      %v2799 = vld [vmem:[#allocation3 + $0x3b8] sm:$0xff]
      %v2800 = vld [vmem:[#allocation3 + $0x3c0] sm:$0xff]
      %v2801 = vld [vmem:[#allocation3 + $0x3c8] sm:$0xff]
      %v2802 = vld [vmem:[#allocation3 + $0x3d0] sm:$0xff]
      %v2803 = vld [vmem:[#allocation3 + $0x3d8] sm:$0xff]
      %v2804 = vld [vmem:[#allocation3 + $0x3e0] sm:$0xff]
      %v2805 = vld [vmem:[#allocation3 + $0x3e8] sm:$0xff]
      %v2806 = vld [vmem:[#allocation3 + $0x3f0] sm:$0xff]
      %v2807 = vld [vmem:[#allocation3 + $0x3f8] sm:$0xff]
      %v2840 = vunpack.c.l.b16 %v458
      %v2841 = vunpack.c.h.b16 %v458
      %v2842 = vunpack.c.l.b16 %v459
      %v2843 = vunpack.c.h.b16 %v459
      %v2844 = vunpack.c.l.b16 %v460
      %v2845 = vunpack.c.h.b16 %v460
      %v2846 = vunpack.c.l.b16 %v461
      %v2847 = vunpack.c.h.b16 %v461
      %v2848 = vunpack.c.l.b16 %v462
      %v2849 = vunpack.c.h.b16 %v462
      %v2850 = vunpack.c.l.b16 %v463
      %v2851 = vunpack.c.h.b16 %v463
      %v2852 = vunpack.c.l.b16 %v464
      %v2853 = vunpack.c.h.b16 %v464
      %v2854 = vunpack.c.l.b16 %v465
      %v2855 = vunpack.c.h.b16 %v465
      %v2856 = vunpack.c.l.b16 %v466
      %v2857 = vunpack.c.h.b16 %v466
      %v2858 = vunpack.c.l.b16 %v467
      %v2859 = vunpack.c.h.b16 %v467
      %v2860 = vunpack.c.l.b16 %v468
      %v2861 = vunpack.c.h.b16 %v468
      %v2862 = vunpack.c.l.b16 %v469
      %v2863 = vunpack.c.h.b16 %v469
      %v2864 = vunpack.c.l.b16 %v470
      %v2865 = vunpack.c.h.b16 %v470
      %v2866 = vunpack.c.l.b16 %v471
      %v2867 = vunpack.c.h.b16 %v471
      %v2868 = vunpack.c.l.b16 %v472
      %v2869 = vunpack.c.h.b16 %v472
      %v2870 = vunpack.c.l.b16 %v473
      %v2871 = vunpack.c.h.b16 %v473
      %v2872 = vunpack.c.l.b16 %v474
      %v2873 = vunpack.c.h.b16 %v474
      %v2874 = vunpack.c.l.b16 %v475
      %v2875 = vunpack.c.h.b16 %v475
      %v2876 = vunpack.c.l.b16 %v476
      %v2877 = vunpack.c.h.b16 %v476
      %v2878 = vunpack.c.l.b16 %v477
      %v2879 = vunpack.c.h.b16 %v477
      %v2880 = vunpack.c.l.b16 %v478
      %v2881 = vunpack.c.h.b16 %v478
      %v2882 = vunpack.c.l.b16 %v479
      %v2883 = vunpack.c.h.b16 %v479
      %v2884 = vunpack.c.l.b16 %v480
      %v2885 = vunpack.c.h.b16 %v480
      %v2886 = vunpack.c.l.b16 %v481
      %v2887 = vunpack.c.h.b16 %v481
      %v2888 = vunpack.c.l.b16 %v482
      %v2889 = vunpack.c.h.b16 %v482
      %v2890 = vunpack.c.l.b16 %v483
      %v2891 = vunpack.c.h.b16 %v483
      %v2892 = vunpack.c.l.b16 %v484
      %v2893 = vunpack.c.h.b16 %v484
      %v2894 = vunpack.c.l.b16 %v485
      %v2895 = vunpack.c.h.b16 %v485
      %v2896 = vunpack.c.l.b16 %v486
      %v2897 = vunpack.c.h.b16 %v486
      %v2898 = vunpack.c.l.b16 %v487
      %v2899 = vunpack.c.h.b16 %v487
      %v2900 = vunpack.c.l.b16 %v488
      %v2901 = vunpack.c.h.b16 %v488
      %v2902 = vunpack.c.l.b16 %v489
      %v2903 = vunpack.c.h.b16 %v489
      %v2904 = vpack.c.b16 %v2844, %v2840
      %v2905 = vpack.c.b16 %v2845, %v2841
      %v2906 = vpack.c.b16 %v2846, %v2842
      %v2907 = vpack.c.b16 %v2847, %v2843
      %v2908 = vpack.c.b16 %v2852, %v2848
      %v2909 = vpack.c.b16 %v2853, %v2849
      %v2910 = vpack.c.b16 %v2854, %v2850
      %v2911 = vpack.c.b16 %v2855, %v2851
      %v2912 = vpack.c.b16 %v2860, %v2856
      %v2913 = vpack.c.b16 %v2861, %v2857
      %v2914 = vpack.c.b16 %v2862, %v2858
      %v2915 = vpack.c.b16 %v2863, %v2859
      %v2916 = vpack.c.b16 %v2868, %v2864
      %v2917 = vpack.c.b16 %v2869, %v2865
      %v2918 = vpack.c.b16 %v2870, %v2866
      %v2919 = vpack.c.b16 %v2871, %v2867
      %v2920 = vpack.c.b16 %v2876, %v2872
      %v2921 = vpack.c.b16 %v2877, %v2873
      %v2922 = vpack.c.b16 %v2878, %v2874
      %v2923 = vpack.c.b16 %v2879, %v2875
      %v2924 = vpack.c.b16 %v2884, %v2880
      %v2925 = vpack.c.b16 %v2885, %v2881
      %v2926 = vpack.c.b16 %v2886, %v2882
      %v2927 = vpack.c.b16 %v2887, %v2883
      %v2928 = vpack.c.b16 %v2892, %v2888
      %v2929 = vpack.c.b16 %v2893, %v2889
      %v2930 = vpack.c.b16 %v2894, %v2890
      %v2931 = vpack.c.b16 %v2895, %v2891
      %v2932 = vpack.c.b16 %v2900, %v2896
      %v2933 = vpack.c.b16 %v2901, %v2897
      %v2934 = vpack.c.b16 %v2902, %v2898
      %v2935 = vpack.c.b16 %v2903, %v2899
      %2968 = vmatpush.bf16.msra.mxu0 %v2932
      %2969 = vmatpush.bf16.msra.mxu0 %v2928
      %2970 = vmatpush.bf16.msra.mxu0 %v2924
      %2971 = vmatpush.bf16.msra.mxu0 %v2920
      %2972 = vmatpush.bf16.msra.mxu0 %v2916
      %2973 = vmatpush.bf16.msra.mxu0 %v2912
      %2974 = vmatpush.bf16.msra.mxu0 %v2908
      %2975 = vmatpush.bf16.msra.mxu0 %v2904
      %2976 = vmatmul.bf16.gmra.mxu0 0
      %v2977 = vpop.f32.mrf.mxu0
      %v2978 = vadd.f32 0.0, %v2977
      %v2979 = vpop.f32.mrf.mxu0
      %v2980 = vadd.f32 0.0, %v2979
      %2981 = vmatmul.bf16.gmra.mxu0 0
      %v2982 = vpop.f32.mrf.mxu0
      %v2983 = vadd.f32 0.0, %v2982
      %v2984 = vpop.f32.mrf.mxu0
      %v2985 = vadd.f32 0.0, %v2984
      %2986 = vmatmul.bf16.gmra.mxu0 0
      %v2987 = vpop.f32.mrf.mxu0
      %v2988 = vadd.f32 0.0, %v2987
      %v2989 = vpop.f32.mrf.mxu0
      %v2990 = vadd.f32 0.0, %v2989
      %2991 = vmatmul.bf16.gmra.mxu0 0
      %v2992 = vpop.f32.mrf.mxu0
      %v2993 = vadd.f32 0.0, %v2992
      %v2994 = vpop.f32.mrf.mxu0
      %v2995 = vadd.f32 0.0, %v2994
      %2996 = vmatmul.bf16.gmra.mxu0 0
      %v2997 = vpop.f32.mrf.mxu0
      %v2998 = vadd.f32 0.0, %v2997
      %v2999 = vpop.f32.mrf.mxu0
      %v3000 = vadd.f32 0.0, %v2999
      %3001 = vmatmul.bf16.gmra.mxu0 0
      %v3002 = vpop.f32.mrf.mxu0
      %v3003 = vadd.f32 0.0, %v3002
      %v3004 = vpop.f32.mrf.mxu0
      %v3005 = vadd.f32 0.0, %v3004
      %3006 = vmatmul.bf16.gmra.mxu0 0
      %v3007 = vpop.f32.mrf.mxu0
      %v3008 = vadd.f32 0.0, %v3007
      %v3009 = vpop.f32.mrf.mxu0
      %v3010 = vadd.f32 0.0, %v3009
      %3011 = vmatmul.bf16.gmra.mxu0 0
      %v3012 = vpop.f32.mrf.mxu0
      %v3013 = vadd.f32 0.0, %v3012
      %v3014 = vpop.f32.mrf.mxu0
      %v3015 = vadd.f32 0.0, %v3014
      %3016 = vmatmul.bf16.gmra.mxu0 0
      %v3017 = vpop.f32.mrf.mxu0
      %v3018 = vadd.f32 0.0, %v3017
      %v3019 = vpop.f32.mrf.mxu0
      %v3020 = vadd.f32 0.0, %v3019
      %3021 = vmatmul.bf16.gmra.mxu0 0
      %v3022 = vpop.f32.mrf.mxu0
      %v3023 = vadd.f32 0.0, %v3022
      %v3024 = vpop.f32.mrf.mxu0
      %v3025 = vadd.f32 0.0, %v3024
      %3026 = vmatmul.bf16.gmra.mxu0 0
      %v3027 = vpop.f32.mrf.mxu0
      %v3028 = vadd.f32 0.0, %v3027
      %v3029 = vpop.f32.mrf.mxu0
      %v3030 = vadd.f32 0.0, %v3029
      %3031 = vmatmul.bf16.gmra.mxu0 0
      %v3032 = vpop.f32.mrf.mxu0
      %v3033 = vadd.f32 0.0, %v3032
      %v3034 = vpop.f32.mrf.mxu0
      %v3035 = vadd.f32 0.0, %v3034
      %3036 = vmatmul.bf16.gmra.mxu0 0
      %v3037 = vpop.f32.mrf.mxu0
      %v3038 = vadd.f32 0.0, %v3037
      %v3039 = vpop.f32.mrf.mxu0
      %v3040 = vadd.f32 0.0, %v3039
      %3041 = vmatmul.bf16.gmra.mxu0 0
      %v3042 = vpop.f32.mrf.mxu0
      %v3043 = vadd.f32 0.0, %v3042
      %v3044 = vpop.f32.mrf.mxu0
      %v3045 = vadd.f32 0.0, %v3044
      %3046 = vmatmul.bf16.gmra.mxu0 0
      %v3047 = vpop.f32.mrf.mxu0
      %v3048 = vadd.f32 0.0, %v3047
      %v3049 = vpop.f32.mrf.mxu0
      %v3050 = vadd.f32 0.0, %v3049
      %3051 = vmatmul.bf16.gmra.mxu0 0
      %v3052 = vpop.f32.mrf.mxu0
      %v3053 = vadd.f32 0.0, %v3052
      %v3054 = vpop.f32.mrf.mxu0
      %v3055 = vadd.f32 0.0, %v3054
      %3056 = vdwg.mxu0
      %3057 = vmatpush.bf16.msra.mxu0 %v2933
      %3058 = vmatpush.bf16.msra.mxu0 %v2929
      %3059 = vmatpush.bf16.msra.mxu0 %v2925
      %3060 = vmatpush.bf16.msra.mxu0 %v2921
      %3061 = vmatpush.bf16.msra.mxu0 %v2917
      %3062 = vmatpush.bf16.msra.mxu0 %v2913
      %3063 = vmatpush.bf16.msra.mxu0 %v2909
      %3064 = vmatpush.bf16.msra.mxu0 %v2905
      %3065 = vmatmul.bf16.gmra.mxu0 0
      %v3066 = vpop.f32.mrf.mxu0
      %v3067 = vadd.f32 0.0, %v3066
      %v3068 = vpop.f32.mrf.mxu0
      %v3069 = vadd.f32 0.0, %v3068
      %3070 = vmatmul.bf16.gmra.mxu0 0
      %v3071 = vpop.f32.mrf.mxu0
      %v3072 = vadd.f32 0.0, %v3071
      %v3073 = vpop.f32.mrf.mxu0
      %v3074 = vadd.f32 0.0, %v3073
      %3075 = vmatmul.bf16.gmra.mxu0 0
      %v3076 = vpop.f32.mrf.mxu0
      %v3077 = vadd.f32 0.0, %v3076
      %v3078 = vpop.f32.mrf.mxu0
      %v3079 = vadd.f32 0.0, %v3078
      %3080 = vmatmul.bf16.gmra.mxu0 0
      %v3081 = vpop.f32.mrf.mxu0
      %v3082 = vadd.f32 0.0, %v3081
      %v3083 = vpop.f32.mrf.mxu0
      %v3084 = vadd.f32 0.0, %v3083
      %3085 = vmatmul.bf16.gmra.mxu0 0
      %v3086 = vpop.f32.mrf.mxu0
      %v3087 = vadd.f32 0.0, %v3086
      %v3088 = vpop.f32.mrf.mxu0
      %v3089 = vadd.f32 0.0, %v3088
      %3090 = vmatmul.bf16.gmra.mxu0 0
      %v3091 = vpop.f32.mrf.mxu0
      %v3092 = vadd.f32 0.0, %v3091
      %v3093 = vpop.f32.mrf.mxu0
      %v3094 = vadd.f32 0.0, %v3093
      %3095 = vmatmul.bf16.gmra.mxu0 0
      %v3096 = vpop.f32.mrf.mxu0
      %v3097 = vadd.f32 0.0, %v3096
      %v3098 = vpop.f32.mrf.mxu0
      %v3099 = vadd.f32 0.0, %v3098
      %3100 = vmatmul.bf16.gmra.mxu0 0
      %v3101 = vpop.f32.mrf.mxu0
      %v3102 = vadd.f32 0.0, %v3101
      %v3103 = vpop.f32.mrf.mxu0
      %v3104 = vadd.f32 0.0, %v3103
      %3105 = vmatmul.bf16.gmra.mxu0 0
      %v3106 = vpop.f32.mrf.mxu0
      %v3107 = vadd.f32 0.0, %v3106
      %v3108 = vpop.f32.mrf.mxu0
      %v3109 = vadd.f32 0.0, %v3108
      %3110 = vmatmul.bf16.gmra.mxu0 0
      %v3111 = vpop.f32.mrf.mxu0
      %v3112 = vadd.f32 0.0, %v3111
      %v3113 = vpop.f32.mrf.mxu0
      %v3114 = vadd.f32 0.0, %v3113
      %3115 = vmatmul.bf16.gmra.mxu0 0
      %v3116 = vpop.f32.mrf.mxu0
      %v3117 = vadd.f32 0.0, %v3116
      %v3118 = vpop.f32.mrf.mxu0
      %v3119 = vadd.f32 0.0, %v3118
      %3120 = vmatmul.bf16.gmra.mxu0 0
      %v3121 = vpop.f32.mrf.mxu0
      %v3122 = vadd.f32 0.0, %v3121
      %v3123 = vpop.f32.mrf.mxu0
      %v3124 = vadd.f32 0.0, %v3123
      %3125 = vmatmul.bf16.gmra.mxu0 0
      %v3126 = vpop.f32.mrf.mxu0
      %v3127 = vadd.f32 0.0, %v3126
      %v3128 = vpop.f32.mrf.mxu0
      %v3129 = vadd.f32 0.0, %v3128
      %3130 = vmatmul.bf16.gmra.mxu0 0
      %v3131 = vpop.f32.mrf.mxu0
      %v3132 = vadd.f32 0.0, %v3131
      %v3133 = vpop.f32.mrf.mxu0
      %v3134 = vadd.f32 0.0, %v3133
      %3135 = vmatmul.bf16.gmra.mxu0 0
      %v3136 = vpop.f32.mrf.mxu0
      %v3137 = vadd.f32 0.0, %v3136
      %v3138 = vpop.f32.mrf.mxu0
      %v3139 = vadd.f32 0.0, %v3138
      %3140 = vmatmul.bf16.gmra.mxu0 0
      %v3141 = vpop.f32.mrf.mxu0
      %v3142 = vadd.f32 0.0, %v3141
      %v3143 = vpop.f32.mrf.mxu0
      %v3144 = vadd.f32 0.0, %v3143
      %3145 = vdwg.mxu0
      %3146 = vmatpush.bf16.msra.mxu0 %v2934
      %3147 = vmatpush.bf16.msra.mxu0 %v2930
      %3148 = vmatpush.bf16.msra.mxu0 %v2926
      %3149 = vmatpush.bf16.msra.mxu0 %v2922
      %3150 = vmatpush.bf16.msra.mxu0 %v2918
      %3151 = vmatpush.bf16.msra.mxu0 %v2914
      %3152 = vmatpush.bf16.msra.mxu0 %v2910
      %3153 = vmatpush.bf16.msra.mxu0 %v2906
      %3154 = vmatmul.bf16.gmra.mxu0 0
      %v3155 = vpop.f32.mrf.mxu0
      %v3156 = vadd.f32 0.0, %v3155
      %v3157 = vpop.f32.mrf.mxu0
      %v3158 = vadd.f32 0.0, %v3157
      %3159 = vmatmul.bf16.gmra.mxu0 0
      %v3160 = vpop.f32.mrf.mxu0
      %v3161 = vadd.f32 0.0, %v3160
      %v3162 = vpop.f32.mrf.mxu0
      %v3163 = vadd.f32 0.0, %v3162
      %3164 = vmatmul.bf16.gmra.mxu0 0
      %v3165 = vpop.f32.mrf.mxu0
      %v3166 = vadd.f32 0.0, %v3165
      %v3167 = vpop.f32.mrf.mxu0
      %v3168 = vadd.f32 0.0, %v3167
      %3169 = vmatmul.bf16.gmra.mxu0 0
      %v3170 = vpop.f32.mrf.mxu0
      %v3171 = vadd.f32 0.0, %v3170
      %v3172 = vpop.f32.mrf.mxu0
      %v3173 = vadd.f32 0.0, %v3172
      %3174 = vmatmul.bf16.gmra.mxu0 0
      %v3175 = vpop.f32.mrf.mxu0
      %v3176 = vadd.f32 0.0, %v3175
      %v3177 = vpop.f32.mrf.mxu0
      %v3178 = vadd.f32 0.0, %v3177
      %3179 = vmatmul.bf16.gmra.mxu0 0
      %v3180 = vpop.f32.mrf.mxu0
      %v3181 = vadd.f32 0.0, %v3180
      %v3182 = vpop.f32.mrf.mxu0
      %v3183 = vadd.f32 0.0, %v3182
      %3184 = vmatmul.bf16.gmra.mxu0 0
      %v3185 = vpop.f32.mrf.mxu0
      %v3186 = vadd.f32 0.0, %v3185
      %v3187 = vpop.f32.mrf.mxu0
      %v3188 = vadd.f32 0.0, %v3187
      %3189 = vmatmul.bf16.gmra.mxu0 0
      %v3190 = vpop.f32.mrf.mxu0
      %v3191 = vadd.f32 0.0, %v3190
      %v3192 = vpop.f32.mrf.mxu0
      %v3193 = vadd.f32 0.0, %v3192
      %3194 = vmatmul.bf16.gmra.mxu0 0
      %v3195 = vpop.f32.mrf.mxu0
      %v3196 = vadd.f32 0.0, %v3195
      %v3197 = vpop.f32.mrf.mxu0
      %v3198 = vadd.f32 0.0, %v3197
      %3199 = vmatmul.bf16.gmra.mxu0 0
      %v3200 = vpop.f32.mrf.mxu0
      %v3201 = vadd.f32 0.0, %v3200
      %v3202 = vpop.f32.mrf.mxu0
      %v3203 = vadd.f32 0.0, %v3202
      %3204 = vmatmul.bf16.gmra.mxu0 0
      %v3205 = vpop.f32.mrf.mxu0
      %v3206 = vadd.f32 0.0, %v3205
      %v3207 = vpop.f32.mrf.mxu0
      %v3208 = vadd.f32 0.0, %v3207
      %3209 = vmatmul.bf16.gmra.mxu0 0
      %v3210 = vpop.f32.mrf.mxu0
      %v3211 = vadd.f32 0.0, %v3210
      %v3212 = vpop.f32.mrf.mxu0
      %v3213 = vadd.f32 0.0, %v3212
      %3214 = vmatmul.bf16.gmra.mxu0 0
      %v3215 = vpop.f32.mrf.mxu0
      %v3216 = vadd.f32 0.0, %v3215
      %v3217 = vpop.f32.mrf.mxu0
      %v3218 = vadd.f32 0.0, %v3217
      %3219 = vmatmul.bf16.gmra.mxu0 0
      %v3220 = vpop.f32.mrf.mxu0
      %v3221 = vadd.f32 0.0, %v3220
      %v3222 = vpop.f32.mrf.mxu0
      %v3223 = vadd.f32 0.0, %v3222
      %3224 = vmatmul.bf16.gmra.mxu0 0
      %v3225 = vpop.f32.mrf.mxu0
      %v3226 = vadd.f32 0.0, %v3225
      %v3227 = vpop.f32.mrf.mxu0
      %v3228 = vadd.f32 0.0, %v3227
      %3229 = vmatmul.bf16.gmra.mxu0 0
      %v3230 = vpop.f32.mrf.mxu0
      %v3231 = vadd.f32 0.0, %v3230
      %v3232 = vpop.f32.mrf.mxu0
      %v3233 = vadd.f32 0.0, %v3232
      %3234 = vdwg.mxu0
      %3235 = vmatpush.bf16.msra.mxu0 %v2935
      %3236 = vmatpush.bf16.msra.mxu0 %v2931
      %3237 = vmatpush.bf16.msra.mxu0 %v2927
      %3238 = vmatpush.bf16.msra.mxu0 %v2923
      %3239 = vmatpush.bf16.msra.mxu0 %v2919
      %3240 = vmatpush.bf16.msra.mxu0 %v2915
      %3241 = vmatpush.bf16.msra.mxu0 %v2911
      %3242 = vmatpush.bf16.msra.mxu0 %v2907
      %3243 = vmatmul.bf16.gmra.mxu0 0
      %v3244 = vpop.f32.mrf.mxu0
      %v3245 = vadd.f32 0.0, %v3244
      %v3246 = vpop.f32.mrf.mxu0
      %v3247 = vadd.f32 0.0, %v3246
      %3248 = vmatmul.bf16.gmra.mxu0 0
      %v3249 = vpop.f32.mrf.mxu0
      %v3250 = vadd.f32 0.0, %v3249
      %v3251 = vpop.f32.mrf.mxu0
      %v3252 = vadd.f32 0.0, %v3251
      %3253 = vmatmul.bf16.gmra.mxu0 0
      %v3254 = vpop.f32.mrf.mxu0
      %v3255 = vadd.f32 0.0, %v3254
      %v3256 = vpop.f32.mrf.mxu0
      %v3257 = vadd.f32 0.0, %v3256
      %3258 = vmatmul.bf16.gmra.mxu0 0
      %v3259 = vpop.f32.mrf.mxu0
      %v3260 = vadd.f32 0.0, %v3259
      %v3261 = vpop.f32.mrf.mxu0
      %v3262 = vadd.f32 0.0, %v3261
      %3263 = vmatmul.bf16.gmra.mxu0 0
      %v3264 = vpop.f32.mrf.mxu0
      %v3265 = vadd.f32 0.0, %v3264
      %v3266 = vpop.f32.mrf.mxu0
      %v3267 = vadd.f32 0.0, %v3266
      %3268 = vmatmul.bf16.gmra.mxu0 0
      %v3269 = vpop.f32.mrf.mxu0
      %v3270 = vadd.f32 0.0, %v3269
      %v3271 = vpop.f32.mrf.mxu0
      %v3272 = vadd.f32 0.0, %v3271
      %3273 = vmatmul.bf16.gmra.mxu0 0
      %v3274 = vpop.f32.mrf.mxu0
      %v3275 = vadd.f32 0.0, %v3274
      %v3276 = vpop.f32.mrf.mxu0
      %v3277 = vadd.f32 0.0, %v3276
      %3278 = vmatmul.bf16.gmra.mxu0 0
      %v3279 = vpop.f32.mrf.mxu0
      %v3280 = vadd.f32 0.0, %v3279
      %v3281 = vpop.f32.mrf.mxu0
      %v3282 = vadd.f32 0.0, %v3281
      %3283 = vmatmul.bf16.gmra.mxu0 0
      %v3284 = vpop.f32.mrf.mxu0
      %v3285 = vadd.f32 0.0, %v3284
      %v3286 = vpop.f32.mrf.mxu0
      %v3287 = vadd.f32 0.0, %v3286
      %3288 = vmatmul.bf16.gmra.mxu0 0
      %v3289 = vpop.f32.mrf.mxu0
      %v3290 = vadd.f32 0.0, %v3289
      %v3291 = vpop.f32.mrf.mxu0
      %v3292 = vadd.f32 0.0, %v3291
      %3293 = vmatmul.bf16.gmra.mxu0 0
      %v3294 = vpop.f32.mrf.mxu0
      %v3295 = vadd.f32 0.0, %v3294
      %v3296 = vpop.f32.mrf.mxu0
      %v3297 = vadd.f32 0.0, %v3296
      %3298 = vmatmul.bf16.gmra.mxu0 0
      %v3299 = vpop.f32.mrf.mxu0
      %v3300 = vadd.f32 0.0, %v3299
      %v3301 = vpop.f32.mrf.mxu0
      %v3302 = vadd.f32 0.0, %v3301
      %3303 = vmatmul.bf16.gmra.mxu0 0
      %v3304 = vpop.f32.mrf.mxu0
      %v3305 = vadd.f32 0.0, %v3304
      %v3306 = vpop.f32.mrf.mxu0
      %v3307 = vadd.f32 0.0, %v3306
      %3308 = vmatmul.bf16.gmra.mxu0 0
      %v3309 = vpop.f32.mrf.mxu0
      %v3310 = vadd.f32 0.0, %v3309
      %v3311 = vpop.f32.mrf.mxu0
      %v3312 = vadd.f32 0.0, %v3311
      %3313 = vmatmul.bf16.gmra.mxu0 0
      %v3314 = vpop.f32.mrf.mxu0
      %v3315 = vadd.f32 0.0, %v3314
      %v3316 = vpop.f32.mrf.mxu0
      %v3317 = vadd.f32 0.0, %v3316
      %3318 = vmatmul.bf16.gmra.mxu0 0
      %v3319 = vpop.f32.mrf.mxu0
      %v3320 = vadd.f32 0.0, %v3319
      %v3321 = vpop.f32.mrf.mxu0
      %v3322 = vadd.f32 0.0, %v3321
      %3323 = vdwg.mxu0
      %v3324 = vadd.f32 %v2680, %v2978
      %v3325 = vadd.f32 %v2681, %v3067
      %v3326 = vadd.f32 %v2682, %v3156
      %v3327 = vadd.f32 %v2683, %v3245
      %v3328 = vadd.f32 %v2684, %v2980
      %v3329 = vadd.f32 %v2685, %v3069
      %v3330 = vadd.f32 %v2686, %v3158
      %v3331 = vadd.f32 %v2687, %v3247
      %v3332 = vadd.f32 %v2688, %v2983
      %v3333 = vadd.f32 %v2689, %v3072
      %v3334 = vadd.f32 %v2690, %v3161
      %v3335 = vadd.f32 %v2691, %v3250
      %v3336 = vadd.f32 %v2692, %v2985
      %v3337 = vadd.f32 %v2693, %v3074
      %v3338 = vadd.f32 %v2694, %v3163
      %v3339 = vadd.f32 %v2695, %v3252
      %v3340 = vadd.f32 %v2696, %v2988
      %v3341 = vadd.f32 %v2697, %v3077
      %v3342 = vadd.f32 %v2698, %v3166
      %v3343 = vadd.f32 %v2699, %v3255
      %v3344 = vadd.f32 %v2700, %v2990
      %v3345 = vadd.f32 %v2701, %v3079
      %v3346 = vadd.f32 %v2702, %v3168
      %v3347 = vadd.f32 %v2703, %v3257
      %v3348 = vadd.f32 %v2704, %v2993
      %v3349 = vadd.f32 %v2705, %v3082
      %v3350 = vadd.f32 %v2706, %v3171
      %v3351 = vadd.f32 %v2707, %v3260
      %v3352 = vadd.f32 %v2708, %v2995
      %v3353 = vadd.f32 %v2709, %v3084
      %v3354 = vadd.f32 %v2710, %v3173
      %v3355 = vadd.f32 %v2711, %v3262
      %v3356 = vadd.f32 %v2712, %v2998
      %v3357 = vadd.f32 %v2713, %v3087
      %v3358 = vadd.f32 %v2714, %v3176
      %v3359 = vadd.f32 %v2715, %v3265
      %v3360 = vadd.f32 %v2716, %v3000
      %v3361 = vadd.f32 %v2717, %v3089
      %v3362 = vadd.f32 %v2718, %v3178
      %v3363 = vadd.f32 %v2719, %v3267
      %v3364 = vadd.f32 %v2720, %v3003
      %v3365 = vadd.f32 %v2721, %v3092
      %v3366 = vadd.f32 %v2722, %v3181
      %v3367 = vadd.f32 %v2723, %v3270
      %v3368 = vadd.f32 %v2724, %v3005
      %v3369 = vadd.f32 %v2725, %v3094
      %v3370 = vadd.f32 %v2726, %v3183
      %v3371 = vadd.f32 %v2727, %v3272
      %v3372 = vadd.f32 %v2728, %v3008
      %v3373 = vadd.f32 %v2729, %v3097
      %v3374 = vadd.f32 %v2730, %v3186
      %v3375 = vadd.f32 %v2731, %v3275
      %v3376 = vadd.f32 %v2732, %v3010
      %v3377 = vadd.f32 %v2733, %v3099
      %v3378 = vadd.f32 %v2734, %v3188
      %v3379 = vadd.f32 %v2735, %v3277
      %v3380 = vadd.f32 %v2736, %v3013
      %v3381 = vadd.f32 %v2737, %v3102
      %v3382 = vadd.f32 %v2738, %v3191
      %v3383 = vadd.f32 %v2739, %v3280
      %v3384 = vadd.f32 %v2740, %v3015
      %v3385 = vadd.f32 %v2741, %v3104
      %v3386 = vadd.f32 %v2742, %v3193
      %v3387 = vadd.f32 %v2743, %v3282
      %v3388 = vadd.f32 %v2744, %v3018
      %v3389 = vadd.f32 %v2745, %v3107
      %v3390 = vadd.f32 %v2746, %v3196
      %v3391 = vadd.f32 %v2747, %v3285
      %v3392 = vadd.f32 %v2748, %v3020
      %v3393 = vadd.f32 %v2749, %v3109
      %v3394 = vadd.f32 %v2750, %v3198
      %v3395 = vadd.f32 %v2751, %v3287
      %v3396 = vadd.f32 %v2752, %v3023
      %v3397 = vadd.f32 %v2753, %v3112
      %v3398 = vadd.f32 %v2754, %v3201
      %v3399 = vadd.f32 %v2755, %v3290
      %v3400 = vadd.f32 %v2756, %v3025
      %v3401 = vadd.f32 %v2757, %v3114
      %v3402 = vadd.f32 %v2758, %v3203
      %v3403 = vadd.f32 %v2759, %v3292
      %v3404 = vadd.f32 %v2760, %v3028
      %v3405 = vadd.f32 %v2761, %v3117
      %v3406 = vadd.f32 %v2762, %v3206
      %v3407 = vadd.f32 %v2763, %v3295
      %v3408 = vadd.f32 %v2764, %v3030
      %v3409 = vadd.f32 %v2765, %v3119
      %v3410 = vadd.f32 %v2766, %v3208
      %v3411 = vadd.f32 %v2767, %v3297
      %v3412 = vadd.f32 %v2768, %v3033
      %v3413 = vadd.f32 %v2769, %v3122
      %v3414 = vadd.f32 %v2770, %v3211
      %v3415 = vadd.f32 %v2771, %v3300
      %v3416 = vadd.f32 %v2772, %v3035
      %v3417 = vadd.f32 %v2773, %v3124
      %v3418 = vadd.f32 %v2774, %v3213
      %v3419 = vadd.f32 %v2775, %v3302
      %v3420 = vadd.f32 %v2776, %v3038
      %v3421 = vadd.f32 %v2777, %v3127
      %v3422 = vadd.f32 %v2778, %v3216
      %v3423 = vadd.f32 %v2779, %v3305
      %v3424 = vadd.f32 %v2780, %v3040
      %v3425 = vadd.f32 %v2781, %v3129
      %v3426 = vadd.f32 %v2782, %v3218
      %v3427 = vadd.f32 %v2783, %v3307
      %v3428 = vadd.f32 %v2784, %v3043
      %v3429 = vadd.f32 %v2785, %v3132
      %v3430 = vadd.f32 %v2786, %v3221
      %v3431 = vadd.f32 %v2787, %v3310
      %v3432 = vadd.f32 %v2788, %v3045
      %v3433 = vadd.f32 %v2789, %v3134
      %v3434 = vadd.f32 %v2790, %v3223
      %v3435 = vadd.f32 %v2791, %v3312
      %v3436 = vadd.f32 %v2792, %v3048
      %v3437 = vadd.f32 %v2793, %v3137
      %v3438 = vadd.f32 %v2794, %v3226
      %v3439 = vadd.f32 %v2795, %v3315
      %v3440 = vadd.f32 %v2796, %v3050
      %v3441 = vadd.f32 %v2797, %v3139
      %v3442 = vadd.f32 %v2798, %v3228
      %v3443 = vadd.f32 %v2799, %v3317
      %v3444 = vadd.f32 %v2800, %v3053
      %v3445 = vadd.f32 %v2801, %v3142
      %v3446 = vadd.f32 %v2802, %v3231
      %v3447 = vadd.f32 %v2803, %v3320
      %v3448 = vadd.f32 %v2804, %v3055
      %v3449 = vadd.f32 %v2805, %v3144
      %v3450 = vadd.f32 %v2806, %v3233
      %v3451 = vadd.f32 %v2807, %v3322
      %v3452 = vmul.f32 %v3324, 0.5
      %v3453 = vmul.f32 %v3325, 0.5
      %v3454 = vmul.f32 %v3326, 0.5
      %v3455 = vmul.f32 %v3328, 0.5
      %v3456 = vmul.f32 %v3329, 0.5
      %v3457 = vmul.f32 %v3330, 0.5
      %v3458 = vmul.f32 %v3332, 0.5
      %v3459 = vmul.f32 %v3333, 0.5
      %v3460 = vmul.f32 %v3334, 0.5
      %v3461 = vmul.f32 %v3336, 0.5
      %v3462 = vmul.f32 %v3337, 0.5
      %v3463 = vmul.f32 %v3338, 0.5
      %v3464 = vmul.f32 %v3340, 0.5
      %v3465 = vmul.f32 %v3341, 0.5
      %v3466 = vmul.f32 %v3342, 0.5
      %v3467 = vmul.f32 %v3344, 0.5
      %v3468 = vmul.f32 %v3345, 0.5
      %v3469 = vmul.f32 %v3346, 0.5
      %v3470 = vmul.f32 %v3348, 0.5
      %v3471 = vmul.f32 %v3349, 0.5
      %v3472 = vmul.f32 %v3350, 0.5
      %v3473 = vmul.f32 %v3352, 0.5
      %v3474 = vmul.f32 %v3353, 0.5
      %v3475 = vmul.f32 %v3354, 0.5
      %v3476 = vmul.f32 %v3356, 0.5
      %v3477 = vmul.f32 %v3357, 0.5
      %v3478 = vmul.f32 %v3358, 0.5
      %v3479 = vmul.f32 %v3360, 0.5
      %v3480 = vmul.f32 %v3361, 0.5
      %v3481 = vmul.f32 %v3362, 0.5
      %v3482 = vmul.f32 %v3364, 0.5
      %v3483 = vmul.f32 %v3365, 0.5
      %v3484 = vmul.f32 %v3366, 0.5
      %v3485 = vmul.f32 %v3368, 0.5
      %v3486 = vmul.f32 %v3369, 0.5
      %v3487 = vmul.f32 %v3370, 0.5
      %v3488 = vmul.f32 %v3372, 0.5
      %v3489 = vmul.f32 %v3373, 0.5
      %v3490 = vmul.f32 %v3374, 0.5
      %v3491 = vmul.f32 %v3376, 0.5
      %v3492 = vmul.f32 %v3377, 0.5
      %v3493 = vmul.f32 %v3378, 0.5
      %v3494 = vmul.f32 %v3380, 0.5
      %v3495 = vmul.f32 %v3381, 0.5
      %v3496 = vmul.f32 %v3382, 0.5
      %v3497 = vmul.f32 %v3384, 0.5
      %v3498 = vmul.f32 %v3385, 0.5
      %v3499 = vmul.f32 %v3386, 0.5
      %v3500 = vmul.f32 %v3388, 0.5
      %v3501 = vmul.f32 %v3389, 0.5
      %v3502 = vmul.f32 %v3390, 0.5
      %v3503 = vmul.f32 %v3392, 0.5
      %v3504 = vmul.f32 %v3393, 0.5
      %v3505 = vmul.f32 %v3394, 0.5
      %v3506 = vmul.f32 %v3396, 0.5
      %v3507 = vmul.f32 %v3397, 0.5
      %v3508 = vmul.f32 %v3398, 0.5
      %v3509 = vmul.f32 %v3400, 0.5
      %v3510 = vmul.f32 %v3401, 0.5
      %v3511 = vmul.f32 %v3402, 0.5
      %v3512 = vmul.f32 %v3404, 0.5
      %v3513 = vmul.f32 %v3405, 0.5
      %v3514 = vmul.f32 %v3406, 0.5
      %v3515 = vmul.f32 %v3408, 0.5
      %v3516 = vmul.f32 %v3409, 0.5
      %v3517 = vmul.f32 %v3410, 0.5
      %v3518 = vmul.f32 %v3412, 0.5
      %v3519 = vmul.f32 %v3413, 0.5
      %v3520 = vmul.f32 %v3414, 0.5
      %v3521 = vmul.f32 %v3416, 0.5
      %v3522 = vmul.f32 %v3417, 0.5
      %v3523 = vmul.f32 %v3418, 0.5
      %v3524 = vmul.f32 %v3420, 0.5
      %v3525 = vmul.f32 %v3421, 0.5
      %v3526 = vmul.f32 %v3422, 0.5
      %v3527 = vmul.f32 %v3424, 0.5
      %v3528 = vmul.f32 %v3425, 0.5
      %v3529 = vmul.f32 %v3426, 0.5
      %v3530 = vmul.f32 %v3428, 0.5
      %v3531 = vmul.f32 %v3429, 0.5
      %v3532 = vmul.f32 %v3430, 0.5
      %v3533 = vmul.f32 %v3432, 0.5
      %v3534 = vmul.f32 %v3433, 0.5
      %v3535 = vmul.f32 %v3434, 0.5
      %v3536 = vmul.f32 %v3436, 0.5
      %v3537 = vmul.f32 %v3437, 0.5
      %v3538 = vmul.f32 %v3438, 0.5
      %v3539 = vmul.f32 %v3440, 0.5
      %v3540 = vmul.f32 %v3441, 0.5
      %v3541 = vmul.f32 %v3442, 0.5
      %v3542 = vmul.f32 %v3444, 0.5
      %v3543 = vmul.f32 %v3445, 0.5
      %v3544 = vmul.f32 %v3446, 0.5
      %v3545 = vmul.f32 %v3448, 0.5
      %v3546 = vmul.f32 %v3449, 0.5
      %v3547 = vmul.f32 %v3450, 0.5
      %v3548 = vtanh.pop %v3452
      %v3549 = vtanh.pop %v3453
      %v3550 = vtanh.pop %v3454
      %v3551 = vtanh.pop %v3455
      %v3552 = vtanh.pop %v3456
      %v3553 = vtanh.pop %v3457
      %v3554 = vtanh.pop %v3458
      %v3555 = vtanh.pop %v3459
      %v3556 = vtanh.pop %v3460
      %v3557 = vtanh.pop %v3461
      %v3558 = vtanh.pop %v3462
      %v3559 = vtanh.pop %v3463
      %v3560 = vtanh.pop %v3464
      %v3561 = vtanh.pop %v3465
      %v3562 = vtanh.pop %v3466
      %v3563 = vtanh.pop %v3467
      %v3564 = vtanh.pop %v3468
      %v3565 = vtanh.pop %v3469
      %v3566 = vtanh.pop %v3470
      %v3567 = vtanh.pop %v3471
      %v3568 = vtanh.pop %v3472
      %v3569 = vtanh.pop %v3473
      %v3570 = vtanh.pop %v3474
      %v3571 = vtanh.pop %v3475
      %v3572 = vtanh.pop %v3476
      %v3573 = vtanh.pop %v3477
      %v3574 = vtanh.pop %v3478
      %v3575 = vtanh.pop %v3479
      %v3576 = vtanh.pop %v3480
      %v3577 = vtanh.pop %v3481
      %v3578 = vtanh.pop %v3482
      %v3579 = vtanh.pop %v3483
      %v3580 = vtanh.pop %v3484
      %v3581 = vtanh.pop %v3485
      %v3582 = vtanh.pop %v3486
      %v3583 = vtanh.pop %v3487
      %v3584 = vtanh.pop %v3488
      %v3585 = vtanh.pop %v3489
      %v3586 = vtanh.pop %v3490
      %v3587 = vtanh.pop %v3491
      %v3588 = vtanh.pop %v3492
      %v3589 = vtanh.pop %v3493
      %v3590 = vtanh.pop %v3494
      %v3591 = vtanh.pop %v3495
      %v3592 = vtanh.pop %v3496
      %v3593 = vtanh.pop %v3497
      %v3594 = vtanh.pop %v3498
      %v3595 = vtanh.pop %v3499
      %v3596 = vtanh.pop %v3500
      %v3597 = vtanh.pop %v3501
      %v3598 = vtanh.pop %v3502
      %v3599 = vtanh.pop %v3503
      %v3600 = vtanh.pop %v3504
      %v3601 = vtanh.pop %v3505
      %v3602 = vtanh.pop %v3506
      %v3603 = vtanh.pop %v3507
      %v3604 = vtanh.pop %v3508
      %v3605 = vtanh.pop %v3509
      %v3606 = vtanh.pop %v3510
      %v3607 = vtanh.pop %v3511
      %v3608 = vtanh.pop %v3512
      %v3609 = vtanh.pop %v3513
      %v3610 = vtanh.pop %v3514
      %v3611 = vtanh.pop %v3515
      %v3612 = vtanh.pop %v3516
      %v3613 = vtanh.pop %v3517
      %v3614 = vtanh.pop %v3518
      %v3615 = vtanh.pop %v3519
      %v3616 = vtanh.pop %v3520
      %v3617 = vtanh.pop %v3521
      %v3618 = vtanh.pop %v3522
      %v3619 = vtanh.pop %v3523
      %v3620 = vtanh.pop %v3524
      %v3621 = vtanh.pop %v3525
      %v3622 = vtanh.pop %v3526
      %v3623 = vtanh.pop %v3527
      %v3624 = vtanh.pop %v3528
      %v3625 = vtanh.pop %v3529
      %v3626 = vtanh.pop %v3530
      %v3627 = vtanh.pop %v3531
      %v3628 = vtanh.pop %v3532
      %v3629 = vtanh.pop %v3533
      %v3630 = vtanh.pop %v3534
      %v3631 = vtanh.pop %v3535
      %v3632 = vtanh.pop %v3536
      %v3633 = vtanh.pop %v3537
      %v3634 = vtanh.pop %v3538
      %v3635 = vtanh.pop %v3539
      %v3636 = vtanh.pop %v3540
      %v3637 = vtanh.pop %v3541
      %v3638 = vtanh.pop %v3542
      %v3639 = vtanh.pop %v3543
      %v3640 = vtanh.pop %v3544
      %v3641 = vtanh.pop %v3545
      %v3642 = vtanh.pop %v3546
      %v3643 = vtanh.pop %v3547
      %v3644 = vmul.f32 %v3548, 0.5
      %v3645 = vmul.f32 %v3549, 0.5
      %v3646 = vmul.f32 %v3550, 0.5
      %v3647 = vmul.f32 %v3551, 0.5
      %v3648 = vmul.f32 %v3552, 0.5
      %v3649 = vmul.f32 %v3553, 0.5
      %v3650 = vmul.f32 %v3554, 0.5
      %v3651 = vmul.f32 %v3555, 0.5
      %v3652 = vmul.f32 %v3556, 0.5
      %v3653 = vmul.f32 %v3557, 0.5
      %v3654 = vmul.f32 %v3558, 0.5
      %v3655 = vmul.f32 %v3559, 0.5
      %v3656 = vmul.f32 %v3560, 0.5
      %v3657 = vmul.f32 %v3561, 0.5
      %v3658 = vmul.f32 %v3562, 0.5
      %v3659 = vmul.f32 %v3563, 0.5
      %v3660 = vmul.f32 %v3564, 0.5
      %v3661 = vmul.f32 %v3565, 0.5
      %v3662 = vmul.f32 %v3566, 0.5
      %v3663 = vmul.f32 %v3567, 0.5
      %v3664 = vmul.f32 %v3568, 0.5
      %v3665 = vmul.f32 %v3569, 0.5
      %v3666 = vmul.f32 %v3570, 0.5
      %v3667 = vmul.f32 %v3571, 0.5
      %v3668 = vmul.f32 %v3572, 0.5
      %v3669 = vmul.f32 %v3573, 0.5
      %v3670 = vmul.f32 %v3574, 0.5
      %v3671 = vmul.f32 %v3575, 0.5
      %v3672 = vmul.f32 %v3576, 0.5
      %v3673 = vmul.f32 %v3577, 0.5
      %v3674 = vmul.f32 %v3578, 0.5
      %v3675 = vmul.f32 %v3579, 0.5
      %v3676 = vmul.f32 %v3580, 0.5
      %v3677 = vmul.f32 %v3581, 0.5
      %v3678 = vmul.f32 %v3582, 0.5
      %v3679 = vmul.f32 %v3583, 0.5
      %v3680 = vmul.f32 %v3584, 0.5
      %v3681 = vmul.f32 %v3585, 0.5
      %v3682 = vmul.f32 %v3586, 0.5
      %v3683 = vmul.f32 %v3587, 0.5
      %v3684 = vmul.f32 %v3588, 0.5
      %v3685 = vmul.f32 %v3589, 0.5
      %v3686 = vmul.f32 %v3590, 0.5
      %v3687 = vmul.f32 %v3591, 0.5
      %v3688 = vmul.f32 %v3592, 0.5
      %v3689 = vmul.f32 %v3593, 0.5
      %v3690 = vmul.f32 %v3594, 0.5
      %v3691 = vmul.f32 %v3595, 0.5
      %v3692 = vmul.f32 %v3596, 0.5
      %v3693 = vmul.f32 %v3597, 0.5
      %v3694 = vmul.f32 %v3598, 0.5
      %v3695 = vmul.f32 %v3599, 0.5
      %v3696 = vmul.f32 %v3600, 0.5
      %v3697 = vmul.f32 %v3601, 0.5
      %v3698 = vmul.f32 %v3602, 0.5
      %v3699 = vmul.f32 %v3603, 0.5
      %v3700 = vmul.f32 %v3604, 0.5
      %v3701 = vmul.f32 %v3605, 0.5
      %v3702 = vmul.f32 %v3606, 0.5
      %v3703 = vmul.f32 %v3607, 0.5
      %v3704 = vmul.f32 %v3608, 0.5
      %v3705 = vmul.f32 %v3609, 0.5
      %v3706 = vmul.f32 %v3610, 0.5
      %v3707 = vmul.f32 %v3611, 0.5
      %v3708 = vmul.f32 %v3612, 0.5
      %v3709 = vmul.f32 %v3613, 0.5
      %v3710 = vmul.f32 %v3614, 0.5
      %v3711 = vmul.f32 %v3615, 0.5
      %v3712 = vmul.f32 %v3616, 0.5
      %v3713 = vmul.f32 %v3617, 0.5
      %v3714 = vmul.f32 %v3618, 0.5
      %v3715 = vmul.f32 %v3619, 0.5
      %v3716 = vmul.f32 %v3620, 0.5
      %v3717 = vmul.f32 %v3621, 0.5
      %v3718 = vmul.f32 %v3622, 0.5
      %v3719 = vmul.f32 %v3623, 0.5
      %v3720 = vmul.f32 %v3624, 0.5
      %v3721 = vmul.f32 %v3625, 0.5
      %v3722 = vmul.f32 %v3626, 0.5
      %v3723 = vmul.f32 %v3627, 0.5
      %v3724 = vmul.f32 %v3628, 0.5
      %v3725 = vmul.f32 %v3629, 0.5
      %v3726 = vmul.f32 %v3630, 0.5
      %v3727 = vmul.f32 %v3631, 0.5
      %v3728 = vmul.f32 %v3632, 0.5
      %v3729 = vmul.f32 %v3633, 0.5
      %v3730 = vmul.f32 %v3634, 0.5
      %v3731 = vmul.f32 %v3635, 0.5
      %v3732 = vmul.f32 %v3636, 0.5
      %v3733 = vmul.f32 %v3637, 0.5
      %v3734 = vmul.f32 %v3638, 0.5
      %v3735 = vmul.f32 %v3639, 0.5
      %v3736 = vmul.f32 %v3640, 0.5
      %v3737 = vmul.f32 %v3641, 0.5
      %v3738 = vmul.f32 %v3642, 0.5
      %v3739 = vmul.f32 %v3643, 0.5
      %v3740 = vadd.f32 %v3644, 0.5
      %v3741 = vadd.f32 %v3645, 0.5
      %v3742 = vadd.f32 %v3646, 0.5
      %v3743 = vadd.f32 %v3647, 0.5
      %v3744 = vadd.f32 %v3648, 0.5
      %v3745 = vadd.f32 %v3649, 0.5
      %v3746 = vadd.f32 %v3650, 0.5
      %v3747 = vadd.f32 %v3651, 0.5
      %v3748 = vadd.f32 %v3652, 0.5
      %v3749 = vadd.f32 %v3653, 0.5
      %v3750 = vadd.f32 %v3654, 0.5
      %v3751 = vadd.f32 %v3655, 0.5
      %v3752 = vadd.f32 %v3656, 0.5
      %v3753 = vadd.f32 %v3657, 0.5
      %v3754 = vadd.f32 %v3658, 0.5
      %v3755 = vadd.f32 %v3659, 0.5
      %v3756 = vadd.f32 %v3660, 0.5
      %v3757 = vadd.f32 %v3661, 0.5
      %v3758 = vadd.f32 %v3662, 0.5
      %v3759 = vadd.f32 %v3663, 0.5
      %v3760 = vadd.f32 %v3664, 0.5
      %v3761 = vadd.f32 %v3665, 0.5
      %v3762 = vadd.f32 %v3666, 0.5
      %v3763 = vadd.f32 %v3667, 0.5
      %v3764 = vadd.f32 %v3668, 0.5
      %v3765 = vadd.f32 %v3669, 0.5
      %v3766 = vadd.f32 %v3670, 0.5
      %v3767 = vadd.f32 %v3671, 0.5
      %v3768 = vadd.f32 %v3672, 0.5
      %v3769 = vadd.f32 %v3673, 0.5
      %v3770 = vadd.f32 %v3674, 0.5
      %v3771 = vadd.f32 %v3675, 0.5
      %v3772 = vadd.f32 %v3676, 0.5
      %v3773 = vadd.f32 %v3677, 0.5
      %v3774 = vadd.f32 %v3678, 0.5
      %v3775 = vadd.f32 %v3679, 0.5
      %v3776 = vadd.f32 %v3680, 0.5
      %v3777 = vadd.f32 %v3681, 0.5
      %v3778 = vadd.f32 %v3682, 0.5
      %v3779 = vadd.f32 %v3683, 0.5
      %v3780 = vadd.f32 %v3684, 0.5
      %v3781 = vadd.f32 %v3685, 0.5
      %v3782 = vadd.f32 %v3686, 0.5
      %v3783 = vadd.f32 %v3687, 0.5
      %v3784 = vadd.f32 %v3688, 0.5
      %v3785 = vadd.f32 %v3689, 0.5
      %v3786 = vadd.f32 %v3690, 0.5
      %v3787 = vadd.f32 %v3691, 0.5
      %v3788 = vadd.f32 %v3692, 0.5
      %v3789 = vadd.f32 %v3693, 0.5
      %v3790 = vadd.f32 %v3694, 0.5
      %v3791 = vadd.f32 %v3695, 0.5
      %v3792 = vadd.f32 %v3696, 0.5
      %v3793 = vadd.f32 %v3697, 0.5
      %v3794 = vadd.f32 %v3698, 0.5
      %v3795 = vadd.f32 %v3699, 0.5
      %v3796 = vadd.f32 %v3700, 0.5
      %v3797 = vadd.f32 %v3701, 0.5
      %v3798 = vadd.f32 %v3702, 0.5
      %v3799 = vadd.f32 %v3703, 0.5
      %v3800 = vadd.f32 %v3704, 0.5
      %v3801 = vadd.f32 %v3705, 0.5
      %v3802 = vadd.f32 %v3706, 0.5
      %v3803 = vadd.f32 %v3707, 0.5
      %v3804 = vadd.f32 %v3708, 0.5
      %v3805 = vadd.f32 %v3709, 0.5
      %v3806 = vadd.f32 %v3710, 0.5
      %v3807 = vadd.f32 %v3711, 0.5
      %v3808 = vadd.f32 %v3712, 0.5
      %v3809 = vadd.f32 %v3713, 0.5
      %v3810 = vadd.f32 %v3714, 0.5
      %v3811 = vadd.f32 %v3715, 0.5
      %v3812 = vadd.f32 %v3716, 0.5
      %v3813 = vadd.f32 %v3717, 0.5
      %v3814 = vadd.f32 %v3718, 0.5
      %v3815 = vadd.f32 %v3719, 0.5
      %v3816 = vadd.f32 %v3720, 0.5
      %v3817 = vadd.f32 %v3721, 0.5
      %v3818 = vadd.f32 %v3722, 0.5
      %v3819 = vadd.f32 %v3723, 0.5
      %v3820 = vadd.f32 %v3724, 0.5
      %v3821 = vadd.f32 %v3725, 0.5
      %v3822 = vadd.f32 %v3726, 0.5
      %v3823 = vadd.f32 %v3727, 0.5
      %v3824 = vadd.f32 %v3728, 0.5
      %v3825 = vadd.f32 %v3729, 0.5
      %v3826 = vadd.f32 %v3730, 0.5
      %v3827 = vadd.f32 %v3731, 0.5
      %v3828 = vadd.f32 %v3732, 0.5
      %v3829 = vadd.f32 %v3733, 0.5
      %v3830 = vadd.f32 %v3734, 0.5
      %v3831 = vadd.f32 %v3735, 0.5
      %v3832 = vadd.f32 %v3736, 0.5
      %v3833 = vadd.f32 %v3737, 0.5
      %v3834 = vadd.f32 %v3738, 0.5
      %v3835 = vadd.f32 %v3739, 0.5
      %v3836 = vtanh.pop %v3327
      %v3837 = vtanh.pop %v3331
      %v3838 = vtanh.pop %v3335
      %v3839 = vtanh.pop %v3339
      %v3840 = vtanh.pop %v3343
      %v3841 = vtanh.pop %v3347
      %v3842 = vtanh.pop %v3351
      %v3843 = vtanh.pop %v3355
      %v3844 = vtanh.pop %v3359
      %v3845 = vtanh.pop %v3363
      %v3846 = vtanh.pop %v3367
      %v3847 = vtanh.pop %v3371
      %v3848 = vtanh.pop %v3375
      %v3849 = vtanh.pop %v3379
      %v3850 = vtanh.pop %v3383
      %v3851 = vtanh.pop %v3387
      %v3852 = vtanh.pop %v3391
      %v3853 = vtanh.pop %v3395
      %v3854 = vtanh.pop %v3399
      %v3855 = vtanh.pop %v3403
      %v3856 = vtanh.pop %v3407
      %v3857 = vtanh.pop %v3411
      %v3858 = vtanh.pop %v3415
      %v3859 = vtanh.pop %v3419
      %v3860 = vtanh.pop %v3423
      %v3861 = vtanh.pop %v3427
      %v3862 = vtanh.pop %v3431
      %v3863 = vtanh.pop %v3435
      %v3864 = vtanh.pop %v3439
      %v3865 = vtanh.pop %v3443
      %v3866 = vtanh.pop %v3447
      %v3867 = vtanh.pop %v3451
      %v3868 = vmul.f32 %v3741, 0.0
      %v3869 = vmul.f32 %v3744, 0.0
      %v3870 = vmul.f32 %v3747, 0.0
      %v3871 = vmul.f32 %v3750, 0.0
      %v3872 = vmul.f32 %v3753, 0.0
      %v3873 = vmul.f32 %v3756, 0.0
      %v3874 = vmul.f32 %v3759, 0.0
      %v3875 = vmul.f32 %v3762, 0.0
      %v3876 = vmul.f32 %v3765, 0.0
      %v3877 = vmul.f32 %v3768, 0.0
      %v3878 = vmul.f32 %v3771, 0.0
      %v3879 = vmul.f32 %v3774, 0.0
      %v3880 = vmul.f32 %v3777, 0.0
      %v3881 = vmul.f32 %v3780, 0.0
      %v3882 = vmul.f32 %v3783, 0.0
      %v3883 = vmul.f32 %v3786, 0.0
      %v3884 = vmul.f32 %v3789, 0.0
      %v3885 = vmul.f32 %v3792, 0.0
      %v3886 = vmul.f32 %v3795, 0.0
      %v3887 = vmul.f32 %v3798, 0.0
      %v3888 = vmul.f32 %v3801, 0.0
      %v3889 = vmul.f32 %v3804, 0.0
      %v3890 = vmul.f32 %v3807, 0.0
      %v3891 = vmul.f32 %v3810, 0.0
      %v3892 = vmul.f32 %v3813, 0.0
      %v3893 = vmul.f32 %v3816, 0.0
      %v3894 = vmul.f32 %v3819, 0.0
      %v3895 = vmul.f32 %v3822, 0.0
      %v3896 = vmul.f32 %v3825, 0.0
      %v3897 = vmul.f32 %v3828, 0.0
      %v3898 = vmul.f32 %v3831, 0.0
      %v3899 = vmul.f32 %v3834, 0.0
      %v3900 = vmul.f32 %v3740, %v3836
      %v3901 = vmul.f32 %v3743, %v3837
      %v3902 = vmul.f32 %v3746, %v3838
      %v3903 = vmul.f32 %v3749, %v3839
      %v3904 = vmul.f32 %v3752, %v3840
      %v3905 = vmul.f32 %v3755, %v3841
      %v3906 = vmul.f32 %v3758, %v3842
      %v3907 = vmul.f32 %v3761, %v3843
      %v3908 = vmul.f32 %v3764, %v3844
      %v3909 = vmul.f32 %v3767, %v3845
      %v3910 = vmul.f32 %v3770, %v3846
      %v3911 = vmul.f32 %v3773, %v3847
      %v3912 = vmul.f32 %v3776, %v3848
      %v3913 = vmul.f32 %v3779, %v3849
      %v3914 = vmul.f32 %v3782, %v3850
      %v3915 = vmul.f32 %v3785, %v3851
      %v3916 = vmul.f32 %v3788, %v3852
      %v3917 = vmul.f32 %v3791, %v3853
      %v3918 = vmul.f32 %v3794, %v3854
      %v3919 = vmul.f32 %v3797, %v3855
      %v3920 = vmul.f32 %v3800, %v3856
      %v3921 = vmul.f32 %v3803, %v3857
      %v3922 = vmul.f32 %v3806, %v3858
      %v3923 = vmul.f32 %v3809, %v3859
      %v3924 = vmul.f32 %v3812, %v3860
      %v3925 = vmul.f32 %v3815, %v3861
      %v3926 = vmul.f32 %v3818, %v3862
      %v3927 = vmul.f32 %v3821, %v3863
      %v3928 = vmul.f32 %v3824, %v3864
      %v3929 = vmul.f32 %v3827, %v3865
      %v3930 = vmul.f32 %v3830, %v3866
      %v3931 = vmul.f32 %v3833, %v3867
      %v3932 = vadd.f32 %v3868, %v3900
      %v3933 = vadd.f32 %v3869, %v3901
      %v3934 = vadd.f32 %v3870, %v3902
      %v3935 = vadd.f32 %v3871, %v3903
      %v3936 = vadd.f32 %v3872, %v3904
      %v3937 = vadd.f32 %v3873, %v3905
      %v3938 = vadd.f32 %v3874, %v3906
      %v3939 = vadd.f32 %v3875, %v3907
      %v3940 = vadd.f32 %v3876, %v3908
      %v3941 = vadd.f32 %v3877, %v3909
      %v3942 = vadd.f32 %v3878, %v3910
      %v3943 = vadd.f32 %v3879, %v3911
      %v3944 = vadd.f32 %v3880, %v3912
      %v3945 = vadd.f32 %v3881, %v3913
      %v3946 = vadd.f32 %v3882, %v3914
      %v3947 = vadd.f32 %v3883, %v3915
      %v3948 = vadd.f32 %v3884, %v3916
      %v3949 = vadd.f32 %v3885, %v3917
      %v3950 = vadd.f32 %v3886, %v3918
      %v3951 = vadd.f32 %v3887, %v3919
      %v3952 = vadd.f32 %v3888, %v3920
      %v3953 = vadd.f32 %v3889, %v3921
      %v3954 = vadd.f32 %v3890, %v3922
      %v3955 = vadd.f32 %v3891, %v3923
      %v3956 = vadd.f32 %v3892, %v3924
      %v3957 = vadd.f32 %v3893, %v3925
      %v3958 = vadd.f32 %v3894, %v3926
      %v3959 = vadd.f32 %v3895, %v3927
      %v3960 = vadd.f32 %v3896, %v3928
      %v3961 = vadd.f32 %v3897, %v3929
      %v3962 = vadd.f32 %v3898, %v3930
      %v3963 = vadd.f32 %v3899, %v3931
      %v3964 = vtanh.pop %v3932
      %v3965 = vtanh.pop %v3933
      %v3966 = vtanh.pop %v3934
      %v3967 = vtanh.pop %v3935
      %v3968 = vtanh.pop %v3936
      %v3969 = vtanh.pop %v3937
      %v3970 = vtanh.pop %v3938
      %v3971 = vtanh.pop %v3939
      %v3972 = vtanh.pop %v3940
      %v3973 = vtanh.pop %v3941
      %v3974 = vtanh.pop %v3942
      %v3975 = vtanh.pop %v3943
      %v3976 = vtanh.pop %v3944
      %v3977 = vtanh.pop %v3945
      %v3978 = vtanh.pop %v3946
      %v3979 = vtanh.pop %v3947
      %v3980 = vtanh.pop %v3948
      %v3981 = vtanh.pop %v3949
      %v3982 = vtanh.pop %v3950
      %v3983 = vtanh.pop %v3951
      %v3984 = vtanh.pop %v3952
      %v3985 = vtanh.pop %v3953
      %v3986 = vtanh.pop %v3954
      %v3987 = vtanh.pop %v3955
      %v3988 = vtanh.pop %v3956
      %v3989 = vtanh.pop %v3957
      %v3990 = vtanh.pop %v3958
      %v3991 = vtanh.pop %v3959
      %v3992 = vtanh.pop %v3960
      %v3993 = vtanh.pop %v3961
      %v3994 = vtanh.pop %v3962
      %v3995 = vtanh.pop %v3963
      %v3996 = vmul.f32 %v3742, %v3964
      %v3997 = vmul.f32 %v3745, %v3965
      %v3998 = vmul.f32 %v3748, %v3966
      %v3999 = vmul.f32 %v3751, %v3967
      %v4000 = vmul.f32 %v3754, %v3968
      %v4001 = vmul.f32 %v3757, %v3969
      %v4002 = vmul.f32 %v3760, %v3970
      %v4003 = vmul.f32 %v3763, %v3971
      %v4004 = vmul.f32 %v3766, %v3972
      %v4005 = vmul.f32 %v3769, %v3973
      %v4006 = vmul.f32 %v3772, %v3974
      %v4007 = vmul.f32 %v3775, %v3975
      %v4008 = vmul.f32 %v3778, %v3976
      %v4009 = vmul.f32 %v3781, %v3977
      %v4010 = vmul.f32 %v3784, %v3978
      %v4011 = vmul.f32 %v3787, %v3979
      %v4012 = vmul.f32 %v3790, %v3980
      %v4013 = vmul.f32 %v3793, %v3981
      %v4014 = vmul.f32 %v3796, %v3982
      %v4015 = vmul.f32 %v3799, %v3983
      %v4016 = vmul.f32 %v3802, %v3984
      %v4017 = vmul.f32 %v3805, %v3985
      %v4018 = vmul.f32 %v3808, %v3986
      %v4019 = vmul.f32 %v3811, %v3987
      %v4020 = vmul.f32 %v3814, %v3988
      %v4021 = vmul.f32 %v3817, %v3989
      %v4022 = vmul.f32 %v3820, %v3990
      %v4023 = vmul.f32 %v3823, %v3991
      %v4024 = vmul.f32 %v3826, %v3992
      %v4025 = vmul.f32 %v3829, %v3993
      %v4026 = vmul.f32 %v3832, %v3994
      %v4027 = vmul.f32 %v3835, %v3995
      %v4028 = vld [vmem:[#allocation3 + $0x400] sm:$0xff]
      %v4029 = vld [vmem:[#allocation3 + $0x408] sm:$0xff]
      %v4030 = vld [vmem:[#allocation3 + $0x410] sm:$0xff]
      %v4031 = vld [vmem:[#allocation3 + $0x418] sm:$0xff]
      %v4032 = vld [vmem:[#allocation3 + $0x420] sm:$0xff]
      %v4033 = vld [vmem:[#allocation3 + $0x428] sm:$0xff]
      %v4034 = vld [vmem:[#allocation3 + $0x430] sm:$0xff]
      %v4035 = vld [vmem:[#allocation3 + $0x438] sm:$0xff]
      %v4036 = vld [vmem:[#allocation3 + $0x440] sm:$0xff]
      %v4037 = vld [vmem:[#allocation3 + $0x448] sm:$0xff]
      %v4038 = vld [vmem:[#allocation3 + $0x450] sm:$0xff]
      %v4039 = vld [vmem:[#allocation3 + $0x458] sm:$0xff]
      %v4040 = vld [vmem:[#allocation3 + $0x460] sm:$0xff]
      %v4041 = vld [vmem:[#allocation3 + $0x468] sm:$0xff]
      %v4042 = vld [vmem:[#allocation3 + $0x470] sm:$0xff]
      %v4043 = vld [vmem:[#allocation3 + $0x478] sm:$0xff]
      %v4044 = vld [vmem:[#allocation3 + $0x480] sm:$0xff]
      %v4045 = vld [vmem:[#allocation3 + $0x488] sm:$0xff]
      %v4046 = vld [vmem:[#allocation3 + $0x490] sm:$0xff]
      %v4047 = vld [vmem:[#allocation3 + $0x498] sm:$0xff]
      %v4048 = vld [vmem:[#allocation3 + $0x4a0] sm:$0xff]
      %v4049 = vld [vmem:[#allocation3 + $0x4a8] sm:$0xff]
      %v4050 = vld [vmem:[#allocation3 + $0x4b0] sm:$0xff]
      %v4051 = vld [vmem:[#allocation3 + $0x4b8] sm:$0xff]
      %v4052 = vld [vmem:[#allocation3 + $0x4c0] sm:$0xff]
      %v4053 = vld [vmem:[#allocation3 + $0x4c8] sm:$0xff]
      %v4054 = vld [vmem:[#allocation3 + $0x4d0] sm:$0xff]
      %v4055 = vld [vmem:[#allocation3 + $0x4d8] sm:$0xff]
      %v4056 = vld [vmem:[#allocation3 + $0x4e0] sm:$0xff]
      %v4057 = vld [vmem:[#allocation3 + $0x4e8] sm:$0xff]
      %v4058 = vld [vmem:[#allocation3 + $0x4f0] sm:$0xff]
      %v4059 = vld [vmem:[#allocation3 + $0x4f8] sm:$0xff]
      %v4060 = vld [vmem:[#allocation3 + $0x500] sm:$0xff]
      %v4061 = vld [vmem:[#allocation3 + $0x508] sm:$0xff]
      %v4062 = vld [vmem:[#allocation3 + $0x510] sm:$0xff]
      %v4063 = vld [vmem:[#allocation3 + $0x518] sm:$0xff]
      %v4064 = vld [vmem:[#allocation3 + $0x520] sm:$0xff]
      %v4065 = vld [vmem:[#allocation3 + $0x528] sm:$0xff]
      %v4066 = vld [vmem:[#allocation3 + $0x530] sm:$0xff]
      %v4067 = vld [vmem:[#allocation3 + $0x538] sm:$0xff]
      %v4068 = vld [vmem:[#allocation3 + $0x540] sm:$0xff]
      %v4069 = vld [vmem:[#allocation3 + $0x548] sm:$0xff]
      %v4070 = vld [vmem:[#allocation3 + $0x550] sm:$0xff]
      %v4071 = vld [vmem:[#allocation3 + $0x558] sm:$0xff]
      %v4072 = vld [vmem:[#allocation3 + $0x560] sm:$0xff]
      %v4073 = vld [vmem:[#allocation3 + $0x568] sm:$0xff]
      %v4074 = vld [vmem:[#allocation3 + $0x570] sm:$0xff]
      %v4075 = vld [vmem:[#allocation3 + $0x578] sm:$0xff]
      %v4076 = vld [vmem:[#allocation3 + $0x580] sm:$0xff]
      %v4077 = vld [vmem:[#allocation3 + $0x588] sm:$0xff]
      %v4078 = vld [vmem:[#allocation3 + $0x590] sm:$0xff]
      %v4079 = vld [vmem:[#allocation3 + $0x598] sm:$0xff]
      %v4080 = vld [vmem:[#allocation3 + $0x5a0] sm:$0xff]
      %v4081 = vld [vmem:[#allocation3 + $0x5a8] sm:$0xff]
      %v4082 = vld [vmem:[#allocation3 + $0x5b0] sm:$0xff]
      %v4083 = vld [vmem:[#allocation3 + $0x5b8] sm:$0xff]
      %v4084 = vld [vmem:[#allocation3 + $0x5c0] sm:$0xff]
      %v4085 = vld [vmem:[#allocation3 + $0x5c8] sm:$0xff]
      %v4086 = vld [vmem:[#allocation3 + $0x5d0] sm:$0xff]
      %v4087 = vld [vmem:[#allocation3 + $0x5d8] sm:$0xff]
      %v4088 = vld [vmem:[#allocation3 + $0x5e0] sm:$0xff]
      %v4089 = vld [vmem:[#allocation3 + $0x5e8] sm:$0xff]
      %v4090 = vld [vmem:[#allocation3 + $0x5f0] sm:$0xff]
      %v4091 = vld [vmem:[#allocation3 + $0x5f8] sm:$0xff]
      %v4092 = vld [vmem:[#allocation3 + $0x600] sm:$0xff]
      %v4093 = vld [vmem:[#allocation3 + $0x608] sm:$0xff]
      %v4094 = vld [vmem:[#allocation3 + $0x610] sm:$0xff]
      %v4095 = vld [vmem:[#allocation3 + $0x618] sm:$0xff]
      %v4096 = vld [vmem:[#allocation3 + $0x620] sm:$0xff]
      %v4097 = vld [vmem:[#allocation3 + $0x628] sm:$0xff]
      %v4098 = vld [vmem:[#allocation3 + $0x630] sm:$0xff]
      %v4099 = vld [vmem:[#allocation3 + $0x638] sm:$0xff]
      %v4100 = vld [vmem:[#allocation3 + $0x640] sm:$0xff]
      %v4101 = vld [vmem:[#allocation3 + $0x648] sm:$0xff]
      %v4102 = vld [vmem:[#allocation3 + $0x650] sm:$0xff]
      %v4103 = vld [vmem:[#allocation3 + $0x658] sm:$0xff]
      %v4104 = vld [vmem:[#allocation3 + $0x660] sm:$0xff]
      %v4105 = vld [vmem:[#allocation3 + $0x668] sm:$0xff]
      %v4106 = vld [vmem:[#allocation3 + $0x670] sm:$0xff]
      %v4107 = vld [vmem:[#allocation3 + $0x678] sm:$0xff]
      %v4108 = vld [vmem:[#allocation3 + $0x680] sm:$0xff]
      %v4109 = vld [vmem:[#allocation3 + $0x688] sm:$0xff]
      %v4110 = vld [vmem:[#allocation3 + $0x690] sm:$0xff]
      %v4111 = vld [vmem:[#allocation3 + $0x698] sm:$0xff]
      %v4112 = vld [vmem:[#allocation3 + $0x6a0] sm:$0xff]
      %v4113 = vld [vmem:[#allocation3 + $0x6a8] sm:$0xff]
      %v4114 = vld [vmem:[#allocation3 + $0x6b0] sm:$0xff]
      %v4115 = vld [vmem:[#allocation3 + $0x6b8] sm:$0xff]
      %v4116 = vld [vmem:[#allocation3 + $0x6c0] sm:$0xff]
      %v4117 = vld [vmem:[#allocation3 + $0x6c8] sm:$0xff]
      %v4118 = vld [vmem:[#allocation3 + $0x6d0] sm:$0xff]
      %v4119 = vld [vmem:[#allocation3 + $0x6d8] sm:$0xff]
      %v4120 = vld [vmem:[#allocation3 + $0x6e0] sm:$0xff]
      %v4121 = vld [vmem:[#allocation3 + $0x6e8] sm:$0xff]
      %v4122 = vld [vmem:[#allocation3 + $0x6f0] sm:$0xff]
      %v4123 = vld [vmem:[#allocation3 + $0x6f8] sm:$0xff]
      %v4124 = vld [vmem:[#allocation3 + $0x700] sm:$0xff]
      %v4125 = vld [vmem:[#allocation3 + $0x708] sm:$0xff]
      %v4126 = vld [vmem:[#allocation3 + $0x710] sm:$0xff]
      %v4127 = vld [vmem:[#allocation3 + $0x718] sm:$0xff]
      %v4128 = vld [vmem:[#allocation3 + $0x720] sm:$0xff]
      %v4129 = vld [vmem:[#allocation3 + $0x728] sm:$0xff]
      %v4130 = vld [vmem:[#allocation3 + $0x730] sm:$0xff]
      %v4131 = vld [vmem:[#allocation3 + $0x738] sm:$0xff]
      %v4132 = vld [vmem:[#allocation3 + $0x740] sm:$0xff]
      %v4133 = vld [vmem:[#allocation3 + $0x748] sm:$0xff]
      %v4134 = vld [vmem:[#allocation3 + $0x750] sm:$0xff]
      %v4135 = vld [vmem:[#allocation3 + $0x758] sm:$0xff]
      %v4136 = vld [vmem:[#allocation3 + $0x760] sm:$0xff]
      %v4137 = vld [vmem:[#allocation3 + $0x768] sm:$0xff]
      %v4138 = vld [vmem:[#allocation3 + $0x770] sm:$0xff]
      %v4139 = vld [vmem:[#allocation3 + $0x778] sm:$0xff]
      %v4140 = vld [vmem:[#allocation3 + $0x780] sm:$0xff]
      %v4141 = vld [vmem:[#allocation3 + $0x788] sm:$0xff]
      %v4142 = vld [vmem:[#allocation3 + $0x790] sm:$0xff]
      %v4143 = vld [vmem:[#allocation3 + $0x798] sm:$0xff]
      %v4144 = vld [vmem:[#allocation3 + $0x7a0] sm:$0xff]
      %v4145 = vld [vmem:[#allocation3 + $0x7a8] sm:$0xff]
      %v4146 = vld [vmem:[#allocation3 + $0x7b0] sm:$0xff]
      %v4147 = vld [vmem:[#allocation3 + $0x7b8] sm:$0xff]
      %v4148 = vld [vmem:[#allocation3 + $0x7c0] sm:$0xff]
      %v4149 = vld [vmem:[#allocation3 + $0x7c8] sm:$0xff]
      %v4150 = vld [vmem:[#allocation3 + $0x7d0] sm:$0xff]
      %v4151 = vld [vmem:[#allocation3 + $0x7d8] sm:$0xff]
      %v4152 = vld [vmem:[#allocation3 + $0x7e0] sm:$0xff]
      %v4153 = vld [vmem:[#allocation3 + $0x7e8] sm:$0xff]
      %v4154 = vld [vmem:[#allocation3 + $0x7f0] sm:$0xff]
      %v4155 = vld [vmem:[#allocation3 + $0x7f8] sm:$0xff]
      %v4156 = vpack.c.bf16 %v3997, %v3996
      %v4157 = vpack.c.bf16 %v3999, %v3998
      %v4158 = vpack.c.bf16 %v4001, %v4000
      %v4159 = vpack.c.bf16 %v4003, %v4002
      %v4160 = vpack.c.bf16 %v4005, %v4004
      %v4161 = vpack.c.bf16 %v4007, %v4006
      %v4162 = vpack.c.bf16 %v4009, %v4008
      %v4163 = vpack.c.bf16 %v4011, %v4010
      %v4164 = vpack.c.bf16 %v4013, %v4012
      %v4165 = vpack.c.bf16 %v4015, %v4014
      %v4166 = vpack.c.bf16 %v4017, %v4016
      %v4167 = vpack.c.bf16 %v4019, %v4018
      %v4168 = vpack.c.bf16 %v4021, %v4020
      %v4169 = vpack.c.bf16 %v4023, %v4022
      %v4170 = vpack.c.bf16 %v4025, %v4024
      %v4171 = vpack.c.bf16 %v4027, %v4026
      %4172 = vmatpush.bf16.msra.mxu0 %v2932
      %4173 = vmatpush.bf16.msra.mxu0 %v2928
      %4174 = vmatpush.bf16.msra.mxu0 %v2924
      %4175 = vmatpush.bf16.msra.mxu0 %v2920
      %4176 = vmatpush.bf16.msra.mxu0 %v2916
      %4177 = vmatpush.bf16.msra.mxu0 %v2912
      %4178 = vmatpush.bf16.msra.mxu0 %v2908
      %4179 = vmatpush.bf16.msra.mxu0 %v2904
      %4180 = vmatmul.bf16.gmra.mxu0 %v4156
      %v4181 = vpop.f32.mrf.mxu0
      %v4182 = vadd.f32 0.0, %v4181
      %v4183 = vpop.f32.mrf.mxu0
      %v4184 = vadd.f32 0.0, %v4183
      %4185 = vmatmul.bf16.gmra.mxu0 %v4157
      %v4186 = vpop.f32.mrf.mxu0
      %v4187 = vadd.f32 0.0, %v4186
      %v4188 = vpop.f32.mrf.mxu0
      %v4189 = vadd.f32 0.0, %v4188
      %4190 = vmatmul.bf16.gmra.mxu0 %v4158
      %v4191 = vpop.f32.mrf.mxu0
      %v4192 = vadd.f32 0.0, %v4191
      %v4193 = vpop.f32.mrf.mxu0
      %v4194 = vadd.f32 0.0, %v4193
      %4195 = vmatmul.bf16.gmra.mxu0 %v4159
      %v4196 = vpop.f32.mrf.mxu0
      %v4197 = vadd.f32 0.0, %v4196
      %v4198 = vpop.f32.mrf.mxu0
      %v4199 = vadd.f32 0.0, %v4198
      %4200 = vmatmul.bf16.gmra.mxu0 %v4160
      %v4201 = vpop.f32.mrf.mxu0
      %v4202 = vadd.f32 0.0, %v4201
      %v4203 = vpop.f32.mrf.mxu0
      %v4204 = vadd.f32 0.0, %v4203
      %4205 = vmatmul.bf16.gmra.mxu0 %v4161
      %v4206 = vpop.f32.mrf.mxu0
      %v4207 = vadd.f32 0.0, %v4206
      %v4208 = vpop.f32.mrf.mxu0
      %v4209 = vadd.f32 0.0, %v4208
      %4210 = vmatmul.bf16.gmra.mxu0 %v4162
      %v4211 = vpop.f32.mrf.mxu0
      %v4212 = vadd.f32 0.0, %v4211
      %v4213 = vpop.f32.mrf.mxu0
      %v4214 = vadd.f32 0.0, %v4213
      %4215 = vmatmul.bf16.gmra.mxu0 %v4163
      %v4216 = vpop.f32.mrf.mxu0
      %v4217 = vadd.f32 0.0, %v4216
      %v4218 = vpop.f32.mrf.mxu0
      %v4219 = vadd.f32 0.0, %v4218
      %4220 = vmatmul.bf16.gmra.mxu0 %v4164
      %v4221 = vpop.f32.mrf.mxu0
      %v4222 = vadd.f32 0.0, %v4221
      %v4223 = vpop.f32.mrf.mxu0
      %v4224 = vadd.f32 0.0, %v4223
      %4225 = vmatmul.bf16.gmra.mxu0 %v4165
      %v4226 = vpop.f32.mrf.mxu0
      %v4227 = vadd.f32 0.0, %v4226
      %v4228 = vpop.f32.mrf.mxu0
      %v4229 = vadd.f32 0.0, %v4228
      %4230 = vmatmul.bf16.gmra.mxu0 %v4166
      %v4231 = vpop.f32.mrf.mxu0
      %v4232 = vadd.f32 0.0, %v4231
      %v4233 = vpop.f32.mrf.mxu0
      %v4234 = vadd.f32 0.0, %v4233
      %4235 = vmatmul.bf16.gmra.mxu0 %v4167
      %v4236 = vpop.f32.mrf.mxu0
      %v4237 = vadd.f32 0.0, %v4236
      %v4238 = vpop.f32.mrf.mxu0
      %v4239 = vadd.f32 0.0, %v4238
      %4240 = vmatmul.bf16.gmra.mxu0 %v4168
      %v4241 = vpop.f32.mrf.mxu0
      %v4242 = vadd.f32 0.0, %v4241
      %v4243 = vpop.f32.mrf.mxu0
      %v4244 = vadd.f32 0.0, %v4243
      %4245 = vmatmul.bf16.gmra.mxu0 %v4169
      %v4246 = vpop.f32.mrf.mxu0
      %v4247 = vadd.f32 0.0, %v4246
      %v4248 = vpop.f32.mrf.mxu0
      %v4249 = vadd.f32 0.0, %v4248
      %4250 = vmatmul.bf16.gmra.mxu0 %v4170
      %v4251 = vpop.f32.mrf.mxu0
      %v4252 = vadd.f32 0.0, %v4251
      %v4253 = vpop.f32.mrf.mxu0
      %v4254 = vadd.f32 0.0, %v4253
      %4255 = vmatmul.bf16.gmra.mxu0 %v4171
      %v4256 = vpop.f32.mrf.mxu0
      %v4257 = vadd.f32 0.0, %v4256
      %v4258 = vpop.f32.mrf.mxu0
      %v4259 = vadd.f32 0.0, %v4258
      %4260 = vdwg.mxu0
      %4261 = vmatpush.bf16.msra.mxu0 %v2933
      %4262 = vmatpush.bf16.msra.mxu0 %v2929
      %4263 = vmatpush.bf16.msra.mxu0 %v2925
      %4264 = vmatpush.bf16.msra.mxu0 %v2921
      %4265 = vmatpush.bf16.msra.mxu0 %v2917
      %4266 = vmatpush.bf16.msra.mxu0 %v2913
      %4267 = vmatpush.bf16.msra.mxu0 %v2909
      %4268 = vmatpush.bf16.msra.mxu0 %v2905
      %4269 = vmatmul.bf16.gmra.mxu0 %v4156
      %v4270 = vpop.f32.mrf.mxu0
      %v4271 = vadd.f32 0.0, %v4270
      %v4272 = vpop.f32.mrf.mxu0
      %v4273 = vadd.f32 0.0, %v4272
      %4274 = vmatmul.bf16.gmra.mxu0 %v4157
      %v4275 = vpop.f32.mrf.mxu0
      %v4276 = vadd.f32 0.0, %v4275
      %v4277 = vpop.f32.mrf.mxu0
      %v4278 = vadd.f32 0.0, %v4277
      %4279 = vmatmul.bf16.gmra.mxu0 %v4158
      %v4280 = vpop.f32.mrf.mxu0
      %v4281 = vadd.f32 0.0, %v4280
      %v4282 = vpop.f32.mrf.mxu0
      %v4283 = vadd.f32 0.0, %v4282
      %4284 = vmatmul.bf16.gmra.mxu0 %v4159
      %v4285 = vpop.f32.mrf.mxu0
      %v4286 = vadd.f32 0.0, %v4285
      %v4287 = vpop.f32.mrf.mxu0
      %v4288 = vadd.f32 0.0, %v4287
      %4289 = vmatmul.bf16.gmra.mxu0 %v4160
      %v4290 = vpop.f32.mrf.mxu0
      %v4291 = vadd.f32 0.0, %v4290
      %v4292 = vpop.f32.mrf.mxu0
      %v4293 = vadd.f32 0.0, %v4292
      %4294 = vmatmul.bf16.gmra.mxu0 %v4161
      %v4295 = vpop.f32.mrf.mxu0
      %v4296 = vadd.f32 0.0, %v4295
      %v4297 = vpop.f32.mrf.mxu0
      %v4298 = vadd.f32 0.0, %v4297
      %4299 = vmatmul.bf16.gmra.mxu0 %v4162
      %v4300 = vpop.f32.mrf.mxu0
      %v4301 = vadd.f32 0.0, %v4300
      %v4302 = vpop.f32.mrf.mxu0
      %v4303 = vadd.f32 0.0, %v4302
      %4304 = vmatmul.bf16.gmra.mxu0 %v4163
      %v4305 = vpop.f32.mrf.mxu0
      %v4306 = vadd.f32 0.0, %v4305
      %v4307 = vpop.f32.mrf.mxu0
      %v4308 = vadd.f32 0.0, %v4307
      %4309 = vmatmul.bf16.gmra.mxu0 %v4164
      %v4310 = vpop.f32.mrf.mxu0
      %v4311 = vadd.f32 0.0, %v4310
      %v4312 = vpop.f32.mrf.mxu0
      %v4313 = vadd.f32 0.0, %v4312
      %4314 = vmatmul.bf16.gmra.mxu0 %v4165
      %v4315 = vpop.f32.mrf.mxu0
      %v4316 = vadd.f32 0.0, %v4315
      %v4317 = vpop.f32.mrf.mxu0
      %v4318 = vadd.f32 0.0, %v4317
      %4319 = vmatmul.bf16.gmra.mxu0 %v4166
      %v4320 = vpop.f32.mrf.mxu0
      %v4321 = vadd.f32 0.0, %v4320
      %v4322 = vpop.f32.mrf.mxu0
      %v4323 = vadd.f32 0.0, %v4322
      %4324 = vmatmul.bf16.gmra.mxu0 %v4167
      %v4325 = vpop.f32.mrf.mxu0
      %v4326 = vadd.f32 0.0, %v4325
      %v4327 = vpop.f32.mrf.mxu0
      %v4328 = vadd.f32 0.0, %v4327
      %4329 = vmatmul.bf16.gmra.mxu0 %v4168
      %v4330 = vpop.f32.mrf.mxu0
      %v4331 = vadd.f32 0.0, %v4330
      %v4332 = vpop.f32.mrf.mxu0
      %v4333 = vadd.f32 0.0, %v4332
      %4334 = vmatmul.bf16.gmra.mxu0 %v4169
      %v4335 = vpop.f32.mrf.mxu0
      %v4336 = vadd.f32 0.0, %v4335
      %v4337 = vpop.f32.mrf.mxu0
      %v4338 = vadd.f32 0.0, %v4337
      %4339 = vmatmul.bf16.gmra.mxu0 %v4170
      %v4340 = vpop.f32.mrf.mxu0
      %v4341 = vadd.f32 0.0, %v4340
      %v4342 = vpop.f32.mrf.mxu0
      %v4343 = vadd.f32 0.0, %v4342
      %4344 = vmatmul.bf16.gmra.mxu0 %v4171
      %v4345 = vpop.f32.mrf.mxu0
      %v4346 = vadd.f32 0.0, %v4345
      %v4347 = vpop.f32.mrf.mxu0
      %v4348 = vadd.f32 0.0, %v4347
      %4349 = vdwg.mxu0
      %4350 = vmatpush.bf16.msra.mxu0 %v2934
      %4351 = vmatpush.bf16.msra.mxu0 %v2930
      %4352 = vmatpush.bf16.msra.mxu0 %v2926
      %4353 = vmatpush.bf16.msra.mxu0 %v2922
      %4354 = vmatpush.bf16.msra.mxu0 %v2918
      %4355 = vmatpush.bf16.msra.mxu0 %v2914
      %4356 = vmatpush.bf16.msra.mxu0 %v2910
      %4357 = vmatpush.bf16.msra.mxu0 %v2906
      %4358 = vmatmul.bf16.gmra.mxu0 %v4156
      %v4359 = vpop.f32.mrf.mxu0
      %v4360 = vadd.f32 0.0, %v4359
      %v4361 = vpop.f32.mrf.mxu0
      %v4362 = vadd.f32 0.0, %v4361
      %4363 = vmatmul.bf16.gmra.mxu0 %v4157
      %v4364 = vpop.f32.mrf.mxu0
      %v4365 = vadd.f32 0.0, %v4364
      %v4366 = vpop.f32.mrf.mxu0
      %v4367 = vadd.f32 0.0, %v4366
      %4368 = vmatmul.bf16.gmra.mxu0 %v4158
      %v4369 = vpop.f32.mrf.mxu0
      %v4370 = vadd.f32 0.0, %v4369
      %v4371 = vpop.f32.mrf.mxu0
      %v4372 = vadd.f32 0.0, %v4371
      %4373 = vmatmul.bf16.gmra.mxu0 %v4159
      %v4374 = vpop.f32.mrf.mxu0
      %v4375 = vadd.f32 0.0, %v4374
      %v4376 = vpop.f32.mrf.mxu0
      %v4377 = vadd.f32 0.0, %v4376
      %4378 = vmatmul.bf16.gmra.mxu0 %v4160
      %v4379 = vpop.f32.mrf.mxu0
      %v4380 = vadd.f32 0.0, %v4379
      %v4381 = vpop.f32.mrf.mxu0
      %v4382 = vadd.f32 0.0, %v4381
      %4383 = vmatmul.bf16.gmra.mxu0 %v4161
      %v4384 = vpop.f32.mrf.mxu0
      %v4385 = vadd.f32 0.0, %v4384
      %v4386 = vpop.f32.mrf.mxu0
      %v4387 = vadd.f32 0.0, %v4386
      %4388 = vmatmul.bf16.gmra.mxu0 %v4162
      %v4389 = vpop.f32.mrf.mxu0
      %v4390 = vadd.f32 0.0, %v4389
      %v4391 = vpop.f32.mrf.mxu0
      %v4392 = vadd.f32 0.0, %v4391
      %4393 = vmatmul.bf16.gmra.mxu0 %v4163
      %v4394 = vpop.f32.mrf.mxu0
      %v4395 = vadd.f32 0.0, %v4394
      %v4396 = vpop.f32.mrf.mxu0
      %v4397 = vadd.f32 0.0, %v4396
      %4398 = vmatmul.bf16.gmra.mxu0 %v4164
      %v4399 = vpop.f32.mrf.mxu0
      %v4400 = vadd.f32 0.0, %v4399
      %v4401 = vpop.f32.mrf.mxu0
      %v4402 = vadd.f32 0.0, %v4401
      %4403 = vmatmul.bf16.gmra.mxu0 %v4165
      %v4404 = vpop.f32.mrf.mxu0
      %v4405 = vadd.f32 0.0, %v4404
      %v4406 = vpop.f32.mrf.mxu0
      %v4407 = vadd.f32 0.0, %v4406
      %4408 = vmatmul.bf16.gmra.mxu0 %v4166
      %v4409 = vpop.f32.mrf.mxu0
      %v4410 = vadd.f32 0.0, %v4409
      %v4411 = vpop.f32.mrf.mxu0
      %v4412 = vadd.f32 0.0, %v4411
      %4413 = vmatmul.bf16.gmra.mxu0 %v4167
      %v4414 = vpop.f32.mrf.mxu0
      %v4415 = vadd.f32 0.0, %v4414
      %v4416 = vpop.f32.mrf.mxu0
      %v4417 = vadd.f32 0.0, %v4416
      %4418 = vmatmul.bf16.gmra.mxu0 %v4168
      %v4419 = vpop.f32.mrf.mxu0
      %v4420 = vadd.f32 0.0, %v4419
      %v4421 = vpop.f32.mrf.mxu0
      %v4422 = vadd.f32 0.0, %v4421
      %4423 = vmatmul.bf16.gmra.mxu0 %v4169
      %v4424 = vpop.f32.mrf.mxu0
      %v4425 = vadd.f32 0.0, %v4424
      %v4426 = vpop.f32.mrf.mxu0
      %v4427 = vadd.f32 0.0, %v4426
      %4428 = vmatmul.bf16.gmra.mxu0 %v4170
      %v4429 = vpop.f32.mrf.mxu0
      %v4430 = vadd.f32 0.0, %v4429
      %v4431 = vpop.f32.mrf.mxu0
      %v4432 = vadd.f32 0.0, %v4431
      %4433 = vmatmul.bf16.gmra.mxu0 %v4171
      %v4434 = vpop.f32.mrf.mxu0
      %v4435 = vadd.f32 0.0, %v4434
      %v4436 = vpop.f32.mrf.mxu0
      %v4437 = vadd.f32 0.0, %v4436
      %4438 = vdwg.mxu0
      %4439 = vmatpush.bf16.msra.mxu0 %v2935
      %4440 = vmatpush.bf16.msra.mxu0 %v2931
      %4441 = vmatpush.bf16.msra.mxu0 %v2927
      %4442 = vmatpush.bf16.msra.mxu0 %v2923
      %4443 = vmatpush.bf16.msra.mxu0 %v2919
      %4444 = vmatpush.bf16.msra.mxu0 %v2915
      %4445 = vmatpush.bf16.msra.mxu0 %v2911
      %4446 = vmatpush.bf16.msra.mxu0 %v2907
      %4447 = vmatmul.bf16.gmra.mxu0 %v4156
      %v4448 = vpop.f32.mrf.mxu0
      %v4449 = vadd.f32 0.0, %v4448
      %v4450 = vpop.f32.mrf.mxu0
      %v4451 = vadd.f32 0.0, %v4450
      %4452 = vmatmul.bf16.gmra.mxu0 %v4157
      %v4453 = vpop.f32.mrf.mxu0
      %v4454 = vadd.f32 0.0, %v4453
      %v4455 = vpop.f32.mrf.mxu0
      %v4456 = vadd.f32 0.0, %v4455
      %4457 = vmatmul.bf16.gmra.mxu0 %v4158
      %v4458 = vpop.f32.mrf.mxu0
      %v4459 = vadd.f32 0.0, %v4458
      %v4460 = vpop.f32.mrf.mxu0
      %v4461 = vadd.f32 0.0, %v4460
      %4462 = vmatmul.bf16.gmra.mxu0 %v4159
      %v4463 = vpop.f32.mrf.mxu0
      %v4464 = vadd.f32 0.0, %v4463
      %v4465 = vpop.f32.mrf.mxu0
      %v4466 = vadd.f32 0.0, %v4465
      %4467 = vmatmul.bf16.gmra.mxu0 %v4160
      %v4468 = vpop.f32.mrf.mxu0
      %v4469 = vadd.f32 0.0, %v4468
      %v4470 = vpop.f32.mrf.mxu0
      %v4471 = vadd.f32 0.0, %v4470
      %4472 = vmatmul.bf16.gmra.mxu0 %v4161
      %v4473 = vpop.f32.mrf.mxu0
      %v4474 = vadd.f32 0.0, %v4473
      %v4475 = vpop.f32.mrf.mxu0
      %v4476 = vadd.f32 0.0, %v4475
      %4477 = vmatmul.bf16.gmra.mxu0 %v4162
      %v4478 = vpop.f32.mrf.mxu0
      %v4479 = vadd.f32 0.0, %v4478
      %v4480 = vpop.f32.mrf.mxu0
      %v4481 = vadd.f32 0.0, %v4480
      %4482 = vmatmul.bf16.gmra.mxu0 %v4163
      %v4483 = vpop.f32.mrf.mxu0
      %v4484 = vadd.f32 0.0, %v4483
      %v4485 = vpop.f32.mrf.mxu0
      %v4486 = vadd.f32 0.0, %v4485
      %4487 = vmatmul.bf16.gmra.mxu0 %v4164
      %v4488 = vpop.f32.mrf.mxu0
      %v4489 = vadd.f32 0.0, %v4488
      %v4490 = vpop.f32.mrf.mxu0
      %v4491 = vadd.f32 0.0, %v4490
      %4492 = vmatmul.bf16.gmra.mxu0 %v4165
      %v4493 = vpop.f32.mrf.mxu0
      %v4494 = vadd.f32 0.0, %v4493
      %v4495 = vpop.f32.mrf.mxu0
      %v4496 = vadd.f32 0.0, %v4495
      %4497 = vmatmul.bf16.gmra.mxu0 %v4166
      %v4498 = vpop.f32.mrf.mxu0
      %v4499 = vadd.f32 0.0, %v4498
      %v4500 = vpop.f32.mrf.mxu0
      %v4501 = vadd.f32 0.0, %v4500
      %4502 = vmatmul.bf16.gmra.mxu0 %v4167
      %v4503 = vpop.f32.mrf.mxu0
      %v4504 = vadd.f32 0.0, %v4503
      %v4505 = vpop.f32.mrf.mxu0
      %v4506 = vadd.f32 0.0, %v4505
      %4507 = vmatmul.bf16.gmra.mxu0 %v4168
      %v4508 = vpop.f32.mrf.mxu0
      %v4509 = vadd.f32 0.0, %v4508
      %v4510 = vpop.f32.mrf.mxu0
      %v4511 = vadd.f32 0.0, %v4510
      %4512 = vmatmul.bf16.gmra.mxu0 %v4169
      %v4513 = vpop.f32.mrf.mxu0
      %v4514 = vadd.f32 0.0, %v4513
      %v4515 = vpop.f32.mrf.mxu0
      %v4516 = vadd.f32 0.0, %v4515
      %4517 = vmatmul.bf16.gmra.mxu0 %v4170
      %v4518 = vpop.f32.mrf.mxu0
      %v4519 = vadd.f32 0.0, %v4518
      %v4520 = vpop.f32.mrf.mxu0
      %v4521 = vadd.f32 0.0, %v4520
      %4522 = vmatmul.bf16.gmra.mxu0 %v4171
      %v4523 = vpop.f32.mrf.mxu0
      %v4524 = vadd.f32 0.0, %v4523
      %v4525 = vpop.f32.mrf.mxu0
      %v4526 = vadd.f32 0.0, %v4525
      %4527 = vdwg.mxu0
      %v4528 = vadd.f32 %v4028, %v4182
      %v4529 = vadd.f32 %v4029, %v4271
      %v4530 = vadd.f32 %v4030, %v4360
      %v4531 = vadd.f32 %v4031, %v4449
      %v4532 = vadd.f32 %v4032, %v4184
      %v4533 = vadd.f32 %v4033, %v4273
      %v4534 = vadd.f32 %v4034, %v4362
      %v4535 = vadd.f32 %v4035, %v4451
      %v4536 = vadd.f32 %v4036, %v4187
      %v4537 = vadd.f32 %v4037, %v4276
      %v4538 = vadd.f32 %v4038, %v4365
      %v4539 = vadd.f32 %v4039, %v4454
      %v4540 = vadd.f32 %v4040, %v4189
      %v4541 = vadd.f32 %v4041, %v4278
      %v4542 = vadd.f32 %v4042, %v4367
      %v4543 = vadd.f32 %v4043, %v4456
      %v4544 = vadd.f32 %v4044, %v4192
      %v4545 = vadd.f32 %v4045, %v4281
      %v4546 = vadd.f32 %v4046, %v4370
      %v4547 = vadd.f32 %v4047, %v4459
      %v4548 = vadd.f32 %v4048, %v4194
      %v4549 = vadd.f32 %v4049, %v4283
      %v4550 = vadd.f32 %v4050, %v4372
      %v4551 = vadd.f32 %v4051, %v4461
      %v4552 = vadd.f32 %v4052, %v4197
      %v4553 = vadd.f32 %v4053, %v4286
      %v4554 = vadd.f32 %v4054, %v4375
      %v4555 = vadd.f32 %v4055, %v4464
      %v4556 = vadd.f32 %v4056, %v4199
      %v4557 = vadd.f32 %v4057, %v4288
      %v4558 = vadd.f32 %v4058, %v4377
      %v4559 = vadd.f32 %v4059, %v4466
      %v4560 = vadd.f32 %v4060, %v4202
      %v4561 = vadd.f32 %v4061, %v4291
      %v4562 = vadd.f32 %v4062, %v4380
      %v4563 = vadd.f32 %v4063, %v4469
      %v4564 = vadd.f32 %v4064, %v4204
      %v4565 = vadd.f32 %v4065, %v4293
      %v4566 = vadd.f32 %v4066, %v4382
      %v4567 = vadd.f32 %v4067, %v4471
      %v4568 = vadd.f32 %v4068, %v4207
      %v4569 = vadd.f32 %v4069, %v4296
      %v4570 = vadd.f32 %v4070, %v4385
      %v4571 = vadd.f32 %v4071, %v4474
      %v4572 = vadd.f32 %v4072, %v4209
      %v4573 = vadd.f32 %v4073, %v4298
      %v4574 = vadd.f32 %v4074, %v4387
      %v4575 = vadd.f32 %v4075, %v4476
      %v4576 = vadd.f32 %v4076, %v4212
      %v4577 = vadd.f32 %v4077, %v4301
      %v4578 = vadd.f32 %v4078, %v4390
      %v4579 = vadd.f32 %v4079, %v4479
      %v4580 = vadd.f32 %v4080, %v4214
      %v4581 = vadd.f32 %v4081, %v4303
      %v4582 = vadd.f32 %v4082, %v4392
      %v4583 = vadd.f32 %v4083, %v4481
      %v4584 = vadd.f32 %v4084, %v4217
      %v4585 = vadd.f32 %v4085, %v4306
      %v4586 = vadd.f32 %v4086, %v4395
      %v4587 = vadd.f32 %v4087, %v4484
      %v4588 = vadd.f32 %v4088, %v4219
      %v4589 = vadd.f32 %v4089, %v4308
      %v4590 = vadd.f32 %v4090, %v4397
      %v4591 = vadd.f32 %v4091, %v4486
      %v4592 = vadd.f32 %v4092, %v4222
      %v4593 = vadd.f32 %v4093, %v4311
      %v4594 = vadd.f32 %v4094, %v4400
      %v4595 = vadd.f32 %v4095, %v4489
      %v4596 = vadd.f32 %v4096, %v4224
      %v4597 = vadd.f32 %v4097, %v4313
      %v4598 = vadd.f32 %v4098, %v4402
      %v4599 = vadd.f32 %v4099, %v4491
      %v4600 = vadd.f32 %v4100, %v4227
      %v4601 = vadd.f32 %v4101, %v4316
      %v4602 = vadd.f32 %v4102, %v4405
      %v4603 = vadd.f32 %v4103, %v4494
      %v4604 = vadd.f32 %v4104, %v4229
      %v4605 = vadd.f32 %v4105, %v4318
      %v4606 = vadd.f32 %v4106, %v4407
      %v4607 = vadd.f32 %v4107, %v4496
      %v4608 = vadd.f32 %v4108, %v4232
      %v4609 = vadd.f32 %v4109, %v4321
      %v4610 = vadd.f32 %v4110, %v4410
      %v4611 = vadd.f32 %v4111, %v4499
      %v4612 = vadd.f32 %v4112, %v4234
      %v4613 = vadd.f32 %v4113, %v4323
      %v4614 = vadd.f32 %v4114, %v4412
      %v4615 = vadd.f32 %v4115, %v4501
      %v4616 = vadd.f32 %v4116, %v4237
      %v4617 = vadd.f32 %v4117, %v4326
      %v4618 = vadd.f32 %v4118, %v4415
      %v4619 = vadd.f32 %v4119, %v4504
      %v4620 = vadd.f32 %v4120, %v4239
      %v4621 = vadd.f32 %v4121, %v4328
      %v4622 = vadd.f32 %v4122, %v4417
      %v4623 = vadd.f32 %v4123, %v4506
      %v4624 = vadd.f32 %v4124, %v4242
      %v4625 = vadd.f32 %v4125, %v4331
      %v4626 = vadd.f32 %v4126, %v4420
      %v4627 = vadd.f32 %v4127, %v4509
      %v4628 = vadd.f32 %v4128, %v4244
      %v4629 = vadd.f32 %v4129, %v4333
      %v4630 = vadd.f32 %v4130, %v4422
      %v4631 = vadd.f32 %v4131, %v4511
      %v4632 = vadd.f32 %v4132, %v4247
      %v4633 = vadd.f32 %v4133, %v4336
      %v4634 = vadd.f32 %v4134, %v4425
      %v4635 = vadd.f32 %v4135, %v4514
      %v4636 = vadd.f32 %v4136, %v4249
      %v4637 = vadd.f32 %v4137, %v4338
      %v4638 = vadd.f32 %v4138, %v4427
      %v4639 = vadd.f32 %v4139, %v4516
      %v4640 = vadd.f32 %v4140, %v4252
      %v4641 = vadd.f32 %v4141, %v4341
      %v4642 = vadd.f32 %v4142, %v4430
      %v4643 = vadd.f32 %v4143, %v4519
      %v4644 = vadd.f32 %v4144, %v4254
      %v4645 = vadd.f32 %v4145, %v4343
      %v4646 = vadd.f32 %v4146, %v4432
      %v4647 = vadd.f32 %v4147, %v4521
      %v4648 = vadd.f32 %v4148, %v4257
      %v4649 = vadd.f32 %v4149, %v4346
      %v4650 = vadd.f32 %v4150, %v4435
      %v4651 = vadd.f32 %v4151, %v4524
      %v4652 = vadd.f32 %v4152, %v4259
      %v4653 = vadd.f32 %v4153, %v4348
      %v4654 = vadd.f32 %v4154, %v4437
      %v4655 = vadd.f32 %v4155, %v4526
      %v4656 = vmul.f32 %v4528, 0.5
      %v4657 = vmul.f32 %v4529, 0.5
      %v4658 = vmul.f32 %v4530, 0.5
      %v4659 = vmul.f32 %v4532, 0.5
      %v4660 = vmul.f32 %v4533, 0.5
      %v4661 = vmul.f32 %v4534, 0.5
      %v4662 = vmul.f32 %v4536, 0.5
      %v4663 = vmul.f32 %v4537, 0.5
      %v4664 = vmul.f32 %v4538, 0.5
      %v4665 = vmul.f32 %v4540, 0.5
      %v4666 = vmul.f32 %v4541, 0.5
      %v4667 = vmul.f32 %v4542, 0.5
      %v4668 = vmul.f32 %v4544, 0.5
      %v4669 = vmul.f32 %v4545, 0.5
      %v4670 = vmul.f32 %v4546, 0.5
      %v4671 = vmul.f32 %v4548, 0.5
      %v4672 = vmul.f32 %v4549, 0.5
      %v4673 = vmul.f32 %v4550, 0.5
      %v4674 = vmul.f32 %v4552, 0.5
      %v4675 = vmul.f32 %v4553, 0.5
      %v4676 = vmul.f32 %v4554, 0.5
      %v4677 = vmul.f32 %v4556, 0.5
      %v4678 = vmul.f32 %v4557, 0.5
      %v4679 = vmul.f32 %v4558, 0.5
      %v4680 = vmul.f32 %v4560, 0.5
      %v4681 = vmul.f32 %v4561, 0.5
      %v4682 = vmul.f32 %v4562, 0.5
      %v4683 = vmul.f32 %v4564, 0.5
      %v4684 = vmul.f32 %v4565, 0.5
      %v4685 = vmul.f32 %v4566, 0.5
      %v4686 = vmul.f32 %v4568, 0.5
      %v4687 = vmul.f32 %v4569, 0.5
      %v4688 = vmul.f32 %v4570, 0.5
      %v4689 = vmul.f32 %v4572, 0.5
      %v4690 = vmul.f32 %v4573, 0.5
      %v4691 = vmul.f32 %v4574, 0.5
      %v4692 = vmul.f32 %v4576, 0.5
      %v4693 = vmul.f32 %v4577, 0.5
      %v4694 = vmul.f32 %v4578, 0.5
      %v4695 = vmul.f32 %v4580, 0.5
      %v4696 = vmul.f32 %v4581, 0.5
      %v4697 = vmul.f32 %v4582, 0.5
      %v4698 = vmul.f32 %v4584, 0.5
      %v4699 = vmul.f32 %v4585, 0.5
      %v4700 = vmul.f32 %v4586, 0.5
      %v4701 = vmul.f32 %v4588, 0.5
      %v4702 = vmul.f32 %v4589, 0.5
      %v4703 = vmul.f32 %v4590, 0.5
      %v4704 = vmul.f32 %v4592, 0.5
      %v4705 = vmul.f32 %v4593, 0.5
      %v4706 = vmul.f32 %v4594, 0.5
      %v4707 = vmul.f32 %v4596, 0.5
      %v4708 = vmul.f32 %v4597, 0.5
      %v4709 = vmul.f32 %v4598, 0.5
      %v4710 = vmul.f32 %v4600, 0.5
      %v4711 = vmul.f32 %v4601, 0.5
      %v4712 = vmul.f32 %v4602, 0.5
      %v4713 = vmul.f32 %v4604, 0.5
      %v4714 = vmul.f32 %v4605, 0.5
      %v4715 = vmul.f32 %v4606, 0.5
      %v4716 = vmul.f32 %v4608, 0.5
      %v4717 = vmul.f32 %v4609, 0.5
      %v4718 = vmul.f32 %v4610, 0.5
      %v4719 = vmul.f32 %v4612, 0.5
      %v4720 = vmul.f32 %v4613, 0.5
      %v4721 = vmul.f32 %v4614, 0.5
      %v4722 = vmul.f32 %v4616, 0.5
      %v4723 = vmul.f32 %v4617, 0.5
      %v4724 = vmul.f32 %v4618, 0.5
      %v4725 = vmul.f32 %v4620, 0.5
      %v4726 = vmul.f32 %v4621, 0.5
      %v4727 = vmul.f32 %v4622, 0.5
      %v4728 = vmul.f32 %v4624, 0.5
      %v4729 = vmul.f32 %v4625, 0.5
      %v4730 = vmul.f32 %v4626, 0.5
      %v4731 = vmul.f32 %v4628, 0.5
      %v4732 = vmul.f32 %v4629, 0.5
      %v4733 = vmul.f32 %v4630, 0.5
      %v4734 = vmul.f32 %v4632, 0.5
      %v4735 = vmul.f32 %v4633, 0.5
      %v4736 = vmul.f32 %v4634, 0.5
      %v4737 = vmul.f32 %v4636, 0.5
      %v4738 = vmul.f32 %v4637, 0.5
      %v4739 = vmul.f32 %v4638, 0.5
      %v4740 = vmul.f32 %v4640, 0.5
      %v4741 = vmul.f32 %v4641, 0.5
      %v4742 = vmul.f32 %v4642, 0.5
      %v4743 = vmul.f32 %v4644, 0.5
      %v4744 = vmul.f32 %v4645, 0.5
      %v4745 = vmul.f32 %v4646, 0.5
      %v4746 = vmul.f32 %v4648, 0.5
      %v4747 = vmul.f32 %v4649, 0.5
      %v4748 = vmul.f32 %v4650, 0.5
      %v4749 = vmul.f32 %v4652, 0.5
      %v4750 = vmul.f32 %v4653, 0.5
      %v4751 = vmul.f32 %v4654, 0.5
      %v4752 = vtanh.pop %v4656
      %v4753 = vtanh.pop %v4657
      %v4754 = vtanh.pop %v4658
      %v4755 = vtanh.pop %v4659
      %v4756 = vtanh.pop %v4660
      %v4757 = vtanh.pop %v4661
      %v4758 = vtanh.pop %v4662
      %v4759 = vtanh.pop %v4663
      %v4760 = vtanh.pop %v4664
      %v4761 = vtanh.pop %v4665
      %v4762 = vtanh.pop %v4666
      %v4763 = vtanh.pop %v4667
      %v4764 = vtanh.pop %v4668
      %v4765 = vtanh.pop %v4669
      %v4766 = vtanh.pop %v4670
      %v4767 = vtanh.pop %v4671
      %v4768 = vtanh.pop %v4672
      %v4769 = vtanh.pop %v4673
      %v4770 = vtanh.pop %v4674
      %v4771 = vtanh.pop %v4675
      %v4772 = vtanh.pop %v4676
      %v4773 = vtanh.pop %v4677
      %v4774 = vtanh.pop %v4678
      %v4775 = vtanh.pop %v4679
      %v4776 = vtanh.pop %v4680
      %v4777 = vtanh.pop %v4681
      %v4778 = vtanh.pop %v4682
      %v4779 = vtanh.pop %v4683
      %v4780 = vtanh.pop %v4684
      %v4781 = vtanh.pop %v4685
      %v4782 = vtanh.pop %v4686
      %v4783 = vtanh.pop %v4687
      %v4784 = vtanh.pop %v4688
      %v4785 = vtanh.pop %v4689
      %v4786 = vtanh.pop %v4690
      %v4787 = vtanh.pop %v4691
      %v4788 = vtanh.pop %v4692
      %v4789 = vtanh.pop %v4693
      %v4790 = vtanh.pop %v4694
      %v4791 = vtanh.pop %v4695
      %v4792 = vtanh.pop %v4696
      %v4793 = vtanh.pop %v4697
      %v4794 = vtanh.pop %v4698
      %v4795 = vtanh.pop %v4699
      %v4796 = vtanh.pop %v4700
      %v4797 = vtanh.pop %v4701
      %v4798 = vtanh.pop %v4702
      %v4799 = vtanh.pop %v4703
      %v4800 = vtanh.pop %v4704
      %v4801 = vtanh.pop %v4705
      %v4802 = vtanh.pop %v4706
      %v4803 = vtanh.pop %v4707
      %v4804 = vtanh.pop %v4708
      %v4805 = vtanh.pop %v4709
      %v4806 = vtanh.pop %v4710
      %v4807 = vtanh.pop %v4711
      %v4808 = vtanh.pop %v4712
      %v4809 = vtanh.pop %v4713
      %v4810 = vtanh.pop %v4714
      %v4811 = vtanh.pop %v4715
      %v4812 = vtanh.pop %v4716
      %v4813 = vtanh.pop %v4717
      %v4814 = vtanh.pop %v4718
      %v4815 = vtanh.pop %v4719
      %v4816 = vtanh.pop %v4720
      %v4817 = vtanh.pop %v4721
      %v4818 = vtanh.pop %v4722
      %v4819 = vtanh.pop %v4723
      %v4820 = vtanh.pop %v4724
      %v4821 = vtanh.pop %v4725
      %v4822 = vtanh.pop %v4726
      %v4823 = vtanh.pop %v4727
      %v4824 = vtanh.pop %v4728
      %v4825 = vtanh.pop %v4729
      %v4826 = vtanh.pop %v4730
      %v4827 = vtanh.pop %v4731
      %v4828 = vtanh.pop %v4732
      %v4829 = vtanh.pop %v4733
      %v4830 = vtanh.pop %v4734
      %v4831 = vtanh.pop %v4735
      %v4832 = vtanh.pop %v4736
      %v4833 = vtanh.pop %v4737
      %v4834 = vtanh.pop %v4738
      %v4835 = vtanh.pop %v4739
      %v4836 = vtanh.pop %v4740
      %v4837 = vtanh.pop %v4741
      %v4838 = vtanh.pop %v4742
      %v4839 = vtanh.pop %v4743
      %v4840 = vtanh.pop %v4744
      %v4841 = vtanh.pop %v4745
      %v4842 = vtanh.pop %v4746
      %v4843 = vtanh.pop %v4747
      %v4844 = vtanh.pop %v4748
      %v4845 = vtanh.pop %v4749
      %v4846 = vtanh.pop %v4750
      %v4847 = vtanh.pop %v4751
      %v4848 = vmul.f32 %v4752, 0.5
      %v4849 = vmul.f32 %v4753, 0.5
      %v4850 = vmul.f32 %v4754, 0.5
      %v4851 = vmul.f32 %v4755, 0.5
      %v4852 = vmul.f32 %v4756, 0.5
      %v4853 = vmul.f32 %v4757, 0.5
      %v4854 = vmul.f32 %v4758, 0.5
      %v4855 = vmul.f32 %v4759, 0.5
      %v4856 = vmul.f32 %v4760, 0.5
      %v4857 = vmul.f32 %v4761, 0.5
      %v4858 = vmul.f32 %v4762, 0.5
      %v4859 = vmul.f32 %v4763, 0.5
      %v4860 = vmul.f32 %v4764, 0.5
      %v4861 = vmul.f32 %v4765, 0.5
      %v4862 = vmul.f32 %v4766, 0.5
      %v4863 = vmul.f32 %v4767, 0.5
      %v4864 = vmul.f32 %v4768, 0.5
      %v4865 = vmul.f32 %v4769, 0.5
      %v4866 = vmul.f32 %v4770, 0.5
      %v4867 = vmul.f32 %v4771, 0.5
      %v4868 = vmul.f32 %v4772, 0.5
      %v4869 = vmul.f32 %v4773, 0.5
      %v4870 = vmul.f32 %v4774, 0.5
      %v4871 = vmul.f32 %v4775, 0.5
      %v4872 = vmul.f32 %v4776, 0.5
      %v4873 = vmul.f32 %v4777, 0.5
      %v4874 = vmul.f32 %v4778, 0.5
      %v4875 = vmul.f32 %v4779, 0.5
      %v4876 = vmul.f32 %v4780, 0.5
      %v4877 = vmul.f32 %v4781, 0.5
      %v4878 = vmul.f32 %v4782, 0.5
      %v4879 = vmul.f32 %v4783, 0.5
      %v4880 = vmul.f32 %v4784, 0.5
      %v4881 = vmul.f32 %v4785, 0.5
      %v4882 = vmul.f32 %v4786, 0.5
      %v4883 = vmul.f32 %v4787, 0.5
      %v4884 = vmul.f32 %v4788, 0.5
      %v4885 = vmul.f32 %v4789, 0.5
      %v4886 = vmul.f32 %v4790, 0.5
      %v4887 = vmul.f32 %v4791, 0.5
      %v4888 = vmul.f32 %v4792, 0.5
      %v4889 = vmul.f32 %v4793, 0.5
      %v4890 = vmul.f32 %v4794, 0.5
      %v4891 = vmul.f32 %v4795, 0.5
      %v4892 = vmul.f32 %v4796, 0.5
      %v4893 = vmul.f32 %v4797, 0.5
      %v4894 = vmul.f32 %v4798, 0.5
      %v4895 = vmul.f32 %v4799, 0.5
      %v4896 = vmul.f32 %v4800, 0.5
      %v4897 = vmul.f32 %v4801, 0.5
      %v4898 = vmul.f32 %v4802, 0.5
      %v4899 = vmul.f32 %v4803, 0.5
      %v4900 = vmul.f32 %v4804, 0.5
      %v4901 = vmul.f32 %v4805, 0.5
      %v4902 = vmul.f32 %v4806, 0.5
      %v4903 = vmul.f32 %v4807, 0.5
      %v4904 = vmul.f32 %v4808, 0.5
      %v4905 = vmul.f32 %v4809, 0.5
      %v4906 = vmul.f32 %v4810, 0.5
      %v4907 = vmul.f32 %v4811, 0.5
      %v4908 = vmul.f32 %v4812, 0.5
      %v4909 = vmul.f32 %v4813, 0.5
      %v4910 = vmul.f32 %v4814, 0.5
      %v4911 = vmul.f32 %v4815, 0.5
      %v4912 = vmul.f32 %v4816, 0.5
      %v4913 = vmul.f32 %v4817, 0.5
      %v4914 = vmul.f32 %v4818, 0.5
      %v4915 = vmul.f32 %v4819, 0.5
      %v4916 = vmul.f32 %v4820, 0.5
      %v4917 = vmul.f32 %v4821, 0.5
      %v4918 = vmul.f32 %v4822, 0.5
      %v4919 = vmul.f32 %v4823, 0.5
      %v4920 = vmul.f32 %v4824, 0.5
      %v4921 = vmul.f32 %v4825, 0.5
      %v4922 = vmul.f32 %v4826, 0.5
      %v4923 = vmul.f32 %v4827, 0.5
      %v4924 = vmul.f32 %v4828, 0.5
      %v4925 = vmul.f32 %v4829, 0.5
      %v4926 = vmul.f32 %v4830, 0.5
      %v4927 = vmul.f32 %v4831, 0.5
      %v4928 = vmul.f32 %v4832, 0.5
      %v4929 = vmul.f32 %v4833, 0.5
      %v4930 = vmul.f32 %v4834, 0.5
      %v4931 = vmul.f32 %v4835, 0.5
      %v4932 = vmul.f32 %v4836, 0.5
      %v4933 = vmul.f32 %v4837, 0.5
      %v4934 = vmul.f32 %v4838, 0.5
      %v4935 = vmul.f32 %v4839, 0.5
      %v4936 = vmul.f32 %v4840, 0.5
      %v4937 = vmul.f32 %v4841, 0.5
      %v4938 = vmul.f32 %v4842, 0.5
      %v4939 = vmul.f32 %v4843, 0.5
      %v4940 = vmul.f32 %v4844, 0.5
      %v4941 = vmul.f32 %v4845, 0.5
      %v4942 = vmul.f32 %v4846, 0.5
      %v4943 = vmul.f32 %v4847, 0.5
      %v4944 = vadd.f32 %v4848, 0.5
      %v4945 = vadd.f32 %v4849, 0.5
      %v4946 = vadd.f32 %v4850, 0.5
      %v4947 = vadd.f32 %v4851, 0.5
      %v4948 = vadd.f32 %v4852, 0.5
      %v4949 = vadd.f32 %v4853, 0.5
      %v4950 = vadd.f32 %v4854, 0.5
      %v4951 = vadd.f32 %v4855, 0.5
      %v4952 = vadd.f32 %v4856, 0.5
      %v4953 = vadd.f32 %v4857, 0.5
      %v4954 = vadd.f32 %v4858, 0.5
      %v4955 = vadd.f32 %v4859, 0.5
      %v4956 = vadd.f32 %v4860, 0.5
      %v4957 = vadd.f32 %v4861, 0.5
      %v4958 = vadd.f32 %v4862, 0.5
      %v4959 = vadd.f32 %v4863, 0.5
      %v4960 = vadd.f32 %v4864, 0.5
      %v4961 = vadd.f32 %v4865, 0.5
      %v4962 = vadd.f32 %v4866, 0.5
      %v4963 = vadd.f32 %v4867, 0.5
      %v4964 = vadd.f32 %v4868, 0.5
      %v4965 = vadd.f32 %v4869, 0.5
      %v4966 = vadd.f32 %v4870, 0.5
      %v4967 = vadd.f32 %v4871, 0.5
      %v4968 = vadd.f32 %v4872, 0.5
      %v4969 = vadd.f32 %v4873, 0.5
      %v4970 = vadd.f32 %v4874, 0.5
      %v4971 = vadd.f32 %v4875, 0.5
      %v4972 = vadd.f32 %v4876, 0.5
      %v4973 = vadd.f32 %v4877, 0.5
      %v4974 = vadd.f32 %v4878, 0.5
      %v4975 = vadd.f32 %v4879, 0.5
      %v4976 = vadd.f32 %v4880, 0.5
      %v4977 = vadd.f32 %v4881, 0.5
      %v4978 = vadd.f32 %v4882, 0.5
      %v4979 = vadd.f32 %v4883, 0.5
      %v4980 = vadd.f32 %v4884, 0.5
      %v4981 = vadd.f32 %v4885, 0.5
      %v4982 = vadd.f32 %v4886, 0.5
      %v4983 = vadd.f32 %v4887, 0.5
      %v4984 = vadd.f32 %v4888, 0.5
      %v4985 = vadd.f32 %v4889, 0.5
      %v4986 = vadd.f32 %v4890, 0.5
      %v4987 = vadd.f32 %v4891, 0.5
      %v4988 = vadd.f32 %v4892, 0.5
      %v4989 = vadd.f32 %v4893, 0.5
      %v4990 = vadd.f32 %v4894, 0.5
      %v4991 = vadd.f32 %v4895, 0.5
      %v4992 = vadd.f32 %v4896, 0.5
      %v4993 = vadd.f32 %v4897, 0.5
      %v4994 = vadd.f32 %v4898, 0.5
      %v4995 = vadd.f32 %v4899, 0.5
      %v4996 = vadd.f32 %v4900, 0.5
      %v4997 = vadd.f32 %v4901, 0.5
      %v4998 = vadd.f32 %v4902, 0.5
      %v4999 = vadd.f32 %v4903, 0.5
      %v5000 = vadd.f32 %v4904, 0.5
      %v5001 = vadd.f32 %v4905, 0.5
      %v5002 = vadd.f32 %v4906, 0.5
      %v5003 = vadd.f32 %v4907, 0.5
      %v5004 = vadd.f32 %v4908, 0.5
      %v5005 = vadd.f32 %v4909, 0.5
      %v5006 = vadd.f32 %v4910, 0.5
      %v5007 = vadd.f32 %v4911, 0.5
      %v5008 = vadd.f32 %v4912, 0.5
      %v5009 = vadd.f32 %v4913, 0.5
      %v5010 = vadd.f32 %v4914, 0.5
      %v5011 = vadd.f32 %v4915, 0.5
      %v5012 = vadd.f32 %v4916, 0.5
      %v5013 = vadd.f32 %v4917, 0.5
      %v5014 = vadd.f32 %v4918, 0.5
      %v5015 = vadd.f32 %v4919, 0.5
      %v5016 = vadd.f32 %v4920, 0.5
      %v5017 = vadd.f32 %v4921, 0.5
      %v5018 = vadd.f32 %v4922, 0.5
      %v5019 = vadd.f32 %v4923, 0.5
      %v5020 = vadd.f32 %v4924, 0.5
      %v5021 = vadd.f32 %v4925, 0.5
      %v5022 = vadd.f32 %v4926, 0.5
      %v5023 = vadd.f32 %v4927, 0.5
      %v5024 = vadd.f32 %v4928, 0.5
      %v5025 = vadd.f32 %v4929, 0.5
      %v5026 = vadd.f32 %v4930, 0.5
      %v5027 = vadd.f32 %v4931, 0.5
      %v5028 = vadd.f32 %v4932, 0.5
      %v5029 = vadd.f32 %v4933, 0.5
      %v5030 = vadd.f32 %v4934, 0.5
      %v5031 = vadd.f32 %v4935, 0.5
      %v5032 = vadd.f32 %v4936, 0.5
      %v5033 = vadd.f32 %v4937, 0.5
      %v5034 = vadd.f32 %v4938, 0.5
      %v5035 = vadd.f32 %v4939, 0.5
      %v5036 = vadd.f32 %v4940, 0.5
      %v5037 = vadd.f32 %v4941, 0.5
      %v5038 = vadd.f32 %v4942, 0.5
      %v5039 = vadd.f32 %v4943, 0.5
      %v5040 = vtanh.pop %v4531
      %v5041 = vtanh.pop %v4535
      %v5042 = vtanh.pop %v4539
      %v5043 = vtanh.pop %v4543
      %v5044 = vtanh.pop %v4547
      %v5045 = vtanh.pop %v4551
      %v5046 = vtanh.pop %v4555
      %v5047 = vtanh.pop %v4559
      %v5048 = vtanh.pop %v4563
      %v5049 = vtanh.pop %v4567
      %v5050 = vtanh.pop %v4571
      %v5051 = vtanh.pop %v4575
      %v5052 = vtanh.pop %v4579
      %v5053 = vtanh.pop %v4583
      %v5054 = vtanh.pop %v4587
      %v5055 = vtanh.pop %v4591
      %v5056 = vtanh.pop %v4595
      %v5057 = vtanh.pop %v4599
      %v5058 = vtanh.pop %v4603
      %v5059 = vtanh.pop %v4607
      %v5060 = vtanh.pop %v4611
      %v5061 = vtanh.pop %v4615
      %v5062 = vtanh.pop %v4619
      %v5063 = vtanh.pop %v4623
      %v5064 = vtanh.pop %v4627
      %v5065 = vtanh.pop %v4631
      %v5066 = vtanh.pop %v4635
      %v5067 = vtanh.pop %v4639
      %v5068 = vtanh.pop %v4643
      %v5069 = vtanh.pop %v4647
      %v5070 = vtanh.pop %v4651
      %v5071 = vtanh.pop %v4655
      %v5072 = vmul.f32 %v4945, %v3932
      %v5073 = vmul.f32 %v4948, %v3933
      %v5074 = vmul.f32 %v4951, %v3934
      %v5075 = vmul.f32 %v4954, %v3935
      %v5076 = vmul.f32 %v4957, %v3936
      %v5077 = vmul.f32 %v4960, %v3937
      %v5078 = vmul.f32 %v4963, %v3938
      %v5079 = vmul.f32 %v4966, %v3939
      %v5080 = vmul.f32 %v4969, %v3940
      %v5081 = vmul.f32 %v4972, %v3941
      %v5082 = vmul.f32 %v4975, %v3942
      %v5083 = vmul.f32 %v4978, %v3943
      %v5084 = vmul.f32 %v4981, %v3944
      %v5085 = vmul.f32 %v4984, %v3945
      %v5086 = vmul.f32 %v4987, %v3946
      %v5087 = vmul.f32 %v4990, %v3947
      %v5088 = vmul.f32 %v4993, %v3948
      %v5089 = vmul.f32 %v4996, %v3949
      %v5090 = vmul.f32 %v4999, %v3950
      %v5091 = vmul.f32 %v5002, %v3951
      %v5092 = vmul.f32 %v5005, %v3952
      %v5093 = vmul.f32 %v5008, %v3953
      %v5094 = vmul.f32 %v5011, %v3954
      %v5095 = vmul.f32 %v5014, %v3955
      %v5096 = vmul.f32 %v5017, %v3956
      %v5097 = vmul.f32 %v5020, %v3957
      %v5098 = vmul.f32 %v5023, %v3958
      %v5099 = vmul.f32 %v5026, %v3959
      %v5100 = vmul.f32 %v5029, %v3960
      %v5101 = vmul.f32 %v5032, %v3961
      %v5102 = vmul.f32 %v5035, %v3962
      %v5103 = vmul.f32 %v5038, %v3963
      %v5104 = vmul.f32 %v4944, %v5040
      %v5105 = vmul.f32 %v4947, %v5041
      %v5106 = vmul.f32 %v4950, %v5042
      %v5107 = vmul.f32 %v4953, %v5043
      %v5108 = vmul.f32 %v4956, %v5044
      %v5109 = vmul.f32 %v4959, %v5045
      %v5110 = vmul.f32 %v4962, %v5046
      %v5111 = vmul.f32 %v4965, %v5047
      %v5112 = vmul.f32 %v4968, %v5048
      %v5113 = vmul.f32 %v4971, %v5049
      %v5114 = vmul.f32 %v4974, %v5050
      %v5115 = vmul.f32 %v4977, %v5051
      %v5116 = vmul.f32 %v4980, %v5052
      %v5117 = vmul.f32 %v4983, %v5053
      %v5118 = vmul.f32 %v4986, %v5054
      %v5119 = vmul.f32 %v4989, %v5055
      %v5120 = vmul.f32 %v4992, %v5056
      %v5121 = vmul.f32 %v4995, %v5057
      %v5122 = vmul.f32 %v4998, %v5058
      %v5123 = vmul.f32 %v5001, %v5059
      %v5124 = vmul.f32 %v5004, %v5060
      %v5125 = vmul.f32 %v5007, %v5061
      %v5126 = vmul.f32 %v5010, %v5062
      %v5127 = vmul.f32 %v5013, %v5063
      %v5128 = vmul.f32 %v5016, %v5064
      %v5129 = vmul.f32 %v5019, %v5065
      %v5130 = vmul.f32 %v5022, %v5066
      %v5131 = vmul.f32 %v5025, %v5067
      %v5132 = vmul.f32 %v5028, %v5068
      %v5133 = vmul.f32 %v5031, %v5069
      %v5134 = vmul.f32 %v5034, %v5070
      %v5135 = vmul.f32 %v5037, %v5071
      %v5136 = vadd.f32 %v5072, %v5104
      %v5137 = vadd.f32 %v5073, %v5105
      %v5138 = vadd.f32 %v5074, %v5106
      %v5139 = vadd.f32 %v5075, %v5107
      %v5140 = vadd.f32 %v5076, %v5108
      %v5141 = vadd.f32 %v5077, %v5109
      %v5142 = vadd.f32 %v5078, %v5110
      %v5143 = vadd.f32 %v5079, %v5111
      %v5144 = vadd.f32 %v5080, %v5112
      %v5145 = vadd.f32 %v5081, %v5113
      %v5146 = vadd.f32 %v5082, %v5114
      %v5147 = vadd.f32 %v5083, %v5115
      %v5148 = vadd.f32 %v5084, %v5116
      %v5149 = vadd.f32 %v5085, %v5117
      %v5150 = vadd.f32 %v5086, %v5118
      %v5151 = vadd.f32 %v5087, %v5119
      %v5152 = vadd.f32 %v5088, %v5120
      %v5153 = vadd.f32 %v5089, %v5121
      %v5154 = vadd.f32 %v5090, %v5122
      %v5155 = vadd.f32 %v5091, %v5123
      %v5156 = vadd.f32 %v5092, %v5124
      %v5157 = vadd.f32 %v5093, %v5125
      %v5158 = vadd.f32 %v5094, %v5126
      %v5159 = vadd.f32 %v5095, %v5127
      %v5160 = vadd.f32 %v5096, %v5128
      %v5161 = vadd.f32 %v5097, %v5129
      %v5162 = vadd.f32 %v5098, %v5130
      %v5163 = vadd.f32 %v5099, %v5131
      %v5164 = vadd.f32 %v5100, %v5132
      %v5165 = vadd.f32 %v5101, %v5133
      %v5166 = vadd.f32 %v5102, %v5134
      %v5167 = vadd.f32 %v5103, %v5135
      %v5168 = vtanh.pop %v5136
      %v5169 = vtanh.pop %v5137
      %v5170 = vtanh.pop %v5138
      %v5171 = vtanh.pop %v5139
      %v5172 = vtanh.pop %v5140
      %v5173 = vtanh.pop %v5141
      %v5174 = vtanh.pop %v5142
      %v5175 = vtanh.pop %v5143
      %v5176 = vtanh.pop %v5144
      %v5177 = vtanh.pop %v5145
      %v5178 = vtanh.pop %v5146
      %v5179 = vtanh.pop %v5147
      %v5180 = vtanh.pop %v5148
      %v5181 = vtanh.pop %v5149
      %v5182 = vtanh.pop %v5150
      %v5183 = vtanh.pop %v5151
      %v5184 = vtanh.pop %v5152
      %v5185 = vtanh.pop %v5153
      %v5186 = vtanh.pop %v5154
      %v5187 = vtanh.pop %v5155
      %v5188 = vtanh.pop %v5156
      %v5189 = vtanh.pop %v5157
      %v5190 = vtanh.pop %v5158
      %v5191 = vtanh.pop %v5159
      %v5192 = vtanh.pop %v5160
      %v5193 = vtanh.pop %v5161
      %v5194 = vtanh.pop %v5162
      %v5195 = vtanh.pop %v5163
      %v5196 = vtanh.pop %v5164
      %v5197 = vtanh.pop %v5165
      %v5198 = vtanh.pop %v5166
      %v5199 = vtanh.pop %v5167
      %v5200 = vmul.f32 %v4946, %v5168
      %v5201 = vmul.f32 %v4949, %v5169
      %v5202 = vmul.f32 %v4952, %v5170
      %v5203 = vmul.f32 %v4955, %v5171
      %v5204 = vmul.f32 %v4958, %v5172
      %v5205 = vmul.f32 %v4961, %v5173
      %v5206 = vmul.f32 %v4964, %v5174
      %v5207 = vmul.f32 %v4967, %v5175
      %v5208 = vmul.f32 %v4970, %v5176
      %v5209 = vmul.f32 %v4973, %v5177
      %v5210 = vmul.f32 %v4976, %v5178
      %v5211 = vmul.f32 %v4979, %v5179
      %v5212 = vmul.f32 %v4982, %v5180
      %v5213 = vmul.f32 %v4985, %v5181
      %v5214 = vmul.f32 %v4988, %v5182
      %v5215 = vmul.f32 %v4991, %v5183
      %v5216 = vmul.f32 %v4994, %v5184
      %v5217 = vmul.f32 %v4997, %v5185
      %v5218 = vmul.f32 %v5000, %v5186
      %v5219 = vmul.f32 %v5003, %v5187
      %v5220 = vmul.f32 %v5006, %v5188
      %v5221 = vmul.f32 %v5009, %v5189
      %v5222 = vmul.f32 %v5012, %v5190
      %v5223 = vmul.f32 %v5015, %v5191
      %v5224 = vmul.f32 %v5018, %v5192
      %v5225 = vmul.f32 %v5021, %v5193
      %v5226 = vmul.f32 %v5024, %v5194
      %v5227 = vmul.f32 %v5027, %v5195
      %v5228 = vmul.f32 %v5030, %v5196
      %v5229 = vmul.f32 %v5033, %v5197
      %v5230 = vmul.f32 %v5036, %v5198
      %v5231 = vmul.f32 %v5039, %v5199
      %v5232 = vld [vmem:[#allocation3 + $0x800] sm:$0xff]
      %v5233 = vld [vmem:[#allocation3 + $0x808] sm:$0xff]
      %v5234 = vld [vmem:[#allocation3 + $0x810] sm:$0xff]
      %v5235 = vld [vmem:[#allocation3 + $0x818] sm:$0xff]
      %v5236 = vld [vmem:[#allocation3 + $0x820] sm:$0xff]
      %v5237 = vld [vmem:[#allocation3 + $0x828] sm:$0xff]
      %v5238 = vld [vmem:[#allocation3 + $0x830] sm:$0xff]
      %v5239 = vld [vmem:[#allocation3 + $0x838] sm:$0xff]
      %v5240 = vld [vmem:[#allocation3 + $0x840] sm:$0xff]
      %v5241 = vld [vmem:[#allocation3 + $0x848] sm:$0xff]
      %v5242 = vld [vmem:[#allocation3 + $0x850] sm:$0xff]
      %v5243 = vld [vmem:[#allocation3 + $0x858] sm:$0xff]
      %v5244 = vld [vmem:[#allocation3 + $0x860] sm:$0xff]
      %v5245 = vld [vmem:[#allocation3 + $0x868] sm:$0xff]
      %v5246 = vld [vmem:[#allocation3 + $0x870] sm:$0xff]
      %v5247 = vld [vmem:[#allocation3 + $0x878] sm:$0xff]
      %v5248 = vld [vmem:[#allocation3 + $0x880] sm:$0xff]
      %v5249 = vld [vmem:[#allocation3 + $0x888] sm:$0xff]
      %v5250 = vld [vmem:[#allocation3 + $0x890] sm:$0xff]
      %v5251 = vld [vmem:[#allocation3 + $0x898] sm:$0xff]
      %v5252 = vld [vmem:[#allocation3 + $0x8a0] sm:$0xff]
      %v5253 = vld [vmem:[#allocation3 + $0x8a8] sm:$0xff]
      %v5254 = vld [vmem:[#allocation3 + $0x8b0] sm:$0xff]
      %v5255 = vld [vmem:[#allocation3 + $0x8b8] sm:$0xff]
      %v5256 = vld [vmem:[#allocation3 + $0x8c0] sm:$0xff]
      %v5257 = vld [vmem:[#allocation3 + $0x8c8] sm:$0xff]
      %v5258 = vld [vmem:[#allocation3 + $0x8d0] sm:$0xff]
      %v5259 = vld [vmem:[#allocation3 + $0x8d8] sm:$0xff]
      %v5260 = vld [vmem:[#allocation3 + $0x8e0] sm:$0xff]
      %v5261 = vld [vmem:[#allocation3 + $0x8e8] sm:$0xff]
      %v5262 = vld [vmem:[#allocation3 + $0x8f0] sm:$0xff]
      %v5263 = vld [vmem:[#allocation3 + $0x8f8] sm:$0xff]
      %v5264 = vld [vmem:[#allocation3 + $0x900] sm:$0xff]
      %v5265 = vld [vmem:[#allocation3 + $0x908] sm:$0xff]
      %v5266 = vld [vmem:[#allocation3 + $0x910] sm:$0xff]
      %v5267 = vld [vmem:[#allocation3 + $0x918] sm:$0xff]
      %v5268 = vld [vmem:[#allocation3 + $0x920] sm:$0xff]
      %v5269 = vld [vmem:[#allocation3 + $0x928] sm:$0xff]
      %v5270 = vld [vmem:[#allocation3 + $0x930] sm:$0xff]
      %v5271 = vld [vmem:[#allocation3 + $0x938] sm:$0xff]
      %v5272 = vld [vmem:[#allocation3 + $0x940] sm:$0xff]
      %v5273 = vld [vmem:[#allocation3 + $0x948] sm:$0xff]
      %v5274 = vld [vmem:[#allocation3 + $0x950] sm:$0xff]
      %v5275 = vld [vmem:[#allocation3 + $0x958] sm:$0xff]
      %v5276 = vld [vmem:[#allocation3 + $0x960] sm:$0xff]
      %v5277 = vld [vmem:[#allocation3 + $0x968] sm:$0xff]
      %v5278 = vld [vmem:[#allocation3 + $0x970] sm:$0xff]
      %v5279 = vld [vmem:[#allocation3 + $0x978] sm:$0xff]
      %v5280 = vld [vmem:[#allocation3 + $0x980] sm:$0xff]
      %v5281 = vld [vmem:[#allocation3 + $0x988] sm:$0xff]
      %v5282 = vld [vmem:[#allocation3 + $0x990] sm:$0xff]
      %v5283 = vld [vmem:[#allocation3 + $0x998] sm:$0xff]
      %v5284 = vld [vmem:[#allocation3 + $0x9a0] sm:$0xff]
      %v5285 = vld [vmem:[#allocation3 + $0x9a8] sm:$0xff]
      %v5286 = vld [vmem:[#allocation3 + $0x9b0] sm:$0xff]
      %v5287 = vld [vmem:[#allocation3 + $0x9b8] sm:$0xff]
      %v5288 = vld [vmem:[#allocation3 + $0x9c0] sm:$0xff]
      %v5289 = vld [vmem:[#allocation3 + $0x9c8] sm:$0xff]
      %v5290 = vld [vmem:[#allocation3 + $0x9d0] sm:$0xff]
      %v5291 = vld [vmem:[#allocation3 + $0x9d8] sm:$0xff]
      %v5292 = vld [vmem:[#allocation3 + $0x9e0] sm:$0xff]
      %v5293 = vld [vmem:[#allocation3 + $0x9e8] sm:$0xff]
      %v5294 = vld [vmem:[#allocation3 + $0x9f0] sm:$0xff]
      %v5295 = vld [vmem:[#allocation3 + $0x9f8] sm:$0xff]
      %v5296 = vld [vmem:[#allocation3 + $0xa00] sm:$0xff]
      %v5297 = vld [vmem:[#allocation3 + $0xa08] sm:$0xff]
      %v5298 = vld [vmem:[#allocation3 + $0xa10] sm:$0xff]
      %v5299 = vld [vmem:[#allocation3 + $0xa18] sm:$0xff]
      %v5300 = vld [vmem:[#allocation3 + $0xa20] sm:$0xff]
      %v5301 = vld [vmem:[#allocation3 + $0xa28] sm:$0xff]
      %v5302 = vld [vmem:[#allocation3 + $0xa30] sm:$0xff]
      %v5303 = vld [vmem:[#allocation3 + $0xa38] sm:$0xff]
      %v5304 = vld [vmem:[#allocation3 + $0xa40] sm:$0xff]
      %v5305 = vld [vmem:[#allocation3 + $0xa48] sm:$0xff]
      %v5306 = vld [vmem:[#allocation3 + $0xa50] sm:$0xff]
      %v5307 = vld [vmem:[#allocation3 + $0xa58] sm:$0xff]
      %v5308 = vld [vmem:[#allocation3 + $0xa60] sm:$0xff]
      %v5309 = vld [vmem:[#allocation3 + $0xa68] sm:$0xff]
      %v5310 = vld [vmem:[#allocation3 + $0xa70] sm:$0xff]
      %v5311 = vld [vmem:[#allocation3 + $0xa78] sm:$0xff]
      %v5312 = vld [vmem:[#allocation3 + $0xa80] sm:$0xff]
      %v5313 = vld [vmem:[#allocation3 + $0xa88] sm:$0xff]
      %v5314 = vld [vmem:[#allocation3 + $0xa90] sm:$0xff]
      %v5315 = vld [vmem:[#allocation3 + $0xa98] sm:$0xff]
      %v5316 = vld [vmem:[#allocation3 + $0xaa0] sm:$0xff]
      %v5317 = vld [vmem:[#allocation3 + $0xaa8] sm:$0xff]
      %v5318 = vld [vmem:[#allocation3 + $0xab0] sm:$0xff]
      %v5319 = vld [vmem:[#allocation3 + $0xab8] sm:$0xff]
      %v5320 = vld [vmem:[#allocation3 + $0xac0] sm:$0xff]
      %v5321 = vld [vmem:[#allocation3 + $0xac8] sm:$0xff]
      %v5322 = vld [vmem:[#allocation3 + $0xad0] sm:$0xff]
      %v5323 = vld [vmem:[#allocation3 + $0xad8] sm:$0xff]
      %v5324 = vld [vmem:[#allocation3 + $0xae0] sm:$0xff]
      %v5325 = vld [vmem:[#allocation3 + $0xae8] sm:$0xff]
      %v5326 = vld [vmem:[#allocation3 + $0xaf0] sm:$0xff]
      %v5327 = vld [vmem:[#allocation3 + $0xaf8] sm:$0xff]
      %v5328 = vld [vmem:[#allocation3 + $0xb00] sm:$0xff]
      %v5329 = vld [vmem:[#allocation3 + $0xb08] sm:$0xff]
      %v5330 = vld [vmem:[#allocation3 + $0xb10] sm:$0xff]
      %v5331 = vld [vmem:[#allocation3 + $0xb18] sm:$0xff]
      %v5332 = vld [vmem:[#allocation3 + $0xb20] sm:$0xff]
      %v5333 = vld [vmem:[#allocation3 + $0xb28] sm:$0xff]
      %v5334 = vld [vmem:[#allocation3 + $0xb30] sm:$0xff]
      %v5335 = vld [vmem:[#allocation3 + $0xb38] sm:$0xff]
      %v5336 = vld [vmem:[#allocation3 + $0xb40] sm:$0xff]
      %v5337 = vld [vmem:[#allocation3 + $0xb48] sm:$0xff]
      %v5338 = vld [vmem:[#allocation3 + $0xb50] sm:$0xff]
      %v5339 = vld [vmem:[#allocation3 + $0xb58] sm:$0xff]
      %v5340 = vld [vmem:[#allocation3 + $0xb60] sm:$0xff]
      %v5341 = vld [vmem:[#allocation3 + $0xb68] sm:$0xff]
      %v5342 = vld [vmem:[#allocation3 + $0xb70] sm:$0xff]
      %v5343 = vld [vmem:[#allocation3 + $0xb78] sm:$0xff]
      %v5344 = vld [vmem:[#allocation3 + $0xb80] sm:$0xff]
      %v5345 = vld [vmem:[#allocation3 + $0xb88] sm:$0xff]
      %v5346 = vld [vmem:[#allocation3 + $0xb90] sm:$0xff]
      %v5347 = vld [vmem:[#allocation3 + $0xb98] sm:$0xff]
      %v5348 = vld [vmem:[#allocation3 + $0xba0] sm:$0xff]
      %v5349 = vld [vmem:[#allocation3 + $0xba8] sm:$0xff]
      %v5350 = vld [vmem:[#allocation3 + $0xbb0] sm:$0xff]
      %v5351 = vld [vmem:[#allocation3 + $0xbb8] sm:$0xff]
      %v5352 = vld [vmem:[#allocation3 + $0xbc0] sm:$0xff]
      %v5353 = vld [vmem:[#allocation3 + $0xbc8] sm:$0xff]
      %v5354 = vld [vmem:[#allocation3 + $0xbd0] sm:$0xff]
      %v5355 = vld [vmem:[#allocation3 + $0xbd8] sm:$0xff]
      %v5356 = vld [vmem:[#allocation3 + $0xbe0] sm:$0xff]
      %v5357 = vld [vmem:[#allocation3 + $0xbe8] sm:$0xff]
      %v5358 = vld [vmem:[#allocation3 + $0xbf0] sm:$0xff]
      %v5359 = vld [vmem:[#allocation3 + $0xbf8] sm:$0xff]
      %v5360 = vpack.c.bf16 %v5201, %v5200
      %v5361 = vpack.c.bf16 %v5203, %v5202
      %v5362 = vpack.c.bf16 %v5205, %v5204
      %v5363 = vpack.c.bf16 %v5207, %v5206
      %v5364 = vpack.c.bf16 %v5209, %v5208
      %v5365 = vpack.c.bf16 %v5211, %v5210
      %v5366 = vpack.c.bf16 %v5213, %v5212
      %v5367 = vpack.c.bf16 %v5215, %v5214
      %v5368 = vpack.c.bf16 %v5217, %v5216
      %v5369 = vpack.c.bf16 %v5219, %v5218
      %v5370 = vpack.c.bf16 %v5221, %v5220
      %v5371 = vpack.c.bf16 %v5223, %v5222
      %v5372 = vpack.c.bf16 %v5225, %v5224
      %v5373 = vpack.c.bf16 %v5227, %v5226
      %v5374 = vpack.c.bf16 %v5229, %v5228
      %v5375 = vpack.c.bf16 %v5231, %v5230
      %5376 = vmatpush.bf16.msra.mxu0 %v2932
      %5377 = vmatpush.bf16.msra.mxu0 %v2928
      %5378 = vmatpush.bf16.msra.mxu0 %v2924
      %5379 = vmatpush.bf16.msra.mxu0 %v2920
      %5380 = vmatpush.bf16.msra.mxu0 %v2916
      %5381 = vmatpush.bf16.msra.mxu0 %v2912
      %5382 = vmatpush.bf16.msra.mxu0 %v2908
      %5383 = vmatpush.bf16.msra.mxu0 %v2904
      %5384 = vmatmul.bf16.gmra.mxu0 %v5360
      %v5385 = vpop.f32.mrf.mxu0
      %v5386 = vadd.f32 0.0, %v5385
      %v5387 = vpop.f32.mrf.mxu0
      %v5388 = vadd.f32 0.0, %v5387
      %5389 = vmatmul.bf16.gmra.mxu0 %v5361
      %v5390 = vpop.f32.mrf.mxu0
      %v5391 = vadd.f32 0.0, %v5390
      %v5392 = vpop.f32.mrf.mxu0
      %v5393 = vadd.f32 0.0, %v5392
      %5394 = vmatmul.bf16.gmra.mxu0 %v5362
      %v5395 = vpop.f32.mrf.mxu0
      %v5396 = vadd.f32 0.0, %v5395
      %v5397 = vpop.f32.mrf.mxu0
      %v5398 = vadd.f32 0.0, %v5397
      %5399 = vmatmul.bf16.gmra.mxu0 %v5363
      %v5400 = vpop.f32.mrf.mxu0
      %v5401 = vadd.f32 0.0, %v5400
      %v5402 = vpop.f32.mrf.mxu0
      %v5403 = vadd.f32 0.0, %v5402
      %5404 = vmatmul.bf16.gmra.mxu0 %v5364
      %v5405 = vpop.f32.mrf.mxu0
      %v5406 = vadd.f32 0.0, %v5405
      %v5407 = vpop.f32.mrf.mxu0
      %v5408 = vadd.f32 0.0, %v5407
      %5409 = vmatmul.bf16.gmra.mxu0 %v5365
      %v5410 = vpop.f32.mrf.mxu0
      %v5411 = vadd.f32 0.0, %v5410
      %v5412 = vpop.f32.mrf.mxu0
      %v5413 = vadd.f32 0.0, %v5412
      %5414 = vmatmul.bf16.gmra.mxu0 %v5366
      %v5415 = vpop.f32.mrf.mxu0
      %v5416 = vadd.f32 0.0, %v5415
      %v5417 = vpop.f32.mrf.mxu0
      %v5418 = vadd.f32 0.0, %v5417
      %5419 = vmatmul.bf16.gmra.mxu0 %v5367
      %v5420 = vpop.f32.mrf.mxu0
      %v5421 = vadd.f32 0.0, %v5420
      %v5422 = vpop.f32.mrf.mxu0
      %v5423 = vadd.f32 0.0, %v5422
      %5424 = vmatmul.bf16.gmra.mxu0 %v5368
      %v5425 = vpop.f32.mrf.mxu0
      %v5426 = vadd.f32 0.0, %v5425
      %v5427 = vpop.f32.mrf.mxu0
      %v5428 = vadd.f32 0.0, %v5427
      %5429 = vmatmul.bf16.gmra.mxu0 %v5369
      %v5430 = vpop.f32.mrf.mxu0
      %v5431 = vadd.f32 0.0, %v5430
      %v5432 = vpop.f32.mrf.mxu0
      %v5433 = vadd.f32 0.0, %v5432
      %5434 = vmatmul.bf16.gmra.mxu0 %v5370
      %v5435 = vpop.f32.mrf.mxu0
      %v5436 = vadd.f32 0.0, %v5435
      %v5437 = vpop.f32.mrf.mxu0
      %v5438 = vadd.f32 0.0, %v5437
      %5439 = vmatmul.bf16.gmra.mxu0 %v5371
      %v5440 = vpop.f32.mrf.mxu0
      %v5441 = vadd.f32 0.0, %v5440
      %v5442 = vpop.f32.mrf.mxu0
      %v5443 = vadd.f32 0.0, %v5442
      %5444 = vmatmul.bf16.gmra.mxu0 %v5372
      %v5445 = vpop.f32.mrf.mxu0
      %v5446 = vadd.f32 0.0, %v5445
      %v5447 = vpop.f32.mrf.mxu0
      %v5448 = vadd.f32 0.0, %v5447
      %5449 = vmatmul.bf16.gmra.mxu0 %v5373
      %v5450 = vpop.f32.mrf.mxu0
      %v5451 = vadd.f32 0.0, %v5450
      %v5452 = vpop.f32.mrf.mxu0
      %v5453 = vadd.f32 0.0, %v5452
      %5454 = vmatmul.bf16.gmra.mxu0 %v5374
      %v5455 = vpop.f32.mrf.mxu0
      %v5456 = vadd.f32 0.0, %v5455
      %v5457 = vpop.f32.mrf.mxu0
      %v5458 = vadd.f32 0.0, %v5457
      %5459 = vmatmul.bf16.gmra.mxu0 %v5375
      %v5460 = vpop.f32.mrf.mxu0
      %v5461 = vadd.f32 0.0, %v5460
      %v5462 = vpop.f32.mrf.mxu0
      %v5463 = vadd.f32 0.0, %v5462
      %5464 = vdwg.mxu0
      %5465 = vmatpush.bf16.msra.mxu0 %v2933
      %5466 = vmatpush.bf16.msra.mxu0 %v2929
      %5467 = vmatpush.bf16.msra.mxu0 %v2925
      %5468 = vmatpush.bf16.msra.mxu0 %v2921
      %5469 = vmatpush.bf16.msra.mxu0 %v2917
      %5470 = vmatpush.bf16.msra.mxu0 %v2913
      %5471 = vmatpush.bf16.msra.mxu0 %v2909
      %5472 = vmatpush.bf16.msra.mxu0 %v2905
      %5473 = vmatmul.bf16.gmra.mxu0 %v5360
      %v5474 = vpop.f32.mrf.mxu0
      %v5475 = vadd.f32 0.0, %v5474
      %v5476 = vpop.f32.mrf.mxu0
      %v5477 = vadd.f32 0.0, %v5476
      %5478 = vmatmul.bf16.gmra.mxu0 %v5361
      %v5479 = vpop.f32.mrf.mxu0
      %v5480 = vadd.f32 0.0, %v5479
      %v5481 = vpop.f32.mrf.mxu0
      %v5482 = vadd.f32 0.0, %v5481
      %5483 = vmatmul.bf16.gmra.mxu0 %v5362
      %v5484 = vpop.f32.mrf.mxu0
      %v5485 = vadd.f32 0.0, %v5484
      %v5486 = vpop.f32.mrf.mxu0
      %v5487 = vadd.f32 0.0, %v5486
      %5488 = vmatmul.bf16.gmra.mxu0 %v5363
      %v5489 = vpop.f32.mrf.mxu0
      %v5490 = vadd.f32 0.0, %v5489
      %v5491 = vpop.f32.mrf.mxu0
      %v5492 = vadd.f32 0.0, %v5491
      %5493 = vmatmul.bf16.gmra.mxu0 %v5364
      %v5494 = vpop.f32.mrf.mxu0
      %v5495 = vadd.f32 0.0, %v5494
      %v5496 = vpop.f32.mrf.mxu0
      %v5497 = vadd.f32 0.0, %v5496
      %5498 = vmatmul.bf16.gmra.mxu0 %v5365
      %v5499 = vpop.f32.mrf.mxu0
      %v5500 = vadd.f32 0.0, %v5499
      %v5501 = vpop.f32.mrf.mxu0
      %v5502 = vadd.f32 0.0, %v5501
      %5503 = vmatmul.bf16.gmra.mxu0 %v5366
      %v5504 = vpop.f32.mrf.mxu0
      %v5505 = vadd.f32 0.0, %v5504
      %v5506 = vpop.f32.mrf.mxu0
      %v5507 = vadd.f32 0.0, %v5506
      %5508 = vmatmul.bf16.gmra.mxu0 %v5367
      %v5509 = vpop.f32.mrf.mxu0
      %v5510 = vadd.f32 0.0, %v5509
      %v5511 = vpop.f32.mrf.mxu0
      %v5512 = vadd.f32 0.0, %v5511
      %5513 = vmatmul.bf16.gmra.mxu0 %v5368
      %v5514 = vpop.f32.mrf.mxu0
      %v5515 = vadd.f32 0.0, %v5514
      %v5516 = vpop.f32.mrf.mxu0
      %v5517 = vadd.f32 0.0, %v5516
      %5518 = vmatmul.bf16.gmra.mxu0 %v5369
      %v5519 = vpop.f32.mrf.mxu0
      %v5520 = vadd.f32 0.0, %v5519
      %v5521 = vpop.f32.mrf.mxu0
      %v5522 = vadd.f32 0.0, %v5521
      %5523 = vmatmul.bf16.gmra.mxu0 %v5370
      %v5524 = vpop.f32.mrf.mxu0
      %v5525 = vadd.f32 0.0, %v5524
      %v5526 = vpop.f32.mrf.mxu0
      %v5527 = vadd.f32 0.0, %v5526
      %5528 = vmatmul.bf16.gmra.mxu0 %v5371
      %v5529 = vpop.f32.mrf.mxu0
      %v5530 = vadd.f32 0.0, %v5529
      %v5531 = vpop.f32.mrf.mxu0
      %v5532 = vadd.f32 0.0, %v5531
      %5533 = vmatmul.bf16.gmra.mxu0 %v5372
      %v5534 = vpop.f32.mrf.mxu0
      %v5535 = vadd.f32 0.0, %v5534
      %v5536 = vpop.f32.mrf.mxu0
      %v5537 = vadd.f32 0.0, %v5536
      %5538 = vmatmul.bf16.gmra.mxu0 %v5373
      %v5539 = vpop.f32.mrf.mxu0
      %v5540 = vadd.f32 0.0, %v5539
      %v5541 = vpop.f32.mrf.mxu0
      %v5542 = vadd.f32 0.0, %v5541
      %5543 = vmatmul.bf16.gmra.mxu0 %v5374
      %v5544 = vpop.f32.mrf.mxu0
      %v5545 = vadd.f32 0.0, %v5544
      %v5546 = vpop.f32.mrf.mxu0
      %v5547 = vadd.f32 0.0, %v5546
      %5548 = vmatmul.bf16.gmra.mxu0 %v5375
      %v5549 = vpop.f32.mrf.mxu0
      %v5550 = vadd.f32 0.0, %v5549
      %v5551 = vpop.f32.mrf.mxu0
      %v5552 = vadd.f32 0.0, %v5551
      %5553 = vdwg.mxu0
      %5554 = vmatpush.bf16.msra.mxu0 %v2934
      %5555 = vmatpush.bf16.msra.mxu0 %v2930
      %5556 = vmatpush.bf16.msra.mxu0 %v2926
      %5557 = vmatpush.bf16.msra.mxu0 %v2922
      %5558 = vmatpush.bf16.msra.mxu0 %v2918
      %5559 = vmatpush.bf16.msra.mxu0 %v2914
      %5560 = vmatpush.bf16.msra.mxu0 %v2910
      %5561 = vmatpush.bf16.msra.mxu0 %v2906
      %5562 = vmatmul.bf16.gmra.mxu0 %v5360
      %v5563 = vpop.f32.mrf.mxu0
      %v5564 = vadd.f32 0.0, %v5563
      %v5565 = vpop.f32.mrf.mxu0
      %v5566 = vadd.f32 0.0, %v5565
      %5567 = vmatmul.bf16.gmra.mxu0 %v5361
      %v5568 = vpop.f32.mrf.mxu0
      %v5569 = vadd.f32 0.0, %v5568
      %v5570 = vpop.f32.mrf.mxu0
      %v5571 = vadd.f32 0.0, %v5570
      %5572 = vmatmul.bf16.gmra.mxu0 %v5362
      %v5573 = vpop.f32.mrf.mxu0
      %v5574 = vadd.f32 0.0, %v5573
      %v5575 = vpop.f32.mrf.mxu0
      %v5576 = vadd.f32 0.0, %v5575
      %5577 = vmatmul.bf16.gmra.mxu0 %v5363
      %v5578 = vpop.f32.mrf.mxu0
      %v5579 = vadd.f32 0.0, %v5578
      %v5580 = vpop.f32.mrf.mxu0
      %v5581 = vadd.f32 0.0, %v5580
      %5582 = vmatmul.bf16.gmra.mxu0 %v5364
      %v5583 = vpop.f32.mrf.mxu0
      %v5584 = vadd.f32 0.0, %v5583
      %v5585 = vpop.f32.mrf.mxu0
      %v5586 = vadd.f32 0.0, %v5585
      %5587 = vmatmul.bf16.gmra.mxu0 %v5365
      %v5588 = vpop.f32.mrf.mxu0
      %v5589 = vadd.f32 0.0, %v5588
      %v5590 = vpop.f32.mrf.mxu0
      %v5591 = vadd.f32 0.0, %v5590
      %5592 = vmatmul.bf16.gmra.mxu0 %v5366
      %v5593 = vpop.f32.mrf.mxu0
      %v5594 = vadd.f32 0.0, %v5593
      %v5595 = vpop.f32.mrf.mxu0
      %v5596 = vadd.f32 0.0, %v5595
      %5597 = vmatmul.bf16.gmra.mxu0 %v5367
      %v5598 = vpop.f32.mrf.mxu0
      %v5599 = vadd.f32 0.0, %v5598
      %v5600 = vpop.f32.mrf.mxu0
      %v5601 = vadd.f32 0.0, %v5600
      %5602 = vmatmul.bf16.gmra.mxu0 %v5368
      %v5603 = vpop.f32.mrf.mxu0
      %v5604 = vadd.f32 0.0, %v5603
      %v5605 = vpop.f32.mrf.mxu0
      %v5606 = vadd.f32 0.0, %v5605
      %5607 = vmatmul.bf16.gmra.mxu0 %v5369
      %v5608 = vpop.f32.mrf.mxu0
      %v5609 = vadd.f32 0.0, %v5608
      %v5610 = vpop.f32.mrf.mxu0
      %v5611 = vadd.f32 0.0, %v5610
      %5612 = vmatmul.bf16.gmra.mxu0 %v5370
      %v5613 = vpop.f32.mrf.mxu0
      %v5614 = vadd.f32 0.0, %v5613
      %v5615 = vpop.f32.mrf.mxu0
      %v5616 = vadd.f32 0.0, %v5615
      %5617 = vmatmul.bf16.gmra.mxu0 %v5371
      %v5618 = vpop.f32.mrf.mxu0
      %v5619 = vadd.f32 0.0, %v5618
      %v5620 = vpop.f32.mrf.mxu0
      %v5621 = vadd.f32 0.0, %v5620
      %5622 = vmatmul.bf16.gmra.mxu0 %v5372
      %v5623 = vpop.f32.mrf.mxu0
      %v5624 = vadd.f32 0.0, %v5623
      %v5625 = vpop.f32.mrf.mxu0
      %v5626 = vadd.f32 0.0, %v5625
      %5627 = vmatmul.bf16.gmra.mxu0 %v5373
      %v5628 = vpop.f32.mrf.mxu0
      %v5629 = vadd.f32 0.0, %v5628
      %v5630 = vpop.f32.mrf.mxu0
      %v5631 = vadd.f32 0.0, %v5630
      %5632 = vmatmul.bf16.gmra.mxu0 %v5374
      %v5633 = vpop.f32.mrf.mxu0
      %v5634 = vadd.f32 0.0, %v5633
      %v5635 = vpop.f32.mrf.mxu0
      %v5636 = vadd.f32 0.0, %v5635
      %5637 = vmatmul.bf16.gmra.mxu0 %v5375
      %v5638 = vpop.f32.mrf.mxu0
      %v5639 = vadd.f32 0.0, %v5638
      %v5640 = vpop.f32.mrf.mxu0
      %v5641 = vadd.f32 0.0, %v5640
      %5642 = vdwg.mxu0
      %5643 = vmatpush.bf16.msra.mxu0 %v2935
      %5644 = vmatpush.bf16.msra.mxu0 %v2931
      %5645 = vmatpush.bf16.msra.mxu0 %v2927
      %5646 = vmatpush.bf16.msra.mxu0 %v2923
      %5647 = vmatpush.bf16.msra.mxu0 %v2919
      %5648 = vmatpush.bf16.msra.mxu0 %v2915
      %5649 = vmatpush.bf16.msra.mxu0 %v2911
      %5650 = vmatpush.bf16.msra.mxu0 %v2907
      %5651 = vmatmul.bf16.gmra.mxu0 %v5360
      %v5652 = vpop.f32.mrf.mxu0
      %v5653 = vadd.f32 0.0, %v5652
      %v5654 = vpop.f32.mrf.mxu0
      %v5655 = vadd.f32 0.0, %v5654
      %5656 = vmatmul.bf16.gmra.mxu0 %v5361
      %v5657 = vpop.f32.mrf.mxu0
      %v5658 = vadd.f32 0.0, %v5657
      %v5659 = vpop.f32.mrf.mxu0
      %v5660 = vadd.f32 0.0, %v5659
      %5661 = vmatmul.bf16.gmra.mxu0 %v5362
      %v5662 = vpop.f32.mrf.mxu0
      %v5663 = vadd.f32 0.0, %v5662
      %v5664 = vpop.f32.mrf.mxu0
      %v5665 = vadd.f32 0.0, %v5664
      %5666 = vmatmul.bf16.gmra.mxu0 %v5363
      %v5667 = vpop.f32.mrf.mxu0
      %v5668 = vadd.f32 0.0, %v5667
      %v5669 = vpop.f32.mrf.mxu0
      %v5670 = vadd.f32 0.0, %v5669
      %5671 = vmatmul.bf16.gmra.mxu0 %v5364
      %v5672 = vpop.f32.mrf.mxu0
      %v5673 = vadd.f32 0.0, %v5672
      %v5674 = vpop.f32.mrf.mxu0
      %v5675 = vadd.f32 0.0, %v5674
      %5676 = vmatmul.bf16.gmra.mxu0 %v5365
      %v5677 = vpop.f32.mrf.mxu0
      %v5678 = vadd.f32 0.0, %v5677
      %v5679 = vpop.f32.mrf.mxu0
      %v5680 = vadd.f32 0.0, %v5679
      %5681 = vmatmul.bf16.gmra.mxu0 %v5366
      %v5682 = vpop.f32.mrf.mxu0
      %v5683 = vadd.f32 0.0, %v5682
      %v5684 = vpop.f32.mrf.mxu0
      %v5685 = vadd.f32 0.0, %v5684
      %5686 = vmatmul.bf16.gmra.mxu0 %v5367
      %v5687 = vpop.f32.mrf.mxu0
      %v5688 = vadd.f32 0.0, %v5687
      %v5689 = vpop.f32.mrf.mxu0
      %v5690 = vadd.f32 0.0, %v5689
      %5691 = vmatmul.bf16.gmra.mxu0 %v5368
      %v5692 = vpop.f32.mrf.mxu0
      %v5693 = vadd.f32 0.0, %v5692
      %v5694 = vpop.f32.mrf.mxu0
      %v5695 = vadd.f32 0.0, %v5694
      %5696 = vmatmul.bf16.gmra.mxu0 %v5369
      %v5697 = vpop.f32.mrf.mxu0
      %v5698 = vadd.f32 0.0, %v5697
      %v5699 = vpop.f32.mrf.mxu0
      %v5700 = vadd.f32 0.0, %v5699
      %5701 = vmatmul.bf16.gmra.mxu0 %v5370
      %v5702 = vpop.f32.mrf.mxu0
      %v5703 = vadd.f32 0.0, %v5702
      %v5704 = vpop.f32.mrf.mxu0
      %v5705 = vadd.f32 0.0, %v5704
      %5706 = vmatmul.bf16.gmra.mxu0 %v5371
      %v5707 = vpop.f32.mrf.mxu0
      %v5708 = vadd.f32 0.0, %v5707
      %v5709 = vpop.f32.mrf.mxu0
      %v5710 = vadd.f32 0.0, %v5709
      %5711 = vmatmul.bf16.gmra.mxu0 %v5372
      %v5712 = vpop.f32.mrf.mxu0
      %v5713 = vadd.f32 0.0, %v5712
      %v5714 = vpop.f32.mrf.mxu0
      %v5715 = vadd.f32 0.0, %v5714
      %5716 = vmatmul.bf16.gmra.mxu0 %v5373
      %v5717 = vpop.f32.mrf.mxu0
      %v5718 = vadd.f32 0.0, %v5717
      %v5719 = vpop.f32.mrf.mxu0
      %v5720 = vadd.f32 0.0, %v5719
      %5721 = vmatmul.bf16.gmra.mxu0 %v5374
      %v5722 = vpop.f32.mrf.mxu0
      %v5723 = vadd.f32 0.0, %v5722
      %v5724 = vpop.f32.mrf.mxu0
      %v5725 = vadd.f32 0.0, %v5724
      %5726 = vmatmul.bf16.gmra.mxu0 %v5375
      %v5727 = vpop.f32.mrf.mxu0
      %v5728 = vadd.f32 0.0, %v5727
      %v5729 = vpop.f32.mrf.mxu0
      %v5730 = vadd.f32 0.0, %v5729
      %5731 = vdwg.mxu0
      %v5732 = vadd.f32 %v5232, %v5386
      %v5733 = vadd.f32 %v5233, %v5475
      %v5734 = vadd.f32 %v5234, %v5564
      %v5735 = vadd.f32 %v5235, %v5653
      %v5736 = vadd.f32 %v5236, %v5388
      %v5737 = vadd.f32 %v5237, %v5477
      %v5738 = vadd.f32 %v5238, %v5566
      %v5739 = vadd.f32 %v5239, %v5655
      %v5740 = vadd.f32 %v5240, %v5391
      %v5741 = vadd.f32 %v5241, %v5480
      %v5742 = vadd.f32 %v5242, %v5569
      %v5743 = vadd.f32 %v5243, %v5658
      %v5744 = vadd.f32 %v5244, %v5393
      %v5745 = vadd.f32 %v5245, %v5482
      %v5746 = vadd.f32 %v5246, %v5571
      %v5747 = vadd.f32 %v5247, %v5660
      %v5748 = vadd.f32 %v5248, %v5396
      %v5749 = vadd.f32 %v5249, %v5485
      %v5750 = vadd.f32 %v5250, %v5574
      %v5751 = vadd.f32 %v5251, %v5663
      %v5752 = vadd.f32 %v5252, %v5398
      %v5753 = vadd.f32 %v5253, %v5487
      %v5754 = vadd.f32 %v5254, %v5576
      %v5755 = vadd.f32 %v5255, %v5665
      %v5756 = vadd.f32 %v5256, %v5401
      %v5757 = vadd.f32 %v5257, %v5490
      %v5758 = vadd.f32 %v5258, %v5579
      %v5759 = vadd.f32 %v5259, %v5668
      %v5760 = vadd.f32 %v5260, %v5403
      %v5761 = vadd.f32 %v5261, %v5492
      %v5762 = vadd.f32 %v5262, %v5581
      %v5763 = vadd.f32 %v5263, %v5670
      %v5764 = vadd.f32 %v5264, %v5406
      %v5765 = vadd.f32 %v5265, %v5495
      %v5766 = vadd.f32 %v5266, %v5584
      %v5767 = vadd.f32 %v5267, %v5673
      %v5768 = vadd.f32 %v5268, %v5408
      %v5769 = vadd.f32 %v5269, %v5497
      %v5770 = vadd.f32 %v5270, %v5586
      %v5771 = vadd.f32 %v5271, %v5675
      %v5772 = vadd.f32 %v5272, %v5411
      %v5773 = vadd.f32 %v5273, %v5500
      %v5774 = vadd.f32 %v5274, %v5589
      %v5775 = vadd.f32 %v5275, %v5678
      %v5776 = vadd.f32 %v5276, %v5413
      %v5777 = vadd.f32 %v5277, %v5502
      %v5778 = vadd.f32 %v5278, %v5591
      %v5779 = vadd.f32 %v5279, %v5680
      %v5780 = vadd.f32 %v5280, %v5416
      %v5781 = vadd.f32 %v5281, %v5505
      %v5782 = vadd.f32 %v5282, %v5594
      %v5783 = vadd.f32 %v5283, %v5683
      %v5784 = vadd.f32 %v5284, %v5418
      %v5785 = vadd.f32 %v5285, %v5507
      %v5786 = vadd.f32 %v5286, %v5596
      %v5787 = vadd.f32 %v5287, %v5685
      %v5788 = vadd.f32 %v5288, %v5421
      %v5789 = vadd.f32 %v5289, %v5510
      %v5790 = vadd.f32 %v5290, %v5599
      %v5791 = vadd.f32 %v5291, %v5688
      %v5792 = vadd.f32 %v5292, %v5423
      %v5793 = vadd.f32 %v5293, %v5512
      %v5794 = vadd.f32 %v5294, %v5601
      %v5795 = vadd.f32 %v5295, %v5690
      %v5796 = vadd.f32 %v5296, %v5426
      %v5797 = vadd.f32 %v5297, %v5515
      %v5798 = vadd.f32 %v5298, %v5604
      %v5799 = vadd.f32 %v5299, %v5693
      %v5800 = vadd.f32 %v5300, %v5428
      %v5801 = vadd.f32 %v5301, %v5517
      %v5802 = vadd.f32 %v5302, %v5606
      %v5803 = vadd.f32 %v5303, %v5695
      %v5804 = vadd.f32 %v5304, %v5431
      %v5805 = vadd.f32 %v5305, %v5520
      %v5806 = vadd.f32 %v5306, %v5609
      %v5807 = vadd.f32 %v5307, %v5698
      %v5808 = vadd.f32 %v5308, %v5433
      %v5809 = vadd.f32 %v5309, %v5522
      %v5810 = vadd.f32 %v5310, %v5611
      %v5811 = vadd.f32 %v5311, %v5700
      %v5812 = vadd.f32 %v5312, %v5436
      %v5813 = vadd.f32 %v5313, %v5525
      %v5814 = vadd.f32 %v5314, %v5614
      %v5815 = vadd.f32 %v5315, %v5703
      %v5816 = vadd.f32 %v5316, %v5438
      %v5817 = vadd.f32 %v5317, %v5527
      %v5818 = vadd.f32 %v5318, %v5616
      %v5819 = vadd.f32 %v5319, %v5705
      %v5820 = vadd.f32 %v5320, %v5441
      %v5821 = vadd.f32 %v5321, %v5530
      %v5822 = vadd.f32 %v5322, %v5619
      %v5823 = vadd.f32 %v5323, %v5708
      %v5824 = vadd.f32 %v5324, %v5443
      %v5825 = vadd.f32 %v5325, %v5532
      %v5826 = vadd.f32 %v5326, %v5621
      %v5827 = vadd.f32 %v5327, %v5710
      %v5828 = vadd.f32 %v5328, %v5446
      %v5829 = vadd.f32 %v5329, %v5535
      %v5830 = vadd.f32 %v5330, %v5624
      %v5831 = vadd.f32 %v5331, %v5713
      %v5832 = vadd.f32 %v5332, %v5448
      %v5833 = vadd.f32 %v5333, %v5537
      %v5834 = vadd.f32 %v5334, %v5626
      %v5835 = vadd.f32 %v5335, %v5715
      %v5836 = vadd.f32 %v5336, %v5451
      %v5837 = vadd.f32 %v5337, %v5540
      %v5838 = vadd.f32 %v5338, %v5629
      %v5839 = vadd.f32 %v5339, %v5718
      %v5840 = vadd.f32 %v5340, %v5453
      %v5841 = vadd.f32 %v5341, %v5542
      %v5842 = vadd.f32 %v5342, %v5631
      %v5843 = vadd.f32 %v5343, %v5720
      %v5844 = vadd.f32 %v5344, %v5456
      %v5845 = vadd.f32 %v5345, %v5545
      %v5846 = vadd.f32 %v5346, %v5634
      %v5847 = vadd.f32 %v5347, %v5723
      %v5848 = vadd.f32 %v5348, %v5458
      %v5849 = vadd.f32 %v5349, %v5547
      %v5850 = vadd.f32 %v5350, %v5636
      %v5851 = vadd.f32 %v5351, %v5725
      %v5852 = vadd.f32 %v5352, %v5461
      %v5853 = vadd.f32 %v5353, %v5550
      %v5854 = vadd.f32 %v5354, %v5639
      %v5855 = vadd.f32 %v5355, %v5728
      %v5856 = vadd.f32 %v5356, %v5463
      %v5857 = vadd.f32 %v5357, %v5552
      %v5858 = vadd.f32 %v5358, %v5641
      %v5859 = vadd.f32 %v5359, %v5730
      %v5860 = vmul.f32 %v5732, 0.5
      %v5861 = vmul.f32 %v5733, 0.5
      %v5862 = vmul.f32 %v5734, 0.5
      %v5863 = vmul.f32 %v5736, 0.5
      %v5864 = vmul.f32 %v5737, 0.5
      %v5865 = vmul.f32 %v5738, 0.5
      %v5866 = vmul.f32 %v5740, 0.5
      %v5867 = vmul.f32 %v5741, 0.5
      %v5868 = vmul.f32 %v5742, 0.5
      %v5869 = vmul.f32 %v5744, 0.5
      %v5870 = vmul.f32 %v5745, 0.5
      %v5871 = vmul.f32 %v5746, 0.5
      %v5872 = vmul.f32 %v5748, 0.5
      %v5873 = vmul.f32 %v5749, 0.5
      %v5874 = vmul.f32 %v5750, 0.5
      %v5875 = vmul.f32 %v5752, 0.5
      %v5876 = vmul.f32 %v5753, 0.5
      %v5877 = vmul.f32 %v5754, 0.5
      %v5878 = vmul.f32 %v5756, 0.5
      %v5879 = vmul.f32 %v5757, 0.5
      %v5880 = vmul.f32 %v5758, 0.5
      %v5881 = vmul.f32 %v5760, 0.5
      %v5882 = vmul.f32 %v5761, 0.5
      %v5883 = vmul.f32 %v5762, 0.5
      %v5884 = vmul.f32 %v5764, 0.5
      %v5885 = vmul.f32 %v5765, 0.5
      %v5886 = vmul.f32 %v5766, 0.5
      %v5887 = vmul.f32 %v5768, 0.5
      %v5888 = vmul.f32 %v5769, 0.5
      %v5889 = vmul.f32 %v5770, 0.5
      %v5890 = vmul.f32 %v5772, 0.5
      %v5891 = vmul.f32 %v5773, 0.5
      %v5892 = vmul.f32 %v5774, 0.5
      %v5893 = vmul.f32 %v5776, 0.5
      %v5894 = vmul.f32 %v5777, 0.5
      %v5895 = vmul.f32 %v5778, 0.5
      %v5896 = vmul.f32 %v5780, 0.5
      %v5897 = vmul.f32 %v5781, 0.5
      %v5898 = vmul.f32 %v5782, 0.5
      %v5899 = vmul.f32 %v5784, 0.5
      %v5900 = vmul.f32 %v5785, 0.5
      %v5901 = vmul.f32 %v5786, 0.5
      %v5902 = vmul.f32 %v5788, 0.5
      %v5903 = vmul.f32 %v5789, 0.5
      %v5904 = vmul.f32 %v5790, 0.5
      %v5905 = vmul.f32 %v5792, 0.5
      %v5906 = vmul.f32 %v5793, 0.5
      %v5907 = vmul.f32 %v5794, 0.5
      %v5908 = vmul.f32 %v5796, 0.5
      %v5909 = vmul.f32 %v5797, 0.5
      %v5910 = vmul.f32 %v5798, 0.5
      %v5911 = vmul.f32 %v5800, 0.5
      %v5912 = vmul.f32 %v5801, 0.5
      %v5913 = vmul.f32 %v5802, 0.5
      %v5914 = vmul.f32 %v5804, 0.5
      %v5915 = vmul.f32 %v5805, 0.5
      %v5916 = vmul.f32 %v5806, 0.5
      %v5917 = vmul.f32 %v5808, 0.5
      %v5918 = vmul.f32 %v5809, 0.5
      %v5919 = vmul.f32 %v5810, 0.5
      %v5920 = vmul.f32 %v5812, 0.5
      %v5921 = vmul.f32 %v5813, 0.5
      %v5922 = vmul.f32 %v5814, 0.5
      %v5923 = vmul.f32 %v5816, 0.5
      %v5924 = vmul.f32 %v5817, 0.5
      %v5925 = vmul.f32 %v5818, 0.5
      %v5926 = vmul.f32 %v5820, 0.5
      %v5927 = vmul.f32 %v5821, 0.5
      %v5928 = vmul.f32 %v5822, 0.5
      %v5929 = vmul.f32 %v5824, 0.5
      %v5930 = vmul.f32 %v5825, 0.5
      %v5931 = vmul.f32 %v5826, 0.5
      %v5932 = vmul.f32 %v5828, 0.5
      %v5933 = vmul.f32 %v5829, 0.5
      %v5934 = vmul.f32 %v5830, 0.5
      %v5935 = vmul.f32 %v5832, 0.5
      %v5936 = vmul.f32 %v5833, 0.5
      %v5937 = vmul.f32 %v5834, 0.5
      %v5938 = vmul.f32 %v5836, 0.5
      %v5939 = vmul.f32 %v5837, 0.5
      %v5940 = vmul.f32 %v5838, 0.5
      %v5941 = vmul.f32 %v5840, 0.5
      %v5942 = vmul.f32 %v5841, 0.5
      %v5943 = vmul.f32 %v5842, 0.5
      %v5944 = vmul.f32 %v5844, 0.5
      %v5945 = vmul.f32 %v5845, 0.5
      %v5946 = vmul.f32 %v5846, 0.5
      %v5947 = vmul.f32 %v5848, 0.5
      %v5948 = vmul.f32 %v5849, 0.5
      %v5949 = vmul.f32 %v5850, 0.5
      %v5950 = vmul.f32 %v5852, 0.5
      %v5951 = vmul.f32 %v5853, 0.5
      %v5952 = vmul.f32 %v5854, 0.5
      %v5953 = vmul.f32 %v5856, 0.5
      %v5954 = vmul.f32 %v5857, 0.5
      %v5955 = vmul.f32 %v5858, 0.5
      %v5956 = vtanh.pop %v5860
      %v5957 = vtanh.pop %v5861
      %v5958 = vtanh.pop %v5862
      %v5959 = vtanh.pop %v5863
      %v5960 = vtanh.pop %v5864
      %v5961 = vtanh.pop %v5865
      %v5962 = vtanh.pop %v5866
      %v5963 = vtanh.pop %v5867
      %v5964 = vtanh.pop %v5868
      %v5965 = vtanh.pop %v5869
      %v5966 = vtanh.pop %v5870
      %v5967 = vtanh.pop %v5871
      %v5968 = vtanh.pop %v5872
      %v5969 = vtanh.pop %v5873
      %v5970 = vtanh.pop %v5874
      %v5971 = vtanh.pop %v5875
      %v5972 = vtanh.pop %v5876
      %v5973 = vtanh.pop %v5877
      %v5974 = vtanh.pop %v5878
      %v5975 = vtanh.pop %v5879
      %v5976 = vtanh.pop %v5880
      %v5977 = vtanh.pop %v5881
      %v5978 = vtanh.pop %v5882
      %v5979 = vtanh.pop %v5883
      %v5980 = vtanh.pop %v5884
      %v5981 = vtanh.pop %v5885
      %v5982 = vtanh.pop %v5886
      %v5983 = vtanh.pop %v5887
      %v5984 = vtanh.pop %v5888
      %v5985 = vtanh.pop %v5889
      %v5986 = vtanh.pop %v5890
      %v5987 = vtanh.pop %v5891
      %v5988 = vtanh.pop %v5892
      %v5989 = vtanh.pop %v5893
      %v5990 = vtanh.pop %v5894
      %v5991 = vtanh.pop %v5895
      %v5992 = vtanh.pop %v5896
      %v5993 = vtanh.pop %v5897
      %v5994 = vtanh.pop %v5898
      %v5995 = vtanh.pop %v5899
      %v5996 = vtanh.pop %v5900
      %v5997 = vtanh.pop %v5901
      %v5998 = vtanh.pop %v5902
      %v5999 = vtanh.pop %v5903
      %v6000 = vtanh.pop %v5904
      %v6001 = vtanh.pop %v5905
      %v6002 = vtanh.pop %v5906
      %v6003 = vtanh.pop %v5907
      %v6004 = vtanh.pop %v5908
      %v6005 = vtanh.pop %v5909
      %v6006 = vtanh.pop %v5910
      %v6007 = vtanh.pop %v5911
      %v6008 = vtanh.pop %v5912
      %v6009 = vtanh.pop %v5913
      %v6010 = vtanh.pop %v5914
      %v6011 = vtanh.pop %v5915
      %v6012 = vtanh.pop %v5916
      %v6013 = vtanh.pop %v5917
      %v6014 = vtanh.pop %v5918
      %v6015 = vtanh.pop %v5919
      %v6016 = vtanh.pop %v5920
      %v6017 = vtanh.pop %v5921
      %v6018 = vtanh.pop %v5922
      %v6019 = vtanh.pop %v5923
      %v6020 = vtanh.pop %v5924
      %v6021 = vtanh.pop %v5925
      %v6022 = vtanh.pop %v5926
      %v6023 = vtanh.pop %v5927
      %v6024 = vtanh.pop %v5928
      %v6025 = vtanh.pop %v5929
      %v6026 = vtanh.pop %v5930
      %v6027 = vtanh.pop %v5931
      %v6028 = vtanh.pop %v5932
      %v6029 = vtanh.pop %v5933
      %v6030 = vtanh.pop %v5934
      %v6031 = vtanh.pop %v5935
      %v6032 = vtanh.pop %v5936
      %v6033 = vtanh.pop %v5937
      %v6034 = vtanh.pop %v5938
      %v6035 = vtanh.pop %v5939
      %v6036 = vtanh.pop %v5940
      %v6037 = vtanh.pop %v5941
      %v6038 = vtanh.pop %v5942
      %v6039 = vtanh.pop %v5943
      %v6040 = vtanh.pop %v5944
      %v6041 = vtanh.pop %v5945
      %v6042 = vtanh.pop %v5946
      %v6043 = vtanh.pop %v5947
      %v6044 = vtanh.pop %v5948
      %v6045 = vtanh.pop %v5949
      %v6046 = vtanh.pop %v5950
      %v6047 = vtanh.pop %v5951
      %v6048 = vtanh.pop %v5952
      %v6049 = vtanh.pop %v5953
      %v6050 = vtanh.pop %v5954
      %v6051 = vtanh.pop %v5955
      %v6052 = vmul.f32 %v5956, 0.5
      %v6053 = vmul.f32 %v5957, 0.5
      %v6054 = vmul.f32 %v5958, 0.5
      %v6055 = vmul.f32 %v5959, 0.5
      %v6056 = vmul.f32 %v5960, 0.5
      %v6057 = vmul.f32 %v5961, 0.5
      %v6058 = vmul.f32 %v5962, 0.5
      %v6059 = vmul.f32 %v5963, 0.5
      %v6060 = vmul.f32 %v5964, 0.5
      %v6061 = vmul.f32 %v5965, 0.5
      %v6062 = vmul.f32 %v5966, 0.5
      %v6063 = vmul.f32 %v5967, 0.5
      %v6064 = vmul.f32 %v5968, 0.5
      %v6065 = vmul.f32 %v5969, 0.5
      %v6066 = vmul.f32 %v5970, 0.5
      %v6067 = vmul.f32 %v5971, 0.5
      %v6068 = vmul.f32 %v5972, 0.5
      %v6069 = vmul.f32 %v5973, 0.5
      %v6070 = vmul.f32 %v5974, 0.5
      %v6071 = vmul.f32 %v5975, 0.5
      %v6072 = vmul.f32 %v5976, 0.5
      %v6073 = vmul.f32 %v5977, 0.5
      %v6074 = vmul.f32 %v5978, 0.5
      %v6075 = vmul.f32 %v5979, 0.5
      %v6076 = vmul.f32 %v5980, 0.5
      %v6077 = vmul.f32 %v5981, 0.5
      %v6078 = vmul.f32 %v5982, 0.5
      %v6079 = vmul.f32 %v5983, 0.5
      %v6080 = vmul.f32 %v5984, 0.5
      %v6081 = vmul.f32 %v5985, 0.5
      %v6082 = vmul.f32 %v5986, 0.5
      %v6083 = vmul.f32 %v5987, 0.5
      %v6084 = vmul.f32 %v5988, 0.5
      %v6085 = vmul.f32 %v5989, 0.5
      %v6086 = vmul.f32 %v5990, 0.5
      %v6087 = vmul.f32 %v5991, 0.5
      %v6088 = vmul.f32 %v5992, 0.5
      %v6089 = vmul.f32 %v5993, 0.5
      %v6090 = vmul.f32 %v5994, 0.5
      %v6091 = vmul.f32 %v5995, 0.5
      %v6092 = vmul.f32 %v5996, 0.5
      %v6093 = vmul.f32 %v5997, 0.5
      %v6094 = vmul.f32 %v5998, 0.5
      %v6095 = vmul.f32 %v5999, 0.5
      %v6096 = vmul.f32 %v6000, 0.5
      %v6097 = vmul.f32 %v6001, 0.5
      %v6098 = vmul.f32 %v6002, 0.5
      %v6099 = vmul.f32 %v6003, 0.5
      %v6100 = vmul.f32 %v6004, 0.5
      %v6101 = vmul.f32 %v6005, 0.5
      %v6102 = vmul.f32 %v6006, 0.5
      %v6103 = vmul.f32 %v6007, 0.5
      %v6104 = vmul.f32 %v6008, 0.5
      %v6105 = vmul.f32 %v6009, 0.5
      %v6106 = vmul.f32 %v6010, 0.5
      %v6107 = vmul.f32 %v6011, 0.5
      %v6108 = vmul.f32 %v6012, 0.5
      %v6109 = vmul.f32 %v6013, 0.5
      %v6110 = vmul.f32 %v6014, 0.5
      %v6111 = vmul.f32 %v6015, 0.5
      %v6112 = vmul.f32 %v6016, 0.5
      %v6113 = vmul.f32 %v6017, 0.5
      %v6114 = vmul.f32 %v6018, 0.5
      %v6115 = vmul.f32 %v6019, 0.5
      %v6116 = vmul.f32 %v6020, 0.5
      %v6117 = vmul.f32 %v6021, 0.5
      %v6118 = vmul.f32 %v6022, 0.5
      %v6119 = vmul.f32 %v6023, 0.5
      %v6120 = vmul.f32 %v6024, 0.5
      %v6121 = vmul.f32 %v6025, 0.5
      %v6122 = vmul.f32 %v6026, 0.5
      %v6123 = vmul.f32 %v6027, 0.5
      %v6124 = vmul.f32 %v6028, 0.5
      %v6125 = vmul.f32 %v6029, 0.5
      %v6126 = vmul.f32 %v6030, 0.5
      %v6127 = vmul.f32 %v6031, 0.5
      %v6128 = vmul.f32 %v6032, 0.5
      %v6129 = vmul.f32 %v6033, 0.5
      %v6130 = vmul.f32 %v6034, 0.5
      %v6131 = vmul.f32 %v6035, 0.5
      %v6132 = vmul.f32 %v6036, 0.5
      %v6133 = vmul.f32 %v6037, 0.5
      %v6134 = vmul.f32 %v6038, 0.5
      %v6135 = vmul.f32 %v6039, 0.5
      %v6136 = vmul.f32 %v6040, 0.5
      %v6137 = vmul.f32 %v6041, 0.5
      %v6138 = vmul.f32 %v6042, 0.5
      %v6139 = vmul.f32 %v6043, 0.5
      %v6140 = vmul.f32 %v6044, 0.5
      %v6141 = vmul.f32 %v6045, 0.5
      %v6142 = vmul.f32 %v6046, 0.5
      %v6143 = vmul.f32 %v6047, 0.5
      %v6144 = vmul.f32 %v6048, 0.5
      %v6145 = vmul.f32 %v6049, 0.5
      %v6146 = vmul.f32 %v6050, 0.5
      %v6147 = vmul.f32 %v6051, 0.5
      %v6148 = vadd.f32 %v6052, 0.5
      %v6149 = vadd.f32 %v6053, 0.5
      %v6150 = vadd.f32 %v6054, 0.5
      %v6151 = vadd.f32 %v6055, 0.5
      %v6152 = vadd.f32 %v6056, 0.5
      %v6153 = vadd.f32 %v6057, 0.5
      %v6154 = vadd.f32 %v6058, 0.5
      %v6155 = vadd.f32 %v6059, 0.5
      %v6156 = vadd.f32 %v6060, 0.5
      %v6157 = vadd.f32 %v6061, 0.5
      %v6158 = vadd.f32 %v6062, 0.5
      %v6159 = vadd.f32 %v6063, 0.5
      %v6160 = vadd.f32 %v6064, 0.5
      %v6161 = vadd.f32 %v6065, 0.5
      %v6162 = vadd.f32 %v6066, 0.5
      %v6163 = vadd.f32 %v6067, 0.5
      %v6164 = vadd.f32 %v6068, 0.5
      %v6165 = vadd.f32 %v6069, 0.5
      %v6166 = vadd.f32 %v6070, 0.5
      %v6167 = vadd.f32 %v6071, 0.5
      %v6168 = vadd.f32 %v6072, 0.5
      %v6169 = vadd.f32 %v6073, 0.5
      %v6170 = vadd.f32 %v6074, 0.5
      %v6171 = vadd.f32 %v6075, 0.5
      %v6172 = vadd.f32 %v6076, 0.5
      %v6173 = vadd.f32 %v6077, 0.5
      %v6174 = vadd.f32 %v6078, 0.5
      %v6175 = vadd.f32 %v6079, 0.5
      %v6176 = vadd.f32 %v6080, 0.5
      %v6177 = vadd.f32 %v6081, 0.5
      %v6178 = vadd.f32 %v6082, 0.5
      %v6179 = vadd.f32 %v6083, 0.5
      %v6180 = vadd.f32 %v6084, 0.5
      %v6181 = vadd.f32 %v6085, 0.5
      %v6182 = vadd.f32 %v6086, 0.5
      %v6183 = vadd.f32 %v6087, 0.5
      %v6184 = vadd.f32 %v6088, 0.5
      %v6185 = vadd.f32 %v6089, 0.5
      %v6186 = vadd.f32 %v6090, 0.5
      %v6187 = vadd.f32 %v6091, 0.5
      %v6188 = vadd.f32 %v6092, 0.5
      %v6189 = vadd.f32 %v6093, 0.5
      %v6190 = vadd.f32 %v6094, 0.5
      %v6191 = vadd.f32 %v6095, 0.5
      %v6192 = vadd.f32 %v6096, 0.5
      %v6193 = vadd.f32 %v6097, 0.5
      %v6194 = vadd.f32 %v6098, 0.5
      %v6195 = vadd.f32 %v6099, 0.5
      %v6196 = vadd.f32 %v6100, 0.5
      %v6197 = vadd.f32 %v6101, 0.5
      %v6198 = vadd.f32 %v6102, 0.5
      %v6199 = vadd.f32 %v6103, 0.5
      %v6200 = vadd.f32 %v6104, 0.5
      %v6201 = vadd.f32 %v6105, 0.5
      %v6202 = vadd.f32 %v6106, 0.5
      %v6203 = vadd.f32 %v6107, 0.5
      %v6204 = vadd.f32 %v6108, 0.5
      %v6205 = vadd.f32 %v6109, 0.5
      %v6206 = vadd.f32 %v6110, 0.5
      %v6207 = vadd.f32 %v6111, 0.5
      %v6208 = vadd.f32 %v6112, 0.5
      %v6209 = vadd.f32 %v6113, 0.5
      %v6210 = vadd.f32 %v6114, 0.5
      %v6211 = vadd.f32 %v6115, 0.5
      %v6212 = vadd.f32 %v6116, 0.5
      %v6213 = vadd.f32 %v6117, 0.5
      %v6214 = vadd.f32 %v6118, 0.5
      %v6215 = vadd.f32 %v6119, 0.5
      %v6216 = vadd.f32 %v6120, 0.5
      %v6217 = vadd.f32 %v6121, 0.5
      %v6218 = vadd.f32 %v6122, 0.5
      %v6219 = vadd.f32 %v6123, 0.5
      %v6220 = vadd.f32 %v6124, 0.5
      %v6221 = vadd.f32 %v6125, 0.5
      %v6222 = vadd.f32 %v6126, 0.5
      %v6223 = vadd.f32 %v6127, 0.5
      %v6224 = vadd.f32 %v6128, 0.5
      %v6225 = vadd.f32 %v6129, 0.5
      %v6226 = vadd.f32 %v6130, 0.5
      %v6227 = vadd.f32 %v6131, 0.5
      %v6228 = vadd.f32 %v6132, 0.5
      %v6229 = vadd.f32 %v6133, 0.5
      %v6230 = vadd.f32 %v6134, 0.5
      %v6231 = vadd.f32 %v6135, 0.5
      %v6232 = vadd.f32 %v6136, 0.5
      %v6233 = vadd.f32 %v6137, 0.5
      %v6234 = vadd.f32 %v6138, 0.5
      %v6235 = vadd.f32 %v6139, 0.5
      %v6236 = vadd.f32 %v6140, 0.5
      %v6237 = vadd.f32 %v6141, 0.5
      %v6238 = vadd.f32 %v6142, 0.5
      %v6239 = vadd.f32 %v6143, 0.5
      %v6240 = vadd.f32 %v6144, 0.5
      %v6241 = vadd.f32 %v6145, 0.5
      %v6242 = vadd.f32 %v6146, 0.5
      %v6243 = vadd.f32 %v6147, 0.5
      %v6244 = vtanh.pop %v5735
      %v6245 = vtanh.pop %v5739
      %v6246 = vtanh.pop %v5743
      %v6247 = vtanh.pop %v5747
      %v6248 = vtanh.pop %v5751
      %v6249 = vtanh.pop %v5755
      %v6250 = vtanh.pop %v5759
      %v6251 = vtanh.pop %v5763
      %v6252 = vtanh.pop %v5767
      %v6253 = vtanh.pop %v5771
      %v6254 = vtanh.pop %v5775
      %v6255 = vtanh.pop %v5779
      %v6256 = vtanh.pop %v5783
      %v6257 = vtanh.pop %v5787
      %v6258 = vtanh.pop %v5791
      %v6259 = vtanh.pop %v5795
      %v6260 = vtanh.pop %v5799
      %v6261 = vtanh.pop %v5803
      %v6262 = vtanh.pop %v5807
      %v6263 = vtanh.pop %v5811
      %v6264 = vtanh.pop %v5815
      %v6265 = vtanh.pop %v5819
      %v6266 = vtanh.pop %v5823
      %v6267 = vtanh.pop %v5827
      %v6268 = vtanh.pop %v5831
      %v6269 = vtanh.pop %v5835
      %v6270 = vtanh.pop %v5839
      %v6271 = vtanh.pop %v5843
      %v6272 = vtanh.pop %v5847
      %v6273 = vtanh.pop %v5851
      %v6274 = vtanh.pop %v5855
      %v6275 = vtanh.pop %v5859
      %v6276 = vmul.f32 %v6149, %v5136
      %v6277 = vmul.f32 %v6152, %v5137
      %v6278 = vmul.f32 %v6155, %v5138
      %v6279 = vmul.f32 %v6158, %v5139
      %v6280 = vmul.f32 %v6161, %v5140
      %v6281 = vmul.f32 %v6164, %v5141
      %v6282 = vmul.f32 %v6167, %v5142
      %v6283 = vmul.f32 %v6170, %v5143
      %v6284 = vmul.f32 %v6173, %v5144
      %v6285 = vmul.f32 %v6176, %v5145
      %v6286 = vmul.f32 %v6179, %v5146
      %v6287 = vmul.f32 %v6182, %v5147
      %v6288 = vmul.f32 %v6185, %v5148
      %v6289 = vmul.f32 %v6188, %v5149
      %v6290 = vmul.f32 %v6191, %v5150
      %v6291 = vmul.f32 %v6194, %v5151
      %v6292 = vmul.f32 %v6197, %v5152
      %v6293 = vmul.f32 %v6200, %v5153
      %v6294 = vmul.f32 %v6203, %v5154
      %v6295 = vmul.f32 %v6206, %v5155
      %v6296 = vmul.f32 %v6209, %v5156
      %v6297 = vmul.f32 %v6212, %v5157
      %v6298 = vmul.f32 %v6215, %v5158
      %v6299 = vmul.f32 %v6218, %v5159
      %v6300 = vmul.f32 %v6221, %v5160
      %v6301 = vmul.f32 %v6224, %v5161
      %v6302 = vmul.f32 %v6227, %v5162
      %v6303 = vmul.f32 %v6230, %v5163
      %v6304 = vmul.f32 %v6233, %v5164
      %v6305 = vmul.f32 %v6236, %v5165
      %v6306 = vmul.f32 %v6239, %v5166
      %v6307 = vmul.f32 %v6242, %v5167
      %v6308 = vmul.f32 %v6148, %v6244
      %v6309 = vmul.f32 %v6151, %v6245
      %v6310 = vmul.f32 %v6154, %v6246
      %v6311 = vmul.f32 %v6157, %v6247
      %v6312 = vmul.f32 %v6160, %v6248
      %v6313 = vmul.f32 %v6163, %v6249
      %v6314 = vmul.f32 %v6166, %v6250
      %v6315 = vmul.f32 %v6169, %v6251
      %v6316 = vmul.f32 %v6172, %v6252
      %v6317 = vmul.f32 %v6175, %v6253
      %v6318 = vmul.f32 %v6178, %v6254
      %v6319 = vmul.f32 %v6181, %v6255
      %v6320 = vmul.f32 %v6184, %v6256
      %v6321 = vmul.f32 %v6187, %v6257
      %v6322 = vmul.f32 %v6190, %v6258
      %v6323 = vmul.f32 %v6193, %v6259
      %v6324 = vmul.f32 %v6196, %v6260
      %v6325 = vmul.f32 %v6199, %v6261
      %v6326 = vmul.f32 %v6202, %v6262
      %v6327 = vmul.f32 %v6205, %v6263
      %v6328 = vmul.f32 %v6208, %v6264
      %v6329 = vmul.f32 %v6211, %v6265
      %v6330 = vmul.f32 %v6214, %v6266
      %v6331 = vmul.f32 %v6217, %v6267
      %v6332 = vmul.f32 %v6220, %v6268
      %v6333 = vmul.f32 %v6223, %v6269
      %v6334 = vmul.f32 %v6226, %v6270
      %v6335 = vmul.f32 %v6229, %v6271
      %v6336 = vmul.f32 %v6232, %v6272
      %v6337 = vmul.f32 %v6235, %v6273
      %v6338 = vmul.f32 %v6238, %v6274
      %v6339 = vmul.f32 %v6241, %v6275
      %v6340 = vadd.f32 %v6276, %v6308
      %v6341 = vadd.f32 %v6277, %v6309
      %v6342 = vadd.f32 %v6278, %v6310
      %v6343 = vadd.f32 %v6279, %v6311
      %v6344 = vadd.f32 %v6280, %v6312
      %v6345 = vadd.f32 %v6281, %v6313
      %v6346 = vadd.f32 %v6282, %v6314
      %v6347 = vadd.f32 %v6283, %v6315
      %v6348 = vadd.f32 %v6284, %v6316
      %v6349 = vadd.f32 %v6285, %v6317
      %v6350 = vadd.f32 %v6286, %v6318
      %v6351 = vadd.f32 %v6287, %v6319
      %v6352 = vadd.f32 %v6288, %v6320
      %v6353 = vadd.f32 %v6289, %v6321
      %v6354 = vadd.f32 %v6290, %v6322
      %v6355 = vadd.f32 %v6291, %v6323
      %v6356 = vadd.f32 %v6292, %v6324
      %v6357 = vadd.f32 %v6293, %v6325
      %v6358 = vadd.f32 %v6294, %v6326
      %v6359 = vadd.f32 %v6295, %v6327
      %v6360 = vadd.f32 %v6296, %v6328
      %v6361 = vadd.f32 %v6297, %v6329
      %v6362 = vadd.f32 %v6298, %v6330
      %v6363 = vadd.f32 %v6299, %v6331
      %v6364 = vadd.f32 %v6300, %v6332
      %v6365 = vadd.f32 %v6301, %v6333
      %v6366 = vadd.f32 %v6302, %v6334
      %v6367 = vadd.f32 %v6303, %v6335
      %v6368 = vadd.f32 %v6304, %v6336
      %v6369 = vadd.f32 %v6305, %v6337
      %v6370 = vadd.f32 %v6306, %v6338
      %v6371 = vadd.f32 %v6307, %v6339
      %v6372 = vtanh.pop %v6340
      %v6373 = vtanh.pop %v6341
      %v6374 = vtanh.pop %v6342
      %v6375 = vtanh.pop %v6343
      %v6376 = vtanh.pop %v6344
      %v6377 = vtanh.pop %v6345
      %v6378 = vtanh.pop %v6346
      %v6379 = vtanh.pop %v6347
      %v6380 = vtanh.pop %v6348
      %v6381 = vtanh.pop %v6349
      %v6382 = vtanh.pop %v6350
      %v6383 = vtanh.pop %v6351
      %v6384 = vtanh.pop %v6352
      %v6385 = vtanh.pop %v6353
      %v6386 = vtanh.pop %v6354
      %v6387 = vtanh.pop %v6355
      %v6388 = vtanh.pop %v6356
      %v6389 = vtanh.pop %v6357
      %v6390 = vtanh.pop %v6358
      %v6391 = vtanh.pop %v6359
      %v6392 = vtanh.pop %v6360
      %v6393 = vtanh.pop %v6361
      %v6394 = vtanh.pop %v6362
      %v6395 = vtanh.pop %v6363
      %v6396 = vtanh.pop %v6364
      %v6397 = vtanh.pop %v6365
      %v6398 = vtanh.pop %v6366
      %v6399 = vtanh.pop %v6367
      %v6400 = vtanh.pop %v6368
      %v6401 = vtanh.pop %v6369
      %v6402 = vtanh.pop %v6370
      %v6403 = vtanh.pop %v6371
      %v6404 = vmul.f32 %v6150, %v6372
      %v6405 = vmul.f32 %v6153, %v6373
      %v6406 = vmul.f32 %v6156, %v6374
      %v6407 = vmul.f32 %v6159, %v6375
      %v6408 = vmul.f32 %v6162, %v6376
      %v6409 = vmul.f32 %v6165, %v6377
      %v6410 = vmul.f32 %v6168, %v6378
      %v6411 = vmul.f32 %v6171, %v6379
      %v6412 = vmul.f32 %v6174, %v6380
      %v6413 = vmul.f32 %v6177, %v6381
      %v6414 = vmul.f32 %v6180, %v6382
      %v6415 = vmul.f32 %v6183, %v6383
      %v6416 = vmul.f32 %v6186, %v6384
      %v6417 = vmul.f32 %v6189, %v6385
      %v6418 = vmul.f32 %v6192, %v6386
      %v6419 = vmul.f32 %v6195, %v6387
      %v6420 = vmul.f32 %v6198, %v6388
      %v6421 = vmul.f32 %v6201, %v6389
      %v6422 = vmul.f32 %v6204, %v6390
      %v6423 = vmul.f32 %v6207, %v6391
      %v6424 = vmul.f32 %v6210, %v6392
      %v6425 = vmul.f32 %v6213, %v6393
      %v6426 = vmul.f32 %v6216, %v6394
      %v6427 = vmul.f32 %v6219, %v6395
      %v6428 = vmul.f32 %v6222, %v6396
      %v6429 = vmul.f32 %v6225, %v6397
      %v6430 = vmul.f32 %v6228, %v6398
      %v6431 = vmul.f32 %v6231, %v6399
      %v6432 = vmul.f32 %v6234, %v6400
      %v6433 = vmul.f32 %v6237, %v6401
      %v6434 = vmul.f32 %v6240, %v6402
      %v6435 = vmul.f32 %v6243, %v6403
      %v6436 = vld [vmem:[#allocation3 + $0xc00] sm:$0xff]
      %v6437 = vld [vmem:[#allocation3 + $0xc08] sm:$0xff]
      %v6438 = vld [vmem:[#allocation3 + $0xc10] sm:$0xff]
      %v6439 = vld [vmem:[#allocation3 + $0xc18] sm:$0xff]
      %v6440 = vld [vmem:[#allocation3 + $0xc20] sm:$0xff]
      %v6441 = vld [vmem:[#allocation3 + $0xc28] sm:$0xff]
      %v6442 = vld [vmem:[#allocation3 + $0xc30] sm:$0xff]
      %v6443 = vld [vmem:[#allocation3 + $0xc38] sm:$0xff]
      %v6444 = vld [vmem:[#allocation3 + $0xc40] sm:$0xff]
      %v6445 = vld [vmem:[#allocation3 + $0xc48] sm:$0xff]
      %v6446 = vld [vmem:[#allocation3 + $0xc50] sm:$0xff]
      %v6447 = vld [vmem:[#allocation3 + $0xc58] sm:$0xff]
      %v6448 = vld [vmem:[#allocation3 + $0xc60] sm:$0xff]
      %v6449 = vld [vmem:[#allocation3 + $0xc68] sm:$0xff]
      %v6450 = vld [vmem:[#allocation3 + $0xc70] sm:$0xff]
      %v6451 = vld [vmem:[#allocation3 + $0xc78] sm:$0xff]
      %v6452 = vld [vmem:[#allocation3 + $0xc80] sm:$0xff]
      %v6453 = vld [vmem:[#allocation3 + $0xc88] sm:$0xff]
      %v6454 = vld [vmem:[#allocation3 + $0xc90] sm:$0xff]
      %v6455 = vld [vmem:[#allocation3 + $0xc98] sm:$0xff]
      %v6456 = vld [vmem:[#allocation3 + $0xca0] sm:$0xff]
      %v6457 = vld [vmem:[#allocation3 + $0xca8] sm:$0xff]
      %v6458 = vld [vmem:[#allocation3 + $0xcb0] sm:$0xff]
      %v6459 = vld [vmem:[#allocation3 + $0xcb8] sm:$0xff]
      %v6460 = vld [vmem:[#allocation3 + $0xcc0] sm:$0xff]
      %v6461 = vld [vmem:[#allocation3 + $0xcc8] sm:$0xff]
      %v6462 = vld [vmem:[#allocation3 + $0xcd0] sm:$0xff]
      %v6463 = vld [vmem:[#allocation3 + $0xcd8] sm:$0xff]
      %v6464 = vld [vmem:[#allocation3 + $0xce0] sm:$0xff]
      %v6465 = vld [vmem:[#allocation3 + $0xce8] sm:$0xff]
      %v6466 = vld [vmem:[#allocation3 + $0xcf0] sm:$0xff]
      %v6467 = vld [vmem:[#allocation3 + $0xcf8] sm:$0xff]
      %v6468 = vld [vmem:[#allocation3 + $0xd00] sm:$0xff]
      %v6469 = vld [vmem:[#allocation3 + $0xd08] sm:$0xff]
      %v6470 = vld [vmem:[#allocation3 + $0xd10] sm:$0xff]
      %v6471 = vld [vmem:[#allocation3 + $0xd18] sm:$0xff]
      %v6472 = vld [vmem:[#allocation3 + $0xd20] sm:$0xff]
      %v6473 = vld [vmem:[#allocation3 + $0xd28] sm:$0xff]
      %v6474 = vld [vmem:[#allocation3 + $0xd30] sm:$0xff]
      %v6475 = vld [vmem:[#allocation3 + $0xd38] sm:$0xff]
      %v6476 = vld [vmem:[#allocation3 + $0xd40] sm:$0xff]
      %v6477 = vld [vmem:[#allocation3 + $0xd48] sm:$0xff]
      %v6478 = vld [vmem:[#allocation3 + $0xd50] sm:$0xff]
      %v6479 = vld [vmem:[#allocation3 + $0xd58] sm:$0xff]
      %v6480 = vld [vmem:[#allocation3 + $0xd60] sm:$0xff]
      %v6481 = vld [vmem:[#allocation3 + $0xd68] sm:$0xff]
      %v6482 = vld [vmem:[#allocation3 + $0xd70] sm:$0xff]
      %v6483 = vld [vmem:[#allocation3 + $0xd78] sm:$0xff]
      %v6484 = vld [vmem:[#allocation3 + $0xd80] sm:$0xff]
      %v6485 = vld [vmem:[#allocation3 + $0xd88] sm:$0xff]
      %v6486 = vld [vmem:[#allocation3 + $0xd90] sm:$0xff]
      %v6487 = vld [vmem:[#allocation3 + $0xd98] sm:$0xff]
      %v6488 = vld [vmem:[#allocation3 + $0xda0] sm:$0xff]
      %v6489 = vld [vmem:[#allocation3 + $0xda8] sm:$0xff]
      %v6490 = vld [vmem:[#allocation3 + $0xdb0] sm:$0xff]
      %v6491 = vld [vmem:[#allocation3 + $0xdb8] sm:$0xff]
      %v6492 = vld [vmem:[#allocation3 + $0xdc0] sm:$0xff]
      %v6493 = vld [vmem:[#allocation3 + $0xdc8] sm:$0xff]
      %v6494 = vld [vmem:[#allocation3 + $0xdd0] sm:$0xff]
      %v6495 = vld [vmem:[#allocation3 + $0xdd8] sm:$0xff]
      %v6496 = vld [vmem:[#allocation3 + $0xde0] sm:$0xff]
      %v6497 = vld [vmem:[#allocation3 + $0xde8] sm:$0xff]
      %v6498 = vld [vmem:[#allocation3 + $0xdf0] sm:$0xff]
      %v6499 = vld [vmem:[#allocation3 + $0xdf8] sm:$0xff]
      %v6500 = vld [vmem:[#allocation3 + $0xe00] sm:$0xff]
      %v6501 = vld [vmem:[#allocation3 + $0xe08] sm:$0xff]
      %v6502 = vld [vmem:[#allocation3 + $0xe10] sm:$0xff]
      %v6503 = vld [vmem:[#allocation3 + $0xe18] sm:$0xff]
      %v6504 = vld [vmem:[#allocation3 + $0xe20] sm:$0xff]
      %v6505 = vld [vmem:[#allocation3 + $0xe28] sm:$0xff]
      %v6506 = vld [vmem:[#allocation3 + $0xe30] sm:$0xff]
      %v6507 = vld [vmem:[#allocation3 + $0xe38] sm:$0xff]
      %v6508 = vld [vmem:[#allocation3 + $0xe40] sm:$0xff]
      %v6509 = vld [vmem:[#allocation3 + $0xe48] sm:$0xff]
      %v6510 = vld [vmem:[#allocation3 + $0xe50] sm:$0xff]
      %v6511 = vld [vmem:[#allocation3 + $0xe58] sm:$0xff]
      %v6512 = vld [vmem:[#allocation3 + $0xe60] sm:$0xff]
      %v6513 = vld [vmem:[#allocation3 + $0xe68] sm:$0xff]
      %v6514 = vld [vmem:[#allocation3 + $0xe70] sm:$0xff]
      %v6515 = vld [vmem:[#allocation3 + $0xe78] sm:$0xff]
      %v6516 = vld [vmem:[#allocation3 + $0xe80] sm:$0xff]
      %v6517 = vld [vmem:[#allocation3 + $0xe88] sm:$0xff]
      %v6518 = vld [vmem:[#allocation3 + $0xe90] sm:$0xff]
      %v6519 = vld [vmem:[#allocation3 + $0xe98] sm:$0xff]
      %v6520 = vld [vmem:[#allocation3 + $0xea0] sm:$0xff]
      %v6521 = vld [vmem:[#allocation3 + $0xea8] sm:$0xff]
      %v6522 = vld [vmem:[#allocation3 + $0xeb0] sm:$0xff]
      %v6523 = vld [vmem:[#allocation3 + $0xeb8] sm:$0xff]
      %v6524 = vld [vmem:[#allocation3 + $0xec0] sm:$0xff]
      %v6525 = vld [vmem:[#allocation3 + $0xec8] sm:$0xff]
      %v6526 = vld [vmem:[#allocation3 + $0xed0] sm:$0xff]
      %v6527 = vld [vmem:[#allocation3 + $0xed8] sm:$0xff]
      %v6528 = vld [vmem:[#allocation3 + $0xee0] sm:$0xff]
      %v6529 = vld [vmem:[#allocation3 + $0xee8] sm:$0xff]
      %v6530 = vld [vmem:[#allocation3 + $0xef0] sm:$0xff]
      %v6531 = vld [vmem:[#allocation3 + $0xef8] sm:$0xff]
      %v6532 = vld [vmem:[#allocation3 + $0xf00] sm:$0xff]
      %v6533 = vld [vmem:[#allocation3 + $0xf08] sm:$0xff]
      %v6534 = vld [vmem:[#allocation3 + $0xf10] sm:$0xff]
      %v6535 = vld [vmem:[#allocation3 + $0xf18] sm:$0xff]
      %v6536 = vld [vmem:[#allocation3 + $0xf20] sm:$0xff]
      %v6537 = vld [vmem:[#allocation3 + $0xf28] sm:$0xff]
      %v6538 = vld [vmem:[#allocation3 + $0xf30] sm:$0xff]
      %v6539 = vld [vmem:[#allocation3 + $0xf38] sm:$0xff]
      %v6540 = vld [vmem:[#allocation3 + $0xf40] sm:$0xff]
      %v6541 = vld [vmem:[#allocation3 + $0xf48] sm:$0xff]
      %v6542 = vld [vmem:[#allocation3 + $0xf50] sm:$0xff]
      %v6543 = vld [vmem:[#allocation3 + $0xf58] sm:$0xff]
      %v6544 = vld [vmem:[#allocation3 + $0xf60] sm:$0xff]
      %v6545 = vld [vmem:[#allocation3 + $0xf68] sm:$0xff]
      %v6546 = vld [vmem:[#allocation3 + $0xf70] sm:$0xff]
      %v6547 = vld [vmem:[#allocation3 + $0xf78] sm:$0xff]
      %v6548 = vld [vmem:[#allocation3 + $0xf80] sm:$0xff]
      %v6549 = vld [vmem:[#allocation3 + $0xf88] sm:$0xff]
      %v6550 = vld [vmem:[#allocation3 + $0xf90] sm:$0xff]
      %v6551 = vld [vmem:[#allocation3 + $0xf98] sm:$0xff]
      %v6552 = vld [vmem:[#allocation3 + $0xfa0] sm:$0xff]
      %v6553 = vld [vmem:[#allocation3 + $0xfa8] sm:$0xff]
      %v6554 = vld [vmem:[#allocation3 + $0xfb0] sm:$0xff]
      %v6555 = vld [vmem:[#allocation3 + $0xfb8] sm:$0xff]
      %v6556 = vld [vmem:[#allocation3 + $0xfc0] sm:$0xff]
      %v6557 = vld [vmem:[#allocation3 + $0xfc8] sm:$0xff]
      %v6558 = vld [vmem:[#allocation3 + $0xfd0] sm:$0xff]
      %v6559 = vld [vmem:[#allocation3 + $0xfd8] sm:$0xff]
      %v6560 = vld [vmem:[#allocation3 + $0xfe0] sm:$0xff]
      %v6561 = vld [vmem:[#allocation3 + $0xfe8] sm:$0xff]
      %v6562 = vld [vmem:[#allocation3 + $0xff0] sm:$0xff]
      %v6563 = vld [vmem:[#allocation3 + $0xff8] sm:$0xff]
      %v6564 = vpack.c.bf16 %v6405, %v6404
      %v6565 = vpack.c.bf16 %v6407, %v6406
      %v6566 = vpack.c.bf16 %v6409, %v6408
      %v6567 = vpack.c.bf16 %v6411, %v6410
      %v6568 = vpack.c.bf16 %v6413, %v6412
      %v6569 = vpack.c.bf16 %v6415, %v6414
      %v6570 = vpack.c.bf16 %v6417, %v6416
      %v6571 = vpack.c.bf16 %v6419, %v6418
      %v6572 = vpack.c.bf16 %v6421, %v6420
      %v6573 = vpack.c.bf16 %v6423, %v6422
      %v6574 = vpack.c.bf16 %v6425, %v6424
      %v6575 = vpack.c.bf16 %v6427, %v6426
      %v6576 = vpack.c.bf16 %v6429, %v6428
      %v6577 = vpack.c.bf16 %v6431, %v6430
      %v6578 = vpack.c.bf16 %v6433, %v6432
      %v6579 = vpack.c.bf16 %v6435, %v6434
      %6580 = vmatpush.bf16.msra.mxu0 %v2932
      %6581 = vmatpush.bf16.msra.mxu0 %v2928
      %6582 = vmatpush.bf16.msra.mxu0 %v2924
      %6583 = vmatpush.bf16.msra.mxu0 %v2920
      %6584 = vmatpush.bf16.msra.mxu0 %v2916
      %6585 = vmatpush.bf16.msra.mxu0 %v2912
      %6586 = vmatpush.bf16.msra.mxu0 %v2908
      %6587 = vmatpush.bf16.msra.mxu0 %v2904
      %6588 = vmatmul.bf16.gmra.mxu0 %v6564
      %v6589 = vpop.f32.mrf.mxu0
      %v6590 = vadd.f32 0.0, %v6589
      %v6591 = vpop.f32.mrf.mxu0
      %v6592 = vadd.f32 0.0, %v6591
      %6593 = vmatmul.bf16.gmra.mxu0 %v6565
      %v6594 = vpop.f32.mrf.mxu0
      %v6595 = vadd.f32 0.0, %v6594
      %v6596 = vpop.f32.mrf.mxu0
      %v6597 = vadd.f32 0.0, %v6596
      %6598 = vmatmul.bf16.gmra.mxu0 %v6566
      %v6599 = vpop.f32.mrf.mxu0
      %v6600 = vadd.f32 0.0, %v6599
      %v6601 = vpop.f32.mrf.mxu0
      %v6602 = vadd.f32 0.0, %v6601
      %6603 = vmatmul.bf16.gmra.mxu0 %v6567
      %v6604 = vpop.f32.mrf.mxu0
      %v6605 = vadd.f32 0.0, %v6604
      %v6606 = vpop.f32.mrf.mxu0
      %v6607 = vadd.f32 0.0, %v6606
      %6608 = vmatmul.bf16.gmra.mxu0 %v6568
      %v6609 = vpop.f32.mrf.mxu0
      %v6610 = vadd.f32 0.0, %v6609
      %v6611 = vpop.f32.mrf.mxu0
      %v6612 = vadd.f32 0.0, %v6611
      %6613 = vmatmul.bf16.gmra.mxu0 %v6569
      %v6614 = vpop.f32.mrf.mxu0
      %v6615 = vadd.f32 0.0, %v6614
      %v6616 = vpop.f32.mrf.mxu0
      %v6617 = vadd.f32 0.0, %v6616
      %6618 = vmatmul.bf16.gmra.mxu0 %v6570
      %v6619 = vpop.f32.mrf.mxu0
      %v6620 = vadd.f32 0.0, %v6619
      %v6621 = vpop.f32.mrf.mxu0
      %v6622 = vadd.f32 0.0, %v6621
      %6623 = vmatmul.bf16.gmra.mxu0 %v6571
      %v6624 = vpop.f32.mrf.mxu0
      %v6625 = vadd.f32 0.0, %v6624
      %v6626 = vpop.f32.mrf.mxu0
      %v6627 = vadd.f32 0.0, %v6626
      %6628 = vmatmul.bf16.gmra.mxu0 %v6572
      %v6629 = vpop.f32.mrf.mxu0
      %v6630 = vadd.f32 0.0, %v6629
      %v6631 = vpop.f32.mrf.mxu0
      %v6632 = vadd.f32 0.0, %v6631
      %6633 = vmatmul.bf16.gmra.mxu0 %v6573
      %v6634 = vpop.f32.mrf.mxu0
      %v6635 = vadd.f32 0.0, %v6634
      %v6636 = vpop.f32.mrf.mxu0
      %v6637 = vadd.f32 0.0, %v6636
      %6638 = vmatmul.bf16.gmra.mxu0 %v6574
      %v6639 = vpop.f32.mrf.mxu0
      %v6640 = vadd.f32 0.0, %v6639
      %v6641 = vpop.f32.mrf.mxu0
      %v6642 = vadd.f32 0.0, %v6641
      %6643 = vmatmul.bf16.gmra.mxu0 %v6575
      %v6644 = vpop.f32.mrf.mxu0
      %v6645 = vadd.f32 0.0, %v6644
      %v6646 = vpop.f32.mrf.mxu0
      %v6647 = vadd.f32 0.0, %v6646
      %6648 = vmatmul.bf16.gmra.mxu0 %v6576
      %v6649 = vpop.f32.mrf.mxu0
      %v6650 = vadd.f32 0.0, %v6649
      %v6651 = vpop.f32.mrf.mxu0
      %v6652 = vadd.f32 0.0, %v6651
      %6653 = vmatmul.bf16.gmra.mxu0 %v6577
      %v6654 = vpop.f32.mrf.mxu0
      %v6655 = vadd.f32 0.0, %v6654
      %v6656 = vpop.f32.mrf.mxu0
      %v6657 = vadd.f32 0.0, %v6656
      %6658 = vmatmul.bf16.gmra.mxu0 %v6578
      %v6659 = vpop.f32.mrf.mxu0
      %v6660 = vadd.f32 0.0, %v6659
      %v6661 = vpop.f32.mrf.mxu0
      %v6662 = vadd.f32 0.0, %v6661
      %6663 = vmatmul.bf16.gmra.mxu0 %v6579
      %v6664 = vpop.f32.mrf.mxu0
      %v6665 = vadd.f32 0.0, %v6664
      %v6666 = vpop.f32.mrf.mxu0
      %v6667 = vadd.f32 0.0, %v6666
      %6668 = vdwg.mxu0
      %6669 = vmatpush.bf16.msra.mxu0 %v2933
      %6670 = vmatpush.bf16.msra.mxu0 %v2929
      %6671 = vmatpush.bf16.msra.mxu0 %v2925
      %6672 = vmatpush.bf16.msra.mxu0 %v2921
      %6673 = vmatpush.bf16.msra.mxu0 %v2917
      %6674 = vmatpush.bf16.msra.mxu0 %v2913
      %6675 = vmatpush.bf16.msra.mxu0 %v2909
      %6676 = vmatpush.bf16.msra.mxu0 %v2905
      %6677 = vmatmul.bf16.gmra.mxu0 %v6564
      %v6678 = vpop.f32.mrf.mxu0
      %v6679 = vadd.f32 0.0, %v6678
      %v6680 = vpop.f32.mrf.mxu0
      %v6681 = vadd.f32 0.0, %v6680
      %6682 = vmatmul.bf16.gmra.mxu0 %v6565
      %v6683 = vpop.f32.mrf.mxu0
      %v6684 = vadd.f32 0.0, %v6683
      %v6685 = vpop.f32.mrf.mxu0
      %v6686 = vadd.f32 0.0, %v6685
      %6687 = vmatmul.bf16.gmra.mxu0 %v6566
      %v6688 = vpop.f32.mrf.mxu0
      %v6689 = vadd.f32 0.0, %v6688
      %v6690 = vpop.f32.mrf.mxu0
      %v6691 = vadd.f32 0.0, %v6690
      %6692 = vmatmul.bf16.gmra.mxu0 %v6567
      %v6693 = vpop.f32.mrf.mxu0
      %v6694 = vadd.f32 0.0, %v6693
      %v6695 = vpop.f32.mrf.mxu0
      %v6696 = vadd.f32 0.0, %v6695
      %6697 = vmatmul.bf16.gmra.mxu0 %v6568
      %v6698 = vpop.f32.mrf.mxu0
      %v6699 = vadd.f32 0.0, %v6698
      %v6700 = vpop.f32.mrf.mxu0
      %v6701 = vadd.f32 0.0, %v6700
      %6702 = vmatmul.bf16.gmra.mxu0 %v6569
      %v6703 = vpop.f32.mrf.mxu0
      %v6704 = vadd.f32 0.0, %v6703
      %v6705 = vpop.f32.mrf.mxu0
      %v6706 = vadd.f32 0.0, %v6705
      %6707 = vmatmul.bf16.gmra.mxu0 %v6570
      %v6708 = vpop.f32.mrf.mxu0
      %v6709 = vadd.f32 0.0, %v6708
      %v6710 = vpop.f32.mrf.mxu0
      %v6711 = vadd.f32 0.0, %v6710
      %6712 = vmatmul.bf16.gmra.mxu0 %v6571
      %v6713 = vpop.f32.mrf.mxu0
      %v6714 = vadd.f32 0.0, %v6713
      %v6715 = vpop.f32.mrf.mxu0
      %v6716 = vadd.f32 0.0, %v6715
      %6717 = vmatmul.bf16.gmra.mxu0 %v6572
      %v6718 = vpop.f32.mrf.mxu0
      %v6719 = vadd.f32 0.0, %v6718
      %v6720 = vpop.f32.mrf.mxu0
      %v6721 = vadd.f32 0.0, %v6720
      %6722 = vmatmul.bf16.gmra.mxu0 %v6573
      %v6723 = vpop.f32.mrf.mxu0
      %v6724 = vadd.f32 0.0, %v6723
      %v6725 = vpop.f32.mrf.mxu0
      %v6726 = vadd.f32 0.0, %v6725
      %6727 = vmatmul.bf16.gmra.mxu0 %v6574
      %v6728 = vpop.f32.mrf.mxu0
      %v6729 = vadd.f32 0.0, %v6728
      %v6730 = vpop.f32.mrf.mxu0
      %v6731 = vadd.f32 0.0, %v6730
      %6732 = vmatmul.bf16.gmra.mxu0 %v6575
      %v6733 = vpop.f32.mrf.mxu0
      %v6734 = vadd.f32 0.0, %v6733
      %v6735 = vpop.f32.mrf.mxu0
      %v6736 = vadd.f32 0.0, %v6735
      %6737 = vmatmul.bf16.gmra.mxu0 %v6576
      %v6738 = vpop.f32.mrf.mxu0
      %v6739 = vadd.f32 0.0, %v6738
      %v6740 = vpop.f32.mrf.mxu0
      %v6741 = vadd.f32 0.0, %v6740
      %6742 = vmatmul.bf16.gmra.mxu0 %v6577
      %v6743 = vpop.f32.mrf.mxu0
      %v6744 = vadd.f32 0.0, %v6743
      %v6745 = vpop.f32.mrf.mxu0
      %v6746 = vadd.f32 0.0, %v6745
      %6747 = vmatmul.bf16.gmra.mxu0 %v6578
      %v6748 = vpop.f32.mrf.mxu0
      %v6749 = vadd.f32 0.0, %v6748
      %v6750 = vpop.f32.mrf.mxu0
      %v6751 = vadd.f32 0.0, %v6750
      %6752 = vmatmul.bf16.gmra.mxu0 %v6579
      %v6753 = vpop.f32.mrf.mxu0
      %v6754 = vadd.f32 0.0, %v6753
      %v6755 = vpop.f32.mrf.mxu0
      %v6756 = vadd.f32 0.0, %v6755
      %6757 = vdwg.mxu0
      %6758 = vmatpush.bf16.msra.mxu0 %v2934
      %6759 = vmatpush.bf16.msra.mxu0 %v2930
      %6760 = vmatpush.bf16.msra.mxu0 %v2926
      %6761 = vmatpush.bf16.msra.mxu0 %v2922
      %6762 = vmatpush.bf16.msra.mxu0 %v2918
      %6763 = vmatpush.bf16.msra.mxu0 %v2914
      %6764 = vmatpush.bf16.msra.mxu0 %v2910
      %6765 = vmatpush.bf16.msra.mxu0 %v2906
      %6766 = vmatmul.bf16.gmra.mxu0 %v6564
      %v6767 = vpop.f32.mrf.mxu0
      %v6768 = vadd.f32 0.0, %v6767
      %v6769 = vpop.f32.mrf.mxu0
      %v6770 = vadd.f32 0.0, %v6769
      %6771 = vmatmul.bf16.gmra.mxu0 %v6565
      %v6772 = vpop.f32.mrf.mxu0
      %v6773 = vadd.f32 0.0, %v6772
      %v6774 = vpop.f32.mrf.mxu0
      %v6775 = vadd.f32 0.0, %v6774
      %6776 = vmatmul.bf16.gmra.mxu0 %v6566
      %v6777 = vpop.f32.mrf.mxu0
      %v6778 = vadd.f32 0.0, %v6777
      %v6779 = vpop.f32.mrf.mxu0
      %v6780 = vadd.f32 0.0, %v6779
      %6781 = vmatmul.bf16.gmra.mxu0 %v6567
      %v6782 = vpop.f32.mrf.mxu0
      %v6783 = vadd.f32 0.0, %v6782
      %v6784 = vpop.f32.mrf.mxu0
      %v6785 = vadd.f32 0.0, %v6784
      %6786 = vmatmul.bf16.gmra.mxu0 %v6568
      %v6787 = vpop.f32.mrf.mxu0
      %v6788 = vadd.f32 0.0, %v6787
      %v6789 = vpop.f32.mrf.mxu0
      %v6790 = vadd.f32 0.0, %v6789
      %6791 = vmatmul.bf16.gmra.mxu0 %v6569
      %v6792 = vpop.f32.mrf.mxu0
      %v6793 = vadd.f32 0.0, %v6792
      %v6794 = vpop.f32.mrf.mxu0
      %v6795 = vadd.f32 0.0, %v6794
      %6796 = vmatmul.bf16.gmra.mxu0 %v6570
      %v6797 = vpop.f32.mrf.mxu0
      %v6798 = vadd.f32 0.0, %v6797
      %v6799 = vpop.f32.mrf.mxu0
      %v6800 = vadd.f32 0.0, %v6799
      %6801 = vmatmul.bf16.gmra.mxu0 %v6571
      %v6802 = vpop.f32.mrf.mxu0
      %v6803 = vadd.f32 0.0, %v6802
      %v6804 = vpop.f32.mrf.mxu0
      %v6805 = vadd.f32 0.0, %v6804
      %6806 = vmatmul.bf16.gmra.mxu0 %v6572
      %v6807 = vpop.f32.mrf.mxu0
      %v6808 = vadd.f32 0.0, %v6807
      %v6809 = vpop.f32.mrf.mxu0
      %v6810 = vadd.f32 0.0, %v6809
      %6811 = vmatmul.bf16.gmra.mxu0 %v6573
      %v6812 = vpop.f32.mrf.mxu0
      %v6813 = vadd.f32 0.0, %v6812
      %v6814 = vpop.f32.mrf.mxu0
      %v6815 = vadd.f32 0.0, %v6814
      %6816 = vmatmul.bf16.gmra.mxu0 %v6574
      %v6817 = vpop.f32.mrf.mxu0
      %v6818 = vadd.f32 0.0, %v6817
      %v6819 = vpop.f32.mrf.mxu0
      %v6820 = vadd.f32 0.0, %v6819
      %6821 = vmatmul.bf16.gmra.mxu0 %v6575
      %v6822 = vpop.f32.mrf.mxu0
      %v6823 = vadd.f32 0.0, %v6822
      %v6824 = vpop.f32.mrf.mxu0
      %v6825 = vadd.f32 0.0, %v6824
      %6826 = vmatmul.bf16.gmra.mxu0 %v6576
      %v6827 = vpop.f32.mrf.mxu0
      %v6828 = vadd.f32 0.0, %v6827
      %v6829 = vpop.f32.mrf.mxu0
      %v6830 = vadd.f32 0.0, %v6829
      %6831 = vmatmul.bf16.gmra.mxu0 %v6577
      %v6832 = vpop.f32.mrf.mxu0
      %v6833 = vadd.f32 0.0, %v6832
      %v6834 = vpop.f32.mrf.mxu0
      %v6835 = vadd.f32 0.0, %v6834
      %6836 = vmatmul.bf16.gmra.mxu0 %v6578
      %v6837 = vpop.f32.mrf.mxu0
      %v6838 = vadd.f32 0.0, %v6837
      %v6839 = vpop.f32.mrf.mxu0
      %v6840 = vadd.f32 0.0, %v6839
      %6841 = vmatmul.bf16.gmra.mxu0 %v6579
      %v6842 = vpop.f32.mrf.mxu0
      %v6843 = vadd.f32 0.0, %v6842
      %v6844 = vpop.f32.mrf.mxu0
      %v6845 = vadd.f32 0.0, %v6844
      %6846 = vdwg.mxu0
      %6847 = vmatpush.bf16.msra.mxu0 %v2935
      %6848 = vmatpush.bf16.msra.mxu0 %v2931
      %6849 = vmatpush.bf16.msra.mxu0 %v2927
      %6850 = vmatpush.bf16.msra.mxu0 %v2923
      %6851 = vmatpush.bf16.msra.mxu0 %v2919
      %6852 = vmatpush.bf16.msra.mxu0 %v2915
      %6853 = vmatpush.bf16.msra.mxu0 %v2911
      %6854 = vmatpush.bf16.msra.mxu0 %v2907
      %6855 = vmatmul.bf16.gmra.mxu0 %v6564
      %v6856 = vpop.f32.mrf.mxu0
      %v6857 = vadd.f32 0.0, %v6856
      %v6858 = vpop.f32.mrf.mxu0
      %v6859 = vadd.f32 0.0, %v6858
      %6860 = vmatmul.bf16.gmra.mxu0 %v6565
      %v6861 = vpop.f32.mrf.mxu0
      %v6862 = vadd.f32 0.0, %v6861
      %v6863 = vpop.f32.mrf.mxu0
      %v6864 = vadd.f32 0.0, %v6863
      %6865 = vmatmul.bf16.gmra.mxu0 %v6566
      %v6866 = vpop.f32.mrf.mxu0
      %v6867 = vadd.f32 0.0, %v6866
      %v6868 = vpop.f32.mrf.mxu0
      %v6869 = vadd.f32 0.0, %v6868
      %6870 = vmatmul.bf16.gmra.mxu0 %v6567
      %v6871 = vpop.f32.mrf.mxu0
      %v6872 = vadd.f32 0.0, %v6871
      %v6873 = vpop.f32.mrf.mxu0
      %v6874 = vadd.f32 0.0, %v6873
      %6875 = vmatmul.bf16.gmra.mxu0 %v6568
      %v6876 = vpop.f32.mrf.mxu0
      %v6877 = vadd.f32 0.0, %v6876
      %v6878 = vpop.f32.mrf.mxu0
      %v6879 = vadd.f32 0.0, %v6878
      %6880 = vmatmul.bf16.gmra.mxu0 %v6569
      %v6881 = vpop.f32.mrf.mxu0
      %v6882 = vadd.f32 0.0, %v6881
      %v6883 = vpop.f32.mrf.mxu0
      %v6884 = vadd.f32 0.0, %v6883
      %6885 = vmatmul.bf16.gmra.mxu0 %v6570
      %v6886 = vpop.f32.mrf.mxu0
      %v6887 = vadd.f32 0.0, %v6886
      %v6888 = vpop.f32.mrf.mxu0
      %v6889 = vadd.f32 0.0, %v6888
      %6890 = vmatmul.bf16.gmra.mxu0 %v6571
      %v6891 = vpop.f32.mrf.mxu0
      %v6892 = vadd.f32 0.0, %v6891
      %v6893 = vpop.f32.mrf.mxu0
      %v6894 = vadd.f32 0.0, %v6893
      %6895 = vmatmul.bf16.gmra.mxu0 %v6572
      %v6896 = vpop.f32.mrf.mxu0
      %v6897 = vadd.f32 0.0, %v6896
      %v6898 = vpop.f32.mrf.mxu0
      %v6899 = vadd.f32 0.0, %v6898
      %6900 = vmatmul.bf16.gmra.mxu0 %v6573
      %v6901 = vpop.f32.mrf.mxu0
      %v6902 = vadd.f32 0.0, %v6901
      %v6903 = vpop.f32.mrf.mxu0
      %v6904 = vadd.f32 0.0, %v6903
      %6905 = vmatmul.bf16.gmra.mxu0 %v6574
      %v6906 = vpop.f32.mrf.mxu0
      %v6907 = vadd.f32 0.0, %v6906
      %v6908 = vpop.f32.mrf.mxu0
      %v6909 = vadd.f32 0.0, %v6908
      %6910 = vmatmul.bf16.gmra.mxu0 %v6575
      %v6911 = vpop.f32.mrf.mxu0
      %v6912 = vadd.f32 0.0, %v6911
      %v6913 = vpop.f32.mrf.mxu0
      %v6914 = vadd.f32 0.0, %v6913
      %6915 = vmatmul.bf16.gmra.mxu0 %v6576
      %v6916 = vpop.f32.mrf.mxu0
      %v6917 = vadd.f32 0.0, %v6916
      %v6918 = vpop.f32.mrf.mxu0
      %v6919 = vadd.f32 0.0, %v6918
      %6920 = vmatmul.bf16.gmra.mxu0 %v6577
      %v6921 = vpop.f32.mrf.mxu0
      %v6922 = vadd.f32 0.0, %v6921
      %v6923 = vpop.f32.mrf.mxu0
      %v6924 = vadd.f32 0.0, %v6923
      %6925 = vmatmul.bf16.gmra.mxu0 %v6578
      %v6926 = vpop.f32.mrf.mxu0
      %v6927 = vadd.f32 0.0, %v6926
      %v6928 = vpop.f32.mrf.mxu0
      %v6929 = vadd.f32 0.0, %v6928
      %6930 = vmatmul.bf16.gmra.mxu0 %v6579
      %v6931 = vpop.f32.mrf.mxu0
      %v6932 = vadd.f32 0.0, %v6931
      %v6933 = vpop.f32.mrf.mxu0
      %v6934 = vadd.f32 0.0, %v6933
      %6935 = vdwg.mxu0
      %v6936 = vadd.f32 %v6436, %v6590
      %v6937 = vadd.f32 %v6437, %v6679
      %v6938 = vadd.f32 %v6438, %v6768
      %v6939 = vadd.f32 %v6439, %v6857
      %v6940 = vadd.f32 %v6440, %v6592
      %v6941 = vadd.f32 %v6441, %v6681
      %v6942 = vadd.f32 %v6442, %v6770
      %v6943 = vadd.f32 %v6443, %v6859
      %v6944 = vadd.f32 %v6444, %v6595
      %v6945 = vadd.f32 %v6445, %v6684
      %v6946 = vadd.f32 %v6446, %v6773
      %v6947 = vadd.f32 %v6447, %v6862
      %v6948 = vadd.f32 %v6448, %v6597
      %v6949 = vadd.f32 %v6449, %v6686
      %v6950 = vadd.f32 %v6450, %v6775
      %v6951 = vadd.f32 %v6451, %v6864
      %v6952 = vadd.f32 %v6452, %v6600
      %v6953 = vadd.f32 %v6453, %v6689
      %v6954 = vadd.f32 %v6454, %v6778
      %v6955 = vadd.f32 %v6455, %v6867
      %v6956 = vadd.f32 %v6456, %v6602
      %v6957 = vadd.f32 %v6457, %v6691
      %v6958 = vadd.f32 %v6458, %v6780
      %v6959 = vadd.f32 %v6459, %v6869
      %v6960 = vadd.f32 %v6460, %v6605
      %v6961 = vadd.f32 %v6461, %v6694
      %v6962 = vadd.f32 %v6462, %v6783
      %v6963 = vadd.f32 %v6463, %v6872
      %v6964 = vadd.f32 %v6464, %v6607
      %v6965 = vadd.f32 %v6465, %v6696
      %v6966 = vadd.f32 %v6466, %v6785
      %v6967 = vadd.f32 %v6467, %v6874
      %v6968 = vadd.f32 %v6468, %v6610
      %v6969 = vadd.f32 %v6469, %v6699
      %v6970 = vadd.f32 %v6470, %v6788
      %v6971 = vadd.f32 %v6471, %v6877
      %v6972 = vadd.f32 %v6472, %v6612
      %v6973 = vadd.f32 %v6473, %v6701
      %v6974 = vadd.f32 %v6474, %v6790
      %v6975 = vadd.f32 %v6475, %v6879
      %v6976 = vadd.f32 %v6476, %v6615
      %v6977 = vadd.f32 %v6477, %v6704
      %v6978 = vadd.f32 %v6478, %v6793
      %v6979 = vadd.f32 %v6479, %v6882
      %v6980 = vadd.f32 %v6480, %v6617
      %v6981 = vadd.f32 %v6481, %v6706
      %v6982 = vadd.f32 %v6482, %v6795
      %v6983 = vadd.f32 %v6483, %v6884
      %v6984 = vadd.f32 %v6484, %v6620
      %v6985 = vadd.f32 %v6485, %v6709
      %v6986 = vadd.f32 %v6486, %v6798
      %v6987 = vadd.f32 %v6487, %v6887
      %v6988 = vadd.f32 %v6488, %v6622
      %v6989 = vadd.f32 %v6489, %v6711
      %v6990 = vadd.f32 %v6490, %v6800
      %v6991 = vadd.f32 %v6491, %v6889
      %v6992 = vadd.f32 %v6492, %v6625
      %v6993 = vadd.f32 %v6493, %v6714
      %v6994 = vadd.f32 %v6494, %v6803
      %v6995 = vadd.f32 %v6495, %v6892
      %v6996 = vadd.f32 %v6496, %v6627
      %v6997 = vadd.f32 %v6497, %v6716
      %v6998 = vadd.f32 %v6498, %v6805
      %v6999 = vadd.f32 %v6499, %v6894
      %v7000 = vadd.f32 %v6500, %v6630
      %v7001 = vadd.f32 %v6501, %v6719
      %v7002 = vadd.f32 %v6502, %v6808
      %v7003 = vadd.f32 %v6503, %v6897
      %v7004 = vadd.f32 %v6504, %v6632
      %v7005 = vadd.f32 %v6505, %v6721
      %v7006 = vadd.f32 %v6506, %v6810
      %v7007 = vadd.f32 %v6507, %v6899
      %v7008 = vadd.f32 %v6508, %v6635
      %v7009 = vadd.f32 %v6509, %v6724
      %v7010 = vadd.f32 %v6510, %v6813
      %v7011 = vadd.f32 %v6511, %v6902
      %v7012 = vadd.f32 %v6512, %v6637
      %v7013 = vadd.f32 %v6513, %v6726
      %v7014 = vadd.f32 %v6514, %v6815
      %v7015 = vadd.f32 %v6515, %v6904
      %v7016 = vadd.f32 %v6516, %v6640
      %v7017 = vadd.f32 %v6517, %v6729
      %v7018 = vadd.f32 %v6518, %v6818
      %v7019 = vadd.f32 %v6519, %v6907
      %v7020 = vadd.f32 %v6520, %v6642
      %v7021 = vadd.f32 %v6521, %v6731
      %v7022 = vadd.f32 %v6522, %v6820
      %v7023 = vadd.f32 %v6523, %v6909
      %v7024 = vadd.f32 %v6524, %v6645
      %v7025 = vadd.f32 %v6525, %v6734
      %v7026 = vadd.f32 %v6526, %v6823
      %v7027 = vadd.f32 %v6527, %v6912
      %v7028 = vadd.f32 %v6528, %v6647
      %v7029 = vadd.f32 %v6529, %v6736
      %v7030 = vadd.f32 %v6530, %v6825
      %v7031 = vadd.f32 %v6531, %v6914
      %v7032 = vadd.f32 %v6532, %v6650
      %v7033 = vadd.f32 %v6533, %v6739
      %v7034 = vadd.f32 %v6534, %v6828
      %v7035 = vadd.f32 %v6535, %v6917
      %v7036 = vadd.f32 %v6536, %v6652
      %v7037 = vadd.f32 %v6537, %v6741
      %v7038 = vadd.f32 %v6538, %v6830
      %v7039 = vadd.f32 %v6539, %v6919
      %v7040 = vadd.f32 %v6540, %v6655
      %v7041 = vadd.f32 %v6541, %v6744
      %v7042 = vadd.f32 %v6542, %v6833
      %v7043 = vadd.f32 %v6543, %v6922
      %v7044 = vadd.f32 %v6544, %v6657
      %v7045 = vadd.f32 %v6545, %v6746
      %v7046 = vadd.f32 %v6546, %v6835
      %v7047 = vadd.f32 %v6547, %v6924
      %v7048 = vadd.f32 %v6548, %v6660
      %v7049 = vadd.f32 %v6549, %v6749
      %v7050 = vadd.f32 %v6550, %v6838
      %v7051 = vadd.f32 %v6551, %v6927
      %v7052 = vadd.f32 %v6552, %v6662
      %v7053 = vadd.f32 %v6553, %v6751
      %v7054 = vadd.f32 %v6554, %v6840
      %v7055 = vadd.f32 %v6555, %v6929
      %v7056 = vadd.f32 %v6556, %v6665
      %v7057 = vadd.f32 %v6557, %v6754
      %v7058 = vadd.f32 %v6558, %v6843
      %v7059 = vadd.f32 %v6559, %v6932
      %v7060 = vadd.f32 %v6560, %v6667
      %v7061 = vadd.f32 %v6561, %v6756
      %v7062 = vadd.f32 %v6562, %v6845
      %v7063 = vadd.f32 %v6563, %v6934
      %v7064 = vmul.f32 %v6936, 0.5
      %v7065 = vmul.f32 %v6937, 0.5
      %v7066 = vmul.f32 %v6938, 0.5
      %v7067 = vmul.f32 %v6940, 0.5
      %v7068 = vmul.f32 %v6941, 0.5
      %v7069 = vmul.f32 %v6942, 0.5
      %v7070 = vmul.f32 %v6944, 0.5
      %v7071 = vmul.f32 %v6945, 0.5
      %v7072 = vmul.f32 %v6946, 0.5
      %v7073 = vmul.f32 %v6948, 0.5
      %v7074 = vmul.f32 %v6949, 0.5
      %v7075 = vmul.f32 %v6950, 0.5
      %v7076 = vmul.f32 %v6952, 0.5
      %v7077 = vmul.f32 %v6953, 0.5
      %v7078 = vmul.f32 %v6954, 0.5
      %v7079 = vmul.f32 %v6956, 0.5
      %v7080 = vmul.f32 %v6957, 0.5
      %v7081 = vmul.f32 %v6958, 0.5
      %v7082 = vmul.f32 %v6960, 0.5
      %v7083 = vmul.f32 %v6961, 0.5
      %v7084 = vmul.f32 %v6962, 0.5
      %v7085 = vmul.f32 %v6964, 0.5
      %v7086 = vmul.f32 %v6965, 0.5
      %v7087 = vmul.f32 %v6966, 0.5
      %v7088 = vmul.f32 %v6968, 0.5
      %v7089 = vmul.f32 %v6969, 0.5
      %v7090 = vmul.f32 %v6970, 0.5
      %v7091 = vmul.f32 %v6972, 0.5
      %v7092 = vmul.f32 %v6973, 0.5
      %v7093 = vmul.f32 %v6974, 0.5
      %v7094 = vmul.f32 %v6976, 0.5
      %v7095 = vmul.f32 %v6977, 0.5
      %v7096 = vmul.f32 %v6978, 0.5
      %v7097 = vmul.f32 %v6980, 0.5
      %v7098 = vmul.f32 %v6981, 0.5
      %v7099 = vmul.f32 %v6982, 0.5
      %v7100 = vmul.f32 %v6984, 0.5
      %v7101 = vmul.f32 %v6985, 0.5
      %v7102 = vmul.f32 %v6986, 0.5
      %v7103 = vmul.f32 %v6988, 0.5
      %v7104 = vmul.f32 %v6989, 0.5
      %v7105 = vmul.f32 %v6990, 0.5
      %v7106 = vmul.f32 %v6992, 0.5
      %v7107 = vmul.f32 %v6993, 0.5
      %v7108 = vmul.f32 %v6994, 0.5
      %v7109 = vmul.f32 %v6996, 0.5
      %v7110 = vmul.f32 %v6997, 0.5
      %v7111 = vmul.f32 %v6998, 0.5
      %v7112 = vmul.f32 %v7000, 0.5
      %v7113 = vmul.f32 %v7001, 0.5
      %v7114 = vmul.f32 %v7002, 0.5
      %v7115 = vmul.f32 %v7004, 0.5
      %v7116 = vmul.f32 %v7005, 0.5
      %v7117 = vmul.f32 %v7006, 0.5
      %v7118 = vmul.f32 %v7008, 0.5
      %v7119 = vmul.f32 %v7009, 0.5
      %v7120 = vmul.f32 %v7010, 0.5
      %v7121 = vmul.f32 %v7012, 0.5
      %v7122 = vmul.f32 %v7013, 0.5
      %v7123 = vmul.f32 %v7014, 0.5
      %v7124 = vmul.f32 %v7016, 0.5
      %v7125 = vmul.f32 %v7017, 0.5
      %v7126 = vmul.f32 %v7018, 0.5
      %v7127 = vmul.f32 %v7020, 0.5
      %v7128 = vmul.f32 %v7021, 0.5
      %v7129 = vmul.f32 %v7022, 0.5
      %v7130 = vmul.f32 %v7024, 0.5
      %v7131 = vmul.f32 %v7025, 0.5
      %v7132 = vmul.f32 %v7026, 0.5
      %v7133 = vmul.f32 %v7028, 0.5
      %v7134 = vmul.f32 %v7029, 0.5
      %v7135 = vmul.f32 %v7030, 0.5
      %v7136 = vmul.f32 %v7032, 0.5
      %v7137 = vmul.f32 %v7033, 0.5
      %v7138 = vmul.f32 %v7034, 0.5
      %v7139 = vmul.f32 %v7036, 0.5
      %v7140 = vmul.f32 %v7037, 0.5
      %v7141 = vmul.f32 %v7038, 0.5
      %v7142 = vmul.f32 %v7040, 0.5
      %v7143 = vmul.f32 %v7041, 0.5
      %v7144 = vmul.f32 %v7042, 0.5
      %v7145 = vmul.f32 %v7044, 0.5
      %v7146 = vmul.f32 %v7045, 0.5
      %v7147 = vmul.f32 %v7046, 0.5
      %v7148 = vmul.f32 %v7048, 0.5
      %v7149 = vmul.f32 %v7049, 0.5
      %v7150 = vmul.f32 %v7050, 0.5
      %v7151 = vmul.f32 %v7052, 0.5
      %v7152 = vmul.f32 %v7053, 0.5
      %v7153 = vmul.f32 %v7054, 0.5
      %v7154 = vmul.f32 %v7056, 0.5
      %v7155 = vmul.f32 %v7057, 0.5
      %v7156 = vmul.f32 %v7058, 0.5
      %v7157 = vmul.f32 %v7060, 0.5
      %v7158 = vmul.f32 %v7061, 0.5
      %v7159 = vmul.f32 %v7062, 0.5
      %v7160 = vtanh.pop %v7064
      %v7161 = vtanh.pop %v7065
      %v7162 = vtanh.pop %v7066
      %v7163 = vtanh.pop %v7067
      %v7164 = vtanh.pop %v7068
      %v7165 = vtanh.pop %v7069
      %v7166 = vtanh.pop %v7070
      %v7167 = vtanh.pop %v7071
      %v7168 = vtanh.pop %v7072
      %v7169 = vtanh.pop %v7073
      %v7170 = vtanh.pop %v7074
      %v7171 = vtanh.pop %v7075
      %v7172 = vtanh.pop %v7076
      %v7173 = vtanh.pop %v7077
      %v7174 = vtanh.pop %v7078
      %v7175 = vtanh.pop %v7079
      %v7176 = vtanh.pop %v7080
      %v7177 = vtanh.pop %v7081
      %v7178 = vtanh.pop %v7082
      %v7179 = vtanh.pop %v7083
      %v7180 = vtanh.pop %v7084
      %v7181 = vtanh.pop %v7085
      %v7182 = vtanh.pop %v7086
      %v7183 = vtanh.pop %v7087
      %v7184 = vtanh.pop %v7088
      %v7185 = vtanh.pop %v7089
      %v7186 = vtanh.pop %v7090
      %v7187 = vtanh.pop %v7091
      %v7188 = vtanh.pop %v7092
      %v7189 = vtanh.pop %v7093
      %v7190 = vtanh.pop %v7094
      %v7191 = vtanh.pop %v7095
      %v7192 = vtanh.pop %v7096
      %v7193 = vtanh.pop %v7097
      %v7194 = vtanh.pop %v7098
      %v7195 = vtanh.pop %v7099
      %v7196 = vtanh.pop %v7100
      %v7197 = vtanh.pop %v7101
      %v7198 = vtanh.pop %v7102
      %v7199 = vtanh.pop %v7103
      %v7200 = vtanh.pop %v7104
      %v7201 = vtanh.pop %v7105
      %v7202 = vtanh.pop %v7106
      %v7203 = vtanh.pop %v7107
      %v7204 = vtanh.pop %v7108
      %v7205 = vtanh.pop %v7109
      %v7206 = vtanh.pop %v7110
      %v7207 = vtanh.pop %v7111
      %v7208 = vtanh.pop %v7112
      %v7209 = vtanh.pop %v7113
      %v7210 = vtanh.pop %v7114
      %v7211 = vtanh.pop %v7115
      %v7212 = vtanh.pop %v7116
      %v7213 = vtanh.pop %v7117
      %v7214 = vtanh.pop %v7118
      %v7215 = vtanh.pop %v7119
      %v7216 = vtanh.pop %v7120
      %v7217 = vtanh.pop %v7121
      %v7218 = vtanh.pop %v7122
      %v7219 = vtanh.pop %v7123
      %v7220 = vtanh.pop %v7124
      %v7221 = vtanh.pop %v7125
      %v7222 = vtanh.pop %v7126
      %v7223 = vtanh.pop %v7127
      %v7224 = vtanh.pop %v7128
      %v7225 = vtanh.pop %v7129
      %v7226 = vtanh.pop %v7130
      %v7227 = vtanh.pop %v7131
      %v7228 = vtanh.pop %v7132
      %v7229 = vtanh.pop %v7133
      %v7230 = vtanh.pop %v7134
      %v7231 = vtanh.pop %v7135
      %v7232 = vtanh.pop %v7136
      %v7233 = vtanh.pop %v7137
      %v7234 = vtanh.pop %v7138
      %v7235 = vtanh.pop %v7139
      %v7236 = vtanh.pop %v7140
      %v7237 = vtanh.pop %v7141
      %v7238 = vtanh.pop %v7142
      %v7239 = vtanh.pop %v7143
      %v7240 = vtanh.pop %v7144
      %v7241 = vtanh.pop %v7145
      %v7242 = vtanh.pop %v7146
      %v7243 = vtanh.pop %v7147
      %v7244 = vtanh.pop %v7148
      %v7245 = vtanh.pop %v7149
      %v7246 = vtanh.pop %v7150
      %v7247 = vtanh.pop %v7151
      %v7248 = vtanh.pop %v7152
      %v7249 = vtanh.pop %v7153
      %v7250 = vtanh.pop %v7154
      %v7251 = vtanh.pop %v7155
      %v7252 = vtanh.pop %v7156
      %v7253 = vtanh.pop %v7157
      %v7254 = vtanh.pop %v7158
      %v7255 = vtanh.pop %v7159
      %v7256 = vmul.f32 %v7160, 0.5
      %v7257 = vmul.f32 %v7161, 0.5
      %v7258 = vmul.f32 %v7162, 0.5
      %v7259 = vmul.f32 %v7163, 0.5
      %v7260 = vmul.f32 %v7164, 0.5
      %v7261 = vmul.f32 %v7165, 0.5
      %v7262 = vmul.f32 %v7166, 0.5
      %v7263 = vmul.f32 %v7167, 0.5
      %v7264 = vmul.f32 %v7168, 0.5
      %v7265 = vmul.f32 %v7169, 0.5
      %v7266 = vmul.f32 %v7170, 0.5
      %v7267 = vmul.f32 %v7171, 0.5
      %v7268 = vmul.f32 %v7172, 0.5
      %v7269 = vmul.f32 %v7173, 0.5
      %v7270 = vmul.f32 %v7174, 0.5
      %v7271 = vmul.f32 %v7175, 0.5
      %v7272 = vmul.f32 %v7176, 0.5
      %v7273 = vmul.f32 %v7177, 0.5
      %v7274 = vmul.f32 %v7178, 0.5
      %v7275 = vmul.f32 %v7179, 0.5
      %v7276 = vmul.f32 %v7180, 0.5
      %v7277 = vmul.f32 %v7181, 0.5
      %v7278 = vmul.f32 %v7182, 0.5
      %v7279 = vmul.f32 %v7183, 0.5
      %v7280 = vmul.f32 %v7184, 0.5
      %v7281 = vmul.f32 %v7185, 0.5
      %v7282 = vmul.f32 %v7186, 0.5
      %v7283 = vmul.f32 %v7187, 0.5
      %v7284 = vmul.f32 %v7188, 0.5
      %v7285 = vmul.f32 %v7189, 0.5
      %v7286 = vmul.f32 %v7190, 0.5
      %v7287 = vmul.f32 %v7191, 0.5
      %v7288 = vmul.f32 %v7192, 0.5
      %v7289 = vmul.f32 %v7193, 0.5
      %v7290 = vmul.f32 %v7194, 0.5
      %v7291 = vmul.f32 %v7195, 0.5
      %v7292 = vmul.f32 %v7196, 0.5
      %v7293 = vmul.f32 %v7197, 0.5
      %v7294 = vmul.f32 %v7198, 0.5
      %v7295 = vmul.f32 %v7199, 0.5
      %v7296 = vmul.f32 %v7200, 0.5
      %v7297 = vmul.f32 %v7201, 0.5
      %v7298 = vmul.f32 %v7202, 0.5
      %v7299 = vmul.f32 %v7203, 0.5
      %v7300 = vmul.f32 %v7204, 0.5
      %v7301 = vmul.f32 %v7205, 0.5
      %v7302 = vmul.f32 %v7206, 0.5
      %v7303 = vmul.f32 %v7207, 0.5
      %v7304 = vmul.f32 %v7208, 0.5
      %v7305 = vmul.f32 %v7209, 0.5
      %v7306 = vmul.f32 %v7210, 0.5
      %v7307 = vmul.f32 %v7211, 0.5
      %v7308 = vmul.f32 %v7212, 0.5
      %v7309 = vmul.f32 %v7213, 0.5
      %v7310 = vmul.f32 %v7214, 0.5
      %v7311 = vmul.f32 %v7215, 0.5
      %v7312 = vmul.f32 %v7216, 0.5
      %v7313 = vmul.f32 %v7217, 0.5
      %v7314 = vmul.f32 %v7218, 0.5
      %v7315 = vmul.f32 %v7219, 0.5
      %v7316 = vmul.f32 %v7220, 0.5
      %v7317 = vmul.f32 %v7221, 0.5
      %v7318 = vmul.f32 %v7222, 0.5
      %v7319 = vmul.f32 %v7223, 0.5
      %v7320 = vmul.f32 %v7224, 0.5
      %v7321 = vmul.f32 %v7225, 0.5
      %v7322 = vmul.f32 %v7226, 0.5
      %v7323 = vmul.f32 %v7227, 0.5
      %v7324 = vmul.f32 %v7228, 0.5
      %v7325 = vmul.f32 %v7229, 0.5
      %v7326 = vmul.f32 %v7230, 0.5
      %v7327 = vmul.f32 %v7231, 0.5
      %v7328 = vmul.f32 %v7232, 0.5
      %v7329 = vmul.f32 %v7233, 0.5
      %v7330 = vmul.f32 %v7234, 0.5
      %v7331 = vmul.f32 %v7235, 0.5
      %v7332 = vmul.f32 %v7236, 0.5
      %v7333 = vmul.f32 %v7237, 0.5
      %v7334 = vmul.f32 %v7238, 0.5
      %v7335 = vmul.f32 %v7239, 0.5
      %v7336 = vmul.f32 %v7240, 0.5
      %v7337 = vmul.f32 %v7241, 0.5
      %v7338 = vmul.f32 %v7242, 0.5
      %v7339 = vmul.f32 %v7243, 0.5
      %v7340 = vmul.f32 %v7244, 0.5
      %v7341 = vmul.f32 %v7245, 0.5
      %v7342 = vmul.f32 %v7246, 0.5
      %v7343 = vmul.f32 %v7247, 0.5
      %v7344 = vmul.f32 %v7248, 0.5
      %v7345 = vmul.f32 %v7249, 0.5
      %v7346 = vmul.f32 %v7250, 0.5
      %v7347 = vmul.f32 %v7251, 0.5
      %v7348 = vmul.f32 %v7252, 0.5
      %v7349 = vmul.f32 %v7253, 0.5
      %v7350 = vmul.f32 %v7254, 0.5
      %v7351 = vmul.f32 %v7255, 0.5
      %v7352 = vadd.f32 %v7256, 0.5
      %v7353 = vadd.f32 %v7257, 0.5
      %v7354 = vadd.f32 %v7258, 0.5
      %v7355 = vadd.f32 %v7259, 0.5
      %v7356 = vadd.f32 %v7260, 0.5
      %v7357 = vadd.f32 %v7261, 0.5
      %v7358 = vadd.f32 %v7262, 0.5
      %v7359 = vadd.f32 %v7263, 0.5
      %v7360 = vadd.f32 %v7264, 0.5
      %v7361 = vadd.f32 %v7265, 0.5
      %v7362 = vadd.f32 %v7266, 0.5
      %v7363 = vadd.f32 %v7267, 0.5
      %v7364 = vadd.f32 %v7268, 0.5
      %v7365 = vadd.f32 %v7269, 0.5
      %v7366 = vadd.f32 %v7270, 0.5
      %v7367 = vadd.f32 %v7271, 0.5
      %v7368 = vadd.f32 %v7272, 0.5
      %v7369 = vadd.f32 %v7273, 0.5
      %v7370 = vadd.f32 %v7274, 0.5
      %v7371 = vadd.f32 %v7275, 0.5
      %v7372 = vadd.f32 %v7276, 0.5
      %v7373 = vadd.f32 %v7277, 0.5
      %v7374 = vadd.f32 %v7278, 0.5
      %v7375 = vadd.f32 %v7279, 0.5
      %v7376 = vadd.f32 %v7280, 0.5
      %v7377 = vadd.f32 %v7281, 0.5
      %v7378 = vadd.f32 %v7282, 0.5
      %v7379 = vadd.f32 %v7283, 0.5
      %v7380 = vadd.f32 %v7284, 0.5
      %v7381 = vadd.f32 %v7285, 0.5
      %v7382 = vadd.f32 %v7286, 0.5
      %v7383 = vadd.f32 %v7287, 0.5
      %v7384 = vadd.f32 %v7288, 0.5
      %v7385 = vadd.f32 %v7289, 0.5
      %v7386 = vadd.f32 %v7290, 0.5
      %v7387 = vadd.f32 %v7291, 0.5
      %v7388 = vadd.f32 %v7292, 0.5
      %v7389 = vadd.f32 %v7293, 0.5
      %v7390 = vadd.f32 %v7294, 0.5
      %v7391 = vadd.f32 %v7295, 0.5
      %v7392 = vadd.f32 %v7296, 0.5
      %v7393 = vadd.f32 %v7297, 0.5
      %v7394 = vadd.f32 %v7298, 0.5
      %v7395 = vadd.f32 %v7299, 0.5
      %v7396 = vadd.f32 %v7300, 0.5
      %v7397 = vadd.f32 %v7301, 0.5
      %v7398 = vadd.f32 %v7302, 0.5
      %v7399 = vadd.f32 %v7303, 0.5
      %v7400 = vadd.f32 %v7304, 0.5
      %v7401 = vadd.f32 %v7305, 0.5
      %v7402 = vadd.f32 %v7306, 0.5
      %v7403 = vadd.f32 %v7307, 0.5
      %v7404 = vadd.f32 %v7308, 0.5
      %v7405 = vadd.f32 %v7309, 0.5
      %v7406 = vadd.f32 %v7310, 0.5
      %v7407 = vadd.f32 %v7311, 0.5
      %v7408 = vadd.f32 %v7312, 0.5
      %v7409 = vadd.f32 %v7313, 0.5
      %v7410 = vadd.f32 %v7314, 0.5
      %v7411 = vadd.f32 %v7315, 0.5
      %v7412 = vadd.f32 %v7316, 0.5
      %v7413 = vadd.f32 %v7317, 0.5
      %v7414 = vadd.f32 %v7318, 0.5
      %v7415 = vadd.f32 %v7319, 0.5
      %v7416 = vadd.f32 %v7320, 0.5
      %v7417 = vadd.f32 %v7321, 0.5
      %v7418 = vadd.f32 %v7322, 0.5
      %v7419 = vadd.f32 %v7323, 0.5
      %v7420 = vadd.f32 %v7324, 0.5
      %v7421 = vadd.f32 %v7325, 0.5
      %v7422 = vadd.f32 %v7326, 0.5
      %v7423 = vadd.f32 %v7327, 0.5
      %v7424 = vadd.f32 %v7328, 0.5
      %v7425 = vadd.f32 %v7329, 0.5
      %v7426 = vadd.f32 %v7330, 0.5
      %v7427 = vadd.f32 %v7331, 0.5
      %v7428 = vadd.f32 %v7332, 0.5
      %v7429 = vadd.f32 %v7333, 0.5
      %v7430 = vadd.f32 %v7334, 0.5
      %v7431 = vadd.f32 %v7335, 0.5
      %v7432 = vadd.f32 %v7336, 0.5
      %v7433 = vadd.f32 %v7337, 0.5
      %v7434 = vadd.f32 %v7338, 0.5
      %v7435 = vadd.f32 %v7339, 0.5
      %v7436 = vadd.f32 %v7340, 0.5
      %v7437 = vadd.f32 %v7341, 0.5
      %v7438 = vadd.f32 %v7342, 0.5
      %v7439 = vadd.f32 %v7343, 0.5
      %v7440 = vadd.f32 %v7344, 0.5
      %v7441 = vadd.f32 %v7345, 0.5
      %v7442 = vadd.f32 %v7346, 0.5
      %v7443 = vadd.f32 %v7347, 0.5
      %v7444 = vadd.f32 %v7348, 0.5
      %v7445 = vadd.f32 %v7349, 0.5
      %v7446 = vadd.f32 %v7350, 0.5
      %v7447 = vadd.f32 %v7351, 0.5
      %v7448 = vtanh.pop %v6939
      %v7449 = vtanh.pop %v6943
      %v7450 = vtanh.pop %v6947
      %v7451 = vtanh.pop %v6951
      %v7452 = vtanh.pop %v6955
      %v7453 = vtanh.pop %v6959
      %v7454 = vtanh.pop %v6963
      %v7455 = vtanh.pop %v6967
      %v7456 = vtanh.pop %v6971
      %v7457 = vtanh.pop %v6975
      %v7458 = vtanh.pop %v6979
      %v7459 = vtanh.pop %v6983
      %v7460 = vtanh.pop %v6987
      %v7461 = vtanh.pop %v6991
      %v7462 = vtanh.pop %v6995
      %v7463 = vtanh.pop %v6999
      %v7464 = vtanh.pop %v7003
      %v7465 = vtanh.pop %v7007
      %v7466 = vtanh.pop %v7011
      %v7467 = vtanh.pop %v7015
      %v7468 = vtanh.pop %v7019
      %v7469 = vtanh.pop %v7023
      %v7470 = vtanh.pop %v7027
      %v7471 = vtanh.pop %v7031
      %v7472 = vtanh.pop %v7035
      %v7473 = vtanh.pop %v7039
      %v7474 = vtanh.pop %v7043
      %v7475 = vtanh.pop %v7047
      %v7476 = vtanh.pop %v7051
      %v7477 = vtanh.pop %v7055
      %v7478 = vtanh.pop %v7059
      %v7479 = vtanh.pop %v7063
      %v7480 = vmul.f32 %v7353, %v6340
      %v7481 = vmul.f32 %v7356, %v6341
      %v7482 = vmul.f32 %v7359, %v6342
      %v7483 = vmul.f32 %v7362, %v6343
      %v7484 = vmul.f32 %v7365, %v6344
      %v7485 = vmul.f32 %v7368, %v6345
      %v7486 = vmul.f32 %v7371, %v6346
      %v7487 = vmul.f32 %v7374, %v6347
      %v7488 = vmul.f32 %v7377, %v6348
      %v7489 = vmul.f32 %v7380, %v6349
      %v7490 = vmul.f32 %v7383, %v6350
      %v7491 = vmul.f32 %v7386, %v6351
      %v7492 = vmul.f32 %v7389, %v6352
      %v7493 = vmul.f32 %v7392, %v6353
      %v7494 = vmul.f32 %v7395, %v6354
      %v7495 = vmul.f32 %v7398, %v6355
      %v7496 = vmul.f32 %v7401, %v6356
      %v7497 = vmul.f32 %v7404, %v6357
      %v7498 = vmul.f32 %v7407, %v6358
      %v7499 = vmul.f32 %v7410, %v6359
      %v7500 = vmul.f32 %v7413, %v6360
      %v7501 = vmul.f32 %v7416, %v6361
      %v7502 = vmul.f32 %v7419, %v6362
      %v7503 = vmul.f32 %v7422, %v6363
      %v7504 = vmul.f32 %v7425, %v6364
      %v7505 = vmul.f32 %v7428, %v6365
      %v7506 = vmul.f32 %v7431, %v6366
      %v7507 = vmul.f32 %v7434, %v6367
      %v7508 = vmul.f32 %v7437, %v6368
      %v7509 = vmul.f32 %v7440, %v6369
      %v7510 = vmul.f32 %v7443, %v6370
      %v7511 = vmul.f32 %v7446, %v6371
      %v7512 = vmul.f32 %v7352, %v7448
      %v7513 = vmul.f32 %v7355, %v7449
      %v7514 = vmul.f32 %v7358, %v7450
      %v7515 = vmul.f32 %v7361, %v7451
      %v7516 = vmul.f32 %v7364, %v7452
      %v7517 = vmul.f32 %v7367, %v7453
      %v7518 = vmul.f32 %v7370, %v7454
      %v7519 = vmul.f32 %v7373, %v7455
      %v7520 = vmul.f32 %v7376, %v7456
      %v7521 = vmul.f32 %v7379, %v7457
      %v7522 = vmul.f32 %v7382, %v7458
      %v7523 = vmul.f32 %v7385, %v7459
      %v7524 = vmul.f32 %v7388, %v7460
      %v7525 = vmul.f32 %v7391, %v7461
      %v7526 = vmul.f32 %v7394, %v7462
      %v7527 = vmul.f32 %v7397, %v7463
      %v7528 = vmul.f32 %v7400, %v7464
      %v7529 = vmul.f32 %v7403, %v7465
      %v7530 = vmul.f32 %v7406, %v7466
      %v7531 = vmul.f32 %v7409, %v7467
      %v7532 = vmul.f32 %v7412, %v7468
      %v7533 = vmul.f32 %v7415, %v7469
      %v7534 = vmul.f32 %v7418, %v7470
      %v7535 = vmul.f32 %v7421, %v7471
      %v7536 = vmul.f32 %v7424, %v7472
      %v7537 = vmul.f32 %v7427, %v7473
      %v7538 = vmul.f32 %v7430, %v7474
      %v7539 = vmul.f32 %v7433, %v7475
      %v7540 = vmul.f32 %v7436, %v7476
      %v7541 = vmul.f32 %v7439, %v7477
      %v7542 = vmul.f32 %v7442, %v7478
      %v7543 = vmul.f32 %v7445, %v7479
      %v7544 = vadd.f32 %v7480, %v7512
      %v7545 = vadd.f32 %v7481, %v7513
      %v7546 = vadd.f32 %v7482, %v7514
      %v7547 = vadd.f32 %v7483, %v7515
      %v7548 = vadd.f32 %v7484, %v7516
      %v7549 = vadd.f32 %v7485, %v7517
      %v7550 = vadd.f32 %v7486, %v7518
      %v7551 = vadd.f32 %v7487, %v7519
      %v7552 = vadd.f32 %v7488, %v7520
      %v7553 = vadd.f32 %v7489, %v7521
      %v7554 = vadd.f32 %v7490, %v7522
      %v7555 = vadd.f32 %v7491, %v7523
      %v7556 = vadd.f32 %v7492, %v7524
      %v7557 = vadd.f32 %v7493, %v7525
      %v7558 = vadd.f32 %v7494, %v7526
      %v7559 = vadd.f32 %v7495, %v7527
      %v7560 = vadd.f32 %v7496, %v7528
      %v7561 = vadd.f32 %v7497, %v7529
      %v7562 = vadd.f32 %v7498, %v7530
      %v7563 = vadd.f32 %v7499, %v7531
      %v7564 = vadd.f32 %v7500, %v7532
      %v7565 = vadd.f32 %v7501, %v7533
      %v7566 = vadd.f32 %v7502, %v7534
      %v7567 = vadd.f32 %v7503, %v7535
      %v7568 = vadd.f32 %v7504, %v7536
      %v7569 = vadd.f32 %v7505, %v7537
      %v7570 = vadd.f32 %v7506, %v7538
      %v7571 = vadd.f32 %v7507, %v7539
      %v7572 = vadd.f32 %v7508, %v7540
      %v7573 = vadd.f32 %v7509, %v7541
      %v7574 = vadd.f32 %v7510, %v7542
      %v7575 = vadd.f32 %v7511, %v7543
      %v7576 = vtanh.pop %v7544
      %v7577 = vtanh.pop %v7545
      %v7578 = vtanh.pop %v7546
      %v7579 = vtanh.pop %v7547
      %v7580 = vtanh.pop %v7548
      %v7581 = vtanh.pop %v7549
      %v7582 = vtanh.pop %v7550
      %v7583 = vtanh.pop %v7551
      %v7584 = vtanh.pop %v7552
      %v7585 = vtanh.pop %v7553
      %v7586 = vtanh.pop %v7554
      %v7587 = vtanh.pop %v7555
      %v7588 = vtanh.pop %v7556
      %v7589 = vtanh.pop %v7557
      %v7590 = vtanh.pop %v7558
      %v7591 = vtanh.pop %v7559
      %v7592 = vtanh.pop %v7560
      %v7593 = vtanh.pop %v7561
      %v7594 = vtanh.pop %v7562
      %v7595 = vtanh.pop %v7563
      %v7596 = vtanh.pop %v7564
      %v7597 = vtanh.pop %v7565
      %v7598 = vtanh.pop %v7566
      %v7599 = vtanh.pop %v7567
      %v7600 = vtanh.pop %v7568
      %v7601 = vtanh.pop %v7569
      %v7602 = vtanh.pop %v7570
      %v7603 = vtanh.pop %v7571
      %v7604 = vtanh.pop %v7572
      %v7605 = vtanh.pop %v7573
      %v7606 = vtanh.pop %v7574
      %v7607 = vtanh.pop %v7575
      %v7608 = vmul.f32 %v7354, %v7576
      %v7609 = vmul.f32 %v7357, %v7577
      %v7610 = vmul.f32 %v7360, %v7578
      %v7611 = vmul.f32 %v7363, %v7579
      %v7612 = vmul.f32 %v7366, %v7580
      %v7613 = vmul.f32 %v7369, %v7581
      %v7614 = vmul.f32 %v7372, %v7582
      %v7615 = vmul.f32 %v7375, %v7583
      %v7616 = vmul.f32 %v7378, %v7584
      %v7617 = vmul.f32 %v7381, %v7585
      %v7618 = vmul.f32 %v7384, %v7586
      %v7619 = vmul.f32 %v7387, %v7587
      %v7620 = vmul.f32 %v7390, %v7588
      %v7621 = vmul.f32 %v7393, %v7589
      %v7622 = vmul.f32 %v7396, %v7590
      %v7623 = vmul.f32 %v7399, %v7591
      %v7624 = vmul.f32 %v7402, %v7592
      %v7625 = vmul.f32 %v7405, %v7593
      %v7626 = vmul.f32 %v7408, %v7594
      %v7627 = vmul.f32 %v7411, %v7595
      %v7628 = vmul.f32 %v7414, %v7596
      %v7629 = vmul.f32 %v7417, %v7597
      %v7630 = vmul.f32 %v7420, %v7598
      %v7631 = vmul.f32 %v7423, %v7599
      %v7632 = vmul.f32 %v7426, %v7600
      %v7633 = vmul.f32 %v7429, %v7601
      %v7634 = vmul.f32 %v7432, %v7602
      %v7635 = vmul.f32 %v7435, %v7603
      %v7636 = vmul.f32 %v7438, %v7604
      %v7637 = vmul.f32 %v7441, %v7605
      %v7638 = vmul.f32 %v7444, %v7606
      %v7639 = vmul.f32 %v7447, %v7607
      %v7640 = vld [vmem:[#allocation2] sm:$0xff]
      %v7641 = vld [vmem:[#allocation2 + $0x8] sm:$0xff]
      %v7642 = vld [vmem:[#allocation2 + $0x10] sm:$0xff]
      %v7643 = vld [vmem:[#allocation2 + $0x18] sm:$0xff]
      %v7644 = vld [vmem:[#allocation2 + $0x20] sm:$0xff]
      %v7645 = vld [vmem:[#allocation2 + $0x28] sm:$0xff]
      %v7646 = vld [vmem:[#allocation2 + $0x30] sm:$0xff]
      %v7647 = vld [vmem:[#allocation2 + $0x38] sm:$0xff]
      %v7648 = vld [vmem:[#allocation2 + $0x40] sm:$0xff]
      %v7649 = vld [vmem:[#allocation2 + $0x48] sm:$0xff]
      %v7650 = vld [vmem:[#allocation2 + $0x50] sm:$0xff]
      %v7651 = vld [vmem:[#allocation2 + $0x58] sm:$0xff]
      %v7652 = vld [vmem:[#allocation2 + $0x60] sm:$0xff]
      %v7653 = vld [vmem:[#allocation2 + $0x68] sm:$0xff]
      %v7654 = vld [vmem:[#allocation2 + $0x70] sm:$0xff]
      %v7655 = vld [vmem:[#allocation2 + $0x78] sm:$0xff]
      %v7656 = vld [vmem:[#allocation2 + $0x80] sm:$0xff]
      %v7657 = vld [vmem:[#allocation2 + $0x88] sm:$0xff]
      %v7658 = vld [vmem:[#allocation2 + $0x90] sm:$0xff]
      %v7659 = vld [vmem:[#allocation2 + $0x98] sm:$0xff]
      %v7660 = vld [vmem:[#allocation2 + $0xa0] sm:$0xff]
      %v7661 = vld [vmem:[#allocation2 + $0xa8] sm:$0xff]
      %v7662 = vld [vmem:[#allocation2 + $0xb0] sm:$0xff]
      %v7663 = vld [vmem:[#allocation2 + $0xb8] sm:$0xff]
      %v7664 = vld [vmem:[#allocation2 + $0xc0] sm:$0xff]
      %v7665 = vld [vmem:[#allocation2 + $0xc8] sm:$0xff]
      %v7666 = vld [vmem:[#allocation2 + $0xd0] sm:$0xff]
      %v7667 = vld [vmem:[#allocation2 + $0xd8] sm:$0xff]
      %v7668 = vld [vmem:[#allocation2 + $0xe0] sm:$0xff]
      %v7669 = vld [vmem:[#allocation2 + $0xe8] sm:$0xff]
      %v7670 = vld [vmem:[#allocation2 + $0xf0] sm:$0xff]
      %v7671 = vld [vmem:[#allocation2 + $0xf8] sm:$0xff]
      %v7672 = vpack.c.bf16 %v7640, %v7640
      %v7673 = vpack.c.bf16 %v7641, %v7641
      %v7674 = vpack.c.bf16 %v7642, %v7642
      %v7675 = vpack.c.bf16 %v7643, %v7643
      %v7676 = vpack.c.bf16 %v7644, %v7644
      %v7677 = vpack.c.bf16 %v7645, %v7645
      %v7678 = vpack.c.bf16 %v7646, %v7646
      %v7679 = vpack.c.bf16 %v7647, %v7647
      %v7680 = vpack.c.bf16 %v7648, %v7648
      %v7681 = vpack.c.bf16 %v7649, %v7649
      %v7682 = vpack.c.bf16 %v7650, %v7650
      %v7683 = vpack.c.bf16 %v7651, %v7651
      %v7684 = vpack.c.bf16 %v7652, %v7652
      %v7685 = vpack.c.bf16 %v7653, %v7653
      %v7686 = vpack.c.bf16 %v7654, %v7654
      %v7687 = vpack.c.bf16 %v7655, %v7655
      %v7688 = vpack.c.bf16 %v7656, %v7656
      %v7689 = vpack.c.bf16 %v7657, %v7657
      %v7690 = vpack.c.bf16 %v7658, %v7658
      %v7691 = vpack.c.bf16 %v7659, %v7659
      %v7692 = vpack.c.bf16 %v7660, %v7660
      %v7693 = vpack.c.bf16 %v7661, %v7661
      %v7694 = vpack.c.bf16 %v7662, %v7662
      %v7695 = vpack.c.bf16 %v7663, %v7663
      %v7696 = vpack.c.bf16 %v7664, %v7664
      %v7697 = vpack.c.bf16 %v7665, %v7665
      %v7698 = vpack.c.bf16 %v7666, %v7666
      %v7699 = vpack.c.bf16 %v7667, %v7667
      %v7700 = vpack.c.bf16 %v7668, %v7668
      %v7701 = vpack.c.bf16 %v7669, %v7669
      %v7702 = vpack.c.bf16 %v7670, %v7670
      %v7703 = vpack.c.bf16 %v7671, %v7671
      %v7704 = vpack.c.bf16 %v7608, %v7608
      %v7705 = vpack.c.bf16 %v7609, %v7609
      %v7706 = vpack.c.bf16 %v7610, %v7610
      %v7707 = vpack.c.bf16 %v7611, %v7611
      %v7708 = vpack.c.bf16 %v7612, %v7612
      %v7709 = vpack.c.bf16 %v7613, %v7613
      %v7710 = vpack.c.bf16 %v7614, %v7614
      %v7711 = vpack.c.bf16 %v7615, %v7615
      %v7712 = vpack.c.bf16 %v7616, %v7616
      %v7713 = vpack.c.bf16 %v7617, %v7617
      %v7714 = vpack.c.bf16 %v7618, %v7618
      %v7715 = vpack.c.bf16 %v7619, %v7619
      %v7716 = vpack.c.bf16 %v7620, %v7620
      %v7717 = vpack.c.bf16 %v7621, %v7621
      %v7718 = vpack.c.bf16 %v7622, %v7622
      %v7719 = vpack.c.bf16 %v7623, %v7623
      %v7720 = vpack.c.bf16 %v7624, %v7624
      %v7721 = vpack.c.bf16 %v7625, %v7625
      %v7722 = vpack.c.bf16 %v7626, %v7626
      %v7723 = vpack.c.bf16 %v7627, %v7627
      %v7724 = vpack.c.bf16 %v7628, %v7628
      %v7725 = vpack.c.bf16 %v7629, %v7629
      %v7726 = vpack.c.bf16 %v7630, %v7630
      %v7727 = vpack.c.bf16 %v7631, %v7631
      %v7728 = vpack.c.bf16 %v7632, %v7632
      %v7729 = vpack.c.bf16 %v7633, %v7633
      %v7730 = vpack.c.bf16 %v7634, %v7634
      %v7731 = vpack.c.bf16 %v7635, %v7635
      %v7732 = vpack.c.bf16 %v7636, %v7636
      %v7733 = vpack.c.bf16 %v7637, %v7637
      %v7734 = vpack.c.bf16 %v7638, %v7638
      %v7735 = vpack.c.bf16 %v7639, %v7639
      %v7768 = vunpack.c.l.b16 %v7672
      %v7769 = vunpack.c.l.b16 %v7673
      %v7770 = vunpack.c.l.b16 %v7674
      %v7771 = vunpack.c.l.b16 %v7675
      %v7772 = vunpack.c.l.b16 %v7676
      %v7773 = vunpack.c.l.b16 %v7677
      %v7774 = vunpack.c.l.b16 %v7678
      %v7775 = vunpack.c.l.b16 %v7679
      %v7776 = vunpack.c.l.b16 %v7680
      %v7777 = vunpack.c.l.b16 %v7681
      %v7778 = vunpack.c.l.b16 %v7682
      %v7779 = vunpack.c.l.b16 %v7683
      %v7780 = vunpack.c.l.b16 %v7684
      %v7781 = vunpack.c.l.b16 %v7685
      %v7782 = vunpack.c.l.b16 %v7686
      %v7783 = vunpack.c.l.b16 %v7687
      %v7784 = vunpack.c.l.b16 %v7688
      %v7785 = vunpack.c.l.b16 %v7689
      %v7786 = vunpack.c.l.b16 %v7690
      %v7787 = vunpack.c.l.b16 %v7691
      %v7788 = vunpack.c.l.b16 %v7692
      %v7789 = vunpack.c.l.b16 %v7693
      %v7790 = vunpack.c.l.b16 %v7694
      %v7791 = vunpack.c.l.b16 %v7695
      %v7792 = vunpack.c.l.b16 %v7696
      %v7793 = vunpack.c.l.b16 %v7697
      %v7794 = vunpack.c.l.b16 %v7698
      %v7795 = vunpack.c.l.b16 %v7699
      %v7796 = vunpack.c.l.b16 %v7700
      %v7797 = vunpack.c.l.b16 %v7701
      %v7798 = vunpack.c.l.b16 %v7702
      %v7799 = vunpack.c.l.b16 %v7703
      %v7800 = vpack.c.b16 %v7769, %v7768
      %v7801 = vpack.c.b16 %v7771, %v7770
      %v7802 = vpack.c.b16 %v7773, %v7772
      %v7803 = vpack.c.b16 %v7775, %v7774
      %v7804 = vpack.c.b16 %v7777, %v7776
      %v7805 = vpack.c.b16 %v7779, %v7778
      %v7806 = vpack.c.b16 %v7781, %v7780
      %v7807 = vpack.c.b16 %v7783, %v7782
      %v7808 = vpack.c.b16 %v7785, %v7784
      %v7809 = vpack.c.b16 %v7787, %v7786
      %v7810 = vpack.c.b16 %v7789, %v7788
      %v7811 = vpack.c.b16 %v7791, %v7790
      %v7812 = vpack.c.b16 %v7793, %v7792
      %v7813 = vpack.c.b16 %v7795, %v7794
      %v7814 = vpack.c.b16 %v7797, %v7796
      %v7815 = vpack.c.b16 %v7799, %v7798
      %v7864 = vunpack.c.l.b16 %v7704
      %v7865 = vunpack.c.l.b16 %v7705
      %v7866 = vunpack.c.l.b16 %v7706
      %v7867 = vunpack.c.l.b16 %v7707
      %v7868 = vunpack.c.l.b16 %v7708
      %v7869 = vunpack.c.l.b16 %v7709
      %v7870 = vunpack.c.l.b16 %v7710
      %v7871 = vunpack.c.l.b16 %v7711
      %v7872 = vunpack.c.l.b16 %v7712
      %v7873 = vunpack.c.l.b16 %v7713
      %v7874 = vunpack.c.l.b16 %v7714
      %v7875 = vunpack.c.l.b16 %v7715
      %v7876 = vunpack.c.l.b16 %v7716
      %v7877 = vunpack.c.l.b16 %v7717
      %v7878 = vunpack.c.l.b16 %v7718
      %v7879 = vunpack.c.l.b16 %v7719
      %v7880 = vunpack.c.l.b16 %v7720
      %v7881 = vunpack.c.l.b16 %v7721
      %v7882 = vunpack.c.l.b16 %v7722
      %v7883 = vunpack.c.l.b16 %v7723
      %v7884 = vunpack.c.l.b16 %v7724
      %v7885 = vunpack.c.l.b16 %v7725
      %v7886 = vunpack.c.l.b16 %v7726
      %v7887 = vunpack.c.l.b16 %v7727
      %v7888 = vunpack.c.l.b16 %v7728
      %v7889 = vunpack.c.l.b16 %v7729
      %v7890 = vunpack.c.l.b16 %v7730
      %v7891 = vunpack.c.l.b16 %v7731
      %v7892 = vunpack.c.l.b16 %v7732
      %v7893 = vunpack.c.l.b16 %v7733
      %v7894 = vunpack.c.l.b16 %v7734
      %v7895 = vunpack.c.l.b16 %v7735
      %v7896 = vpack.c.b16 %v7865, %v7864
      %v7897 = vpack.c.b16 %v7867, %v7866
      %v7898 = vpack.c.b16 %v7869, %v7868
      %v7899 = vpack.c.b16 %v7871, %v7870
      %v7900 = vpack.c.b16 %v7873, %v7872
      %v7901 = vpack.c.b16 %v7875, %v7874
      %v7902 = vpack.c.b16 %v7877, %v7876
      %v7903 = vpack.c.b16 %v7879, %v7878
      %v7904 = vpack.c.b16 %v7881, %v7880
      %v7905 = vpack.c.b16 %v7883, %v7882
      %v7906 = vpack.c.b16 %v7885, %v7884
      %v7907 = vpack.c.b16 %v7887, %v7886
      %v7908 = vpack.c.b16 %v7889, %v7888
      %v7909 = vpack.c.b16 %v7891, %v7890
      %v7910 = vpack.c.b16 %v7893, %v7892
      %v7911 = vpack.c.b16 %v7895, %v7894
      %v7928 = vld [vmem:[%s346] sm:$0xf]
      %v7929 = vld [vmem:[%s346 + $0x4] sm:$0xf]
      %v7930 = vld [vmem:[%s346 + $0x8] sm:$0xf]
      %v7931 = vld [vmem:[%s346 + $0xc] sm:$0xf]
      %v7932 = vld [vmem:[%s346 + $0x10] sm:$0xf]
      %v7933 = vld [vmem:[%s346 + $0x14] sm:$0xf]
      %v7934 = vld [vmem:[%s346 + $0x18] sm:$0xf]
      %v7935 = vld [vmem:[%s346 + $0x1c] sm:$0xf]
      %v7936 = vld [vmem:[%s346 + $0x20] sm:$0xf]
      %v7937 = vld [vmem:[%s346 + $0x24] sm:$0xf]
      %v7938 = vld [vmem:[%s346 + $0x28] sm:$0xf]
      %v7939 = vld [vmem:[%s346 + $0x2c] sm:$0xf]
      %v7940 = vld [vmem:[%s346 + $0x30] sm:$0xf]
      %v7941 = vld [vmem:[%s346 + $0x34] sm:$0xf]
      %v7942 = vld [vmem:[%s346 + $0x38] sm:$0xf]
      %v7943 = vld [vmem:[%s346 + $0x3c] sm:$0xf]
      %v7944 = vld [vmem:[%s346 + $0x40] sm:$0xf]
      %v7945 = vld [vmem:[%s346 + $0x44] sm:$0xf]
      %v7946 = vld [vmem:[%s346 + $0x48] sm:$0xf]
      %v7947 = vld [vmem:[%s346 + $0x4c] sm:$0xf]
      %v7948 = vld [vmem:[%s346 + $0x50] sm:$0xf]
      %v7949 = vld [vmem:[%s346 + $0x54] sm:$0xf]
      %v7950 = vld [vmem:[%s346 + $0x58] sm:$0xf]
      %v7951 = vld [vmem:[%s346 + $0x5c] sm:$0xf]
      %v7952 = vld [vmem:[%s346 + $0x60] sm:$0xf]
      %v7953 = vld [vmem:[%s346 + $0x64] sm:$0xf]
      %v7954 = vld [vmem:[%s346 + $0x68] sm:$0xf]
      %v7955 = vld [vmem:[%s346 + $0x6c] sm:$0xf]
      %v7956 = vld [vmem:[%s346 + $0x70] sm:$0xf]
      %v7957 = vld [vmem:[%s346 + $0x74] sm:$0xf]
      %v7958 = vld [vmem:[%s346 + $0x78] sm:$0xf]
      %v7959 = vld [vmem:[%s346 + $0x7c] sm:$0xf]
      %v7960 = vld [vmem:[%s349] sm:$0x1]
      %v7962 = vperm.slane %v7960, 0
      %v7996 = vunpack.c.l.b16 %v7928
      %v7997 = vunpack.c.l.b16 %v7929
      %v7998 = vunpack.c.l.b16 %v7930
      %v7999 = vunpack.c.l.b16 %v7931
      %v8000 = vunpack.c.l.b16 %v7932
      %v8001 = vunpack.c.l.b16 %v7933
      %v8002 = vunpack.c.l.b16 %v7934
      %v8003 = vunpack.c.l.b16 %v7935
      %v8004 = vunpack.c.l.b16 %v7936
      %v8005 = vunpack.c.l.b16 %v7937
      %v8006 = vunpack.c.l.b16 %v7938
      %v8007 = vunpack.c.l.b16 %v7939
      %v8008 = vunpack.c.l.b16 %v7940
      %v8009 = vunpack.c.l.b16 %v7941
      %v8010 = vunpack.c.l.b16 %v7942
      %v8011 = vunpack.c.l.b16 %v7943
      %v8012 = vunpack.c.l.b16 %v7944
      %v8013 = vunpack.c.l.b16 %v7945
      %v8014 = vunpack.c.l.b16 %v7946
      %v8015 = vunpack.c.l.b16 %v7947
      %v8016 = vunpack.c.l.b16 %v7948
      %v8017 = vunpack.c.l.b16 %v7949
      %v8018 = vunpack.c.l.b16 %v7950
      %v8019 = vunpack.c.l.b16 %v7951
      %v8020 = vunpack.c.l.b16 %v7952
      %v8021 = vunpack.c.l.b16 %v7953
      %v8022 = vunpack.c.l.b16 %v7954
      %v8023 = vunpack.c.l.b16 %v7955
      %v8024 = vunpack.c.l.b16 %v7956
      %v8025 = vunpack.c.l.b16 %v7957
      %v8026 = vunpack.c.l.b16 %v7958
      %v8027 = vunpack.c.l.b16 %v7959
      %v8028 = vpack.c.b16 %v7997, %v7996
      %v8029 = vpack.c.b16 %v7999, %v7998
      %v8030 = vpack.c.b16 %v8001, %v8000
      %v8031 = vpack.c.b16 %v8003, %v8002
      %v8032 = vpack.c.b16 %v8005, %v8004
      %v8033 = vpack.c.b16 %v8007, %v8006
      %v8034 = vpack.c.b16 %v8009, %v8008
      %v8035 = vpack.c.b16 %v8011, %v8010
      %v8036 = vpack.c.b16 %v8013, %v8012
      %v8037 = vpack.c.b16 %v8015, %v8014
      %v8038 = vpack.c.b16 %v8017, %v8016
      %v8039 = vpack.c.b16 %v8019, %v8018
      %v8040 = vpack.c.b16 %v8021, %v8020
      %v8041 = vpack.c.b16 %v8023, %v8022
      %v8042 = vpack.c.b16 %v8025, %v8024
      %v8043 = vpack.c.b16 %v8027, %v8026
      %8060 = vmatpush.bf16.msra.mxu0 %v8035
      %8061 = vmatpush.bf16.msra.mxu0 %v8034
      %8062 = vmatpush.bf16.msra.mxu0 %v8033
      %8063 = vmatpush.bf16.msra.mxu0 %v8032
      %8064 = vmatpush.bf16.msra.mxu0 %v8031
      %8065 = vmatpush.bf16.msra.mxu0 %v8030
      %8066 = vmatpush.bf16.msra.mxu0 %v8029
      %8067 = vmatpush.bf16.msra.mxu0 %v8028
      %8068 = vmatmul.bf16.gmra.mxu0 %v7800
      %v8069 = vpop.f32.mrf.mxu0
      %v8070 = vadd.f32 %v7962, %v8069
      %v8071 = vpop.f32.mrf.mxu0
      %v8072 = vadd.f32 %v7962, %v8071
      %8073 = vmatmul.bf16.gmra.mxu0 %v7801
      %v8074 = vpop.f32.mrf.mxu0
      %v8075 = vadd.f32 %v7962, %v8074
      %v8076 = vpop.f32.mrf.mxu0
      %v8077 = vadd.f32 %v7962, %v8076
      %8078 = vmatmul.bf16.gmra.mxu0 %v7802
      %v8079 = vpop.f32.mrf.mxu0
      %v8080 = vadd.f32 %v7962, %v8079
      %v8081 = vpop.f32.mrf.mxu0
      %v8082 = vadd.f32 %v7962, %v8081
      %8083 = vmatmul.bf16.gmra.mxu0 %v7803
      %v8084 = vpop.f32.mrf.mxu0
      %v8085 = vadd.f32 %v7962, %v8084
      %v8086 = vpop.f32.mrf.mxu0
      %v8087 = vadd.f32 %v7962, %v8086
      %8088 = vmatmul.bf16.gmra.mxu0 %v7804
      %v8089 = vpop.f32.mrf.mxu0
      %v8090 = vadd.f32 %v7962, %v8089
      %v8091 = vpop.f32.mrf.mxu0
      %v8092 = vadd.f32 %v7962, %v8091
      %8093 = vmatmul.bf16.gmra.mxu0 %v7805
      %v8094 = vpop.f32.mrf.mxu0
      %v8095 = vadd.f32 %v7962, %v8094
      %v8096 = vpop.f32.mrf.mxu0
      %v8097 = vadd.f32 %v7962, %v8096
      %8098 = vmatmul.bf16.gmra.mxu0 %v7806
      %v8099 = vpop.f32.mrf.mxu0
      %v8100 = vadd.f32 %v7962, %v8099
      %v8101 = vpop.f32.mrf.mxu0
      %v8102 = vadd.f32 %v7962, %v8101
      %8103 = vmatmul.bf16.gmra.mxu0 %v7807
      %v8104 = vpop.f32.mrf.mxu0
      %v8105 = vadd.f32 %v7962, %v8104
      %v8106 = vpop.f32.mrf.mxu0
      %v8107 = vadd.f32 %v7962, %v8106
      %8108 = vmatmul.bf16.gmra.mxu0 %v7808
      %v8109 = vpop.f32.mrf.mxu0
      %v8110 = vadd.f32 %v7962, %v8109
      %v8111 = vpop.f32.mrf.mxu0
      %v8112 = vadd.f32 %v7962, %v8111
      %8113 = vmatmul.bf16.gmra.mxu0 %v7809
      %v8114 = vpop.f32.mrf.mxu0
      %v8115 = vadd.f32 %v7962, %v8114
      %v8116 = vpop.f32.mrf.mxu0
      %v8117 = vadd.f32 %v7962, %v8116
      %8118 = vmatmul.bf16.gmra.mxu0 %v7810
      %v8119 = vpop.f32.mrf.mxu0
      %v8120 = vadd.f32 %v7962, %v8119
      %v8121 = vpop.f32.mrf.mxu0
      %v8122 = vadd.f32 %v7962, %v8121
      %8123 = vmatmul.bf16.gmra.mxu0 %v7811
      %v8124 = vpop.f32.mrf.mxu0
      %v8125 = vadd.f32 %v7962, %v8124
      %v8126 = vpop.f32.mrf.mxu0
      %v8127 = vadd.f32 %v7962, %v8126
      %8128 = vmatmul.bf16.gmra.mxu0 %v7812
      %v8129 = vpop.f32.mrf.mxu0
      %v8130 = vadd.f32 %v7962, %v8129
      %v8131 = vpop.f32.mrf.mxu0
      %v8132 = vadd.f32 %v7962, %v8131
      %8133 = vmatmul.bf16.gmra.mxu0 %v7813
      %v8134 = vpop.f32.mrf.mxu0
      %v8135 = vadd.f32 %v7962, %v8134
      %v8136 = vpop.f32.mrf.mxu0
      %v8137 = vadd.f32 %v7962, %v8136
      %8138 = vmatmul.bf16.gmra.mxu0 %v7814
      %v8139 = vpop.f32.mrf.mxu0
      %v8140 = vadd.f32 %v7962, %v8139
      %v8141 = vpop.f32.mrf.mxu0
      %v8142 = vadd.f32 %v7962, %v8141
      %8143 = vmatmul.bf16.gmra.mxu0 %v7815
      %v8144 = vpop.f32.mrf.mxu0
      %v8145 = vadd.f32 %v7962, %v8144
      %v8146 = vpop.f32.mrf.mxu0
      %v8147 = vadd.f32 %v7962, %v8146
      %8148 = vdwg.mxu0
      %8149 = vmatpush.bf16.msra.mxu0 %v8043
      %8150 = vmatpush.bf16.msra.mxu0 %v8042
      %8151 = vmatpush.bf16.msra.mxu0 %v8041
      %8152 = vmatpush.bf16.msra.mxu0 %v8040
      %8153 = vmatpush.bf16.msra.mxu0 %v8039
      %8154 = vmatpush.bf16.msra.mxu0 %v8038
      %8155 = vmatpush.bf16.msra.mxu0 %v8037
      %8156 = vmatpush.bf16.msra.mxu0 %v8036
      %8157 = vmatmul.bf16.gmra.mxu0 %v7896
      %v8158 = vpop.f32.mrf.mxu0
      %v8159 = vadd.f32 %v8070, %v8158
      %v8160 = vpop.f32.mrf.mxu0
      %v8161 = vadd.f32 %v8072, %v8160
      %8162 = vmatmul.bf16.gmra.mxu0 %v7897
      %v8163 = vpop.f32.mrf.mxu0
      %v8164 = vadd.f32 %v8075, %v8163
      %v8165 = vpop.f32.mrf.mxu0
      %v8166 = vadd.f32 %v8077, %v8165
      %8167 = vmatmul.bf16.gmra.mxu0 %v7898
      %v8168 = vpop.f32.mrf.mxu0
      %v8169 = vadd.f32 %v8080, %v8168
      %v8170 = vpop.f32.mrf.mxu0
      %v8171 = vadd.f32 %v8082, %v8170
      %8172 = vmatmul.bf16.gmra.mxu0 %v7899
      %v8173 = vpop.f32.mrf.mxu0
      %v8174 = vadd.f32 %v8085, %v8173
      %v8175 = vpop.f32.mrf.mxu0
      %v8176 = vadd.f32 %v8087, %v8175
      %8177 = vmatmul.bf16.gmra.mxu0 %v7900
      %v8178 = vpop.f32.mrf.mxu0
      %v8179 = vadd.f32 %v8090, %v8178
      %v8180 = vpop.f32.mrf.mxu0
      %v8181 = vadd.f32 %v8092, %v8180
      %8182 = vmatmul.bf16.gmra.mxu0 %v7901
      %v8183 = vpop.f32.mrf.mxu0
      %v8184 = vadd.f32 %v8095, %v8183
      %v8185 = vpop.f32.mrf.mxu0
      %v8186 = vadd.f32 %v8097, %v8185
      %8187 = vmatmul.bf16.gmra.mxu0 %v7902
      %v8188 = vpop.f32.mrf.mxu0
      %v8189 = vadd.f32 %v8100, %v8188
      %v8190 = vpop.f32.mrf.mxu0
      %v8191 = vadd.f32 %v8102, %v8190
      %8192 = vmatmul.bf16.gmra.mxu0 %v7903
      %v8193 = vpop.f32.mrf.mxu0
      %v8194 = vadd.f32 %v8105, %v8193
      %v8195 = vpop.f32.mrf.mxu0
      %v8196 = vadd.f32 %v8107, %v8195
      %8197 = vmatmul.bf16.gmra.mxu0 %v7904
      %v8198 = vpop.f32.mrf.mxu0
      %v8199 = vadd.f32 %v8110, %v8198
      %v8200 = vpop.f32.mrf.mxu0
      %v8201 = vadd.f32 %v8112, %v8200
      %8202 = vmatmul.bf16.gmra.mxu0 %v7905
      %v8203 = vpop.f32.mrf.mxu0
      %v8204 = vadd.f32 %v8115, %v8203
      %v8205 = vpop.f32.mrf.mxu0
      %v8206 = vadd.f32 %v8117, %v8205
      %8207 = vmatmul.bf16.gmra.mxu0 %v7906
      %v8208 = vpop.f32.mrf.mxu0
      %v8209 = vadd.f32 %v8120, %v8208
      %v8210 = vpop.f32.mrf.mxu0
      %v8211 = vadd.f32 %v8122, %v8210
      %8212 = vmatmul.bf16.gmra.mxu0 %v7907
      %v8213 = vpop.f32.mrf.mxu0
      %v8214 = vadd.f32 %v8125, %v8213
      %v8215 = vpop.f32.mrf.mxu0
      %v8216 = vadd.f32 %v8127, %v8215
      %8217 = vmatmul.bf16.gmra.mxu0 %v7908
      %v8218 = vpop.f32.mrf.mxu0
      %v8219 = vadd.f32 %v8130, %v8218
      %v8220 = vpop.f32.mrf.mxu0
      %v8221 = vadd.f32 %v8132, %v8220
      %8222 = vmatmul.bf16.gmra.mxu0 %v7909
      %v8223 = vpop.f32.mrf.mxu0
      %v8224 = vadd.f32 %v8135, %v8223
      %v8225 = vpop.f32.mrf.mxu0
      %v8226 = vadd.f32 %v8137, %v8225
      %8227 = vmatmul.bf16.gmra.mxu0 %v7910
      %v8228 = vpop.f32.mrf.mxu0
      %v8229 = vadd.f32 %v8140, %v8228
      %v8230 = vpop.f32.mrf.mxu0
      %v8231 = vadd.f32 %v8142, %v8230
      %8232 = vmatmul.bf16.gmra.mxu0 %v7911
      %v8233 = vpop.f32.mrf.mxu0
      %v8234 = vadd.f32 %v8145, %v8233
      %v8235 = vpop.f32.mrf.mxu0
      %v8236 = vadd.f32 %v8147, %v8235
      %8237 = vdwg.mxu0
      %p8238 = scmp.lt.s32.totalorder %s18, 3
      // Predicated region
      $region53: #{forward.1} parent=47 // pred_check
        %p8239 = pneg %p8238
      $region54: #{forward.1} parent=47 // pred_check_branch
        %8241 = sbr.rel (%p8239) target = $region56
      $region55: #{forward.1} parent=47 // pred_region
        %v8242 = vmax.f32 %v8159, 0.0
        %v8243 = vmax.f32 %v8161, 0.0
        %v8244 = vmax.f32 %v8164, 0.0
        %v8245 = vmax.f32 %v8166, 0.0
        %v8246 = vmax.f32 %v8169, 0.0
        %v8247 = vmax.f32 %v8171, 0.0
        %v8248 = vmax.f32 %v8174, 0.0
        %v8249 = vmax.f32 %v8176, 0.0
        %v8250 = vmax.f32 %v8179, 0.0
        %v8251 = vmax.f32 %v8181, 0.0
        %v8252 = vmax.f32 %v8184, 0.0
        %v8253 = vmax.f32 %v8186, 0.0
        %v8254 = vmax.f32 %v8189, 0.0
        %v8255 = vmax.f32 %v8191, 0.0
        %v8256 = vmax.f32 %v8194, 0.0
        %v8257 = vmax.f32 %v8196, 0.0
        %v8258 = vmax.f32 %v8199, 0.0
        %v8259 = vmax.f32 %v8201, 0.0
        %v8260 = vmax.f32 %v8204, 0.0
        %v8261 = vmax.f32 %v8206, 0.0
        %v8262 = vmax.f32 %v8209, 0.0
        %v8263 = vmax.f32 %v8211, 0.0
        %v8264 = vmax.f32 %v8214, 0.0
        %v8265 = vmax.f32 %v8216, 0.0
        %v8266 = vmax.f32 %v8219, 0.0
        %v8267 = vmax.f32 %v8221, 0.0
        %v8268 = vmax.f32 %v8224, 0.0
        %v8269 = vmax.f32 %v8226, 0.0
        %v8270 = vmax.f32 %v8229, 0.0
        %v8271 = vmax.f32 %v8231, 0.0
        %v8272 = vmax.f32 %v8234, 0.0
        %v8273 = vmax.f32 %v8236, 0.0
        %v8274 = vld [vmem:[%s354] sm:$0xff]
        %v8275 = vld [vmem:[%s354 + $0x8] sm:$0xff]
        %v8276 = vld [vmem:[%s354 + $0x10] sm:$0xff]
        %v8277 = vld [vmem:[%s354 + $0x18] sm:$0xff]
        %v8278 = vld [vmem:[%s354 + $0x20] sm:$0xff]
        %v8279 = vld [vmem:[%s354 + $0x28] sm:$0xff]
        %v8280 = vld [vmem:[%s354 + $0x30] sm:$0xff]
        %v8281 = vld [vmem:[%s354 + $0x38] sm:$0xff]
        %v8282 = vld [vmem:[%s354 + $0x40] sm:$0xff]
        %v8283 = vld [vmem:[%s354 + $0x48] sm:$0xff]
        %v8284 = vld [vmem:[%s354 + $0x50] sm:$0xff]
        %v8285 = vld [vmem:[%s354 + $0x58] sm:$0xff]
        %v8286 = vld [vmem:[%s354 + $0x60] sm:$0xff]
        %v8287 = vld [vmem:[%s354 + $0x68] sm:$0xff]
        %v8288 = vld [vmem:[%s354 + $0x70] sm:$0xff]
        %v8289 = vld [vmem:[%s354 + $0x78] sm:$0xff]
        %v8290 = vld [vmem:[%s354 + $0x80] sm:$0xff]
        %v8291 = vld [vmem:[%s354 + $0x88] sm:$0xff]
        %v8292 = vld [vmem:[%s354 + $0x90] sm:$0xff]
        %v8293 = vld [vmem:[%s354 + $0x98] sm:$0xff]
        %v8294 = vld [vmem:[%s354 + $0xa0] sm:$0xff]
        %v8295 = vld [vmem:[%s354 + $0xa8] sm:$0xff]
        %v8296 = vld [vmem:[%s354 + $0xb0] sm:$0xff]
        %v8297 = vld [vmem:[%s354 + $0xb8] sm:$0xff]
        %v8298 = vld [vmem:[%s354 + $0xc0] sm:$0xff]
        %v8299 = vld [vmem:[%s354 + $0xc8] sm:$0xff]
        %v8300 = vld [vmem:[%s354 + $0xd0] sm:$0xff]
        %v8301 = vld [vmem:[%s354 + $0xd8] sm:$0xff]
        %v8302 = vld [vmem:[%s354 + $0xe0] sm:$0xff]
        %v8303 = vld [vmem:[%s354 + $0xe8] sm:$0xff]
        %v8304 = vld [vmem:[%s354 + $0xf0] sm:$0xff]
        %v8305 = vld [vmem:[%s354 + $0xf8] sm:$0xff]
        %v8306 = vmul.f32 %v8242, %v8274
        %v8307 = vmul.f32 %v8243, %v8275
        %v8308 = vmul.f32 %v8244, %v8276
        %v8309 = vmul.f32 %v8245, %v8277
        %v8310 = vmul.f32 %v8246, %v8278
        %v8311 = vmul.f32 %v8247, %v8279
        %v8312 = vmul.f32 %v8248, %v8280
        %v8313 = vmul.f32 %v8249, %v8281
        %v8314 = vmul.f32 %v8250, %v8282
        %v8315 = vmul.f32 %v8251, %v8283
        %v8316 = vmul.f32 %v8252, %v8284
        %v8317 = vmul.f32 %v8253, %v8285
        %v8318 = vmul.f32 %v8254, %v8286
        %v8319 = vmul.f32 %v8255, %v8287
        %v8320 = vmul.f32 %v8256, %v8288
        %v8321 = vmul.f32 %v8257, %v8289
        %v8322 = vmul.f32 %v8258, %v8290
        %v8323 = vmul.f32 %v8259, %v8291
        %v8324 = vmul.f32 %v8260, %v8292
        %v8325 = vmul.f32 %v8261, %v8293
        %v8326 = vmul.f32 %v8262, %v8294
        %v8327 = vmul.f32 %v8263, %v8295
        %v8328 = vmul.f32 %v8264, %v8296
        %v8329 = vmul.f32 %v8265, %v8297
        %v8330 = vmul.f32 %v8266, %v8298
        %v8331 = vmul.f32 %v8267, %v8299
        %v8332 = vmul.f32 %v8268, %v8300
        %v8333 = vmul.f32 %v8269, %v8301
        %v8334 = vmul.f32 %v8270, %v8302
        %v8335 = vmul.f32 %v8271, %v8303
        %v8336 = vmul.f32 %v8272, %v8304
        %v8337 = vmul.f32 %v8273, %v8305
        %8338 = vst [vmem:[#allocation2] sm:$0xff] %v8306
        %8339 = vst [vmem:[#allocation2 + $0x8] sm:$0xff] %v8307
        %8340 = vst [vmem:[#allocation2 + $0x10] sm:$0xff] %v8308
        %8341 = vst [vmem:[#allocation2 + $0x18] sm:$0xff] %v8309
        %8342 = vst [vmem:[#allocation2 + $0x20] sm:$0xff] %v8310
        %8343 = vst [vmem:[#allocation2 + $0x28] sm:$0xff] %v8311
        %8344 = vst [vmem:[#allocation2 + $0x30] sm:$0xff] %v8312
        %8345 = vst [vmem:[#allocation2 + $0x38] sm:$0xff] %v8313
        %8346 = vst [vmem:[#allocation2 + $0x40] sm:$0xff] %v8314
        %8347 = vst [vmem:[#allocation2 + $0x48] sm:$0xff] %v8315
        %8348 = vst [vmem:[#allocation2 + $0x50] sm:$0xff] %v8316
        %8349 = vst [vmem:[#allocation2 + $0x58] sm:$0xff] %v8317
        %8350 = vst [vmem:[#allocation2 + $0x60] sm:$0xff] %v8318
        %8351 = vst [vmem:[#allocation2 + $0x68] sm:$0xff] %v8319
        %8352 = vst [vmem:[#allocation2 + $0x70] sm:$0xff] %v8320
        %8353 = vst [vmem:[#allocation2 + $0x78] sm:$0xff] %v8321
        %8354 = vst [vmem:[#allocation2 + $0x80] sm:$0xff] %v8322
        %8355 = vst [vmem:[#allocation2 + $0x88] sm:$0xff] %v8323
        %8356 = vst [vmem:[#allocation2 + $0x90] sm:$0xff] %v8324
        %8357 = vst [vmem:[#allocation2 + $0x98] sm:$0xff] %v8325
        %8358 = vst [vmem:[#allocation2 + $0xa0] sm:$0xff] %v8326
        %8359 = vst [vmem:[#allocation2 + $0xa8] sm:$0xff] %v8327
        %8360 = vst [vmem:[#allocation2 + $0xb0] sm:$0xff] %v8328
        %8361 = vst [vmem:[#allocation2 + $0xb8] sm:$0xff] %v8329
        %8362 = vst [vmem:[#allocation2 + $0xc0] sm:$0xff] %v8330
        %8363 = vst [vmem:[#allocation2 + $0xc8] sm:$0xff] %v8331
        %8364 = vst [vmem:[#allocation2 + $0xd0] sm:$0xff] %v8332
        %8365 = vst [vmem:[#allocation2 + $0xd8] sm:$0xff] %v8333
        %8366 = vst [vmem:[#allocation2 + $0xe0] sm:$0xff] %v8334
        %8367 = vst [vmem:[#allocation2 + $0xe8] sm:$0xff] %v8335
        %8368 = vst [vmem:[#allocation2 + $0xf0] sm:$0xff] %v8336
        %8369 = vst [vmem:[#allocation2 + $0xf8] sm:$0xff] %v8337
        %8370 = vst [vmem:[#allocation2 + $0x100] sm:$0xf] %v8306
      $region56: #{forward.1} parent=47 // pred_fallthru
        _
      %p8371 = scmp.eq.s32.totalorder %s18, 3
      // Predicated region
      $region57: #{forward.1} parent=47 // pred_check
        %p8372 = pneg %p8371
      $region58: #{forward.1} parent=47 // pred_check_branch
        %8374 = sbr.rel (%p8372) target = $region60
      $region59: #{forward.1} parent=47 // pred_region
        %v8375 = vmul.f32 %v8159, 0.5
        %v8376 = vmul.f32 %v8161, 0.5
        %v8377 = vmul.f32 %v8164, 0.5
        %v8378 = vmul.f32 %v8166, 0.5
        %v8379 = vmul.f32 %v8169, 0.5
        %v8380 = vmul.f32 %v8171, 0.5
        %v8381 = vmul.f32 %v8174, 0.5
        %v8382 = vmul.f32 %v8176, 0.5
        %v8383 = vmul.f32 %v8179, 0.5
        %v8384 = vmul.f32 %v8181, 0.5
        %v8385 = vmul.f32 %v8184, 0.5
        %v8386 = vmul.f32 %v8186, 0.5
        %v8387 = vmul.f32 %v8189, 0.5
        %v8388 = vmul.f32 %v8191, 0.5
        %v8389 = vmul.f32 %v8194, 0.5
        %v8390 = vmul.f32 %v8196, 0.5
        %v8391 = vmul.f32 %v8199, 0.5
        %v8392 = vmul.f32 %v8201, 0.5
        %v8393 = vmul.f32 %v8204, 0.5
        %v8394 = vmul.f32 %v8206, 0.5
        %v8395 = vmul.f32 %v8209, 0.5
        %v8396 = vmul.f32 %v8211, 0.5
        %v8397 = vmul.f32 %v8214, 0.5
        %v8398 = vmul.f32 %v8216, 0.5
        %v8399 = vmul.f32 %v8219, 0.5
        %v8400 = vmul.f32 %v8221, 0.5
        %v8401 = vmul.f32 %v8224, 0.5
        %v8402 = vmul.f32 %v8226, 0.5
        %v8403 = vmul.f32 %v8229, 0.5
        %v8404 = vmul.f32 %v8231, 0.5
        %v8405 = vmul.f32 %v8234, 0.5
        %v8406 = vmul.f32 %v8236, 0.5
        %v8407 = vtanh.pop %v8375
        %v8408 = vtanh.pop %v8376
        %v8409 = vtanh.pop %v8377
        %v8410 = vtanh.pop %v8378
        %v8411 = vtanh.pop %v8379
        %v8412 = vtanh.pop %v8380
        %v8413 = vtanh.pop %v8381
        %v8414 = vtanh.pop %v8382
        %v8415 = vtanh.pop %v8383
        %v8416 = vtanh.pop %v8384
        %v8417 = vtanh.pop %v8385
        %v8418 = vtanh.pop %v8386
        %v8419 = vtanh.pop %v8387
        %v8420 = vtanh.pop %v8388
        %v8421 = vtanh.pop %v8389
        %v8422 = vtanh.pop %v8390
        %v8423 = vtanh.pop %v8391
        %v8424 = vtanh.pop %v8392
        %v8425 = vtanh.pop %v8393
        %v8426 = vtanh.pop %v8394
        %v8427 = vtanh.pop %v8395
        %v8428 = vtanh.pop %v8396
        %v8429 = vtanh.pop %v8397
        %v8430 = vtanh.pop %v8398
        %v8431 = vtanh.pop %v8399
        %v8432 = vtanh.pop %v8400
        %v8433 = vtanh.pop %v8401
        %v8434 = vtanh.pop %v8402
        %v8435 = vtanh.pop %v8403
        %v8436 = vtanh.pop %v8404
        %v8437 = vtanh.pop %v8405
        %v8438 = vtanh.pop %v8406
        %v8439 = vmul.f32 %v8407, 0.5
        %v8440 = vmul.f32 %v8408, 0.5
        %v8441 = vmul.f32 %v8409, 0.5
        %v8442 = vmul.f32 %v8410, 0.5
        %v8443 = vmul.f32 %v8411, 0.5
        %v8444 = vmul.f32 %v8412, 0.5
        %v8445 = vmul.f32 %v8413, 0.5
        %v8446 = vmul.f32 %v8414, 0.5
        %v8447 = vmul.f32 %v8415, 0.5
        %v8448 = vmul.f32 %v8416, 0.5
        %v8449 = vmul.f32 %v8417, 0.5
        %v8450 = vmul.f32 %v8418, 0.5
        %v8451 = vmul.f32 %v8419, 0.5
        %v8452 = vmul.f32 %v8420, 0.5
        %v8453 = vmul.f32 %v8421, 0.5
        %v8454 = vmul.f32 %v8422, 0.5
        %v8455 = vmul.f32 %v8423, 0.5
        %v8456 = vmul.f32 %v8424, 0.5
        %v8457 = vmul.f32 %v8425, 0.5
        %v8458 = vmul.f32 %v8426, 0.5
        %v8459 = vmul.f32 %v8427, 0.5
        %v8460 = vmul.f32 %v8428, 0.5
        %v8461 = vmul.f32 %v8429, 0.5
        %v8462 = vmul.f32 %v8430, 0.5
        %v8463 = vmul.f32 %v8431, 0.5
        %v8464 = vmul.f32 %v8432, 0.5
        %v8465 = vmul.f32 %v8433, 0.5
        %v8466 = vmul.f32 %v8434, 0.5
        %v8467 = vmul.f32 %v8435, 0.5
        %v8468 = vmul.f32 %v8436, 0.5
        %v8469 = vmul.f32 %v8437, 0.5
        %v8470 = vmul.f32 %v8438, 0.5
        %v8471 = vadd.f32 %v8439, 0.5
        %v8472 = vadd.f32 %v8440, 0.5
        %v8473 = vadd.f32 %v8441, 0.5
        %v8474 = vadd.f32 %v8442, 0.5
        %v8475 = vadd.f32 %v8443, 0.5
        %v8476 = vadd.f32 %v8444, 0.5
        %v8477 = vadd.f32 %v8445, 0.5
        %v8478 = vadd.f32 %v8446, 0.5
        %v8479 = vadd.f32 %v8447, 0.5
        %v8480 = vadd.f32 %v8448, 0.5
        %v8481 = vadd.f32 %v8449, 0.5
        %v8482 = vadd.f32 %v8450, 0.5
        %v8483 = vadd.f32 %v8451, 0.5
        %v8484 = vadd.f32 %v8452, 0.5
        %v8485 = vadd.f32 %v8453, 0.5
        %v8486 = vadd.f32 %v8454, 0.5
        %v8487 = vadd.f32 %v8455, 0.5
        %v8488 = vadd.f32 %v8456, 0.5
        %v8489 = vadd.f32 %v8457, 0.5
        %v8490 = vadd.f32 %v8458, 0.5
        %v8491 = vadd.f32 %v8459, 0.5
        %v8492 = vadd.f32 %v8460, 0.5
        %v8493 = vadd.f32 %v8461, 0.5
        %v8494 = vadd.f32 %v8462, 0.5
        %v8495 = vadd.f32 %v8463, 0.5
        %v8496 = vadd.f32 %v8464, 0.5
        %v8497 = vadd.f32 %v8465, 0.5
        %v8498 = vadd.f32 %v8466, 0.5
        %v8499 = vadd.f32 %v8467, 0.5
        %v8500 = vadd.f32 %v8468, 0.5
        %v8501 = vadd.f32 %v8469, 0.5
        %v8502 = vadd.f32 %v8470, 0.5
        %8503 = vst [vmem:[%s7] sm:$0xff] %v8471
        %8504 = vst [vmem:[%s7 + $0x8] sm:$0xff] %v8472
        %8505 = vst [vmem:[%s7 + $0x10] sm:$0xff] %v8473
        %8506 = vst [vmem:[%s7 + $0x18] sm:$0xff] %v8474
        %8507 = vst [vmem:[%s7 + $0x20] sm:$0xff] %v8475
        %8508 = vst [vmem:[%s7 + $0x28] sm:$0xff] %v8476
        %8509 = vst [vmem:[%s7 + $0x30] sm:$0xff] %v8477
        %8510 = vst [vmem:[%s7 + $0x38] sm:$0xff] %v8478
        %8511 = vst [vmem:[%s7 + $0x40] sm:$0xff] %v8479
        %8512 = vst [vmem:[%s7 + $0x48] sm:$0xff] %v8480
        %8513 = vst [vmem:[%s7 + $0x50] sm:$0xff] %v8481
        %8514 = vst [vmem:[%s7 + $0x58] sm:$0xff] %v8482
        %8515 = vst [vmem:[%s7 + $0x60] sm:$0xff] %v8483
        %8516 = vst [vmem:[%s7 + $0x68] sm:$0xff] %v8484
        %8517 = vst [vmem:[%s7 + $0x70] sm:$0xff] %v8485
        %8518 = vst [vmem:[%s7 + $0x78] sm:$0xff] %v8486
        %8519 = vst [vmem:[%s7 + $0x80] sm:$0xff] %v8487
        %8520 = vst [vmem:[%s7 + $0x88] sm:$0xff] %v8488
        %8521 = vst [vmem:[%s7 + $0x90] sm:$0xff] %v8489
        %8522 = vst [vmem:[%s7 + $0x98] sm:$0xff] %v8490
        %8523 = vst [vmem:[%s7 + $0xa0] sm:$0xff] %v8491
        %8524 = vst [vmem:[%s7 + $0xa8] sm:$0xff] %v8492
        %8525 = vst [vmem:[%s7 + $0xb0] sm:$0xff] %v8493
        %8526 = vst [vmem:[%s7 + $0xb8] sm:$0xff] %v8494
        %8527 = vst [vmem:[%s7 + $0xc0] sm:$0xff] %v8495
        %8528 = vst [vmem:[%s7 + $0xc8] sm:$0xff] %v8496
        %8529 = vst [vmem:[%s7 + $0xd0] sm:$0xff] %v8497
        %8530 = vst [vmem:[%s7 + $0xd8] sm:$0xff] %v8498
        %8531 = vst [vmem:[%s7 + $0xe0] sm:$0xff] %v8499
        %8532 = vst [vmem:[%s7 + $0xe8] sm:$0xff] %v8500
        %8533 = vst [vmem:[%s7 + $0xf0] sm:$0xff] %v8501
        %8534 = vst [vmem:[%s7 + $0xf8] sm:$0xff] %v8502
      $region60: #{forward.1} parent=47 // pred_fallthru
        _
      // Predicated region
      $region61: #{forward.1} parent=47 // pred_check
        %p8535 = pneg %p208
      $region62: #{forward.1} parent=47 // pred_check_branch
        %8537 = sbr.rel (%p8535) target = $region64
      $region63: #{forward.1} parent=47 // pred_region
        _
      $region64: #{forward.1} parent=47 // pred_fallthru
        _
      // Predicated region
      $region65: #{forward.1} parent=47 // pred_check
        %p8538 = pneg %p208
      $region66: #{forward.1} parent=47 // pred_check_branch
        %8540 = sbr.rel (%p8538) target = $region68
      $region67: #{forward.1} parent=47 // pred_region
        _
      $region68: #{forward.1} parent=47 // pred_fallthru
        _
    $region48: #{forward.1} parent=5 // pred_fallthru
      _
    %p8541 = scmp.le.s32.totalorder 2, %s13
    // Predicated region
    $region69: #{forward.1} parent=5 // pred_check
      %p8542 = pneg %p8541
    $region70: #{forward.1} parent=5 // pred_check_branch
      %8544 = sbr.rel (%p8542) target = $region72
    $region71: #{forward.1} parent=5 // pred_region
      %s8545 = ssub.s32 %s13, 2
    $region72: #{forward.1} parent=5 // pred_fallthru
      _
  $region6: #{forward.1} parent=0 // loop_footer
    %s17 = sadd.s32 1, %s13
  $region7: #{forward.1} parent=0 // loop_footer_branch
    %12 = sbr.rel target = $region3
  $region8: #{forward.1} parent=0 // loop_exit
    _

</llo_original>
